<compile_context>
chip_gen: v5e
topology: v5e:2x2
jax: 0.10.0
libtpu: 0.0.40
codegen_flags: <defaults>
</compile_context>

<pallas_src>
import functools

import jax
import jax.numpy as jnp
from jax.experimental import pallas as pl
from jax.experimental.pallas import tpu as pltpu

_MIB = 1024 * 1024


def _round_up(x, m):
    return (x + m - 1) // m * m


# ----------------------------------------------------------------------------
# Kernels
# ----------------------------------------------------------------------------
def _mm_bias_act_kernel(p_ref, w_ref, b_ref, o_ref, *, act):
    """One M-tile: bf16 matmul (f32 accumulate) + bias + activation."""
    y = jnp.dot(p_ref[...], w_ref[...], preferred_element_type=jnp.float32)
    y = y + b_ref[...]
    if act == "leaky":
        y = jnp.where(y > 0, y, 0.2 * y)
    else:  # sigmoid: the divide goes to the EUP slot via approx reciprocal
        y = pl.reciprocal(1.0 + jnp.exp(-y), approx=True)
        y = jnp.minimum(y, 1.0)
    o_ref[...] = y.astype(o_ref.dtype)


def _conv_taps_matmul(x_ref, w_ref, *, taps, hh, oh, ow, owp, tm):
    """Implicit GEMM over kernel taps.

    x_ref: (tn, 4*hh, wh_pad, cin) factor-2 space-to-depth block of the padded
           NHWC input (phase-major along axis 1).
    w_ref: (n_taps, cin, cp) weights, tap-major.
    Returns the f32 conv output (tm, cp), tm = tn*oh*owp, with the lane-padded
    extra output columns (ox >= ow) masked to zero so they never pollute the
    BatchNorm statistics.
    """
    cin = x_ref.shape[-1]
    acc = None
    for t, (i, j) in enumerate(taps):
        phase = (i % 2) * 2 + (j % 2)
        r0 = phase * hh + i // 2
        c0 = j // 2
        slab = x_ref[:, r0:r0 + oh, c0:c0 + owp, :]          # (tn, oh, owp, cin)
        lhs = slab.reshape(tm, cin)                          # layout no-op (owp % 8 == 0)
        part = jnp.dot(lhs, w_ref[t], preferred_element_type=jnp.float32)
        acc = part if acc is None else acc + part
    if owp != ow:
        ox = jax.lax.broadcasted_iota(jnp.int32, (tm // owp, owp, 1), 1)
        acc = jnp.where((ox < ow).reshape(tm, 1), acc, 0.0)
    return acc


def _accum_channel_stats(acc, sum_ref, ssq_ref):
    """Accumulate per-channel sum / sum-of-squares as (8, Cp) per-sublane
    partials (pure elementwise vreg adds); the 8-row reduce happens once in
    the finalize / normalize step."""
    tm, cp = acc.shape
    if tm % 8 == 0:
        part = acc.reshape(tm // 8, 8, cp)
        sum_ref[...] += jnp.sum(part, axis=0)
        ssq_ref[...] += jnp.sum(part * part, axis=0)
    else:
        sum_ref[0:1, :] += jnp.sum(acc, axis=0, keepdims=True)
        ssq_ref[0:1, :] += jnp.sum(acc * acc, axis=0, keepdims=True)


def _bn_scale_shift(sum_ref, ssq_ref, g_ref, b_ref, *, m_true, eps):
    inv_m = 1.0 / float(m_true)
    s = jnp.sum(sum_ref[...], axis=0, keepdims=True)          # (1, Cp)
    ss = jnp.sum(ssq_ref[...], axis=0, keepdims=True)
    mean = s * inv_m
    var = jnp.maximum(ss * inv_m - mean * mean, 0.0)          # biased, train-mode
    scale = jax.lax.rsqrt(var + eps) * g_ref[...]
    shift = b_ref[...] - mean * scale
    return scale, shift


def _fused_conv_bn_lrelu_kernel(x_ref, w_ref, g_ref, b_ref, o_ref,
                                y_sc, sum_sc, ssq_sc,
                                *, taps, hh, oh, ow, owp, tm, n_tiles,
                                m_true, eps):
    """Fused implicit-GEMM conv + train-mode BatchNorm + LeakyReLU(0.2).

    Grid iterates over batch tiles ("arbitrary").  Raw f32 conv outputs live in
    the y_sc VMEM scratch; the (M_pad, Cp) output block is grid-resident and is
    written once, on the last grid step, after stats are complete.
    """
    b = pl.program_id(0)

    @pl.when(b == 0)
    def _():
        sum_sc[...] = jnp.zeros_like(sum_sc)
        ssq_sc[...] = jnp.zeros_like(ssq_sc)

    acc = _conv_taps_matmul(x_ref, w_ref, taps=taps, hh=hh, oh=oh,
                            ow=ow, owp=owp, tm=tm)
    off = pl.multiple_of(b * tm, tm)
    y_sc[pl.ds(off, tm), :] = acc
    _accum_channel_stats(acc, sum_sc, ssq_sc)

    @pl.when(b == n_tiles - 1)
    def _():
        scale, shift = _bn_scale_shift(sum_sc, ssq_sc, g_ref, b_ref,
                                       m_true=m_true, eps=eps)

        def norm_tile(t, carry):
            toff = pl.multiple_of(t * tm, tm)
            y = y_sc[pl.ds(toff, tm), :] * scale + shift
            y = jnp.where(y > 0, y, 0.2 * y)
            o_ref[pl.ds(toff, tm), :] = y.astype(o_ref.dtype)
            return carry

        jax.lax.fori_loop(0, n_tiles, norm_tile, 0)


def _conv_stats_kernel(x_ref, w_ref, y_ref, sum_ref, ssq_ref,
                       *, taps, hh, oh, ow, owp, tm):
    """Two-pass fallback, pass 1: implicit-GEMM conv (bf16 result to HBM) +
    per-channel partial stats in grid-resident (8, Cp) outputs."""
    @pl.when(pl.program_id(0) == 0)
    def _():
        sum_ref[...] = jnp.zeros_like(sum_ref)
        ssq_ref[...] = jnp.zeros_like(ssq_ref)

    acc = _conv_taps_matmul(x_ref, w_ref, taps=taps, hh=hh, oh=oh,
                            ow=ow, owp=owp, tm=tm)
    y_ref[...] = acc.astype(y_ref.dtype)
    _accum_channel_stats(acc, sum_ref, ssq_ref)


def _bn_act_kernel(y_ref, sum_ref, ssq_ref, g_ref, b_ref, o_ref, *, m_true, eps):
    """Two-pass fallback, pass 2: normalize + gamma/beta + LeakyReLU(0.2)."""
    scale, shift = _bn_scale_shift(sum_ref, ssq_ref, g_ref, b_ref,
                                   m_true=m_true, eps=eps)
    y = y_ref[...].astype(jnp.float32) * scale + shift
    y = jnp.where(y > 0, y, 0.2 * y)
    o_ref[...] = y.astype(o_ref.dtype)


# ----------------------------------------------------------------------------
# Host-side glue
# ----------------------------------------------------------------------------
def _space_to_depth2(x, pad):
    """Zero-pad spatially and re-lay out as factor-2 space-to-depth,
    phase-major:  xs[n, (2*dy+dx)*Hh + y, x, c] == x_padded[n, 2*y+dy, 2*x+dx, c].
    Returns (xs of shape (N, 4*Hh, Wh, C), Hh, Wh)."""
    N, H, W, C = x.shape
    xp = jnp.pad(x, ((0, 0), (pad, pad), (pad, pad), (0, 0)))
    Hp, Wp = H + 2 * pad, W + 2 * pad
    assert Hp % 2 == 0 and Wp % 2 == 0
    Hh, Wh = Hp // 2, Wp // 2
    xs = xp.reshape(N, Hh, 2, Wh, 2, C).transpose(0, 2, 4, 1, 3, 5)
    return xs.reshape(N, 4 * Hh, Wh, C), Hh, Wh


def _im2col_nhwc(x, kh, kw, stride, pad):
    """x: (N, H, W, C) -> (N*OH*OW, kh*kw*C).  Only used for conv1 (K=16)."""
    N, H, W, C = x.shape
    xp = jnp.pad(x, ((0, 0), (pad, pad), (pad, pad), (0, 0)))
    OH = (H + 2 * pad - kh) // stride + 1
    OW = (W + 2 * pad - kw) // stride + 1
    cols = []
    for i in range(kh):
        for j in range(kw):
            cols.append(xp[:, i:i + stride * OH:stride,
                           j:j + stride * OW:stride, :])
    cols = jnp.stack(cols, axis=3)                            # (N,OH,OW,kh*kw,C)
    return cols.reshape(N * OH * OW, kh * kw * C), OH, OW


def _choose_tm(m, k, *, lhs_bytes=4 * _MIB, cap=4096):
    """K-adaptive M tile: target ~lhs_bytes for the (TM, K) bf16 LHS tile."""
    tm = max(128, min(cap, (lhs_bytes // max(2 * k, 1)) // 128 * 128))
    return min(tm, _round_up(m, 128))


def _vmem_limit(estimate_bytes):
    # >= the v6e/v7x scoped default (32 MiB), < v7x physical (64 MiB).
    return int(max(32 * _MIB, min(56 * _MIB, estimate_bytes + 16 * _MIB)))


def conv_plain_layer(x, weight, bias, *, stride, pad, act,
                     out_dtype=jnp.bfloat16):
    """Conv2d + bias + activation as a tiled matmul.
    conv1: small-K (=16) im2col; conv4 (full-image kernel): plain matmul on the
    flattened input, no im2col needed."""
    Cout, Cin, kh, kw = weight.shape
    N, H, W, _ = x.shape
    x = x.astype(jnp.bfloat16)
    if pad == 0 and kh == H and kw == W:                      # conv4: 1x1 output
        OH = OW = 1
        p = x.reshape(N, kh * kw * Cin)
    else:
        p, OH, OW = _im2col_nhwc(x, kh, kw, stride, pad)
    p = p.astype(jnp.bfloat16)
    M, K = p.shape
    Cp = _round_up(Cout, 128)                                 # lane-dense output

    w2 = weight.transpose(2, 3, 1, 0).reshape(K, Cout)        # (kh,kw,Cin)-major K
    w2 = jnp.pad(w2, ((0, 0), (0, Cp - Cout))).astype(jnp.bfloat16)
    b2 = jnp.pad(bias.astype(jnp.float32).reshape(1, Cout),
                 ((0, 0), (0, Cp - Cout)))

    TM = _choose_tm(M, K)
    M_pad = _round_up(M, TM)
    if M_pad > M:
        p = jnp.pad(p, ((0, M_pad - M), (0, 0)))
    grid_m = M_pad // TM

    est = 2 * TM * K * 2 + 2 * K * Cp * 2 + 2 * TM * Cp * 4 + 2 * _MIB
    out_bytes = M_pad * Cp * jnp.dtype(out_dtype).itemsize
    y = pl.pallas_call(
        functools.partial(_mm_bias_act_kernel, act=act),
        out_shape=jax.ShapeDtypeStruct((M_pad, Cp), out_dtype),
        grid=(grid_m,),
        in_specs=[pl.BlockSpec((TM, K), lambda i: (i, 0)),
                  pl.BlockSpec((K, Cp), lambda i: (0, 0)),
                  pl.BlockSpec((1, Cp), lambda i: (0, 0))],
        out_specs=pl.BlockSpec((TM, Cp), lambda i: (i, 0)),
        compiler_params=pltpu.CompilerParams(
            dimension_semantics=("parallel",),
            vmem_limit_bytes=_vmem_limit(est)),
        cost_estimate=pl.CostEstimate(
            flops=2 * M_pad * K * Cp,
            transcendentals=M_pad * Cp if act == "sigmoid" else 0,
            bytes_accessed=p.size * 2 + w2.size * 2 + b2.size * 4 + out_bytes),
    )(p, w2, b2)
    return y[:M, :Cout].reshape(N, OH, OW, Cout)


def conv_bn_layer(x, weight, gamma, beta, *, pad, out_dtype=jnp.bfloat16,
                  eps=1e-5, fused_budget_bytes=28 * _MIB, force_two_pass=False):
    """Stride-2 Conv2d + train-mode BatchNorm2d + LeakyReLU(0.2).

    Implicit GEMM over a factor-2 space-to-depth slab of the padded input
    (no im2col buffer in HBM).  The conv bias is folded away (it cancels
    exactly under train-mode BN).  Fused single-call path when the working
    set fits VMEM; two-pass fallback otherwise (e.g. v7x at large batch).
    """
    Cout, Cin, kh, kw = weight.shape
    N, H, W, _ = x.shape
    OH = (H + 2 * pad - kh) // 2 + 1
    OW = (W + 2 * pad - kw) // 2 + 1
    OWp = _round_up(OW, 8)                 # keep the merged row dim 8-aligned
    Cp = _round_up(Cout, 128)

    xs, Hh, Wh = _space_to_depth2(x.astype(jnp.bfloat16), pad)
    Wh_pad = OWp + (kw - 1) // 2
    if Wh_pad > Wh:
        xs = jnp.pad(xs, ((0, 0), (0, 0), (0, Wh_pad - Wh), (0, 0)))

    n_taps = kh * kw
    taps = tuple((i, j) for i in range(kh) for j in range(kw))
    wt = weight.transpose(2, 3, 1, 0).reshape(n_taps, Cin, Cout)
    wt = jnp.pad(wt, ((0, 0), (0, 0), (0, Cp - Cout))).astype(jnp.bfloat16)
    g2 = jnp.pad(gamma.astype(jnp.float32).reshape(1, Cout),
                 ((0, 0), (0, Cp - Cout)))
    b2 = jnp.pad(beta.astype(jnp.float32).reshape(1, Cout),
                 ((0, 0), (0, Cp - Cout)))

    # Batch tiling: target ~2 MiB for the (TN, 4*Hh, Wh_pad, Cin) input block,
    # preferring a TN that divides N so no batch padding is needed.
    per_sample = 4 * Hh * _round_up(Wh_pad, 8) * max(_round_up(Cin, 128), 128) * 2
    TN = max(1, min(N, (2 * _MIB) // max(per_sample, 1)))
    for t in range(TN, 0, -1):
        if N % t == 0:
            TN = t
            break
    Npad = _round_up(N, TN)
    if Npad > N:
        xs = jnp.pad(xs, ((0, Npad - N), (0, 0), (0, 0), (0, 0)))
    grid_b = Npad // TN
    TMy = TN * OH * OWp
    M_pad = Npad * OH * OWp
    m_true = N * OH * OW                   # rows that actually feed the stats

    x_spec = pl.BlockSpec((TN, 4 * Hh, Wh_pad, Cin), lambda b: (b, 0, 0, 0))
    w_spec = pl.BlockSpec((n_taps, Cin, Cp), lambda b: (0, 0, 0))
    vec_spec = pl.BlockSpec((1, Cp), lambda b: (0, 0))
    stat_spec = pl.BlockSpec((8, Cp), lambda b: (0, 0))
    y_tile_spec = pl.BlockSpec((TMy, Cp), lambda b: (b, 0))

    x_blk_bytes = TN * per_sample
    w_bytes = n_taps * _round_up(Cin, 8) * Cp * 2
    flops = 2 * M_pad * (n_taps * Cin) * Cp

    fused_bytes = (M_pad * Cp * 4                              # f32 y scratch
                   + M_pad * Cp * 2                            # resident output
                   + 2 * x_blk_bytes + 2 * w_bytes
                   + 4 * TMy * Cp * 4                          # in-flight temps
                   + 2 * _MIB)
    use_fused = (not force_two_pass) and fused_bytes <= fused_budget_bytes

    if use_fused:
        kern = functools.partial(
            _fused_conv_bn_lrelu_kernel, taps=taps, hh=Hh, oh=OH, ow=OW,
            owp=OWp, tm=TMy, n_tiles=grid_b, m_true=m_true, eps=eps)
        y = pl.pallas_call(
            kern,
            out_shape=jax.ShapeDtypeStruct((M_pad, Cp), out_dtype),
            grid=(grid_b,),
            in_specs=[x_spec, w_spec, vec_spec, vec_spec],
            out_specs=pl.BlockSpec((M_pad, Cp), lambda b: (0, 0)),
            scratch_shapes=[pltpu.VMEM((M_pad, Cp), jnp.float32),
                            pltpu.VMEM((8, Cp), jnp.float32),
                            pltpu.VMEM((8, Cp), jnp.float32)],
            compiler_params=pltpu.CompilerParams(
                dimension_semantics=("arbitrary",),
                vmem_limit_bytes=_vmem_limit(fused_bytes)),
            cost_estimate=pl.CostEstimate(
                flops=flops, transcendentals=Cp,
                bytes_accessed=xs.size * 2 + wt.size * 2
                + (g2.size + b2.size) * 4 + M_pad * Cp * 2),
        )(xs, wt, g2, b2)
    else:
        # Pass 1: implicit-GEMM conv + per-channel partial stats.
        pass1_bytes = 2 * x_blk_bytes + 2 * w_bytes + 4 * TMy * Cp * 4 + 2 * _MIB
        kern1 = functools.partial(_conv_stats_kernel, taps=taps, hh=Hh,
                                  oh=OH, ow=OW, owp=OWp, tm=TMy)
        y_raw, psum, pssq = pl.pallas_call(
            kern1,
            out_shape=(jax.ShapeDtypeStruct((M_pad, Cp), jnp.bfloat16),
                       jax.ShapeDtypeStruct((8, Cp), jnp.float32),
                       jax.ShapeDtypeStruct((8, Cp), jnp.float32)),
            grid=(grid_b,),
            in_specs=[x_spec, w_spec],
            out_specs=(y_tile_spec, stat_spec, stat_spec),
            compiler_params=pltpu.CompilerParams(
                dimension_semantics=("arbitrary",),
                vmem_limit_bytes=_vmem_limit(pass1_bytes)),
            cost_estimate=pl.CostEstimate(
                flops=flops, transcendentals=0,
                bytes_accessed=xs.size * 2 + wt.size * 2
                + M_pad * Cp * 2 + 2 * 8 * Cp * 4),
        )(xs, wt)
        # Pass 2: normalize + gamma/beta + LeakyReLU.
        pass2_bytes = 4 * TMy * Cp * 4 + 2 * _MIB
        kern2 = functools.partial(_bn_act_kernel, m_true=m_true, eps=eps)
        y = pl.pallas_call(
            kern2,
            out_shape=jax.ShapeDtypeStruct((M_pad, Cp), out_dtype),
            grid=(grid_b,),
            in_specs=[y_tile_spec, stat_spec, stat_spec, vec_spec, vec_spec],
            out_specs=y_tile_spec,
            compiler_params=pltpu.CompilerParams(
                dimension_semantics=("parallel",),
                vmem_limit_bytes=_vmem_limit(pass2_bytes)),
            cost_estimate=pl.CostEstimate(
                flops=5 * M_pad * Cp, transcendentals=Cp,
                bytes_accessed=2 * M_pad * Cp * 2 + (2 * 8 + 2) * Cp * 4),
        )(y_raw, psum, pssq, g2, b2)

    y = y.reshape(Npad, OH, OWp, Cp)[:N, :, :OW, :Cout]
    return y


def init_params(key, d=16):
    """Matches weight_init(0.0, 0.02): N(0, 0.02) conv weights, zero conv
    biases; BatchNorm gamma=1 / beta=0 (untouched by normal_init)."""
    ks = jax.random.split(key, 4)
    std = 0.02
    return {
        "conv1_w": std * jax.random.normal(ks[0], (d, 1, 4, 4), jnp.float32),
        "conv1_b": jnp.zeros((d,), jnp.float32),
        "conv2_w": std * jax.random.normal(ks[1], (2 * d, d, 4, 4), jnp.float32),
        "conv2_b": jnp.zeros((2 * d,), jnp.float32),
        "bn2_g": jnp.ones((2 * d,), jnp.float32),
        "bn2_b": jnp.zeros((2 * d,), jnp.float32),
        "conv3_w": std * jax.random.normal(ks[2], (4 * d, 2 * d, 3, 3), jnp.float32),
        "conv3_b": jnp.zeros((4 * d,), jnp.float32),
        "bn3_g": jnp.ones((4 * d,), jnp.float32),
        "bn3_b": jnp.zeros((4 * d,), jnp.float32),
        "conv4_w": std * jax.random.normal(ks[3], (1, 4 * d, 4, 4), jnp.float32),
        "conv4_b": jnp.zeros((1,), jnp.float32),
    }


def dc_discriminator(params, x, *, force_two_pass_bn=False):
    """Forward pass.  x: (N, 1, 32, 32) NCHW f32 -> (N, 1, 1, 1) f32."""
    h = x.transpose(0, 2, 3, 1).astype(jnp.bfloat16)          # NHWC, bf16
    # conv1 + LeakyReLU(0.2)             : 32 -> 16  (im2col, K=16, big M tile)
    h = conv_plain_layer(h, params["conv1_w"], params["conv1_b"],
                         stride=2, pad=1, act="leaky")
    # conv2 + BN(train) + LeakyReLU(0.2) : 16 -> 8   (fused implicit GEMM)
    h = conv_bn_layer(h, params["conv2_w"], params["bn2_g"], params["bn2_b"],
                      pad=1, force_two_pass=force_two_pass_bn)
    # conv3 + BN(train) + LeakyReLU(0.2) : 8 -> 4    (fused implicit GEMM)
    h = conv_bn_layer(h, params["conv3_w"], params["bn3_g"], params["bn3_b"],
                      pad=1, force_two_pass=force_two_pass_bn)
    # conv4 + sigmoid                    : 4 -> 1    (plain matmul, no im2col)
    h = conv_plain_layer(h, params["conv4_w"], params["conv4_b"],
                         stride=1, pad=0, act="sigmoid", out_dtype=jnp.float32)
    return h.transpose(0, 3, 1, 2)                            # (N, 1, 1, 1)


# ----------------------------------------------------------------------------
# Pure-JAX reference (f32) for a correctness check.
# ----------------------------------------------------------------------------
def _ref_forward(params, x):
    def conv(v, w, b, stride, pad):
        y = jax.lax.conv_general_dilated(
            v, w, (stride, stride), [(pad, pad), (pad, pad)],
            dimension_numbers=("NCHW", "OIHW", "NCHW"))
        return y + b.reshape(1, -1, 1, 1)

    def bn(y, g, be):
        mean = jnp.mean(y, axis=(0, 2, 3), keepdims=True)
        var = jnp.mean(jnp.square(y - mean), axis=(0, 2, 3), keepdims=True)
        return ((y - mean) * jax.lax.rsqrt(var + 1e-5)
                * g.reshape(1, -1, 1, 1) + be.reshape(1, -1, 1, 1))

    lrelu = lambda v: jnp.where(v > 0, v, 0.2 * v)
    x = lrelu(conv(x, params["conv1_w"], params["conv1_b"], 2, 1))
    x = lrelu(bn(conv(x, params["conv2_w"], params["conv2_b"], 2, 1),
                 params["bn2_g"], params["bn2_b"]))
    x = lrelu(bn(conv(x, params["conv3_w"], params["conv3_b"], 2, 1),
                 params["bn3_g"], params["bn3_b"]))
    x = jax.nn.sigmoid(conv(x, params["conv4_w"], params["conv4_b"], 1, 0))
    return x


if __name__ == "__main__":
    key = jax.random.PRNGKey(0)
    pkey, xkey = jax.random.split(key)

    d = 16           # small d (module default is 128); shapes scale identically
    batch = 2
    params = init_params(pkey, d=d)
    x = jax.random.normal(xkey, (batch, 1, 32, 32), jnp.float32)  # MNIST @ 32x32

    out = jax.block_until_ready(jax.jit(dc_discriminator)(params, x))
    assert out.shape == (batch, 1, 1, 1), out.shape

    ref = _ref_forward(params, x)
    err = float(jnp.max(jnp.abs(out - ref)))
    assert err < 5e-2, f"max abs err vs f32 reference: {err}"   # bf16 MXU inputs
    assert bool(jnp.all(jnp.isfinite(out)))
    assert bool(jnp.all((out >= 0.0) & (out <= 1.0 + 1e-3))), "sigmoid range"

    # Also exercise the two-pass BN fallback (used when the fused working set
    # would not fit VMEM, e.g. on v7x at large batch) against the same ref.
    fwd_fb = jax.jit(functools.partial(dc_discriminator, force_two_pass_bn=True))
    out_fb = jax.block_until_ready(fwd_fb(params, x))
    err_fb = float(jnp.max(jnp.abs(out_fb - ref)))
    assert err_fb < 5e-2, f"fallback max abs err vs f32 reference: {err_fb}"

    print("KERNEL_OK")
</pallas_src>

<mosaic_0001>
module attributes {stable_mosaic.version = 11 : i64} {
  func.func @_mm_bias_act_kernel(%arg0: i32, %arg1: memref<512x16xbf16, #tpu.memory_space<vmem>>, %arg2: memref<16x128xbf16, #tpu.memory_space<vmem>>, %arg3: memref<1x128xf32, #tpu.memory_space<vmem>>, %arg4: memref<512x128xbf16, #tpu.memory_space<vmem>>) attributes {dimension_semantics = [#tpu.dimension_semantics<parallel>], iteration_bounds = array<i64: 1>, scalar_prefetch = 0 : i64, scratch_operands = 0 : i64, tpu.core_type = #tpu.core_type<tc>, window_params = [{transform_indices = @transform_0, window_bounds = array<i64: 512, 16>}, {pipeline_mode = #tpu.pipeline_mode<synchronous>, transform_indices = @transform_1, window_bounds = array<i64: 16, 128>}, {pipeline_mode = #tpu.pipeline_mode<synchronous>, transform_indices = @transform_2, window_bounds = array<i64: 1, 128>}, {transform_indices = @transform_3, window_bounds = array<i64: 512, 128>}]} {
    %c0 = arith.constant 0 : index
    %c0_0 = arith.constant 0 : index
    %0 = vector.load %arg1[%c0, %c0_0] : memref<512x16xbf16, #tpu.memory_space<vmem>>, vector<512x16xbf16>
    %c0_1 = arith.constant 0 : index
    %c0_2 = arith.constant 0 : index
    %1 = vector.load %arg2[%c0_1, %c0_2] : memref<16x128xbf16, #tpu.memory_space<vmem>>, vector<16x128xbf16>
    %cst = arith.constant dense<0.000000e+00> : vector<512x128xf32>
    %2 = tpu.matmul %0, %1, %cst {dimension_numbers = #tpu.dot_dimension_numbers<[1], [0], [0], [1], [0, 0, 1, 1], [], []>} : vector<512x16xbf16>, vector<16x128xbf16>, vector<512x128xf32> -> vector<512x128xf32>
    %c0_3 = arith.constant 0 : index
    %c0_4 = arith.constant 0 : index
    %3 = vector.load %arg3[%c0_3, %c0_4] : memref<1x128xf32, #tpu.memory_space<vmem>>, vector<1x128xf32>
    %4 = vector.broadcast %3 : vector<1x128xf32> to vector<512x128xf32>
    %5 = arith.addf %2, %4 : vector<512x128xf32>
    %cst_5 = arith.constant 0.000000e+00 : f32
    %6 = vector.broadcast %cst_5 : f32 to vector<512x128xf32>
    %7 = arith.cmpf ogt, %5, %6 : vector<512x128xf32>
    %cst_6 = arith.constant 2.000000e-01 : f32
    %8 = vector.broadcast %cst_6 : f32 to vector<512x128xf32>
    %9 = arith.mulf %8, %5 : vector<512x128xf32>
    %10 = arith.select %7, %5, %9 : vector<512x128xi1>, vector<512x128xf32>
    %11 = arith.truncf %10 : vector<512x128xf32> to vector<512x128xbf16>
    %c0_7 = arith.constant 0 : index
    %c0_8 = arith.constant 0 : index
    %12 = vector.load %arg4[%c0_7, %c0_8] : memref<512x128xbf16, #tpu.memory_space<vmem>>, vector<512x128xbf16>
    tpu.vector_store %arg4[%c0_7, %c0_8], %11 {strides = array<i32>} : memref<512x128xbf16, #tpu.memory_space<vmem>>, vector<512x128xbf16>,
    return
  }
  func.func @transform_0(%arg0: i32) -> (i32, i32) {
    %c0_i32 = arith.constant 0 : i32
    %c0_i32_0 = arith.constant 0 : i32
    return %arg0, %c0_i32 : i32, i32
  }
  func.func @transform_1(%arg0: i32) -> (i32, i32) {
    %c0_i32 = arith.constant 0 : i32
    %c0_i32_0 = arith.constant 0 : i32
    %c0_i32_1 = arith.constant 0 : i32
    return %c0_i32, %c0_i32_0 : i32, i32
  }
  func.func @transform_2(%arg0: i32) -> (i32, i32) {
    %c0_i32 = arith.constant 0 : i32
    %c0_i32_0 = arith.constant 0 : i32
    %c0_i32_1 = arith.constant 0 : i32
    return %c0_i32, %c0_i32_0 : i32, i32
  }
  func.func @transform_3(%arg0: i32) -> (i32, i32) {
    %c0_i32 = arith.constant 0 : i32
    %c0_i32_0 = arith.constant 0 : i32
    return %arg0, %c0_i32 : i32, i32
  }
}

module attributes {stable_mosaic.version = 11 : i64} {
  func.func @_fused_conv_bn_lrelu_kernel(%arg0: i32, %arg1: memref<2x36x9x16xbf16, #tpu.memory_space<vmem>>, %arg2: memref<16x16x128xbf16, #tpu.memory_space<vmem>>, %arg3: memref<1x128xf32, #tpu.memory_space<vmem>>, %arg4: memref<1x128xf32, #tpu.memory_space<vmem>>, %arg5: memref<128x128xbf16, #tpu.memory_space<vmem>>, %arg6: memref<128x128xf32, #tpu.memory_space<vmem>>, %arg7: memref<8x128xf32, #tpu.memory_space<vmem>>, %arg8: memref<8x128xf32, #tpu.memory_space<vmem>>) attributes {dimension_semantics = [#tpu.dimension_semantics<arbitrary>], iteration_bounds = array<i64: 1>, scalar_prefetch = 0 : i64, scratch_operands = 3 : i64, tpu.core_type = #tpu.core_type<tc>, window_params = [{transform_indices = @transform_0, window_bounds = array<i64: 2, 36, 9, 16>}, {pipeline_mode = #tpu.pipeline_mode<synchronous>, transform_indices = @transform_1, window_bounds = array<i64: 16, 16, 128>}, {pipeline_mode = #tpu.pipeline_mode<synchronous>, transform_indices = @transform_2, window_bounds = array<i64: 1, 128>}, {pipeline_mode = #tpu.pipeline_mode<synchronous>, transform_indices = @transform_3, window_bounds = array<i64: 1, 128>}, {pipeline_mode = #tpu.pipeline_mode<synchronous>, transform_indices = @transform_4, window_bounds = array<i64: 128, 128>}]} {
    %c0_i32 = arith.constant 0 : i32
    %0 = arith.cmpi eq, %arg0, %c0_i32 : i32
    %1 = arith.extui %0 : i1 to i32
    %c0_i32_0 = arith.constant 0 : i32
    %2 = arith.cmpi ne, %1, %c0_i32_0 : i32
    scf.if %2 {
      %cst_121 = arith.constant 0.000000e+00 : f32
      %115 = vector.broadcast %cst_121 : f32 to vector<8x128xf32>
      %c0_122 = arith.constant 0 : index
      %c0_123 = arith.constant 0 : index
      %116 = vector.load %arg7[%c0_122, %c0_123] : memref<8x128xf32, #tpu.memory_space<vmem>>, vector<8x128xf32>
      tpu.vector_store %arg7[%c0_122, %c0_123], %115 {strides = array<i32>} : memref<8x128xf32, #tpu.memory_space<vmem>>, vector<8x128xf32>,
      %cst_124 = arith.constant 0.000000e+00 : f32
      %117 = vector.broadcast %cst_124 : f32 to vector<8x128xf32>
      %c0_125 = arith.constant 0 : index
      %c0_126 = arith.constant 0 : index
      %118 = vector.load %arg8[%c0_125, %c0_126] : memref<8x128xf32, #tpu.memory_space<vmem>>, vector<8x128xf32>
      tpu.vector_store %arg8[%c0_125, %c0_126], %117 {strides = array<i32>} : memref<8x128xf32, #tpu.memory_space<vmem>>, vector<8x128xf32>,
    } else {
    }
    %c0 = arith.constant 0 : index
    %c0_1 = arith.constant 0 : index
    %c0_2 = arith.constant 0 : index
    %c0_3 = arith.constant 0 : index
    %3 = vector.load %arg1[%c0, %c0_1, %c0_2, %c0_3] : memref<2x36x9x16xbf16, #tpu.memory_space<vmem>>, vector<2x8x8x16xbf16>
    %4 = vector.shape_cast %3 : vector<2x8x8x16xbf16> to vector<128x16xbf16>
    %c0_4 = arith.constant 0 : index
    %c0_5 = arith.constant 0 : index
    %c0_6 = arith.constant 0 : index
    %5 = vector.load %arg2[%c0_4, %c0_5, %c0_6] : memref<16x16x128xbf16, #tpu.memory_space<vmem>>, vector<1x16x128xbf16>
    %6 = vector.shape_cast %5 : vector<1x16x128xbf16> to vector<16x128xbf16>
    %cst = arith.constant dense<0.000000e+00> : vector<128x128xf32>
    %7 = tpu.matmul %4, %6, %cst {dimension_numbers = #tpu.dot_dimension_numbers<[1], [0], [0], [1], [0, 0, 1, 1], [], []>} : vector<128x16xbf16>, vector<16x128xbf16>, vector<128x128xf32> -> vector<128x128xf32>
    %c0_7 = arith.constant 0 : index
    %c9 = arith.constant 9 : index
    %c0_8 = arith.constant 0 : index
    %c0_9 = arith.constant 0 : index
    %8 = vector.load %arg1[%c0_7, %c9, %c0_8, %c0_9] : memref<2x36x9x16xbf16, #tpu.memory_space<vmem>>, vector<2x8x8x16xbf16>
    %9 = vector.shape_cast %8 : vector<2x8x8x16xbf16> to vector<128x16xbf16>
    %c1 = arith.constant 1 : index
    %c0_10 = arith.constant 0 : index
    %c0_11 = arith.constant 0 : index
    %10 = vector.load %arg2[%c1, %c0_10, %c0_11] : memref<16x16x128xbf16, #tpu.memory_space<vmem>>, vector<1x16x128xbf16>
    %11 = vector.shape_cast %10 : vector<1x16x128xbf16> to vector<16x128xbf16>
    %cst_12 = arith.constant dense<0.000000e+00> : vector<128x128xf32>
    %12 = tpu.matmul %9, %11, %cst_12 {dimension_numbers = #tpu.dot_dimension_numbers<[1], [0], [0], [1], [0, 0, 1, 1], [], []>} : vector<128x16xbf16>, vector<16x128xbf16>, vector<128x128xf32> -> vector<128x128xf32>
    %13 = arith.addf %7, %12 : vector<128x128xf32>
    %c0_13 = arith.constant 0 : index
    %c0_14 = arith.constant 0 : index
    %c1_15 = arith.constant 1 : index
    %c0_16 = arith.constant 0 : index
    %14 = vector.load %arg1[%c0_13, %c0_14, %c1_15, %c0_16] : memref<2x36x9x16xbf16, #tpu.memory_space<vmem>>, vector<2x8x8x16xbf16>
    %15 = vector.shape_cast %14 : vector<2x8x8x16xbf16> to vector<128x16xbf16>
    %c2 = arith.constant 2 : index
    %c0_17 = arith.constant 0 : index
    %c0_18 = arith.constant 0 : index
    %16 = vector.load %arg2[%c2, %c0_17, %c0_18] : memref<16x16x128xbf16, #tpu.memory_space<vmem>>, vector<1x16x128xbf16>
    %17 = vector.shape_cast %16 : vector<1x16x128xbf16> to vector<16x128xbf16>
    %cst_19 = arith.constant dense<0.000000e+00> : vector<128x128xf32>
    %18 = tpu.matmul %15, %17, %cst_19 {dimension_numbers = #tpu.dot_dimension_numbers<[1], [0], [0], [1], [0, 0, 1, 1], [], []>} : vector<128x16xbf16>, vector<16x128xbf16>, vector<128x128xf32> -> vector<128x128xf32>
    %19 = arith.addf %13, %18 : vector<128x128xf32>
    %c0_20 = arith.constant 0 : index
    %c9_21 = arith.constant 9 : index
    %c1_22 = arith.constant 1 : index
    %c0_23 = arith.constant 0 : index
    %20 = vector.load %arg1[%c0_20, %c9_21, %c1_22, %c0_23] : memref<2x36x9x16xbf16, #tpu.memory_space<vmem>>, vector<2x8x8x16xbf16>
    %21 = vector.shape_cast %20 : vector<2x8x8x16xbf16> to vector<128x16xbf16>
    %c3 = arith.constant 3 : index
    %c0_24 = arith.constant 0 : index
    %c0_25 = arith.constant 0 : index
    %22 = vector.load %arg2[%c3, %c0_24, %c0_25] : memref<16x16x128xbf16, #tpu.memory_space<vmem>>, vector<1x16x128xbf16>
    %23 = vector.shape_cast %22 : vector<1x16x128xbf16> to vector<16x128xbf16>
    %cst_26 = arith.constant dense<0.000000e+00> : vector<128x128xf32>
    %24 = tpu.matmul %21, %23, %cst_26 {dimension_numbers = #tpu.dot_dimension_numbers<[1], [0], [0], [1], [0, 0, 1, 1], [], []>} : vector<128x16xbf16>, vector<16x128xbf16>, vector<128x128xf32> -> vector<128x128xf32>
    %25 = arith.addf %19, %24 : vector<128x128xf32>
    %c0_27 = arith.constant 0 : index
    %c18 = arith.constant 18 : index
    %c0_28 = arith.constant 0 : index
    %c0_29 = arith.constant 0 : index
    %26 = vector.load %arg1[%c0_27, %c18, %c0_28, %c0_29] : memref<2x36x9x16xbf16, #tpu.memory_space<vmem>>, vector<2x8x8x16xbf16>
    %27 = vector.shape_cast %26 : vector<2x8x8x16xbf16> to vector<128x16xbf16>
    %c4 = arith.constant 4 : index
    %c0_30 = arith.constant 0 : index
    %c0_31 = arith.constant 0 : index
    %28 = vector.load %arg2[%c4, %c0_30, %c0_31] : memref<16x16x128xbf16, #tpu.memory_space<vmem>>, vector<1x16x128xbf16>
    %29 = vector.shape_cast %28 : vector<1x16x128xbf16> to vector<16x128xbf16>
    %cst_32 = arith.constant dense<0.000000e+00> : vector<128x128xf32>
    %30 = tpu.matmul %27, %29, %cst_32 {dimension_numbers = #tpu.dot_dimension_numbers<[1], [0], [0], [1], [0, 0, 1, 1], [], []>} : vector<128x16xbf16>, vector<16x128xbf16>, vector<128x128xf32> -> vector<128x128xf32>
    %31 = arith.addf %25, %30 : vector<128x128xf32>
    %c0_33 = arith.constant 0 : index
    %c27 = arith.constant 27 : index
    %c0_34 = arith.constant 0 : index
    %c0_35 = arith.constant 0 : index
    %32 = vector.load %arg1[%c0_33, %c27, %c0_34, %c0_35] : memref<2x36x9x16xbf16, #tpu.memory_space<vmem>>, vector<2x8x8x16xbf16>
    %33 = vector.shape_cast %32 : vector<2x8x8x16xbf16> to vector<128x16xbf16>
    %c5 = arith.constant 5 : index
    %c0_36 = arith.constant 0 : index
    %c0_37 = arith.constant 0 : index
    %34 = vector.load %arg2[%c5, %c0_36, %c0_37] : memref<16x16x128xbf16, #tpu.memory_space<vmem>>, vector<1x16x128xbf16>
    %35 = vector.shape_cast %34 : vector<1x16x128xbf16> to vector<16x128xbf16>
    %cst_38 = arith.constant dense<0.000000e+00> : vector<128x128xf32>
    %36 = tpu.matmul %33, %35, %cst_38 {dimension_numbers = #tpu.dot_dimension_numbers<[1], [0], [0], [1], [0, 0, 1, 1], [], []>} : vector<128x16xbf16>, vector<16x128xbf16>, vector<128x128xf32> -> vector<128x128xf32>
    %37 = arith.addf %31, %36 : vector<128x128xf32>
    %c0_39 = arith.constant 0 : index
    %c18_40 = arith.constant 18 : index
    %c1_41 = arith.constant 1 : index
    %c0_42 = arith.constant 0 : index
    %38 = vector.load %arg1[%c0_39, %c18_40, %c1_41, %c0_42] : memref<2x36x9x16xbf16, #tpu.memory_space<vmem>>, vector<2x8x8x16xbf16>
    %39 = vector.shape_cast %38 : vector<2x8x8x16xbf16> to vector<128x16xbf16>
    %c6 = arith.constant 6 : index
    %c0_43 = arith.constant 0 : index
    %c0_44 = arith.constant 0 : index
    %40 = vector.load %arg2[%c6, %c0_43, %c0_44] : memref<16x16x128xbf16, #tpu.memory_space<vmem>>, vector<1x16x128xbf16>
    %41 = vector.shape_cast %40 : vector<1x16x128xbf16> to vector<16x128xbf16>
    %cst_45 = arith.constant dense<0.000000e+00> : vector<128x128xf32>
    %42 = tpu.matmul %39, %41, %cst_45 {dimension_numbers = #tpu.dot_dimension_numbers<[1], [0], [0], [1], [0, 0, 1, 1], [], []>} : vector<128x16xbf16>, vector<16x128xbf16>, vector<128x128xf32> -> vector<128x128xf32>
    %43 = arith.addf %37, %42 : vector<128x128xf32>
    %c0_46 = arith.constant 0 : index
    %c27_47 = arith.constant 27 : index
    %c1_48 = arith.constant 1 : index
    %c0_49 = arith.constant 0 : index
    %44 = vector.load %arg1[%c0_46, %c27_47, %c1_48, %c0_49] : memref<2x36x9x16xbf16, #tpu.memory_space<vmem>>, vector<2x8x8x16xbf16>
    %45 = vector.shape_cast %44 : vector<2x8x8x16xbf16> to vector<128x16xbf16>
    %c7 = arith.constant 7 : index
    %c0_50 = arith.constant 0 : index
    %c0_51 = arith.constant 0 : index
    %46 = vector.load %arg2[%c7, %c0_50, %c0_51] : memref<16x16x128xbf16, #tpu.memory_space<vmem>>, vector<1x16x128xbf16>
    %47 = vector.shape_cast %46 : vector<1x16x128xbf16> to vector<16x128xbf16>
    %cst_52 = arith.constant dense<0.000000e+00> : vector<128x128xf32>
    %48 = tpu.matmul %45, %47, %cst_52 {dimension_numbers = #tpu.dot_dimension_numbers<[1], [0], [0], [1], [0, 0, 1, 1], [], []>} : vector<128x16xbf16>, vector<16x128xbf16>, vector<128x128xf32> -> vector<128x128xf32>
    %49 = arith.addf %43, %48 : vector<128x128xf32>
    %c0_53 = arith.constant 0 : index
    %c1_54 = arith.constant 1 : index
    %c0_55 = arith.constant 0 : index
    %c0_56 = arith.constant 0 : index
    %50 = vector.load %arg1[%c0_53, %c1_54, %c0_55, %c0_56] : memref<2x36x9x16xbf16, #tpu.memory_space<vmem>>, vector<2x8x8x16xbf16>
    %51 = vector.shape_cast %50 : vector<2x8x8x16xbf16> to vector<128x16xbf16>
    %c8 = arith.constant 8 : index
    %c0_57 = arith.constant 0 : index
    %c0_58 = arith.constant 0 : index
    %52 = vector.load %arg2[%c8, %c0_57, %c0_58] : memref<16x16x128xbf16, #tpu.memory_space<vmem>>, vector<1x16x128xbf16>
    %53 = vector.shape_cast %52 : vector<1x16x128xbf16> to vector<16x128xbf16>
    %cst_59 = arith.constant dense<0.000000e+00> : vector<128x128xf32>
    %54 = tpu.matmul %51, %53, %cst_59 {dimension_numbers = #tpu.dot_dimension_numbers<[1], [0], [0], [1], [0, 0, 1, 1], [], []>} : vector<128x16xbf16>, vector<16x128xbf16>, vector<128x128xf32> -> vector<128x128xf32>
    %55 = arith.addf %49, %54 : vector<128x128xf32>
    %c0_60 = arith.constant 0 : index
    %c10 = arith.constant 10 : index
    %c0_61 = arith.constant 0 : index
    %c0_62 = arith.constant 0 : index
    %56 = vector.load %arg1[%c0_60, %c10, %c0_61, %c0_62] : memref<2x36x9x16xbf16, #tpu.memory_space<vmem>>, vector<2x8x8x16xbf16>
    %57 = vector.shape_cast %56 : vector<2x8x8x16xbf16> to vector<128x16xbf16>
    %c9_63 = arith.constant 9 : index
    %c0_64 = arith.constant 0 : index
    %c0_65 = arith.constant 0 : index
    %58 = vector.load %arg2[%c9_63, %c0_64, %c0_65] : memref<16x16x128xbf16, #tpu.memory_space<vmem>>, vector<1x16x128xbf16>
    %59 = vector.shape_cast %58 : vector<1x16x128xbf16> to vector<16x128xbf16>
    %cst_66 = arith.constant dense<0.000000e+00> : vector<128x128xf32>
    %60 = tpu.matmul %57, %59, %cst_66 {dimension_numbers = #tpu.dot_dimension_numbers<[1], [0], [0], [1], [0, 0, 1, 1], [], []>} : vector<128x16xbf16>, vector<16x128xbf16>, vector<128x128xf32> -> vector<128x128xf32>
    %61 = arith.addf %55, %60 : vector<128x128xf32>
    %c0_67 = arith.constant 0 : index
    %c1_68 = arith.constant 1 : index
    %c1_69 = arith.constant 1 : index
    %c0_70 = arith.constant 0 : index
    %62 = vector.load %arg1[%c0_67, %c1_68, %c1_69, %c0_70] : memref<2x36x9x16xbf16, #tpu.memory_space<vmem>>, vector<2x8x8x16xbf16>
    %63 = vector.shape_cast %62 : vector<2x8x8x16xbf16> to vector<128x16xbf16>
    %c10_71 = arith.constant 10 : index
    %c0_72 = arith.constant 0 : index
    %c0_73 = arith.constant 0 : index
    %64 = vector.load %arg2[%c10_71, %c0_72, %c0_73] : memref<16x16x128xbf16, #tpu.memory_space<vmem>>, vector<1x16x128xbf16>
    %65 = vector.shape_cast %64 : vector<1x16x128xbf16> to vector<16x128xbf16>
    %cst_74 = arith.constant dense<0.000000e+00> : vector<128x128xf32>
    %66 = tpu.matmul %63, %65, %cst_74 {dimension_numbers = #tpu.dot_dimension_numbers<[1], [0], [0], [1], [0, 0, 1, 1], [], []>} : vector<128x16xbf16>, vector<16x128xbf16>, vector<128x128xf32> -> vector<128x128xf32>
    %67 = arith.addf %61, %66 : vector<128x128xf32>
    %c0_75 = arith.constant 0 : index
    %c10_76 = arith.constant 10 : index
    %c1_77 = arith.constant 1 : index
    %c0_78 = arith.constant 0 : index
    %68 = vector.load %arg1[%c0_75, %c10_76, %c1_77, %c0_78] : memref<2x36x9x16xbf16, #tpu.memory_space<vmem>>, vector<2x8x8x16xbf16>
    %69 = vector.shape_cast %68 : vector<2x8x8x16xbf16> to vector<128x16xbf16>
    %c11 = arith.constant 11 : index
    %c0_79 = arith.constant 0 : index
    %c0_80 = arith.constant 0 : index
    %70 = vector.load %arg2[%c11, %c0_79, %c0_80] : memref<16x16x128xbf16, #tpu.memory_space<vmem>>, vector<1x16x128xbf16>
    %71 = vector.shape_cast %70 : vector<1x16x128xbf16> to vector<16x128xbf16>
    %cst_81 = arith.constant dense<0.000000e+00> : vector<128x128xf32>
    %72 = tpu.matmul %69, %71, %cst_81 {dimension_numbers = #tpu.dot_dimension_numbers<[1], [0], [0], [1], [0, 0, 1, 1], [], []>} : vector<128x16xbf16>, vector<16x128xbf16>, vector<128x128xf32> -> vector<128x128xf32>
    %73 = arith.addf %67, %72 : vector<128x128xf32>
    %c0_82 = arith.constant 0 : index
    %c19 = arith.constant 19 : index
    %c0_83 = arith.constant 0 : index
    %c0_84 = arith.constant 0 : index
    %74 = vector.load %arg1[%c0_82, %c19, %c0_83, %c0_84] : memref<2x36x9x16xbf16, #tpu.memory_space<vmem>>, vector<2x8x8x16xbf16>
    %75 = vector.shape_cast %74 : vector<2x8x8x16xbf16> to vector<128x16xbf16>
    %c12 = arith.constant 12 : index
    %c0_85 = arith.constant 0 : index
    %c0_86 = arith.constant 0 : index
    %76 = vector.load %arg2[%c12, %c0_85, %c0_86] : memref<16x16x128xbf16, #tpu.memory_space<vmem>>, vector<1x16x128xbf16>
    %77 = vector.shape_cast %76 : vector<1x16x128xbf16> to vector<16x128xbf16>
    %cst_87 = arith.constant dense<0.000000e+00> : vector<128x128xf32>
    %78 = tpu.matmul %75, %77, %cst_87 {dimension_numbers = #tpu.dot_dimension_numbers<[1], [0], [0], [1], [0, 0, 1, 1], [], []>} : vector<128x16xbf16>, vector<16x128xbf16>, vector<128x128xf32> -> vector<128x128xf32>
    %79 = arith.addf %73, %78 : vector<128x128xf32>
    %c0_88 = arith.constant 0 : index
    %c28 = arith.constant 28 : index
    %c0_89 = arith.constant 0 : index
    %c0_90 = arith.constant 0 : index
    %80 = vector.load %arg1[%c0_88, %c28, %c0_89, %c0_90] : memref<2x36x9x16xbf16, #tpu.memory_space<vmem>>, vector<2x8x8x16xbf16>
    %81 = vector.shape_cast %80 : vector<2x8x8x16xbf16> to vector<128x16xbf16>
    %c13 = arith.constant 13 : index
    %c0_91 = arith.constant 0 : index
    %c0_92 = arith.constant 0 : index
    %82 = vector.load %arg2[%c13, %c0_91, %c0_92] : memref<16x16x128xbf16, #tpu.memory_space<vmem>>, vector<1x16x128xbf16>
    %83 = vector.shape_cast %82 : vector<1x16x128xbf16> to vector<16x128xbf16>
    %cst_93 = arith.constant dense<0.000000e+00> : vector<128x128xf32>
    %84 = tpu.matmul %81, %83, %cst_93 {dimension_numbers = #tpu.dot_dimension_numbers<[1], [0], [0], [1], [0, 0, 1, 1], [], []>} : vector<128x16xbf16>, vector<16x128xbf16>, vector<128x128xf32> -> vector<128x128xf32>
    %85 = arith.addf %79, %84 : vector<128x128xf32>
    %c0_94 = arith.constant 0 : index
    %c19_95 = arith.constant 19 : index
    %c1_96 = arith.constant 1 : index
    %c0_97 = arith.constant 0 : index
    %86 = vector.load %arg1[%c0_94, %c19_95, %c1_96, %c0_97] : memref<2x36x9x16xbf16, #tpu.memory_space<vmem>>, vector<2x8x8x16xbf16>
    %87 = vector.shape_cast %86 : vector<2x8x8x16xbf16> to vector<128x16xbf16>
    %c14 = arith.constant 14 : index
    %c0_98 = arith.constant 0 : index
    %c0_99 = arith.constant 0 : index
    %88 = vector.load %arg2[%c14, %c0_98, %c0_99] : memref<16x16x128xbf16, #tpu.memory_space<vmem>>, vector<1x16x128xbf16>
    %89 = vector.shape_cast %88 : vector<1x16x128xbf16> to vector<16x128xbf16>
    %cst_100 = arith.constant dense<0.000000e+00> : vector<128x128xf32>
    %90 = tpu.matmul %87, %89, %cst_100 {dimension_numbers = #tpu.dot_dimension_numbers<[1], [0], [0], [1], [0, 0, 1, 1], [], []>} : vector<128x16xbf16>, vector<16x128xbf16>, vector<128x128xf32> -> vector<128x128xf32>
    %91 = arith.addf %85, %90 : vector<128x128xf32>
    %c0_101 = arith.constant 0 : index
    %c28_102 = arith.constant 28 : index
    %c1_103 = arith.constant 1 : index
    %c0_104 = arith.constant 0 : index
    %92 = vector.load %arg1[%c0_101, %c28_102, %c1_103, %c0_104] : memref<2x36x9x16xbf16, #tpu.memory_space<vmem>>, vector<2x8x8x16xbf16>
    %93 = vector.shape_cast %92 : vector<2x8x8x16xbf16> to vector<128x16xbf16>
    %c15 = arith.constant 15 : index
    %c0_105 = arith.constant 0 : index
    %c0_106 = arith.constant 0 : index
    %94 = vector.load %arg2[%c15, %c0_105, %c0_106] : memref<16x16x128xbf16, #tpu.memory_space<vmem>>, vector<1x16x128xbf16>
    %95 = vector.shape_cast %94 : vector<1x16x128xbf16> to vector<16x128xbf16>
    %cst_107 = arith.constant dense<0.000000e+00> : vector<128x128xf32>
    %96 = tpu.matmul %93, %95, %cst_107 {dimension_numbers = #tpu.dot_dimension_numbers<[1], [0], [0], [1], [0, 0, 1, 1], [], []>} : vector<128x16xbf16>, vector<16x128xbf16>, vector<128x128xf32> -> vector<128x128xf32>
    %97 = arith.addf %91, %96 : vector<128x128xf32>
    %c128_i32 = arith.constant 128 : i32
    %98 = arith.muli %arg0, %c128_i32 : i32
    %99 = tpu.assume_multiple %98, 128 : i32
    %100 = arith.index_cast %99 : i32 to index
    %c0_108 = arith.constant 0 : index
    %101 = vector.load %arg6[%100, %c0_108] : memref<128x128xf32, #tpu.memory_space<vmem>>, vector<128x128xf32>
    tpu.vector_store %arg6[%100, %c0_108], %97 {strides = array<i32>} : memref<128x128xf32, #tpu.memory_space<vmem>>, vector<128x128xf32>,
    %102 = vector.shape_cast %97 : vector<128x128xf32> to vector<16x8x128xf32>
    %c0_109 = arith.constant 0 : index
    %c0_110 = arith.constant 0 : index
    %103 = vector.load %arg7[%c0_109, %c0_110] : memref<8x128xf32, #tpu.memory_space<vmem>>, vector<8x128xf32>
    %cst_111 = arith.constant dense<0.000000e+00> : vector<8x128xf32>
    %104 = vector.multi_reduction <add>, %102, %cst_111 [0] : vector<16x8x128xf32> to vector<8x128xf32>
    %105 = arith.addf %103, %104 : vector<8x128xf32>
    %c0_112 = arith.constant 0 : index
    %c0_113 = arith.constant 0 : index
    %106 = vector.load %arg7[%c0_112, %c0_113] : memref<8x128xf32, #tpu.memory_space<vmem>>, vector<8x128xf32>
    tpu.vector_store %arg7[%c0_112, %c0_113], %105 {strides = array<i32>} : memref<8x128xf32, #tpu.memory_space<vmem>>, vector<8x128xf32>,
    %c0_114 = arith.constant 0 : index
    %c0_115 = arith.constant 0 : index
    %107 = vector.load %arg8[%c0_114, %c0_115] : memref<8x128xf32, #tpu.memory_space<vmem>>, vector<8x128xf32>
    %108 = arith.mulf %102, %102 : vector<16x8x128xf32>
    %cst_116 = arith.constant dense<0.000000e+00> : vector<8x128xf32>
    %109 = vector.multi_reduction <add>, %108, %cst_116 [0] : vector<16x8x128xf32> to vector<8x128xf32>
    %110 = arith.addf %107, %109 : vector<8x128xf32>
    %c0_117 = arith.constant 0 : index
    %c0_118 = arith.constant 0 : index
    %111 = vector.load %arg8[%c0_117, %c0_118] : memref<8x128xf32, #tpu.memory_space<vmem>>, vector<8x128xf32>
    tpu.vector_store %arg8[%c0_117, %c0_118], %110 {strides = array<i32>} : memref<8x128xf32, #tpu.memory_space<vmem>>, vector<8x128xf32>,
    %c0_i32_119 = arith.constant 0 : i32
    %112 = arith.cmpi eq, %arg0, %c0_i32_119 : i32
    %113 = arith.extui %112 : i1 to i32
    %c0_i32_120 = arith.constant 0 : i32
    %114 = arith.cmpi ne, %113, %c0_i32_120 : i32
    scf.if %114 {
      %c0_121 = arith.constant 0 : index
      %c0_122 = arith.constant 0 : index
      %115 = vector.load %arg7[%c0_121, %c0_122] : memref<8x128xf32, #tpu.memory_space<vmem>>, vector<8x128xf32>
      %cst_123 = arith.constant dense<0.000000e+00> : vector<128xf32>
      %116 = vector.multi_reduction <add>, %115, %cst_123 [0] : vector<8x128xf32> to vector<128xf32>
      %117 = vector.shape_cast %116 : vector<128xf32> to vector<1x128xf32>
      %c0_124 = arith.constant 0 : index
      %c0_125 = arith.constant 0 : index
      %118 = vector.load %arg8[%c0_124, %c0_125] : memref<8x128xf32, #tpu.memory_space<vmem>>, vector<8x128xf32>
      %cst_126 = arith.constant dense<0.000000e+00> : vector<128xf32>
      %119 = vector.multi_reduction <add>, %118, %cst_126 [0] : vector<8x128xf32> to vector<128xf32>
      %120 = vector.shape_cast %119 : vector<128xf32> to vector<1x128xf32>
      %cst_127 = arith.constant 7.812500e-03 : f32
      %121 = vector.broadcast %cst_127 : f32 to vector<1x128xf32>
      %122 = arith.mulf %117, %121 : vector<1x128xf32>
      %cst_128 = arith.constant 7.812500e-03 : f32
      %123 = vector.broadcast %cst_128 : f32 to vector<1x128xf32>
      %124 = arith.mulf %120, %123 : vector<1x128xf32>
      %125 = arith.mulf %122, %122 : vector<1x128xf32>
      %126 = arith.subf %124, %125 : vector<1x128xf32>
      %cst_129 = arith.constant 0.000000e+00 : f32
      %127 = vector.broadcast %cst_129 : f32 to vector<1x128xf32>
      %128 = arith.maximumf %126, %127 : vector<1x128xf32>
      %cst_130 = arith.constant 9.99999974E-6 : f32
      %129 = vector.broadcast %cst_130 : f32 to vector<1x128xf32>
      %130 = arith.addf %128, %129 : vector<1x128xf32>
      %131 = math.rsqrt %130 : vector<1x128xf32>
      %c0_131 = arith.constant 0 : index
      %c0_132 = arith.constant 0 : index
      %132 = vector.load %arg3[%c0_131, %c0_132] : memref<1x128xf32, #tpu.memory_space<vmem>>, vector<1x128xf32>
      %133 = arith.mulf %131, %132 : vector<1x128xf32>
      %c0_133 = arith.constant 0 : index
      %c0_134 = arith.constant 0 : index
      %134 = vector.load %arg4[%c0_133, %c0_134] : memref<1x128xf32, #tpu.memory_space<vmem>>, vector<1x128xf32>
      %135 = arith.mulf %122, %133 : vector<1x128xf32>
      %136 = arith.subf %134, %135 : vector<1x128xf32>
      %c0_i32_135 = arith.constant 0 : i32
      %c128_i32_136 = arith.constant 128 : i32
      %137 = arith.muli %c0_i32_135, %c128_i32_136 : i32
      %138 = tpu.assume_multiple %137, 128 : i32
      %139 = arith.index_cast %138 : i32 to index
      %c0_137 = arith.constant 0 : index
      %140 = vector.load %arg6[%139, %c0_137] : memref<128x128xf32, #tpu.memory_space<vmem>>, vector<128x128xf32>
      %141 = vector.broadcast %133 : vector<1x128xf32> to vector<128x128xf32>
      %142 = arith.mulf %140, %141 : vector<128x128xf32>
      %143 = vector.broadcast %136 : vector<1x128xf32> to vector<128x128xf32>
      %144 = arith.addf %142, %143 : vector<128x128xf32>
      %cst_138 = arith.constant 0.000000e+00 : f32
      %145 = vector.broadcast %cst_138 : f32 to vector<128x128xf32>
      %146 = arith.cmpf ogt, %144, %145 : vector<128x128xf32>
      %cst_139 = arith.constant 2.000000e-01 : f32
      %147 = vector.broadcast %cst_139 : f32 to vector<128x128xf32>
      %148 = arith.mulf %147, %144 : vector<128x128xf32>
      %149 = arith.select %146, %144, %148 : vector<128x128xi1>, vector<128x128xf32>
      %150 = arith.truncf %149 : vector<128x128xf32> to vector<128x128xbf16>
      %151 = arith.index_cast %138 : i32 to index
      %c0_140 = arith.constant 0 : index
      %152 = vector.load %arg5[%151, %c0_140] : memref<128x128xbf16, #tpu.memory_space<vmem>>, vector<128x128xbf16>
      tpu.vector_store %arg5[%151, %c0_140], %150 {strides = array<i32>} : memref<128x128xbf16, #tpu.memory_space<vmem>>, vector<128x128xbf16>,
      %c1_i32 = arith.constant 1 : i32
    } else {
    }
    return
  }
  func.func @transform_0(%arg0: i32) -> (i32, i32, i32, i32) {
    %c0_i32 = arith.constant 0 : i32
    %c0_i32_0 = arith.constant 0 : i32
    %c0_i32_1 = arith.constant 0 : i32
    %c0_i32_2 = arith.constant 0 : i32
    return %arg0, %c0_i32, %c0_i32_0, %c0_i32_1 : i32, i32, i32, i32
  }
  func.func @transform_1(%arg0: i32) -> (i32, i32, i32) {
    %c0_i32 = arith.constant 0 : i32
    %c0_i32_0 = arith.constant 0 : i32
    %c0_i32_1 = arith.constant 0 : i32
    %c0_i32_2 = arith.constant 0 : i32
    return %c0_i32, %c0_i32_0, %c0_i32_1 : i32, i32, i32
  }
  func.func @transform_2(%arg0: i32) -> (i32, i32) {
    %c0_i32 = arith.constant 0 : i32
    %c0_i32_0 = arith.constant 0 : i32
    %c0_i32_1 = arith.constant 0 : i32
    return %c0_i32, %c0_i32_0 : i32, i32
  }
  func.func @transform_3(%arg0: i32) -> (i32, i32) {
    %c0_i32 = arith.constant 0 : i32
    %c0_i32_0 = arith.constant 0 : i32
    %c0_i32_1 = arith.constant 0 : i32
    return %c0_i32, %c0_i32_0 : i32, i32
  }
  func.func @transform_4(%arg0: i32) -> (i32, i32) {
    %c0_i32 = arith.constant 0 : i32
    %c0_i32_0 = arith.constant 0 : i32
    %c0_i32_1 = arith.constant 0 : i32
    return %c0_i32, %c0_i32_0 : i32, i32
  }
}

module attributes {stable_mosaic.version = 11 : i64} {
  func.func @_fused_conv_bn_lrelu_kernel(%arg0: i32, %arg1: memref<2x20x9x32xbf16, #tpu.memory_space<vmem>>, %arg2: memref<9x32x128xbf16, #tpu.memory_space<vmem>>, %arg3: memref<1x128xf32, #tpu.memory_space<vmem>>, %arg4: memref<1x128xf32, #tpu.memory_space<vmem>>, %arg5: memref<64x128xbf16, #tpu.memory_space<vmem>>, %arg6: memref<64x128xf32, #tpu.memory_space<vmem>>, %arg7: memref<8x128xf32, #tpu.memory_space<vmem>>, %arg8: memref<8x128xf32, #tpu.memory_space<vmem>>) attributes {dimension_semantics = [#tpu.dimension_semantics<arbitrary>], iteration_bounds = array<i64: 1>, scalar_prefetch = 0 : i64, scratch_operands = 3 : i64, tpu.core_type = #tpu.core_type<tc>, window_params = [{transform_indices = @transform_0, window_bounds = array<i64: 2, 20, 9, 32>}, {pipeline_mode = #tpu.pipeline_mode<synchronous>, transform_indices = @transform_1, window_bounds = array<i64: 9, 32, 128>}, {pipeline_mode = #tpu.pipeline_mode<synchronous>, transform_indices = @transform_2, window_bounds = array<i64: 1, 128>}, {pipeline_mode = #tpu.pipeline_mode<synchronous>, transform_indices = @transform_3, window_bounds = array<i64: 1, 128>}, {pipeline_mode = #tpu.pipeline_mode<synchronous>, transform_indices = @transform_4, window_bounds = array<i64: 64, 128>}]} {
    %c0_i32 = arith.constant 0 : i32
    %0 = arith.cmpi eq, %arg0, %c0_i32 : i32
    %1 = arith.extui %0 : i1 to i32
    %c0_i32_0 = arith.constant 0 : i32
    %2 = arith.cmpi ne, %1, %c0_i32_0 : i32
    scf.if %2 {
      %cst_75 = arith.constant 0.000000e+00 : f32
      %81 = vector.broadcast %cst_75 : f32 to vector<8x128xf32>
      %c0_76 = arith.constant 0 : index
      %c0_77 = arith.constant 0 : index
      %82 = vector.load %arg7[%c0_76, %c0_77] : memref<8x128xf32, #tpu.memory_space<vmem>>, vector<8x128xf32>
      tpu.vector_store %arg7[%c0_76, %c0_77], %81 {strides = array<i32>} : memref<8x128xf32, #tpu.memory_space<vmem>>, vector<8x128xf32>,
      %cst_78 = arith.constant 0.000000e+00 : f32
      %83 = vector.broadcast %cst_78 : f32 to vector<8x128xf32>
      %c0_79 = arith.constant 0 : index
      %c0_80 = arith.constant 0 : index
      %84 = vector.load %arg8[%c0_79, %c0_80] : memref<8x128xf32, #tpu.memory_space<vmem>>, vector<8x128xf32>
      tpu.vector_store %arg8[%c0_79, %c0_80], %83 {strides = array<i32>} : memref<8x128xf32, #tpu.memory_space<vmem>>, vector<8x128xf32>,
    } else {
    }
    %c0 = arith.constant 0 : index
    %c0_1 = arith.constant 0 : index
    %c0_2 = arith.constant 0 : index
    %c0_3 = arith.constant 0 : index
    %3 = vector.load %arg1[%c0, %c0_1, %c0_2, %c0_3] : memref<2x20x9x32xbf16, #tpu.memory_space<vmem>>, vector<2x4x8x32xbf16>
    %4 = vector.shape_cast %3 : vector<2x4x8x32xbf16> to vector<64x32xbf16>
    %c0_4 = arith.constant 0 : index
    %c0_5 = arith.constant 0 : index
    %c0_6 = arith.constant 0 : index
    %5 = vector.load %arg2[%c0_4, %c0_5, %c0_6] : memref<9x32x128xbf16, #tpu.memory_space<vmem>>, vector<1x32x128xbf16>
    %6 = vector.shape_cast %5 : vector<1x32x128xbf16> to vector<32x128xbf16>
    %cst = arith.constant dense<0.000000e+00> : vector<64x128xf32>
    %7 = tpu.matmul %4, %6, %cst {dimension_numbers = #tpu.dot_dimension_numbers<[1], [0], [0], [1], [0, 0, 1, 1], [], []>} : vector<64x32xbf16>, vector<32x128xbf16>, vector<64x128xf32> -> vector<64x128xf32>
    %c0_7 = arith.constant 0 : index
    %c5 = arith.constant 5 : index
    %c0_8 = arith.constant 0 : index
    %c0_9 = arith.constant 0 : index
    %8 = vector.load %arg1[%c0_7, %c5, %c0_8, %c0_9] : memref<2x20x9x32xbf16, #tpu.memory_space<vmem>>, vector<2x4x8x32xbf16>
    %9 = vector.shape_cast %8 : vector<2x4x8x32xbf16> to vector<64x32xbf16>
    %c1 = arith.constant 1 : index
    %c0_10 = arith.constant 0 : index
    %c0_11 = arith.constant 0 : index
    %10 = vector.load %arg2[%c1, %c0_10, %c0_11] : memref<9x32x128xbf16, #tpu.memory_space<vmem>>, vector<1x32x128xbf16>
    %11 = vector.shape_cast %10 : vector<1x32x128xbf16> to vector<32x128xbf16>
    %cst_12 = arith.constant dense<0.000000e+00> : vector<64x128xf32>
    %12 = tpu.matmul %9, %11, %cst_12 {dimension_numbers = #tpu.dot_dimension_numbers<[1], [0], [0], [1], [0, 0, 1, 1], [], []>} : vector<64x32xbf16>, vector<32x128xbf16>, vector<64x128xf32> -> vector<64x128xf32>
    %13 = arith.addf %7, %12 : vector<64x128xf32>
    %c0_13 = arith.constant 0 : index
    %c0_14 = arith.constant 0 : index
    %c1_15 = arith.constant 1 : index
    %c0_16 = arith.constant 0 : index
    %14 = vector.load %arg1[%c0_13, %c0_14, %c1_15, %c0_16] : memref<2x20x9x32xbf16, #tpu.memory_space<vmem>>, vector<2x4x8x32xbf16>
    %15 = vector.shape_cast %14 : vector<2x4x8x32xbf16> to vector<64x32xbf16>
    %c2 = arith.constant 2 : index
    %c0_17 = arith.constant 0 : index
    %c0_18 = arith.constant 0 : index
    %16 = vector.load %arg2[%c2, %c0_17, %c0_18] : memref<9x32x128xbf16, #tpu.memory_space<vmem>>, vector<1x32x128xbf16>
    %17 = vector.shape_cast %16 : vector<1x32x128xbf16> to vector<32x128xbf16>
    %cst_19 = arith.constant dense<0.000000e+00> : vector<64x128xf32>
    %18 = tpu.matmul %15, %17, %cst_19 {dimension_numbers = #tpu.dot_dimension_numbers<[1], [0], [0], [1], [0, 0, 1, 1], [], []>} : vector<64x32xbf16>, vector<32x128xbf16>, vector<64x128xf32> -> vector<64x128xf32>
    %19 = arith.addf %13, %18 : vector<64x128xf32>
    %c0_20 = arith.constant 0 : index
    %c10 = arith.constant 10 : index
    %c0_21 = arith.constant 0 : index
    %c0_22 = arith.constant 0 : index
    %20 = vector.load %arg1[%c0_20, %c10, %c0_21, %c0_22] : memref<2x20x9x32xbf16, #tpu.memory_space<vmem>>, vector<2x4x8x32xbf16>
    %21 = vector.shape_cast %20 : vector<2x4x8x32xbf16> to vector<64x32xbf16>
    %c3 = arith.constant 3 : index
    %c0_23 = arith.constant 0 : index
    %c0_24 = arith.constant 0 : index
    %22 = vector.load %arg2[%c3, %c0_23, %c0_24] : memref<9x32x128xbf16, #tpu.memory_space<vmem>>, vector<1x32x128xbf16>
    %23 = vector.shape_cast %22 : vector<1x32x128xbf16> to vector<32x128xbf16>
    %cst_25 = arith.constant dense<0.000000e+00> : vector<64x128xf32>
    %24 = tpu.matmul %21, %23, %cst_25 {dimension_numbers = #tpu.dot_dimension_numbers<[1], [0], [0], [1], [0, 0, 1, 1], [], []>} : vector<64x32xbf16>, vector<32x128xbf16>, vector<64x128xf32> -> vector<64x128xf32>
    %25 = arith.addf %19, %24 : vector<64x128xf32>
    %c0_26 = arith.constant 0 : index
    %c15 = arith.constant 15 : index
    %c0_27 = arith.constant 0 : index
    %c0_28 = arith.constant 0 : index
    %26 = vector.load %arg1[%c0_26, %c15, %c0_27, %c0_28] : memref<2x20x9x32xbf16, #tpu.memory_space<vmem>>, vector<2x4x8x32xbf16>
    %27 = vector.shape_cast %26 : vector<2x4x8x32xbf16> to vector<64x32xbf16>
    %c4 = arith.constant 4 : index
    %c0_29 = arith.constant 0 : index
    %c0_30 = arith.constant 0 : index
    %28 = vector.load %arg2[%c4, %c0_29, %c0_30] : memref<9x32x128xbf16, #tpu.memory_space<vmem>>, vector<1x32x128xbf16>
    %29 = vector.shape_cast %28 : vector<1x32x128xbf16> to vector<32x128xbf16>
    %cst_31 = arith.constant dense<0.000000e+00> : vector<64x128xf32>
    %30 = tpu.matmul %27, %29, %cst_31 {dimension_numbers = #tpu.dot_dimension_numbers<[1], [0], [0], [1], [0, 0, 1, 1], [], []>} : vector<64x32xbf16>, vector<32x128xbf16>, vector<64x128xf32> -> vector<64x128xf32>
    %31 = arith.addf %25, %30 : vector<64x128xf32>
    %c0_32 = arith.constant 0 : index
    %c10_33 = arith.constant 10 : index
    %c1_34 = arith.constant 1 : index
    %c0_35 = arith.constant 0 : index
    %32 = vector.load %arg1[%c0_32, %c10_33, %c1_34, %c0_35] : memref<2x20x9x32xbf16, #tpu.memory_space<vmem>>, vector<2x4x8x32xbf16>
    %33 = vector.shape_cast %32 : vector<2x4x8x32xbf16> to vector<64x32xbf16>
    %c5_36 = arith.constant 5 : index
    %c0_37 = arith.constant 0 : index
    %c0_38 = arith.constant 0 : index
    %34 = vector.load %arg2[%c5_36, %c0_37, %c0_38] : memref<9x32x128xbf16, #tpu.memory_space<vmem>>, vector<1x32x128xbf16>
    %35 = vector.shape_cast %34 : vector<1x32x128xbf16> to vector<32x128xbf16>
    %cst_39 = arith.constant dense<0.000000e+00> : vector<64x128xf32>
    %36 = tpu.matmul %33, %35, %cst_39 {dimension_numbers = #tpu.dot_dimension_numbers<[1], [0], [0], [1], [0, 0, 1, 1], [], []>} : vector<64x32xbf16>, vector<32x128xbf16>, vector<64x128xf32> -> vector<64x128xf32>
    %37 = arith.addf %31, %36 : vector<64x128xf32>
    %c0_40 = arith.constant 0 : index
    %c1_41 = arith.constant 1 : index
    %c0_42 = arith.constant 0 : index
    %c0_43 = arith.constant 0 : index
    %38 = vector.load %arg1[%c0_40, %c1_41, %c0_42, %c0_43] : memref<2x20x9x32xbf16, #tpu.memory_space<vmem>>, vector<2x4x8x32xbf16>
    %39 = vector.shape_cast %38 : vector<2x4x8x32xbf16> to vector<64x32xbf16>
    %c6 = arith.constant 6 : index
    %c0_44 = arith.constant 0 : index
    %c0_45 = arith.constant 0 : index
    %40 = vector.load %arg2[%c6, %c0_44, %c0_45] : memref<9x32x128xbf16, #tpu.memory_space<vmem>>, vector<1x32x128xbf16>
    %41 = vector.shape_cast %40 : vector<1x32x128xbf16> to vector<32x128xbf16>
    %cst_46 = arith.constant dense<0.000000e+00> : vector<64x128xf32>
    %42 = tpu.matmul %39, %41, %cst_46 {dimension_numbers = #tpu.dot_dimension_numbers<[1], [0], [0], [1], [0, 0, 1, 1], [], []>} : vector<64x32xbf16>, vector<32x128xbf16>, vector<64x128xf32> -> vector<64x128xf32>
    %43 = arith.addf %37, %42 : vector<64x128xf32>
    %c0_47 = arith.constant 0 : index
    %c6_48 = arith.constant 6 : index
    %c0_49 = arith.constant 0 : index
    %c0_50 = arith.constant 0 : index
    %44 = vector.load %arg1[%c0_47, %c6_48, %c0_49, %c0_50] : memref<2x20x9x32xbf16, #tpu.memory_space<vmem>>, vector<2x4x8x32xbf16>
    %45 = vector.shape_cast %44 : vector<2x4x8x32xbf16> to vector<64x32xbf16>
    %c7 = arith.constant 7 : index
    %c0_51 = arith.constant 0 : index
    %c0_52 = arith.constant 0 : index
    %46 = vector.load %arg2[%c7, %c0_51, %c0_52] : memref<9x32x128xbf16, #tpu.memory_space<vmem>>, vector<1x32x128xbf16>
    %47 = vector.shape_cast %46 : vector<1x32x128xbf16> to vector<32x128xbf16>
    %cst_53 = arith.constant dense<0.000000e+00> : vector<64x128xf32>
    %48 = tpu.matmul %45, %47, %cst_53 {dimension_numbers = #tpu.dot_dimension_numbers<[1], [0], [0], [1], [0, 0, 1, 1], [], []>} : vector<64x32xbf16>, vector<32x128xbf16>, vector<64x128xf32> -> vector<64x128xf32>
    %49 = arith.addf %43, %48 : vector<64x128xf32>
    %c0_54 = arith.constant 0 : index
    %c1_55 = arith.constant 1 : index
    %c1_56 = arith.constant 1 : index
    %c0_57 = arith.constant 0 : index
    %50 = vector.load %arg1[%c0_54, %c1_55, %c1_56, %c0_57] : memref<2x20x9x32xbf16, #tpu.memory_space<vmem>>, vector<2x4x8x32xbf16>
    %51 = vector.shape_cast %50 : vector<2x4x8x32xbf16> to vector<64x32xbf16>
    %c8 = arith.constant 8 : index
    %c0_58 = arith.constant 0 : index
    %c0_59 = arith.constant 0 : index
    %52 = vector.load %arg2[%c8, %c0_58, %c0_59] : memref<9x32x128xbf16, #tpu.memory_space<vmem>>, vector<1x32x128xbf16>
    %53 = vector.shape_cast %52 : vector<1x32x128xbf16> to vector<32x128xbf16>
    %cst_60 = arith.constant dense<0.000000e+00> : vector<64x128xf32>
    %54 = tpu.matmul %51, %53, %cst_60 {dimension_numbers = #tpu.dot_dimension_numbers<[1], [0], [0], [1], [0, 0, 1, 1], [], []>} : vector<64x32xbf16>, vector<32x128xbf16>, vector<64x128xf32> -> vector<64x128xf32>
    %55 = arith.addf %49, %54 : vector<64x128xf32>
    %56 = tpu.iota {dimensions = array<i32: 1>} : vector<8x8x1xi32>
    %c4_i32 = arith.constant 4 : i32
    %57 = vector.broadcast %c4_i32 : i32 to vector<8x8x1xi32>
    %58 = arith.cmpi slt, %56, %57 : vector<8x8x1xi32>
    %59 = vector.shape_cast %58 : vector<8x8x1xi1> to vector<64x1xi1>
    %cst_61 = arith.constant 0.000000e+00 : f32
    %60 = vector.shape_cast %59 : vector<64x1xi1> to vector<64x1xi1>
    %61 = vector.broadcast %60 : vector<64x1xi1> to vector<64x128xi1>
    %62 = vector.broadcast %cst_61 : f32 to vector<64x128xf32>
    %63 = arith.select %61, %55, %62 : vector<64x128xi1>, vector<64x128xf32>
    %c64_i32 = arith.constant 64 : i32
    %64 = arith.muli %arg0, %c64_i32 : i32
    %65 = tpu.assume_multiple %64, 64 : i32
    %66 = arith.index_cast %65 : i32 to index
    %c0_62 = arith.constant 0 : index
    %67 = vector.load %arg6[%66, %c0_62] : memref<64x128xf32, #tpu.memory_space<vmem>>, vector<64x128xf32>
    tpu.vector_store %arg6[%66, %c0_62], %63 {strides = array<i32>} : memref<64x128xf32, #tpu.memory_space<vmem>>, vector<64x128xf32>,
    %68 = vector.shape_cast %63 : vector<64x128xf32> to vector<8x8x128xf32>
    %c0_63 = arith.constant 0 : index
    %c0_64 = arith.constant 0 : index
    %69 = vector.load %arg7[%c0_63, %c0_64] : memref<8x128xf32, #tpu.memory_space<vmem>>, vector<8x128xf32>
    %cst_65 = arith.constant dense<0.000000e+00> : vector<8x128xf32>
    %70 = vector.multi_reduction <add>, %68, %cst_65 [0] : vector<8x8x128xf32> to vector<8x128xf32>
    %71 = arith.addf %69, %70 : vector<8x128xf32>
    %c0_66 = arith.constant 0 : index
    %c0_67 = arith.constant 0 : index
    %72 = vector.load %arg7[%c0_66, %c0_67] : memref<8x128xf32, #tpu.memory_space<vmem>>, vector<8x128xf32>
    tpu.vector_store %arg7[%c0_66, %c0_67], %71 {strides = array<i32>} : memref<8x128xf32, #tpu.memory_space<vmem>>, vector<8x128xf32>,
    %c0_68 = arith.constant 0 : index
    %c0_69 = arith.constant 0 : index
    %73 = vector.load %arg8[%c0_68, %c0_69] : memref<8x128xf32, #tpu.memory_space<vmem>>, vector<8x128xf32>
    %74 = arith.mulf %68, %68 : vector<8x8x128xf32>
    %cst_70 = arith.constant dense<0.000000e+00> : vector<8x128xf32>
    %75 = vector.multi_reduction <add>, %74, %cst_70 [0] : vector<8x8x128xf32> to vector<8x128xf32>
    %76 = arith.addf %73, %75 : vector<8x128xf32>
    %c0_71 = arith.constant 0 : index
    %c0_72 = arith.constant 0 : index
    %77 = vector.load %arg8[%c0_71, %c0_72] : memref<8x128xf32, #tpu.memory_space<vmem>>, vector<8x128xf32>
    tpu.vector_store %arg8[%c0_71, %c0_72], %76 {strides = array<i32>} : memref<8x128xf32, #tpu.memory_space<vmem>>, vector<8x128xf32>,
    %c0_i32_73 = arith.constant 0 : i32
    %78 = arith.cmpi eq, %arg0, %c0_i32_73 : i32
    %79 = arith.extui %78 : i1 to i32
    %c0_i32_74 = arith.constant 0 : i32
    %80 = arith.cmpi ne, %79, %c0_i32_74 : i32
    scf.if %80 {
      %c0_75 = arith.constant 0 : index
      %c0_76 = arith.constant 0 : index
      %81 = vector.load %arg7[%c0_75, %c0_76] : memref<8x128xf32, #tpu.memory_space<vmem>>, vector<8x128xf32>
      %cst_77 = arith.constant dense<0.000000e+00> : vector<128xf32>
      %82 = vector.multi_reduction <add>, %81, %cst_77 [0] : vector<8x128xf32> to vector<128xf32>
      %83 = vector.shape_cast %82 : vector<128xf32> to vector<1x128xf32>
      %c0_78 = arith.constant 0 : index
      %c0_79 = arith.constant 0 : index
      %84 = vector.load %arg8[%c0_78, %c0_79] : memref<8x128xf32, #tpu.memory_space<vmem>>, vector<8x128xf32>
      %cst_80 = arith.constant dense<0.000000e+00> : vector<128xf32>
      %85 = vector.multi_reduction <add>, %84, %cst_80 [0] : vector<8x128xf32> to vector<128xf32>
      %86 = vector.shape_cast %85 : vector<128xf32> to vector<1x128xf32>
      %cst_81 = arith.constant 3.125000e-02 : f32
      %87 = vector.broadcast %cst_81 : f32 to vector<1x128xf32>
      %88 = arith.mulf %83, %87 : vector<1x128xf32>
      %cst_82 = arith.constant 3.125000e-02 : f32
      %89 = vector.broadcast %cst_82 : f32 to vector<1x128xf32>
      %90 = arith.mulf %86, %89 : vector<1x128xf32>
      %91 = arith.mulf %88, %88 : vector<1x128xf32>
      %92 = arith.subf %90, %91 : vector<1x128xf32>
      %cst_83 = arith.constant 0.000000e+00 : f32
      %93 = vector.broadcast %cst_83 : f32 to vector<1x128xf32>
      %94 = arith.maximumf %92, %93 : vector<1x128xf32>
      %cst_84 = arith.constant 9.99999974E-6 : f32
      %95 = vector.broadcast %cst_84 : f32 to vector<1x128xf32>
      %96 = arith.addf %94, %95 : vector<1x128xf32>
      %97 = math.rsqrt %96 : vector<1x128xf32>
      %c0_85 = arith.constant 0 : index
      %c0_86 = arith.constant 0 : index
      %98 = vector.load %arg3[%c0_85, %c0_86] : memref<1x128xf32, #tpu.memory_space<vmem>>, vector<1x128xf32>
      %99 = arith.mulf %97, %98 : vector<1x128xf32>
      %c0_87 = arith.constant 0 : index
      %c0_88 = arith.constant 0 : index
      %100 = vector.load %arg4[%c0_87, %c0_88] : memref<1x128xf32, #tpu.memory_space<vmem>>, vector<1x128xf32>
      %101 = arith.mulf %88, %99 : vector<1x128xf32>
      %102 = arith.subf %100, %101 : vector<1x128xf32>
      %c0_i32_89 = arith.constant 0 : i32
      %c64_i32_90 = arith.constant 64 : i32
      %103 = arith.muli %c0_i32_89, %c64_i32_90 : i32
      %104 = tpu.assume_multiple %103, 64 : i32
      %105 = arith.index_cast %104 : i32 to index
      %c0_91 = arith.constant 0 : index
      %106 = vector.load %arg6[%105, %c0_91] : memref<64x128xf32, #tpu.memory_space<vmem>>, vector<64x128xf32>
      %107 = vector.broadcast %99 : vector<1x128xf32> to vector<64x128xf32>
      %108 = arith.mulf %106, %107 : vector<64x128xf32>
      %109 = vector.broadcast %102 : vector<1x128xf32> to vector<64x128xf32>
      %110 = arith.addf %108, %109 : vector<64x128xf32>
      %cst_92 = arith.constant 0.000000e+00 : f32
      %111 = vector.broadcast %cst_92 : f32 to vector<64x128xf32>
      %112 = arith.cmpf ogt, %110, %111 : vector<64x128xf32>
      %cst_93 = arith.constant 2.000000e-01 : f32
      %113 = vector.broadcast %cst_93 : f32 to vector<64x128xf32>
      %114 = arith.mulf %113, %110 : vector<64x128xf32>
      %115 = arith.select %112, %110, %114 : vector<64x128xi1>, vector<64x128xf32>
      %116 = arith.truncf %115 : vector<64x128xf32> to vector<64x128xbf16>
      %117 = arith.index_cast %104 : i32 to index
      %c0_94 = arith.constant 0 : index
      %118 = vector.load %arg5[%117, %c0_94] : memref<64x128xbf16, #tpu.memory_space<vmem>>, vector<64x128xbf16>
      tpu.vector_store %arg5[%117, %c0_94], %116 {strides = array<i32>} : memref<64x128xbf16, #tpu.memory_space<vmem>>, vector<64x128xbf16>,
      %c1_i32 = arith.constant 1 : i32
    } else {
    }
    return
  }
  func.func @transform_0(%arg0: i32) -> (i32, i32, i32, i32) {
    %c0_i32 = arith.constant 0 : i32
    %c0_i32_0 = arith.constant 0 : i32
    %c0_i32_1 = arith.constant 0 : i32
    %c0_i32_2 = arith.constant 0 : i32
    return %arg0, %c0_i32, %c0_i32_0, %c0_i32_1 : i32, i32, i32, i32
  }
  func.func @transform_1(%arg0: i32) -> (i32, i32, i32) {
    %c0_i32 = arith.constant 0 : i32
    %c0_i32_0 = arith.constant 0 : i32
    %c0_i32_1 = arith.constant 0 : i32
    %c0_i32_2 = arith.constant 0 : i32
    return %c0_i32, %c0_i32_0, %c0_i32_1 : i32, i32, i32
  }
  func.func @transform_2(%arg0: i32) -> (i32, i32) {
    %c0_i32 = arith.constant 0 : i32
    %c0_i32_0 = arith.constant 0 : i32
    %c0_i32_1 = arith.constant 0 : i32
    return %c0_i32, %c0_i32_0 : i32, i32
  }
  func.func @transform_3(%arg0: i32) -> (i32, i32) {
    %c0_i32 = arith.constant 0 : i32
    %c0_i32_0 = arith.constant 0 : i32
    %c0_i32_1 = arith.constant 0 : i32
    return %c0_i32, %c0_i32_0 : i32, i32
  }
  func.func @transform_4(%arg0: i32) -> (i32, i32) {
    %c0_i32 = arith.constant 0 : i32
    %c0_i32_0 = arith.constant 0 : i32
    %c0_i32_1 = arith.constant 0 : i32
    return %c0_i32, %c0_i32_0 : i32, i32
  }
}

module attributes {stable_mosaic.version = 11 : i64} {
  func.func @_mm_bias_act_kernel(%arg0: i32, %arg1: memref<128x1024xbf16, #tpu.memory_space<vmem>>, %arg2: memref<1024x128xbf16, #tpu.memory_space<vmem>>, %arg3: memref<1x128xf32, #tpu.memory_space<vmem>>, %arg4: memref<128x128xf32, #tpu.memory_space<vmem>>) attributes {dimension_semantics = [#tpu.dimension_semantics<parallel>], iteration_bounds = array<i64: 1>, scalar_prefetch = 0 : i64, scratch_operands = 0 : i64, tpu.core_type = #tpu.core_type<tc>, window_params = [{transform_indices = @transform_0, window_bounds = array<i64: 128, 1024>}, {pipeline_mode = #tpu.pipeline_mode<synchronous>, transform_indices = @transform_1, window_bounds = array<i64: 1024, 128>}, {pipeline_mode = #tpu.pipeline_mode<synchronous>, transform_indices = @transform_2, window_bounds = array<i64: 1, 128>}, {transform_indices = @transform_3, window_bounds = array<i64: 128, 128>}]} {
    %c0 = arith.constant 0 : index
    %c0_0 = arith.constant 0 : index
    %0 = vector.load %arg1[%c0, %c0_0] : memref<128x1024xbf16, #tpu.memory_space<vmem>>, vector<128x1024xbf16>
    %c0_1 = arith.constant 0 : index
    %c0_2 = arith.constant 0 : index
    %1 = vector.load %arg2[%c0_1, %c0_2] : memref<1024x128xbf16, #tpu.memory_space<vmem>>, vector<1024x128xbf16>
    %cst = arith.constant dense<0.000000e+00> : vector<128x128xf32>
    %2 = tpu.matmul %0, %1, %cst {dimension_numbers = #tpu.dot_dimension_numbers<[1], [0], [0], [1], [0, 0, 1, 1], [], []>} : vector<128x1024xbf16>, vector<1024x128xbf16>, vector<128x128xf32> -> vector<128x128xf32>
    %c0_3 = arith.constant 0 : index
    %c0_4 = arith.constant 0 : index
    %3 = vector.load %arg3[%c0_3, %c0_4] : memref<1x128xf32, #tpu.memory_space<vmem>>, vector<1x128xf32>
    %4 = vector.broadcast %3 : vector<1x128xf32> to vector<128x128xf32>
    %5 = arith.addf %2, %4 : vector<128x128xf32>
    %cst_5 = arith.constant 0.000000e+00 : f32
    %6 = vector.broadcast %cst_5 : f32 to vector<128x128xf32>
    %7 = arith.subf %6, %5 : vector<128x128xf32>
    %8 = math.exp %7 : vector<128x128xf32>
    %cst_6 = arith.constant 1.000000e+00 : f32
    %9 = vector.broadcast %cst_6 : f32 to vector<128x128xf32>
    %10 = arith.addf %9, %8 : vector<128x128xf32>
    %11 = tpu.reciprocal %10 {approx = true} : vector<128x128xf32> -> vector<128x128xf32>
    %cst_7 = arith.constant 1.000000e+00 : f32
    %12 = vector.broadcast %cst_7 : f32 to vector<128x128xf32>
    %13 = arith.minimumf %11, %12 : vector<128x128xf32>
    %c0_8 = arith.constant 0 : index
    %c0_9 = arith.constant 0 : index
    %14 = vector.load %arg4[%c0_8, %c0_9] : memref<128x128xf32, #tpu.memory_space<vmem>>, vector<128x128xf32>
    tpu.vector_store %arg4[%c0_8, %c0_9], %13 {strides = array<i32>} : memref<128x128xf32, #tpu.memory_space<vmem>>, vector<128x128xf32>,
    return
  }
  func.func @transform_0(%arg0: i32) -> (i32, i32) {
    %c0_i32 = arith.constant 0 : i32
    %c0_i32_0 = arith.constant 0 : i32
    return %arg0, %c0_i32 : i32, i32
  }
  func.func @transform_1(%arg0: i32) -> (i32, i32) {
    %c0_i32 = arith.constant 0 : i32
    %c0_i32_0 = arith.constant 0 : i32
    %c0_i32_1 = arith.constant 0 : i32
    return %c0_i32, %c0_i32_0 : i32, i32
  }
  func.func @transform_2(%arg0: i32) -> (i32, i32) {
    %c0_i32 = arith.constant 0 : i32
    %c0_i32_0 = arith.constant 0 : i32
    %c0_i32_1 = arith.constant 0 : i32
    return %c0_i32, %c0_i32_0 : i32, i32
  }
  func.func @transform_3(%arg0: i32) -> (i32, i32) {
    %c0_i32 = arith.constant 0 : i32
    %c0_i32_0 = arith.constant 0 : i32
    return %arg0, %c0_i32 : i32, i32
  }
}

</mosaic_0001>

<llo_original>
// kernel: dc_discriminator.4
$region0: #{dc_discriminator.4}
  #allocation0 [shape = 'u32[]', space=smem, size = 0x4, offset = 0x4, fixed_abs, tag = 'smem constant byte address 0x4 - core index']
  #allocation1 [shape = 'u32[72,128]{1,0:T(1,128)}', space=vmem, size = 0x9000, scoped, tag = 'internal scratch']
  %s0 = inlined_call_operand.vmem [shape: bf16[512,16], index: 0, kind: input, shape index: {}]
  %s1 = inlined_call_operand.vmem [shape: bf16[16,128], index: 1, kind: input, shape index: {}]
  %s2 = inlined_call_operand.vmem [shape: f32[1,128], index: 2, kind: input, shape index: {}]
  %s3 = inlined_call_operand.vmem [shape: bf16[512,128], index: 3, kind: output, shape index: {}]
  %s4 = sld [smem:[#allocation0]]
  $region22: #{dc_discriminator.4} parent=0
    _
  %s6 = ssub.s32 1, %s4
  %s7 = scalar_select 0, %s6, %s4
  // Predicated region
  $region2: #{dc_discriminator.4} parent=0 // pred_check
    _
  $region3: #{dc_discriminator.4} parent=0 // pred_check_branch
    %9 = sbr.rel (0) target = $region5
  $region4: #{dc_discriminator.4} parent=0 // pred_region
    _
  $region5: #{dc_discriminator.4} parent=0 // pred_fallthru
    _
  // Predicated region
  $region6: #{dc_discriminator.4} parent=0 // pred_check
    _
  $region7: #{dc_discriminator.4} parent=0 // pred_check_branch
    %11 = sbr.rel (0) target = $region9
  $region8: #{dc_discriminator.4} parent=0 // pred_region
    _
  $region9: #{dc_discriminator.4} parent=0 // pred_fallthru
    _
  // Predicated region
  $region10: #{dc_discriminator.4} parent=0 // pred_check
    _
  $region11: #{dc_discriminator.4} parent=0 // pred_check_branch
    %13 = sbr.rel (0) target = $region13
  $region12: #{dc_discriminator.4} parent=0 // pred_region
    _
  $region13: #{dc_discriminator.4} parent=0 // pred_fallthru
    _
  %v15 = vld [vmem:[%s0] sm:$0xf]
  %v16 = vld [vmem:[%s0 + $0x4] sm:$0xf]
  %v17 = vld [vmem:[%s0 + $0x8] sm:$0xf]
  %v18 = vld [vmem:[%s0 + $0xc] sm:$0xf]
  %v19 = vld [vmem:[%s0 + $0x10] sm:$0xf]
  %v20 = vld [vmem:[%s0 + $0x14] sm:$0xf]
  %v21 = vld [vmem:[%s0 + $0x18] sm:$0xf]
  %v22 = vld [vmem:[%s0 + $0x1c] sm:$0xf]
  %v23 = vld [vmem:[%s0 + $0x20] sm:$0xf]
  %v24 = vld [vmem:[%s0 + $0x24] sm:$0xf]
  %v25 = vld [vmem:[%s0 + $0x28] sm:$0xf]
  %v26 = vld [vmem:[%s0 + $0x2c] sm:$0xf]
  %v27 = vld [vmem:[%s0 + $0x30] sm:$0xf]
  %v28 = vld [vmem:[%s0 + $0x34] sm:$0xf]
  %v29 = vld [vmem:[%s0 + $0x38] sm:$0xf]
  %v30 = vld [vmem:[%s0 + $0x3c] sm:$0xf]
  %v31 = vld [vmem:[%s0 + $0x40] sm:$0xf]
  %v32 = vld [vmem:[%s0 + $0x44] sm:$0xf]
  %v33 = vld [vmem:[%s0 + $0x48] sm:$0xf]
  %v34 = vld [vmem:[%s0 + $0x4c] sm:$0xf]
  %v35 = vld [vmem:[%s0 + $0x50] sm:$0xf]
  %v36 = vld [vmem:[%s0 + $0x54] sm:$0xf]
  %v37 = vld [vmem:[%s0 + $0x58] sm:$0xf]
  %v38 = vld [vmem:[%s0 + $0x5c] sm:$0xf]
  %v39 = vld [vmem:[%s0 + $0x60] sm:$0xf]
  %v40 = vld [vmem:[%s0 + $0x64] sm:$0xf]
  %v41 = vld [vmem:[%s0 + $0x68] sm:$0xf]
  %v42 = vld [vmem:[%s0 + $0x6c] sm:$0xf]
  %v43 = vld [vmem:[%s0 + $0x70] sm:$0xf]
  %v44 = vld [vmem:[%s0 + $0x74] sm:$0xf]
  %v45 = vld [vmem:[%s0 + $0x78] sm:$0xf]
  %v46 = vld [vmem:[%s0 + $0x7c] sm:$0xf]
  %v47 = vld [vmem:[%s0 + $0x80] sm:$0xf]
  %v48 = vld [vmem:[%s0 + $0x84] sm:$0xf]
  %v49 = vld [vmem:[%s0 + $0x88] sm:$0xf]
  %v50 = vld [vmem:[%s0 + $0x8c] sm:$0xf]
  %v51 = vld [vmem:[%s0 + $0x90] sm:$0xf]
  %v52 = vld [vmem:[%s0 + $0x94] sm:$0xf]
  %v53 = vld [vmem:[%s0 + $0x98] sm:$0xf]
  %v54 = vld [vmem:[%s0 + $0x9c] sm:$0xf]
  %v55 = vld [vmem:[%s0 + $0xa0] sm:$0xf]
  %v56 = vld [vmem:[%s0 + $0xa4] sm:$0xf]
  %v57 = vld [vmem:[%s0 + $0xa8] sm:$0xf]
  %v58 = vld [vmem:[%s0 + $0xac] sm:$0xf]
  %v59 = vld [vmem:[%s0 + $0xb0] sm:$0xf]
  %v60 = vld [vmem:[%s0 + $0xb4] sm:$0xf]
  %v61 = vld [vmem:[%s0 + $0xb8] sm:$0xf]
  %v62 = vld [vmem:[%s0 + $0xbc] sm:$0xf]
  %v63 = vld [vmem:[%s0 + $0xc0] sm:$0xf]
  %v64 = vld [vmem:[%s0 + $0xc4] sm:$0xf]
  %v65 = vld [vmem:[%s0 + $0xc8] sm:$0xf]
  %v66 = vld [vmem:[%s0 + $0xcc] sm:$0xf]
  %v67 = vld [vmem:[%s0 + $0xd0] sm:$0xf]
  %v68 = vld [vmem:[%s0 + $0xd4] sm:$0xf]
  %v69 = vld [vmem:[%s0 + $0xd8] sm:$0xf]
  %v70 = vld [vmem:[%s0 + $0xdc] sm:$0xf]
  %v71 = vld [vmem:[%s0 + $0xe0] sm:$0xf]
  %v72 = vld [vmem:[%s0 + $0xe4] sm:$0xf]
  %v73 = vld [vmem:[%s0 + $0xe8] sm:$0xf]
  %v74 = vld [vmem:[%s0 + $0xec] sm:$0xf]
  %v75 = vld [vmem:[%s0 + $0xf0] sm:$0xf]
  %v76 = vld [vmem:[%s0 + $0xf4] sm:$0xf]
  %v77 = vld [vmem:[%s0 + $0xf8] sm:$0xf]
  %v78 = vld [vmem:[%s0 + $0xfc] sm:$0xf]
  %v79 = vld [vmem:[%s1] sm:$0xf]
  %v80 = vld [vmem:[%s1 + $0x4] sm:$0xf]
  %v81 = vld [vmem:[%s2] sm:$0x1]
  %v83 = vperm.slane %v81, 0
  %v149 = vunpack.c.l.b16 %v15
  %v150 = vunpack.c.l.b16 %v16
  %v151 = vunpack.c.l.b16 %v17
  %v152 = vunpack.c.l.b16 %v18
  %v153 = vunpack.c.l.b16 %v19
  %v154 = vunpack.c.l.b16 %v20
  %v155 = vunpack.c.l.b16 %v21
  %v156 = vunpack.c.l.b16 %v22
  %v157 = vunpack.c.l.b16 %v23
  %v158 = vunpack.c.l.b16 %v24
  %v159 = vunpack.c.l.b16 %v25
  %v160 = vunpack.c.l.b16 %v26
  %v161 = vunpack.c.l.b16 %v27
  %v162 = vunpack.c.l.b16 %v28
  %v163 = vunpack.c.l.b16 %v29
  %v164 = vunpack.c.l.b16 %v30
  %v165 = vunpack.c.l.b16 %v31
  %v166 = vunpack.c.l.b16 %v32
  %v167 = vunpack.c.l.b16 %v33
  %v168 = vunpack.c.l.b16 %v34
  %v169 = vunpack.c.l.b16 %v35
  %v170 = vunpack.c.l.b16 %v36
  %v171 = vunpack.c.l.b16 %v37
  %v172 = vunpack.c.l.b16 %v38
  %v173 = vunpack.c.l.b16 %v39
  %v174 = vunpack.c.l.b16 %v40
  %v175 = vunpack.c.l.b16 %v41
  %v176 = vunpack.c.l.b16 %v42
  %v177 = vunpack.c.l.b16 %v43
  %v178 = vunpack.c.l.b16 %v44
  %v179 = vunpack.c.l.b16 %v45
  %v180 = vunpack.c.l.b16 %v46
  %v181 = vunpack.c.l.b16 %v47
  %v182 = vunpack.c.l.b16 %v48
  %v183 = vunpack.c.l.b16 %v49
  %v184 = vunpack.c.l.b16 %v50
  %v185 = vunpack.c.l.b16 %v51
  %v186 = vunpack.c.l.b16 %v52
  %v187 = vunpack.c.l.b16 %v53
  %v188 = vunpack.c.l.b16 %v54
  %v189 = vunpack.c.l.b16 %v55
  %v190 = vunpack.c.l.b16 %v56
  %v191 = vunpack.c.l.b16 %v57
  %v192 = vunpack.c.l.b16 %v58
  %v193 = vunpack.c.l.b16 %v59
  %v194 = vunpack.c.l.b16 %v60
  %v195 = vunpack.c.l.b16 %v61
  %v196 = vunpack.c.l.b16 %v62
  %v197 = vunpack.c.l.b16 %v63
  %v198 = vunpack.c.l.b16 %v64
  %v199 = vunpack.c.l.b16 %v65
  %v200 = vunpack.c.l.b16 %v66
  %v201 = vunpack.c.l.b16 %v67
  %v202 = vunpack.c.l.b16 %v68
  %v203 = vunpack.c.l.b16 %v69
  %v204 = vunpack.c.l.b16 %v70
  %v205 = vunpack.c.l.b16 %v71
  %v206 = vunpack.c.l.b16 %v72
  %v207 = vunpack.c.l.b16 %v73
  %v208 = vunpack.c.l.b16 %v74
  %v209 = vunpack.c.l.b16 %v75
  %v210 = vunpack.c.l.b16 %v76
  %v211 = vunpack.c.l.b16 %v77
  %v212 = vunpack.c.l.b16 %v78
  %v213 = vpack.c.b16 %v150, %v149
  %v214 = vpack.c.b16 %v152, %v151
  %v215 = vpack.c.b16 %v154, %v153
  %v216 = vpack.c.b16 %v156, %v155
  %v217 = vpack.c.b16 %v158, %v157
  %v218 = vpack.c.b16 %v160, %v159
  %v219 = vpack.c.b16 %v162, %v161
  %v220 = vpack.c.b16 %v164, %v163
  %v221 = vpack.c.b16 %v166, %v165
  %v222 = vpack.c.b16 %v168, %v167
  %v223 = vpack.c.b16 %v170, %v169
  %v224 = vpack.c.b16 %v172, %v171
  %v225 = vpack.c.b16 %v174, %v173
  %v226 = vpack.c.b16 %v176, %v175
  %v227 = vpack.c.b16 %v178, %v177
  %v228 = vpack.c.b16 %v180, %v179
  %v229 = vpack.c.b16 %v182, %v181
  %v230 = vpack.c.b16 %v184, %v183
  %v231 = vpack.c.b16 %v186, %v185
  %v232 = vpack.c.b16 %v188, %v187
  %v233 = vpack.c.b16 %v190, %v189
  %v234 = vpack.c.b16 %v192, %v191
  %v235 = vpack.c.b16 %v194, %v193
  %v236 = vpack.c.b16 %v196, %v195
  %v237 = vpack.c.b16 %v198, %v197
  %v238 = vpack.c.b16 %v200, %v199
  %v239 = vpack.c.b16 %v202, %v201
  %v240 = vpack.c.b16 %v204, %v203
  %v241 = vpack.c.b16 %v206, %v205
  %v242 = vpack.c.b16 %v208, %v207
  %v243 = vpack.c.b16 %v210, %v209
  %v244 = vpack.c.b16 %v212, %v211
  %v247 = vunpack.c.l.b16 %v79
  %v248 = vunpack.c.l.b16 %v80
  %v249 = vpack.c.b16 %v248, %v247
  %vm251 = vcmask 130048
  %v253 = vsel %vm251, %v213, 0
  %v256 = vsel %vm251, %v214, 0
  %v259 = vsel %vm251, %v215, 0
  %v262 = vsel %vm251, %v216, 0
  %v265 = vsel %vm251, %v217, 0
  %v268 = vsel %vm251, %v218, 0
  %v271 = vsel %vm251, %v219, 0
  %v274 = vsel %vm251, %v220, 0
  %v277 = vsel %vm251, %v221, 0
  %v280 = vsel %vm251, %v222, 0
  %v283 = vsel %vm251, %v223, 0
  %v286 = vsel %vm251, %v224, 0
  %v289 = vsel %vm251, %v225, 0
  %v292 = vsel %vm251, %v226, 0
  %v295 = vsel %vm251, %v227, 0
  %v298 = vsel %vm251, %v228, 0
  %v301 = vsel %vm251, %v229, 0
  %v304 = vsel %vm251, %v230, 0
  %v307 = vsel %vm251, %v231, 0
  %v310 = vsel %vm251, %v232, 0
  %v313 = vsel %vm251, %v233, 0
  %v316 = vsel %vm251, %v234, 0
  %v319 = vsel %vm251, %v235, 0
  %v322 = vsel %vm251, %v236, 0
  %v325 = vsel %vm251, %v237, 0
  %v328 = vsel %vm251, %v238, 0
  %v331 = vsel %vm251, %v239, 0
  %v334 = vsel %vm251, %v240, 0
  %v337 = vsel %vm251, %v241, 0
  %v340 = vsel %vm251, %v242, 0
  %v343 = vsel %vm251, %v243, 0
  %v346 = vsel %vm251, %v244, 0
  %348 = vmatpush.bf16.msra.mxu0 0
  %349 = vmatpush.bf16.msra.mxu0 0
  %350 = vmatpush.bf16.msra.mxu0 0
  %351 = vmatpush.bf16.msra.mxu0 0
  %352 = vmatpush.bf16.msra.mxu0 0
  %353 = vmatpush.bf16.msra.mxu0 0
  %354 = vmatpush.bf16.msra.mxu0 0
  %355 = vmatpush.bf16.msra.mxu0 %v249
  %356 = vmatmul.bf16.gmra.mxu0 %v253
  %v357 = vpop.f32.mrf.mxu0
  %v358 = vadd.f32 %v83, %v357
  %v359 = vpop.f32.mrf.mxu0
  %v360 = vadd.f32 %v83, %v359
  %361 = vmatmul.bf16.gmra.mxu0 %v256
  %v362 = vpop.f32.mrf.mxu0
  %v363 = vadd.f32 %v83, %v362
  %v364 = vpop.f32.mrf.mxu0
  %v365 = vadd.f32 %v83, %v364
  %366 = vmatmul.bf16.gmra.mxu0 %v259
  %v367 = vpop.f32.mrf.mxu0
  %v368 = vadd.f32 %v83, %v367
  %v369 = vpop.f32.mrf.mxu0
  %v370 = vadd.f32 %v83, %v369
  %371 = vmatmul.bf16.gmra.mxu0 %v262
  %v372 = vpop.f32.mrf.mxu0
  %v373 = vadd.f32 %v83, %v372
  %v374 = vpop.f32.mrf.mxu0
  %v375 = vadd.f32 %v83, %v374
  %376 = vmatmul.bf16.gmra.mxu0 %v265
  %v377 = vpop.f32.mrf.mxu0
  %v378 = vadd.f32 %v83, %v377
  %v379 = vpop.f32.mrf.mxu0
  %v380 = vadd.f32 %v83, %v379
  %381 = vmatmul.bf16.gmra.mxu0 %v268
  %v382 = vpop.f32.mrf.mxu0
  %v383 = vadd.f32 %v83, %v382
  %v384 = vpop.f32.mrf.mxu0
  %v385 = vadd.f32 %v83, %v384
  %386 = vmatmul.bf16.gmra.mxu0 %v271
  %v387 = vpop.f32.mrf.mxu0
  %v388 = vadd.f32 %v83, %v387
  %v389 = vpop.f32.mrf.mxu0
  %v390 = vadd.f32 %v83, %v389
  %391 = vmatmul.bf16.gmra.mxu0 %v274
  %v392 = vpop.f32.mrf.mxu0
  %v393 = vadd.f32 %v83, %v392
  %v394 = vpop.f32.mrf.mxu0
  %v395 = vadd.f32 %v83, %v394
  %396 = vmatmul.bf16.gmra.mxu0 %v277
  %v397 = vpop.f32.mrf.mxu0
  %v398 = vadd.f32 %v83, %v397
  %v399 = vpop.f32.mrf.mxu0
  %v400 = vadd.f32 %v83, %v399
  %401 = vmatmul.bf16.gmra.mxu0 %v280
  %v402 = vpop.f32.mrf.mxu0
  %v403 = vadd.f32 %v83, %v402
  %v404 = vpop.f32.mrf.mxu0
  %v405 = vadd.f32 %v83, %v404
  %406 = vmatmul.bf16.gmra.mxu0 %v283
  %v407 = vpop.f32.mrf.mxu0
  %v408 = vadd.f32 %v83, %v407
  %v409 = vpop.f32.mrf.mxu0
  %v410 = vadd.f32 %v83, %v409
  %411 = vmatmul.bf16.gmra.mxu0 %v286
  %v412 = vpop.f32.mrf.mxu0
  %v413 = vadd.f32 %v83, %v412
  %v414 = vpop.f32.mrf.mxu0
  %v415 = vadd.f32 %v83, %v414
  %416 = vmatmul.bf16.gmra.mxu0 %v289
  %v417 = vpop.f32.mrf.mxu0
  %v418 = vadd.f32 %v83, %v417
  %v419 = vpop.f32.mrf.mxu0
  %v420 = vadd.f32 %v83, %v419
  %421 = vmatmul.bf16.gmra.mxu0 %v292
  %v422 = vpop.f32.mrf.mxu0
  %v423 = vadd.f32 %v83, %v422
  %v424 = vpop.f32.mrf.mxu0
  %v425 = vadd.f32 %v83, %v424
  %426 = vmatmul.bf16.gmra.mxu0 %v295
  %v427 = vpop.f32.mrf.mxu0
  %v428 = vadd.f32 %v83, %v427
  %v429 = vpop.f32.mrf.mxu0
  %v430 = vadd.f32 %v83, %v429
  %431 = vmatmul.bf16.gmra.mxu0 %v298
  %v432 = vpop.f32.mrf.mxu0
  %v433 = vadd.f32 %v83, %v432
  %v434 = vpop.f32.mrf.mxu0
  %v435 = vadd.f32 %v83, %v434
  %436 = vmatmul.bf16.gmra.mxu0 %v301
  %v437 = vpop.f32.mrf.mxu0
  %v438 = vadd.f32 %v83, %v437
  %v439 = vpop.f32.mrf.mxu0
  %v440 = vadd.f32 %v83, %v439
  %441 = vmatmul.bf16.gmra.mxu0 %v304
  %v442 = vpop.f32.mrf.mxu0
  %v443 = vadd.f32 %v83, %v442
  %v444 = vpop.f32.mrf.mxu0
  %v445 = vadd.f32 %v83, %v444
  %446 = vmatmul.bf16.gmra.mxu0 %v307
  %v447 = vpop.f32.mrf.mxu0
  %v448 = vadd.f32 %v83, %v447
  %v449 = vpop.f32.mrf.mxu0
  %v450 = vadd.f32 %v83, %v449
  %451 = vmatmul.bf16.gmra.mxu0 %v310
  %v452 = vpop.f32.mrf.mxu0
  %v453 = vadd.f32 %v83, %v452
  %v454 = vpop.f32.mrf.mxu0
  %v455 = vadd.f32 %v83, %v454
  %456 = vmatmul.bf16.gmra.mxu0 %v313
  %v457 = vpop.f32.mrf.mxu0
  %v458 = vadd.f32 %v83, %v457
  %v459 = vpop.f32.mrf.mxu0
  %v460 = vadd.f32 %v83, %v459
  %461 = vmatmul.bf16.gmra.mxu0 %v316
  %v462 = vpop.f32.mrf.mxu0
  %v463 = vadd.f32 %v83, %v462
  %v464 = vpop.f32.mrf.mxu0
  %v465 = vadd.f32 %v83, %v464
  %466 = vmatmul.bf16.gmra.mxu0 %v319
  %v467 = vpop.f32.mrf.mxu0
  %v468 = vadd.f32 %v83, %v467
  %v469 = vpop.f32.mrf.mxu0
  %v470 = vadd.f32 %v83, %v469
  %471 = vmatmul.bf16.gmra.mxu0 %v322
  %v472 = vpop.f32.mrf.mxu0
  %v473 = vadd.f32 %v83, %v472
  %v474 = vpop.f32.mrf.mxu0
  %v475 = vadd.f32 %v83, %v474
  %476 = vmatmul.bf16.gmra.mxu0 %v325
  %v477 = vpop.f32.mrf.mxu0
  %v478 = vadd.f32 %v83, %v477
  %v479 = vpop.f32.mrf.mxu0
  %v480 = vadd.f32 %v83, %v479
  %481 = vmatmul.bf16.gmra.mxu0 %v328
  %v482 = vpop.f32.mrf.mxu0
  %v483 = vadd.f32 %v83, %v482
  %v484 = vpop.f32.mrf.mxu0
  %v485 = vadd.f32 %v83, %v484
  %486 = vmatmul.bf16.gmra.mxu0 %v331
  %v487 = vpop.f32.mrf.mxu0
  %v488 = vadd.f32 %v83, %v487
  %v489 = vpop.f32.mrf.mxu0
  %v490 = vadd.f32 %v83, %v489
  %491 = vmatmul.bf16.gmra.mxu0 %v334
  %v492 = vpop.f32.mrf.mxu0
  %v493 = vadd.f32 %v83, %v492
  %v494 = vpop.f32.mrf.mxu0
  %v495 = vadd.f32 %v83, %v494
  %496 = vmatmul.bf16.gmra.mxu0 %v337
  %v497 = vpop.f32.mrf.mxu0
  %v498 = vadd.f32 %v83, %v497
  %v499 = vpop.f32.mrf.mxu0
  %v500 = vadd.f32 %v83, %v499
  %501 = vmatmul.bf16.gmra.mxu0 %v340
  %v502 = vpop.f32.mrf.mxu0
  %v503 = vadd.f32 %v83, %v502
  %v504 = vpop.f32.mrf.mxu0
  %v505 = vadd.f32 %v83, %v504
  %506 = vmatmul.bf16.gmra.mxu0 %v343
  %v507 = vpop.f32.mrf.mxu0
  %v508 = vadd.f32 %v83, %v507
  %v509 = vpop.f32.mrf.mxu0
  %v510 = vadd.f32 %v83, %v509
  %511 = vmatmul.bf16.gmra.mxu0 %v346
  %v512 = vpop.f32.mrf.mxu0
  %v513 = vadd.f32 %v83, %v512
  %v514 = vpop.f32.mrf.mxu0
  %v515 = vadd.f32 %v83, %v514
  %516 = vdwg.mxu0
  %vm517 = vcmp.gt.f32.partialorder %v358, 0.0
  %vm518 = vcmp.gt.f32.partialorder %v360, 0.0
  %vm519 = vcmp.gt.f32.partialorder %v363, 0.0
  %vm520 = vcmp.gt.f32.partialorder %v365, 0.0
  %vm521 = vcmp.gt.f32.partialorder %v368, 0.0
  %vm522 = vcmp.gt.f32.partialorder %v370, 0.0
  %vm523 = vcmp.gt.f32.partialorder %v373, 0.0
  %vm524 = vcmp.gt.f32.partialorder %v375, 0.0
  %vm525 = vcmp.gt.f32.partialorder %v378, 0.0
  %vm526 = vcmp.gt.f32.partialorder %v380, 0.0
  %vm527 = vcmp.gt.f32.partialorder %v383, 0.0
  %vm528 = vcmp.gt.f32.partialorder %v385, 0.0
  %vm529 = vcmp.gt.f32.partialorder %v388, 0.0
  %vm530 = vcmp.gt.f32.partialorder %v390, 0.0
  %vm531 = vcmp.gt.f32.partialorder %v393, 0.0
  %vm532 = vcmp.gt.f32.partialorder %v395, 0.0
  %vm533 = vcmp.gt.f32.partialorder %v398, 0.0
  %vm534 = vcmp.gt.f32.partialorder %v400, 0.0
  %vm535 = vcmp.gt.f32.partialorder %v403, 0.0
  %vm536 = vcmp.gt.f32.partialorder %v405, 0.0
  %vm537 = vcmp.gt.f32.partialorder %v408, 0.0
  %vm538 = vcmp.gt.f32.partialorder %v410, 0.0
  %vm539 = vcmp.gt.f32.partialorder %v413, 0.0
  %vm540 = vcmp.gt.f32.partialorder %v415, 0.0
  %vm541 = vcmp.gt.f32.partialorder %v418, 0.0
  %vm542 = vcmp.gt.f32.partialorder %v420, 0.0
  %vm543 = vcmp.gt.f32.partialorder %v423, 0.0
  %vm544 = vcmp.gt.f32.partialorder %v425, 0.0
  %vm545 = vcmp.gt.f32.partialorder %v428, 0.0
  %vm546 = vcmp.gt.f32.partialorder %v430, 0.0
  %vm547 = vcmp.gt.f32.partialorder %v433, 0.0
  %vm548 = vcmp.gt.f32.partialorder %v435, 0.0
  %vm549 = vcmp.gt.f32.partialorder %v438, 0.0
  %vm550 = vcmp.gt.f32.partialorder %v440, 0.0
  %vm551 = vcmp.gt.f32.partialorder %v443, 0.0
  %vm552 = vcmp.gt.f32.partialorder %v445, 0.0
  %vm553 = vcmp.gt.f32.partialorder %v448, 0.0
  %vm554 = vcmp.gt.f32.partialorder %v450, 0.0
  %vm555 = vcmp.gt.f32.partialorder %v453, 0.0
  %vm556 = vcmp.gt.f32.partialorder %v455, 0.0
  %vm557 = vcmp.gt.f32.partialorder %v458, 0.0
  %vm558 = vcmp.gt.f32.partialorder %v460, 0.0
  %vm559 = vcmp.gt.f32.partialorder %v463, 0.0
  %vm560 = vcmp.gt.f32.partialorder %v465, 0.0
  %vm561 = vcmp.gt.f32.partialorder %v468, 0.0
  %vm562 = vcmp.gt.f32.partialorder %v470, 0.0
  %vm563 = vcmp.gt.f32.partialorder %v473, 0.0
  %vm564 = vcmp.gt.f32.partialorder %v475, 0.0
  %vm565 = vcmp.gt.f32.partialorder %v478, 0.0
  %vm566 = vcmp.gt.f32.partialorder %v480, 0.0
  %vm567 = vcmp.gt.f32.partialorder %v483, 0.0
  %vm568 = vcmp.gt.f32.partialorder %v485, 0.0
  %vm569 = vcmp.gt.f32.partialorder %v488, 0.0
  %vm570 = vcmp.gt.f32.partialorder %v490, 0.0
  %vm571 = vcmp.gt.f32.partialorder %v493, 0.0
  %vm572 = vcmp.gt.f32.partialorder %v495, 0.0
  %vm573 = vcmp.gt.f32.partialorder %v498, 0.0
  %vm574 = vcmp.gt.f32.partialorder %v500, 0.0
  %vm575 = vcmp.gt.f32.partialorder %v503, 0.0
  %vm576 = vcmp.gt.f32.partialorder %v505, 0.0
  %vm577 = vcmp.gt.f32.partialorder %v508, 0.0
  %vm578 = vcmp.gt.f32.partialorder %v510, 0.0
  %vm579 = vcmp.gt.f32.partialorder %v513, 0.0
  %vm580 = vcmp.gt.f32.partialorder %v515, 0.0
  %v581 = vmul.f32 %v358, 0.2
  %v582 = vmul.f32 %v360, 0.2
  %v583 = vmul.f32 %v363, 0.2
  %v584 = vmul.f32 %v365, 0.2
  %v585 = vmul.f32 %v368, 0.2
  %v586 = vmul.f32 %v370, 0.2
  %v587 = vmul.f32 %v373, 0.2
  %v588 = vmul.f32 %v375, 0.2
  %v589 = vmul.f32 %v378, 0.2
  %v590 = vmul.f32 %v380, 0.2
  %v591 = vmul.f32 %v383, 0.2
  %v592 = vmul.f32 %v385, 0.2
  %v593 = vmul.f32 %v388, 0.2
  %v594 = vmul.f32 %v390, 0.2
  %v595 = vmul.f32 %v393, 0.2
  %v596 = vmul.f32 %v395, 0.2
  %v597 = vmul.f32 %v398, 0.2
  %v598 = vmul.f32 %v400, 0.2
  %v599 = vmul.f32 %v403, 0.2
  %v600 = vmul.f32 %v405, 0.2
  %v601 = vmul.f32 %v408, 0.2
  %v602 = vmul.f32 %v410, 0.2
  %v603 = vmul.f32 %v413, 0.2
  %v604 = vmul.f32 %v415, 0.2
  %v605 = vmul.f32 %v418, 0.2
  %v606 = vmul.f32 %v420, 0.2
  %v607 = vmul.f32 %v423, 0.2
  %v608 = vmul.f32 %v425, 0.2
  %v609 = vmul.f32 %v428, 0.2
  %v610 = vmul.f32 %v430, 0.2
  %v611 = vmul.f32 %v433, 0.2
  %v612 = vmul.f32 %v435, 0.2
  %v613 = vmul.f32 %v438, 0.2
  %v614 = vmul.f32 %v440, 0.2
  %v615 = vmul.f32 %v443, 0.2
  %v616 = vmul.f32 %v445, 0.2
  %v617 = vmul.f32 %v448, 0.2
  %v618 = vmul.f32 %v450, 0.2
  %v619 = vmul.f32 %v453, 0.2
  %v620 = vmul.f32 %v455, 0.2
  %v621 = vmul.f32 %v458, 0.2
  %v622 = vmul.f32 %v460, 0.2
  %v623 = vmul.f32 %v463, 0.2
  %v624 = vmul.f32 %v465, 0.2
  %v625 = vmul.f32 %v468, 0.2
  %v626 = vmul.f32 %v470, 0.2
  %v627 = vmul.f32 %v473, 0.2
  %v628 = vmul.f32 %v475, 0.2
  %v629 = vmul.f32 %v478, 0.2
  %v630 = vmul.f32 %v480, 0.2
  %v631 = vmul.f32 %v483, 0.2
  %v632 = vmul.f32 %v485, 0.2
  %v633 = vmul.f32 %v488, 0.2
  %v634 = vmul.f32 %v490, 0.2
  %v635 = vmul.f32 %v493, 0.2
  %v636 = vmul.f32 %v495, 0.2
  %v637 = vmul.f32 %v498, 0.2
  %v638 = vmul.f32 %v500, 0.2
  %v639 = vmul.f32 %v503, 0.2
  %v640 = vmul.f32 %v505, 0.2
  %v641 = vmul.f32 %v508, 0.2
  %v642 = vmul.f32 %v510, 0.2
  %v643 = vmul.f32 %v513, 0.2
  %v644 = vmul.f32 %v515, 0.2
  %v645 = vsel %vm517, %v358, %v581
  %v646 = vsel %vm518, %v360, %v582
  %v647 = vsel %vm519, %v363, %v583
  %v648 = vsel %vm520, %v365, %v584
  %v649 = vsel %vm521, %v368, %v585
  %v650 = vsel %vm522, %v370, %v586
  %v651 = vsel %vm523, %v373, %v587
  %v652 = vsel %vm524, %v375, %v588
  %v653 = vsel %vm525, %v378, %v589
  %v654 = vsel %vm526, %v380, %v590
  %v655 = vsel %vm527, %v383, %v591
  %v656 = vsel %vm528, %v385, %v592
  %v657 = vsel %vm529, %v388, %v593
  %v658 = vsel %vm530, %v390, %v594
  %v659 = vsel %vm531, %v393, %v595
  %v660 = vsel %vm532, %v395, %v596
  %v661 = vsel %vm533, %v398, %v597
  %v662 = vsel %vm534, %v400, %v598
  %v663 = vsel %vm535, %v403, %v599
  %v664 = vsel %vm536, %v405, %v600
  %v665 = vsel %vm537, %v408, %v601
  %v666 = vsel %vm538, %v410, %v602
  %v667 = vsel %vm539, %v413, %v603
  %v668 = vsel %vm540, %v415, %v604
  %v669 = vsel %vm541, %v418, %v605
  %v670 = vsel %vm542, %v420, %v606
  %v671 = vsel %vm543, %v423, %v607
  %v672 = vsel %vm544, %v425, %v608
  %v673 = vsel %vm545, %v428, %v609
  %v674 = vsel %vm546, %v430, %v610
  %v675 = vsel %vm547, %v433, %v611
  %v676 = vsel %vm548, %v435, %v612
  %v677 = vsel %vm549, %v438, %v613
  %v678 = vsel %vm550, %v440, %v614
  %v679 = vsel %vm551, %v443, %v615
  %v680 = vsel %vm552, %v445, %v616
  %v681 = vsel %vm553, %v448, %v617
  %v682 = vsel %vm554, %v450, %v618
  %v683 = vsel %vm555, %v453, %v619
  %v684 = vsel %vm556, %v455, %v620
  %v685 = vsel %vm557, %v458, %v621
  %v686 = vsel %vm558, %v460, %v622
  %v687 = vsel %vm559, %v463, %v623
  %v688 = vsel %vm560, %v465, %v624
  %v689 = vsel %vm561, %v468, %v625
  %v690 = vsel %vm562, %v470, %v626
  %v691 = vsel %vm563, %v473, %v627
  %v692 = vsel %vm564, %v475, %v628
  %v693 = vsel %vm565, %v478, %v629
  %v694 = vsel %vm566, %v480, %v630
  %v695 = vsel %vm567, %v483, %v631
  %v696 = vsel %vm568, %v485, %v632
  %v697 = vsel %vm569, %v488, %v633
  %v698 = vsel %vm570, %v490, %v634
  %v699 = vsel %vm571, %v493, %v635
  %v700 = vsel %vm572, %v495, %v636
  %v701 = vsel %vm573, %v498, %v637
  %v702 = vsel %vm574, %v500, %v638
  %v703 = vsel %vm575, %v503, %v639
  %v704 = vsel %vm576, %v505, %v640
  %v705 = vsel %vm577, %v508, %v641
  %v706 = vsel %vm578, %v510, %v642
  %v707 = vsel %vm579, %v513, %v643
  %v708 = vsel %vm580, %v515, %v644
  %v709 = vpack.c.bf16 %v645, %v645
  %v710 = vpack.c.bf16 %v646, %v646
  %v711 = vpack.c.bf16 %v647, %v647
  %v712 = vpack.c.bf16 %v648, %v648
  %v713 = vpack.c.bf16 %v649, %v649
  %v714 = vpack.c.bf16 %v650, %v650
  %v715 = vpack.c.bf16 %v651, %v651
  %v716 = vpack.c.bf16 %v652, %v652
  %v717 = vpack.c.bf16 %v653, %v653
  %v718 = vpack.c.bf16 %v654, %v654
  %v719 = vpack.c.bf16 %v655, %v655
  %v720 = vpack.c.bf16 %v656, %v656
  %v721 = vpack.c.bf16 %v657, %v657
  %v722 = vpack.c.bf16 %v658, %v658
  %v723 = vpack.c.bf16 %v659, %v659
  %v724 = vpack.c.bf16 %v660, %v660
  %v725 = vpack.c.bf16 %v661, %v661
  %v726 = vpack.c.bf16 %v662, %v662
  %v727 = vpack.c.bf16 %v663, %v663
  %v728 = vpack.c.bf16 %v664, %v664
  %v729 = vpack.c.bf16 %v665, %v665
  %v730 = vpack.c.bf16 %v666, %v666
  %v731 = vpack.c.bf16 %v667, %v667
  %v732 = vpack.c.bf16 %v668, %v668
  %v733 = vpack.c.bf16 %v669, %v669
  %v734 = vpack.c.bf16 %v670, %v670
  %v735 = vpack.c.bf16 %v671, %v671
  %v736 = vpack.c.bf16 %v672, %v672
  %v737 = vpack.c.bf16 %v673, %v673
  %v738 = vpack.c.bf16 %v674, %v674
  %v739 = vpack.c.bf16 %v675, %v675
  %v740 = vpack.c.bf16 %v676, %v676
  %v741 = vpack.c.bf16 %v677, %v677
  %v742 = vpack.c.bf16 %v678, %v678
  %v743 = vpack.c.bf16 %v679, %v679
  %v744 = vpack.c.bf16 %v680, %v680
  %v745 = vpack.c.bf16 %v681, %v681
  %v746 = vpack.c.bf16 %v682, %v682
  %v747 = vpack.c.bf16 %v683, %v683
  %v748 = vpack.c.bf16 %v684, %v684
  %v749 = vpack.c.bf16 %v685, %v685
  %v750 = vpack.c.bf16 %v686, %v686
  %v751 = vpack.c.bf16 %v687, %v687
  %v752 = vpack.c.bf16 %v688, %v688
  %v753 = vpack.c.bf16 %v689, %v689
  %v754 = vpack.c.bf16 %v690, %v690
  %v755 = vpack.c.bf16 %v691, %v691
  %v756 = vpack.c.bf16 %v692, %v692
  %v757 = vpack.c.bf16 %v693, %v693
  %v758 = vpack.c.bf16 %v694, %v694
  %v759 = vpack.c.bf16 %v695, %v695
  %v760 = vpack.c.bf16 %v696, %v696
  %v761 = vpack.c.bf16 %v697, %v697
  %v762 = vpack.c.bf16 %v698, %v698
  %v763 = vpack.c.bf16 %v699, %v699
  %v764 = vpack.c.bf16 %v700, %v700
  %v765 = vpack.c.bf16 %v701, %v701
  %v766 = vpack.c.bf16 %v702, %v702
  %v767 = vpack.c.bf16 %v703, %v703
  %v768 = vpack.c.bf16 %v704, %v704
  %v769 = vpack.c.bf16 %v705, %v705
  %v770 = vpack.c.bf16 %v706, %v706
  %v771 = vpack.c.bf16 %v707, %v707
  %v772 = vpack.c.bf16 %v708, %v708
  %773 = vst [vmem:[%s3] sm:$0xf] %v709
  %774 = vst [vmem:[%s3 + $0x4] sm:$0xf] %v710
  %775 = vst [vmem:[%s3 + $0x8] sm:$0xf] %v711
  %776 = vst [vmem:[%s3 + $0xc] sm:$0xf] %v712
  %777 = vst [vmem:[%s3 + $0x10] sm:$0xf] %v713
  %778 = vst [vmem:[%s3 + $0x14] sm:$0xf] %v714
  %779 = vst [vmem:[%s3 + $0x18] sm:$0xf] %v715
  %780 = vst [vmem:[%s3 + $0x1c] sm:$0xf] %v716
  %781 = vst [vmem:[%s3 + $0x20] sm:$0xf] %v717
  %782 = vst [vmem:[%s3 + $0x24] sm:$0xf] %v718
  %783 = vst [vmem:[%s3 + $0x28] sm:$0xf] %v719
  %784 = vst [vmem:[%s3 + $0x2c] sm:$0xf] %v720
  %785 = vst [vmem:[%s3 + $0x30] sm:$0xf] %v721
  %786 = vst [vmem:[%s3 + $0x34] sm:$0xf] %v722
  %787 = vst [vmem:[%s3 + $0x38] sm:$0xf] %v723
  %788 = vst [vmem:[%s3 + $0x3c] sm:$0xf] %v724
  %789 = vst [vmem:[%s3 + $0x40] sm:$0xf] %v725
  %790 = vst [vmem:[%s3 + $0x44] sm:$0xf] %v726
  %791 = vst [vmem:[%s3 + $0x48] sm:$0xf] %v727
  %792 = vst [vmem:[%s3 + $0x4c] sm:$0xf] %v728
  %793 = vst [vmem:[%s3 + $0x50] sm:$0xf] %v729
  %794 = vst [vmem:[%s3 + $0x54] sm:$0xf] %v730
  %795 = vst [vmem:[%s3 + $0x58] sm:$0xf] %v731
  %796 = vst [vmem:[%s3 + $0x5c] sm:$0xf] %v732
  %797 = vst [vmem:[%s3 + $0x60] sm:$0xf] %v733
  %798 = vst [vmem:[%s3 + $0x64] sm:$0xf] %v734
  %799 = vst [vmem:[%s3 + $0x68] sm:$0xf] %v735
  %800 = vst [vmem:[%s3 + $0x6c] sm:$0xf] %v736
  %801 = vst [vmem:[%s3 + $0x70] sm:$0xf] %v737
  %802 = vst [vmem:[%s3 + $0x74] sm:$0xf] %v738
  %803 = vst [vmem:[%s3 + $0x78] sm:$0xf] %v739
  %804 = vst [vmem:[%s3 + $0x7c] sm:$0xf] %v740
  %805 = vst [vmem:[%s3 + $0x80] sm:$0xf] %v741
  %806 = vst [vmem:[%s3 + $0x84] sm:$0xf] %v742
  %807 = vst [vmem:[%s3 + $0x88] sm:$0xf] %v743
  %808 = vst [vmem:[%s3 + $0x8c] sm:$0xf] %v744
  %809 = vst [vmem:[%s3 + $0x90] sm:$0xf] %v745
  %810 = vst [vmem:[%s3 + $0x94] sm:$0xf] %v746
  %811 = vst [vmem:[%s3 + $0x98] sm:$0xf] %v747
  %812 = vst [vmem:[%s3 + $0x9c] sm:$0xf] %v748
  %813 = vst [vmem:[%s3 + $0xa0] sm:$0xf] %v749
  %814 = vst [vmem:[%s3 + $0xa4] sm:$0xf] %v750
  %815 = vst [vmem:[%s3 + $0xa8] sm:$0xf] %v751
  %816 = vst [vmem:[%s3 + $0xac] sm:$0xf] %v752
  %817 = vst [vmem:[%s3 + $0xb0] sm:$0xf] %v753
  %818 = vst [vmem:[%s3 + $0xb4] sm:$0xf] %v754
  %819 = vst [vmem:[%s3 + $0xb8] sm:$0xf] %v755
  %820 = vst [vmem:[%s3 + $0xbc] sm:$0xf] %v756
  %821 = vst [vmem:[%s3 + $0xc0] sm:$0xf] %v757
  %822 = vst [vmem:[%s3 + $0xc4] sm:$0xf] %v758
  %823 = vst [vmem:[%s3 + $0xc8] sm:$0xf] %v759
  %824 = vst [vmem:[%s3 + $0xcc] sm:$0xf] %v760
  %825 = vst [vmem:[%s3 + $0xd0] sm:$0xf] %v761
  %826 = vst [vmem:[%s3 + $0xd4] sm:$0xf] %v762
  %827 = vst [vmem:[%s3 + $0xd8] sm:$0xf] %v763
  %828 = vst [vmem:[%s3 + $0xdc] sm:$0xf] %v764
  %829 = vst [vmem:[%s3 + $0xe0] sm:$0xf] %v765
  %830 = vst [vmem:[%s3 + $0xe4] sm:$0xf] %v766
  %831 = vst [vmem:[%s3 + $0xe8] sm:$0xf] %v767
  %832 = vst [vmem:[%s3 + $0xec] sm:$0xf] %v768
  %833 = vst [vmem:[%s3 + $0xf0] sm:$0xf] %v769
  %834 = vst [vmem:[%s3 + $0xf4] sm:$0xf] %v770
  %835 = vst [vmem:[%s3 + $0xf8] sm:$0xf] %v771
  %836 = vst [vmem:[%s3 + $0xfc] sm:$0xf] %v772
  // Predicated region
  $region14: #{dc_discriminator.4} parent=0 // pred_check
    _
  $region15: #{dc_discriminator.4} parent=0 // pred_check_branch
    %838 = sbr.rel (0) target = $region17
  $region16: #{dc_discriminator.4} parent=0 // pred_region
    _
  $region17: #{dc_discriminator.4} parent=0 // pred_fallthru
    _
  // Predicated region
  $region18: #{dc_discriminator.4} parent=0 // pred_check
    _
  $region19: #{dc_discriminator.4} parent=0 // pred_check_branch
    %840 = sbr.rel (0) target = $region21
  $region20: #{dc_discriminator.4} parent=0 // pred_region
    _
  $region21: #{dc_discriminator.4} parent=0 // pred_fallthru
    _

// kernel: dc_discriminator.6
$region0: #{dc_discriminator.6}
  #allocation0 [shape = 'u32[]', space=smem, size = 0x4, offset = 0x4, fixed_abs, tag = 'smem constant byte address 0x4 - core index']
  #allocation1 [shape = 'u32[72,128]{1,0:T(1,128)}', space=vmem, size = 0x9000, scoped, tag = 'internal scratch']
  #allocation2 [shape = 'f32[64,128]{1,0:T(8,128)}', space=vmem, size = 0x8000, scoped, tag = 'scratch operand']
  #allocation3 [shape = 'f32[8,128]{1,0:T(8,128)}', space=vmem, size = 0x1000, scoped, tag = 'scratch operand']
  #allocation4 [shape = 'f32[8,128]{1,0:T(8,128)}', space=vmem, size = 0x1000, scoped, tag = 'scratch operand']
  %s0 = inlined_call_operand.vmem [shape: bf16[2,20,9,32], index: 0, kind: input, shape index: {}]
  %s1 = inlined_call_operand.vmem [shape: bf16[9,32,128], index: 1, kind: input, shape index: {}]
  %s2 = inlined_call_operand.vmem [shape: f32[1,128], index: 2, kind: input, shape index: {}]
  %s3 = inlined_call_operand.vmem [shape: f32[1,128], index: 3, kind: input, shape index: {}]
  %s4 = inlined_call_operand.vmem [shape: bf16[64,128], index: 4, kind: output, shape index: {}]
  %s5 = sld [smem:[#allocation0]]
  $region34: #{dc_discriminator.6} parent=0
    _
  %s7 = ssub.s32 1, %s5
  %s8 = scalar_select 0, %s7, %s5
  // Predicated region
  $region2: #{dc_discriminator.6} parent=0 // pred_check
    _
  $region3: #{dc_discriminator.6} parent=0 // pred_check_branch
    %10 = sbr.rel (0) target = $region5
  $region4: #{dc_discriminator.6} parent=0 // pred_region
    _
  $region5: #{dc_discriminator.6} parent=0 // pred_fallthru
    _
  // Predicated region
  $region6: #{dc_discriminator.6} parent=0 // pred_check
    _
  $region7: #{dc_discriminator.6} parent=0 // pred_check_branch
    %12 = sbr.rel (0) target = $region9
  $region8: #{dc_discriminator.6} parent=0 // pred_region
    _
  $region9: #{dc_discriminator.6} parent=0 // pred_fallthru
    _
  // Predicated region
  $region10: #{dc_discriminator.6} parent=0 // pred_check
    _
  $region11: #{dc_discriminator.6} parent=0 // pred_check_branch
    %14 = sbr.rel (0) target = $region13
  $region12: #{dc_discriminator.6} parent=0 // pred_region
    _
  $region13: #{dc_discriminator.6} parent=0 // pred_fallthru
    _
  // Predicated region
  $region14: #{dc_discriminator.6} parent=0 // pred_check
    _
  $region15: #{dc_discriminator.6} parent=0 // pred_check_branch
    %16 = sbr.rel (0) target = $region17
  $region16: #{dc_discriminator.6} parent=0 // pred_region
    _
  $region17: #{dc_discriminator.6} parent=0 // pred_fallthru
    _
  %p18 = scmp.eq.s32.totalorder 0, 0
  // Predicated region
  $region18: #{dc_discriminator.6} parent=0 // pred_check
    %p19 = pneg %p18
  $region19: #{dc_discriminator.6} parent=0 // pred_check_branch
    %21 = sbr.rel (%p19) target = $region21
  $region20: #{dc_discriminator.6} parent=0 // pred_region
    %22 = vst [vmem:[#allocation3] sm:$0xff] 0.0
    %23 = vst [vmem:[#allocation4] sm:$0xff] 0.0
  $region21: #{dc_discriminator.6} parent=0 // pred_fallthru
    _
  %v24 = vld [vmem:[%s0] sm:$0xf]
  %v25 = vld [vmem:[%s0 + $0x8] sm:$0xf]
  %v26 = vld [vmem:[%s0 + $0x10] sm:$0xf]
  %v27 = vld [vmem:[%s0 + $0x18] sm:$0xf]
  %v28 = vld [vmem:[%s0 + $0xa0] sm:$0xf]
  %v29 = vld [vmem:[%s0 + $0xa8] sm:$0xf]
  %v30 = vld [vmem:[%s0 + $0xb0] sm:$0xf]
  %v31 = vld [vmem:[%s0 + $0xb8] sm:$0xf]
  %v32 = vld [vmem:[%s1] sm:$0xf]
  %v33 = vld [vmem:[%s1 + $0x4] sm:$0xf]
  %v34 = vld [vmem:[%s1 + $0x8] sm:$0xf]
  %v35 = vld [vmem:[%s1 + $0xc] sm:$0xf]
  %s36 = scalar_lea.vmem %s0, 40
  %v37 = vld [vmem:[%s36] sm:$0xf]
  %v38 = vld [vmem:[%s36 + $0x8] sm:$0xf]
  %v39 = vld [vmem:[%s36 + $0x10] sm:$0xf]
  %v40 = vld [vmem:[%s36 + $0x18] sm:$0xf]
  %v41 = vld [vmem:[%s36 + $0xa0] sm:$0xf]
  %v42 = vld [vmem:[%s36 + $0xa8] sm:$0xf]
  %v43 = vld [vmem:[%s36 + $0xb0] sm:$0xf]
  %v44 = vld [vmem:[%s36 + $0xb8] sm:$0xf]
  %s45 = scalar_lea.vmem %s1, 16
  %v46 = vld [vmem:[%s45] sm:$0xf]
  %v47 = vld [vmem:[%s45 + $0x4] sm:$0xf]
  %v48 = vld [vmem:[%s45 + $0x8] sm:$0xf]
  %v49 = vld [vmem:[%s45 + $0xc] sm:$0xf]
  %v58 = vunpack.c.l.b16 %v37
  %v59 = vunpack.c.l.b16 %v38
  %v60 = vunpack.c.l.b16 %v39
  %v61 = vunpack.c.l.b16 %v40
  %v62 = vunpack.c.l.b16 %v41
  %v63 = vunpack.c.l.b16 %v42
  %v64 = vunpack.c.l.b16 %v43
  %v65 = vunpack.c.l.b16 %v44
  %v66 = vpack.c.b16 %v59, %v58
  %v67 = vpack.c.b16 %v61, %v60
  %v68 = vpack.c.b16 %v63, %v62
  %v69 = vpack.c.b16 %v65, %v64
  %v74 = vunpack.c.l.b16 %v46
  %v75 = vunpack.c.l.b16 %v47
  %v76 = vunpack.c.l.b16 %v48
  %v77 = vunpack.c.l.b16 %v49
  %v78 = vpack.c.b16 %v75, %v74
  %v79 = vpack.c.b16 %v77, %v76
  %vm82 = vcmask 261120
  %v84 = vsel %vm82, %v66, 0
  %v87 = vsel %vm82, %v67, 0
  %v90 = vsel %vm82, %v68, 0
  %v93 = vsel %vm82, %v69, 0
  %95 = vmatpush.bf16.msra.mxu0 0
  %96 = vmatpush.bf16.msra.mxu0 0
  %97 = vmatpush.bf16.msra.mxu0 0
  %98 = vmatpush.bf16.msra.mxu0 0
  %99 = vmatpush.bf16.msra.mxu0 0
  %100 = vmatpush.bf16.msra.mxu0 0
  %101 = vmatpush.bf16.msra.mxu0 %v79
  %102 = vmatpush.bf16.msra.mxu0 %v78
  %103 = vmatmul.bf16.gmra.mxu0 %v84
  %v104 = vpop.f32.mrf.mxu0
  %v105 = vadd.f32 0.0, %v104
  %v106 = vpop.f32.mrf.mxu0
  %v107 = vadd.f32 0.0, %v106
  %108 = vmatmul.bf16.gmra.mxu0 %v87
  %v109 = vpop.f32.mrf.mxu0
  %v110 = vadd.f32 0.0, %v109
  %v111 = vpop.f32.mrf.mxu0
  %v112 = vadd.f32 0.0, %v111
  %113 = vmatmul.bf16.gmra.mxu0 %v90
  %v114 = vpop.f32.mrf.mxu0
  %v115 = vadd.f32 0.0, %v114
  %v116 = vpop.f32.mrf.mxu0
  %v117 = vadd.f32 0.0, %v116
  %118 = vmatmul.bf16.gmra.mxu0 %v93
  %v119 = vpop.f32.mrf.mxu0
  %v120 = vadd.f32 0.0, %v119
  %v121 = vpop.f32.mrf.mxu0
  %v122 = vadd.f32 0.0, %v121
  %123 = vdwg.mxu0
  %v132 = vunpack.c.l.b16 %v24
  %v133 = vunpack.c.l.b16 %v25
  %v134 = vunpack.c.l.b16 %v26
  %v135 = vunpack.c.l.b16 %v27
  %v136 = vunpack.c.l.b16 %v28
  %v137 = vunpack.c.l.b16 %v29
  %v138 = vunpack.c.l.b16 %v30
  %v139 = vunpack.c.l.b16 %v31
  %v140 = vpack.c.b16 %v133, %v132
  %v141 = vpack.c.b16 %v135, %v134
  %v142 = vpack.c.b16 %v137, %v136
  %v143 = vpack.c.b16 %v139, %v138
  %v148 = vunpack.c.l.b16 %v32
  %v149 = vunpack.c.l.b16 %v33
  %v150 = vunpack.c.l.b16 %v34
  %v151 = vunpack.c.l.b16 %v35
  %v152 = vpack.c.b16 %v149, %v148
  %v153 = vpack.c.b16 %v151, %v150
  %v157 = vsel %vm82, %v140, 0
  %v160 = vsel %vm82, %v141, 0
  %v163 = vsel %vm82, %v142, 0
  %v166 = vsel %vm82, %v143, 0
  %168 = vmatpush.bf16.msra.mxu0 0
  %169 = vmatpush.bf16.msra.mxu0 0
  %170 = vmatpush.bf16.msra.mxu0 0
  %171 = vmatpush.bf16.msra.mxu0 0
  %172 = vmatpush.bf16.msra.mxu0 0
  %173 = vmatpush.bf16.msra.mxu0 0
  %174 = vmatpush.bf16.msra.mxu0 %v153
  %175 = vmatpush.bf16.msra.mxu0 %v152
  %176 = vmatmul.bf16.gmra.mxu0 %v157
  %v177 = vpop.f32.mrf.mxu0
  %v178 = vadd.f32 %v105, %v177
  %v179 = vpop.f32.mrf.mxu0
  %v180 = vadd.f32 %v107, %v179
  %181 = vmatmul.bf16.gmra.mxu0 %v160
  %v182 = vpop.f32.mrf.mxu0
  %v183 = vadd.f32 %v110, %v182
  %v184 = vpop.f32.mrf.mxu0
  %v185 = vadd.f32 %v112, %v184
  %186 = vmatmul.bf16.gmra.mxu0 %v163
  %v187 = vpop.f32.mrf.mxu0
  %v188 = vadd.f32 %v115, %v187
  %v189 = vpop.f32.mrf.mxu0
  %v190 = vadd.f32 %v117, %v189
  %191 = vmatmul.bf16.gmra.mxu0 %v166
  %v192 = vpop.f32.mrf.mxu0
  %v193 = vadd.f32 %v120, %v192
  %v194 = vpop.f32.mrf.mxu0
  %v195 = vadd.f32 %v122, %v194
  %196 = vdwg.mxu0
  %v197 = vld [vmem:[%s0] sm:$0xf]
  %v198 = vld [vmem:[%s0 + $0x4] sm:$0x1]
  %v199 = vld [vmem:[%s0 + $0x8] sm:$0xf]
  %v200 = vld [vmem:[%s0 + $0xc] sm:$0x1]
  %v201 = vld [vmem:[%s0 + $0x10] sm:$0xf]
  %v202 = vld [vmem:[%s0 + $0x14] sm:$0x1]
  %v203 = vld [vmem:[%s0 + $0x18] sm:$0xf]
  %v204 = vld [vmem:[%s0 + $0x1c] sm:$0x1]
  %v205 = vld [vmem:[%s0 + $0xa0] sm:$0xf]
  %v206 = vld [vmem:[%s0 + $0xa4] sm:$0x1]
  %v207 = vld [vmem:[%s0 + $0xa8] sm:$0xf]
  %v208 = vld [vmem:[%s0 + $0xac] sm:$0x1]
  %v209 = vld [vmem:[%s0 + $0xb0] sm:$0xf]
  %v210 = vld [vmem:[%s0 + $0xb4] sm:$0x1]
  %v211 = vld [vmem:[%s0 + $0xb8] sm:$0xf]
  %v212 = vld [vmem:[%s0 + $0xbc] sm:$0x1]
  %vm213 = vsmask.f32 3328
  %vm214 = vsmask.f32 7440
  %vm215 = vmor %vm213, %vm214
  %v217 = vshrl.u32 %v197, 16
  %v219 = vrot.slane %v217, 4
  %v220 = vshll.u32 %v197, 16
  %v222 = vrot.slane %v220, 5
  %v223 = vor.u32 %v219, %v222
  %v224 = vrot.slane %v223, 4
  %v226 = vshll.u32 %v198, 16
  %v228 = vrot.slane %v226, 5
  %v229 = vsel %vm215, %v224, %v228
  %v231 = vshrl.u32 %v199, 16
  %v233 = vrot.slane %v231, 4
  %v234 = vshll.u32 %v199, 16
  %v236 = vrot.slane %v234, 5
  %v237 = vor.u32 %v233, %v236
  %v238 = vrot.slane %v237, 4
  %v240 = vshll.u32 %v200, 16
  %v242 = vrot.slane %v240, 5
  %v243 = vsel %vm215, %v238, %v242
  %v245 = vshrl.u32 %v201, 16
  %v247 = vrot.slane %v245, 4
  %v248 = vshll.u32 %v201, 16
  %v250 = vrot.slane %v248, 5
  %v251 = vor.u32 %v247, %v250
  %v252 = vrot.slane %v251, 4
  %v254 = vshll.u32 %v202, 16
  %v256 = vrot.slane %v254, 5
  %v257 = vsel %vm215, %v252, %v256
  %v259 = vshrl.u32 %v203, 16
  %v261 = vrot.slane %v259, 4
  %v262 = vshll.u32 %v203, 16
  %v264 = vrot.slane %v262, 5
  %v265 = vor.u32 %v261, %v264
  %v266 = vrot.slane %v265, 4
  %v268 = vshll.u32 %v204, 16
  %v270 = vrot.slane %v268, 5
  %v271 = vsel %vm215, %v266, %v270
  %v273 = vshrl.u32 %v205, 16
  %v275 = vrot.slane %v273, 4
  %v276 = vshll.u32 %v205, 16
  %v278 = vrot.slane %v276, 5
  %v279 = vor.u32 %v275, %v278
  %v280 = vrot.slane %v279, 4
  %v282 = vshll.u32 %v206, 16
  %v284 = vrot.slane %v282, 5
  %v285 = vsel %vm215, %v280, %v284
  %v287 = vshrl.u32 %v207, 16
  %v289 = vrot.slane %v287, 4
  %v290 = vshll.u32 %v207, 16
  %v292 = vrot.slane %v290, 5
  %v293 = vor.u32 %v289, %v292
  %v294 = vrot.slane %v293, 4
  %v296 = vshll.u32 %v208, 16
  %v298 = vrot.slane %v296, 5
  %v299 = vsel %vm215, %v294, %v298
  %v301 = vshrl.u32 %v209, 16
  %v303 = vrot.slane %v301, 4
  %v304 = vshll.u32 %v209, 16
  %v306 = vrot.slane %v304, 5
  %v307 = vor.u32 %v303, %v306
  %v308 = vrot.slane %v307, 4
  %v310 = vshll.u32 %v210, 16
  %v312 = vrot.slane %v310, 5
  %v313 = vsel %vm215, %v308, %v312
  %v315 = vshrl.u32 %v211, 16
  %v317 = vrot.slane %v315, 4
  %v318 = vshll.u32 %v211, 16
  %v320 = vrot.slane %v318, 5
  %v321 = vor.u32 %v317, %v320
  %v322 = vrot.slane %v321, 4
  %v324 = vshll.u32 %v212, 16
  %v326 = vrot.slane %v324, 5
  %v327 = vsel %vm215, %v322, %v326
  %s328 = scalar_lea.vmem %s1, 32
  %v329 = vld [vmem:[%s328] sm:$0xf]
  %v330 = vld [vmem:[%s328 + $0x4] sm:$0xf]
  %v331 = vld [vmem:[%s328 + $0x8] sm:$0xf]
  %v332 = vld [vmem:[%s328 + $0xc] sm:$0xf]
  %v333 = vunpack.c.l.b16 %v229
  %v334 = vunpack.c.l.b16 %v243
  %v335 = vunpack.c.l.b16 %v257
  %v336 = vunpack.c.l.b16 %v271
  %v337 = vunpack.c.l.b16 %v285
  %v338 = vunpack.c.l.b16 %v299
  %v339 = vunpack.c.l.b16 %v313
  %v340 = vunpack.c.l.b16 %v327
  %v341 = vpack.c.b16 %v334, %v333
  %v342 = vpack.c.b16 %v336, %v335
  %v343 = vpack.c.b16 %v338, %v337
  %v344 = vpack.c.b16 %v340, %v339
  %v349 = vunpack.c.l.b16 %v329
  %v350 = vunpack.c.l.b16 %v330
  %v351 = vunpack.c.l.b16 %v331
  %v352 = vunpack.c.l.b16 %v332
  %v353 = vpack.c.b16 %v350, %v349
  %v354 = vpack.c.b16 %v352, %v351
  %v358 = vsel %vm82, %v341, 0
  %v361 = vsel %vm82, %v342, 0
  %v364 = vsel %vm82, %v343, 0
  %v367 = vsel %vm82, %v344, 0
  %369 = vmatpush.bf16.msra.mxu0 0
  %370 = vmatpush.bf16.msra.mxu0 0
  %371 = vmatpush.bf16.msra.mxu0 0
  %372 = vmatpush.bf16.msra.mxu0 0
  %373 = vmatpush.bf16.msra.mxu0 0
  %374 = vmatpush.bf16.msra.mxu0 0
  %375 = vmatpush.bf16.msra.mxu0 %v354
  %376 = vmatpush.bf16.msra.mxu0 %v353
  %377 = vmatmul.bf16.gmra.mxu0 %v358
  %v378 = vpop.f32.mrf.mxu0
  %v379 = vadd.f32 0.0, %v378
  %v380 = vpop.f32.mrf.mxu0
  %v381 = vadd.f32 0.0, %v380
  %382 = vmatmul.bf16.gmra.mxu0 %v361
  %v383 = vpop.f32.mrf.mxu0
  %v384 = vadd.f32 0.0, %v383
  %v385 = vpop.f32.mrf.mxu0
  %v386 = vadd.f32 0.0, %v385
  %387 = vmatmul.bf16.gmra.mxu0 %v364
  %v388 = vpop.f32.mrf.mxu0
  %v389 = vadd.f32 0.0, %v388
  %v390 = vpop.f32.mrf.mxu0
  %v391 = vadd.f32 0.0, %v390
  %392 = vmatmul.bf16.gmra.mxu0 %v367
  %v393 = vpop.f32.mrf.mxu0
  %v394 = vadd.f32 0.0, %v393
  %v395 = vpop.f32.mrf.mxu0
  %v396 = vadd.f32 0.0, %v395
  %397 = vdwg.mxu0
  %v398 = vadd.f32 %v178, %v379
  %v399 = vadd.f32 %v180, %v381
  %v400 = vadd.f32 %v183, %v384
  %v401 = vadd.f32 %v185, %v386
  %v402 = vadd.f32 %v188, %v389
  %v403 = vadd.f32 %v190, %v391
  %v404 = vadd.f32 %v193, %v394
  %v405 = vadd.f32 %v195, %v396
  %s406 = scalar_lea.vmem %s0, 80
  %v407 = vld [vmem:[%s406] sm:$0xf]
  %v408 = vld [vmem:[%s406 + $0x8] sm:$0xf]
  %v409 = vld [vmem:[%s406 + $0x10] sm:$0xf]
  %v410 = vld [vmem:[%s406 + $0x18] sm:$0xf]
  %v411 = vld [vmem:[%s406 + $0xa0] sm:$0xf]
  %v412 = vld [vmem:[%s406 + $0xa8] sm:$0xf]
  %v413 = vld [vmem:[%s406 + $0xb0] sm:$0xf]
  %v414 = vld [vmem:[%s406 + $0xb8] sm:$0xf]
  %s415 = scalar_lea.vmem %s1, 48
  %v416 = vld [vmem:[%s415] sm:$0xf]
  %v417 = vld [vmem:[%s415 + $0x4] sm:$0xf]
  %v418 = vld [vmem:[%s415 + $0x8] sm:$0xf]
  %v419 = vld [vmem:[%s415 + $0xc] sm:$0xf]
  %v428 = vunpack.c.l.b16 %v407
  %v429 = vunpack.c.l.b16 %v408
  %v430 = vunpack.c.l.b16 %v409
  %v431 = vunpack.c.l.b16 %v410
  %v432 = vunpack.c.l.b16 %v411
  %v433 = vunpack.c.l.b16 %v412
  %v434 = vunpack.c.l.b16 %v413
  %v435 = vunpack.c.l.b16 %v414
  %v436 = vpack.c.b16 %v429, %v428
  %v437 = vpack.c.b16 %v431, %v430
  %v438 = vpack.c.b16 %v433, %v432
  %v439 = vpack.c.b16 %v435, %v434
  %v444 = vunpack.c.l.b16 %v416
  %v445 = vunpack.c.l.b16 %v417
  %v446 = vunpack.c.l.b16 %v418
  %v447 = vunpack.c.l.b16 %v419
  %v448 = vpack.c.b16 %v445, %v444
  %v449 = vpack.c.b16 %v447, %v446
  %v453 = vsel %vm82, %v436, 0
  %v456 = vsel %vm82, %v437, 0
  %v459 = vsel %vm82, %v438, 0
  %v462 = vsel %vm82, %v439, 0
  %464 = vmatpush.bf16.msra.mxu0 0
  %465 = vmatpush.bf16.msra.mxu0 0
  %466 = vmatpush.bf16.msra.mxu0 0
  %467 = vmatpush.bf16.msra.mxu0 0
  %468 = vmatpush.bf16.msra.mxu0 0
  %469 = vmatpush.bf16.msra.mxu0 0
  %470 = vmatpush.bf16.msra.mxu0 %v449
  %471 = vmatpush.bf16.msra.mxu0 %v448
  %472 = vmatmul.bf16.gmra.mxu0 %v453
  %v473 = vpop.f32.mrf.mxu0
  %v474 = vadd.f32 0.0, %v473
  %v475 = vpop.f32.mrf.mxu0
  %v476 = vadd.f32 0.0, %v475
  %477 = vmatmul.bf16.gmra.mxu0 %v456
  %v478 = vpop.f32.mrf.mxu0
  %v479 = vadd.f32 0.0, %v478
  %v480 = vpop.f32.mrf.mxu0
  %v481 = vadd.f32 0.0, %v480
  %482 = vmatmul.bf16.gmra.mxu0 %v459
  %v483 = vpop.f32.mrf.mxu0
  %v484 = vadd.f32 0.0, %v483
  %v485 = vpop.f32.mrf.mxu0
  %v486 = vadd.f32 0.0, %v485
  %487 = vmatmul.bf16.gmra.mxu0 %v462
  %v488 = vpop.f32.mrf.mxu0
  %v489 = vadd.f32 0.0, %v488
  %v490 = vpop.f32.mrf.mxu0
  %v491 = vadd.f32 0.0, %v490
  %492 = vdwg.mxu0
  %v493 = vadd.f32 %v398, %v474
  %v494 = vadd.f32 %v399, %v476
  %v495 = vadd.f32 %v400, %v479
  %v496 = vadd.f32 %v401, %v481
  %v497 = vadd.f32 %v402, %v484
  %v498 = vadd.f32 %v403, %v486
  %v499 = vadd.f32 %v404, %v489
  %v500 = vadd.f32 %v405, %v491
  %s501 = scalar_lea.vmem %s0, 120
  %v502 = vld [vmem:[%s501] sm:$0xf]
  %v503 = vld [vmem:[%s501 + $0x8] sm:$0xf]
  %v504 = vld [vmem:[%s501 + $0x10] sm:$0xf]
  %v505 = vld [vmem:[%s501 + $0x18] sm:$0xf]
  %v506 = vld [vmem:[%s501 + $0xa0] sm:$0xf]
  %v507 = vld [vmem:[%s501 + $0xa8] sm:$0xf]
  %v508 = vld [vmem:[%s501 + $0xb0] sm:$0xf]
  %v509 = vld [vmem:[%s501 + $0xb8] sm:$0xf]
  %s510 = scalar_lea.vmem %s1, 64
  %v511 = vld [vmem:[%s510] sm:$0xf]
  %v512 = vld [vmem:[%s510 + $0x4] sm:$0xf]
  %v513 = vld [vmem:[%s510 + $0x8] sm:$0xf]
  %v514 = vld [vmem:[%s510 + $0xc] sm:$0xf]
  %v523 = vunpack.c.l.b16 %v502
  %v524 = vunpack.c.l.b16 %v503
  %v525 = vunpack.c.l.b16 %v504
  %v526 = vunpack.c.l.b16 %v505
  %v527 = vunpack.c.l.b16 %v506
  %v528 = vunpack.c.l.b16 %v507
  %v529 = vunpack.c.l.b16 %v508
  %v530 = vunpack.c.l.b16 %v509
  %v531 = vpack.c.b16 %v524, %v523
  %v532 = vpack.c.b16 %v526, %v525
  %v533 = vpack.c.b16 %v528, %v527
  %v534 = vpack.c.b16 %v530, %v529
  %v539 = vunpack.c.l.b16 %v511
  %v540 = vunpack.c.l.b16 %v512
  %v541 = vunpack.c.l.b16 %v513
  %v542 = vunpack.c.l.b16 %v514
  %v543 = vpack.c.b16 %v540, %v539
  %v544 = vpack.c.b16 %v542, %v541
  %v548 = vsel %vm82, %v531, 0
  %v551 = vsel %vm82, %v532, 0
  %v554 = vsel %vm82, %v533, 0
  %v557 = vsel %vm82, %v534, 0
  %559 = vmatpush.bf16.msra.mxu0 0
  %560 = vmatpush.bf16.msra.mxu0 0
  %561 = vmatpush.bf16.msra.mxu0 0
  %562 = vmatpush.bf16.msra.mxu0 0
  %563 = vmatpush.bf16.msra.mxu0 0
  %564 = vmatpush.bf16.msra.mxu0 0
  %565 = vmatpush.bf16.msra.mxu0 %v544
  %566 = vmatpush.bf16.msra.mxu0 %v543
  %567 = vmatmul.bf16.gmra.mxu0 %v548
  %v568 = vpop.f32.mrf.mxu0
  %v569 = vadd.f32 0.0, %v568
  %v570 = vpop.f32.mrf.mxu0
  %v571 = vadd.f32 0.0, %v570
  %572 = vmatmul.bf16.gmra.mxu0 %v551
  %v573 = vpop.f32.mrf.mxu0
  %v574 = vadd.f32 0.0, %v573
  %v575 = vpop.f32.mrf.mxu0
  %v576 = vadd.f32 0.0, %v575
  %577 = vmatmul.bf16.gmra.mxu0 %v554
  %v578 = vpop.f32.mrf.mxu0
  %v579 = vadd.f32 0.0, %v578
  %v580 = vpop.f32.mrf.mxu0
  %v581 = vadd.f32 0.0, %v580
  %582 = vmatmul.bf16.gmra.mxu0 %v557
  %v583 = vpop.f32.mrf.mxu0
  %v584 = vadd.f32 0.0, %v583
  %v585 = vpop.f32.mrf.mxu0
  %v586 = vadd.f32 0.0, %v585
  %587 = vdwg.mxu0
  %v588 = vadd.f32 %v493, %v569
  %v589 = vadd.f32 %v494, %v571
  %v590 = vadd.f32 %v495, %v574
  %v591 = vadd.f32 %v496, %v576
  %v592 = vadd.f32 %v497, %v579
  %v593 = vadd.f32 %v498, %v581
  %v594 = vadd.f32 %v499, %v584
  %v595 = vadd.f32 %v500, %v586
  %v596 = vld [vmem:[%s406] sm:$0xf]
  %v597 = vld [vmem:[%s406 + $0x4] sm:$0x1]
  %v598 = vld [vmem:[%s406 + $0x8] sm:$0xf]
  %v599 = vld [vmem:[%s406 + $0xc] sm:$0x1]
  %v600 = vld [vmem:[%s406 + $0x10] sm:$0xf]
  %v601 = vld [vmem:[%s406 + $0x14] sm:$0x1]
  %v602 = vld [vmem:[%s406 + $0x18] sm:$0xf]
  %v603 = vld [vmem:[%s406 + $0x1c] sm:$0x1]
  %v604 = vld [vmem:[%s406 + $0xa0] sm:$0xf]
  %v605 = vld [vmem:[%s406 + $0xa4] sm:$0x1]
  %v606 = vld [vmem:[%s406 + $0xa8] sm:$0xf]
  %v607 = vld [vmem:[%s406 + $0xac] sm:$0x1]
  %v608 = vld [vmem:[%s406 + $0xb0] sm:$0xf]
  %v609 = vld [vmem:[%s406 + $0xb4] sm:$0x1]
  %v610 = vld [vmem:[%s406 + $0xb8] sm:$0xf]
  %v611 = vld [vmem:[%s406 + $0xbc] sm:$0x1]
  %v613 = vshrl.u32 %v596, 16
  %v615 = vrot.slane %v613, 4
  %v616 = vshll.u32 %v596, 16
  %v618 = vrot.slane %v616, 5
  %v619 = vor.u32 %v615, %v618
  %v620 = vrot.slane %v619, 4
  %v622 = vshll.u32 %v597, 16
  %v624 = vrot.slane %v622, 5
  %v625 = vsel %vm215, %v620, %v624
  %v627 = vshrl.u32 %v598, 16
  %v629 = vrot.slane %v627, 4
  %v630 = vshll.u32 %v598, 16
  %v632 = vrot.slane %v630, 5
  %v633 = vor.u32 %v629, %v632
  %v634 = vrot.slane %v633, 4
  %v636 = vshll.u32 %v599, 16
  %v638 = vrot.slane %v636, 5
  %v639 = vsel %vm215, %v634, %v638
  %v641 = vshrl.u32 %v600, 16
  %v643 = vrot.slane %v641, 4
  %v644 = vshll.u32 %v600, 16
  %v646 = vrot.slane %v644, 5
  %v647 = vor.u32 %v643, %v646
  %v648 = vrot.slane %v647, 4
  %v650 = vshll.u32 %v601, 16
  %v652 = vrot.slane %v650, 5
  %v653 = vsel %vm215, %v648, %v652
  %v655 = vshrl.u32 %v602, 16
  %v657 = vrot.slane %v655, 4
  %v658 = vshll.u32 %v602, 16
  %v660 = vrot.slane %v658, 5
  %v661 = vor.u32 %v657, %v660
  %v662 = vrot.slane %v661, 4
  %v664 = vshll.u32 %v603, 16
  %v666 = vrot.slane %v664, 5
  %v667 = vsel %vm215, %v662, %v666
  %v669 = vshrl.u32 %v604, 16
  %v671 = vrot.slane %v669, 4
  %v672 = vshll.u32 %v604, 16
  %v674 = vrot.slane %v672, 5
  %v675 = vor.u32 %v671, %v674
  %v676 = vrot.slane %v675, 4
  %v678 = vshll.u32 %v605, 16
  %v680 = vrot.slane %v678, 5
  %v681 = vsel %vm215, %v676, %v680
  %v683 = vshrl.u32 %v606, 16
  %v685 = vrot.slane %v683, 4
  %v686 = vshll.u32 %v606, 16
  %v688 = vrot.slane %v686, 5
  %v689 = vor.u32 %v685, %v688
  %v690 = vrot.slane %v689, 4
  %v692 = vshll.u32 %v607, 16
  %v694 = vrot.slane %v692, 5
  %v695 = vsel %vm215, %v690, %v694
  %v697 = vshrl.u32 %v608, 16
  %v699 = vrot.slane %v697, 4
  %v700 = vshll.u32 %v608, 16
  %v702 = vrot.slane %v700, 5
  %v703 = vor.u32 %v699, %v702
  %v704 = vrot.slane %v703, 4
  %v706 = vshll.u32 %v609, 16
  %v708 = vrot.slane %v706, 5
  %v709 = vsel %vm215, %v704, %v708
  %v711 = vshrl.u32 %v610, 16
  %v713 = vrot.slane %v711, 4
  %v714 = vshll.u32 %v610, 16
  %v716 = vrot.slane %v714, 5
  %v717 = vor.u32 %v713, %v716
  %v718 = vrot.slane %v717, 4
  %v720 = vshll.u32 %v611, 16
  %v722 = vrot.slane %v720, 5
  %v723 = vsel %vm215, %v718, %v722
  %s724 = scalar_lea.vmem %s1, 80
  %v725 = vld [vmem:[%s724] sm:$0xf]
  %v726 = vld [vmem:[%s724 + $0x4] sm:$0xf]
  %v727 = vld [vmem:[%s724 + $0x8] sm:$0xf]
  %v728 = vld [vmem:[%s724 + $0xc] sm:$0xf]
  %v729 = vunpack.c.l.b16 %v625
  %v730 = vunpack.c.l.b16 %v639
  %v731 = vunpack.c.l.b16 %v653
  %v732 = vunpack.c.l.b16 %v667
  %v733 = vunpack.c.l.b16 %v681
  %v734 = vunpack.c.l.b16 %v695
  %v735 = vunpack.c.l.b16 %v709
  %v736 = vunpack.c.l.b16 %v723
  %v737 = vpack.c.b16 %v730, %v729
  %v738 = vpack.c.b16 %v732, %v731
  %v739 = vpack.c.b16 %v734, %v733
  %v740 = vpack.c.b16 %v736, %v735
  %v745 = vunpack.c.l.b16 %v725
  %v746 = vunpack.c.l.b16 %v726
  %v747 = vunpack.c.l.b16 %v727
  %v748 = vunpack.c.l.b16 %v728
  %v749 = vpack.c.b16 %v746, %v745
  %v750 = vpack.c.b16 %v748, %v747
  %v754 = vsel %vm82, %v737, 0
  %v757 = vsel %vm82, %v738, 0
  %v760 = vsel %vm82, %v739, 0
  %v763 = vsel %vm82, %v740, 0
  %765 = vmatpush.bf16.msra.mxu0 0
  %766 = vmatpush.bf16.msra.mxu0 0
  %767 = vmatpush.bf16.msra.mxu0 0
  %768 = vmatpush.bf16.msra.mxu0 0
  %769 = vmatpush.bf16.msra.mxu0 0
  %770 = vmatpush.bf16.msra.mxu0 0
  %771 = vmatpush.bf16.msra.mxu0 %v750
  %772 = vmatpush.bf16.msra.mxu0 %v749
  %773 = vmatmul.bf16.gmra.mxu0 %v754
  %v774 = vpop.f32.mrf.mxu0
  %v775 = vadd.f32 0.0, %v774
  %v776 = vpop.f32.mrf.mxu0
  %v777 = vadd.f32 0.0, %v776
  %778 = vmatmul.bf16.gmra.mxu0 %v757
  %v779 = vpop.f32.mrf.mxu0
  %v780 = vadd.f32 0.0, %v779
  %v781 = vpop.f32.mrf.mxu0
  %v782 = vadd.f32 0.0, %v781
  %783 = vmatmul.bf16.gmra.mxu0 %v760
  %v784 = vpop.f32.mrf.mxu0
  %v785 = vadd.f32 0.0, %v784
  %v786 = vpop.f32.mrf.mxu0
  %v787 = vadd.f32 0.0, %v786
  %788 = vmatmul.bf16.gmra.mxu0 %v763
  %v789 = vpop.f32.mrf.mxu0
  %v790 = vadd.f32 0.0, %v789
  %v791 = vpop.f32.mrf.mxu0
  %v792 = vadd.f32 0.0, %v791
  %793 = vdwg.mxu0
  %v794 = vadd.f32 %v588, %v775
  %v795 = vadd.f32 %v589, %v777
  %v796 = vadd.f32 %v590, %v780
  %v797 = vadd.f32 %v591, %v782
  %v798 = vadd.f32 %v592, %v785
  %v799 = vadd.f32 %v593, %v787
  %v800 = vadd.f32 %v594, %v790
  %v801 = vadd.f32 %v595, %v792
  %s802 = scalar_lea.vmem %s0, 8
  %v803 = vld [vmem:[%s802] sm:$0xf]
  %v804 = vld [vmem:[%s802 + $0x8] sm:$0xf]
  %v805 = vld [vmem:[%s802 + $0x10] sm:$0xf]
  %v806 = vld [vmem:[%s802 + $0x18] sm:$0xf]
  %v807 = vld [vmem:[%s802 + $0xa0] sm:$0xf]
  %v808 = vld [vmem:[%s802 + $0xa8] sm:$0xf]
  %v809 = vld [vmem:[%s802 + $0xb0] sm:$0xf]
  %v810 = vld [vmem:[%s802 + $0xb8] sm:$0xf]
  %s811 = scalar_lea.vmem %s1, 96
  %v812 = vld [vmem:[%s811] sm:$0xf]
  %v813 = vld [vmem:[%s811 + $0x4] sm:$0xf]
  %v814 = vld [vmem:[%s811 + $0x8] sm:$0xf]
  %v815 = vld [vmem:[%s811 + $0xc] sm:$0xf]
  %v824 = vunpack.c.l.b16 %v803
  %v825 = vunpack.c.l.b16 %v804
  %v826 = vunpack.c.l.b16 %v805
  %v827 = vunpack.c.l.b16 %v806
  %v828 = vunpack.c.l.b16 %v807
  %v829 = vunpack.c.l.b16 %v808
  %v830 = vunpack.c.l.b16 %v809
  %v831 = vunpack.c.l.b16 %v810
  %v832 = vpack.c.b16 %v825, %v824
  %v833 = vpack.c.b16 %v827, %v826
  %v834 = vpack.c.b16 %v829, %v828
  %v835 = vpack.c.b16 %v831, %v830
  %v840 = vunpack.c.l.b16 %v812
  %v841 = vunpack.c.l.b16 %v813
  %v842 = vunpack.c.l.b16 %v814
  %v843 = vunpack.c.l.b16 %v815
  %v844 = vpack.c.b16 %v841, %v840
  %v845 = vpack.c.b16 %v843, %v842
  %v849 = vsel %vm82, %v832, 0
  %v852 = vsel %vm82, %v833, 0
  %v855 = vsel %vm82, %v834, 0
  %v858 = vsel %vm82, %v835, 0
  %860 = vmatpush.bf16.msra.mxu0 0
  %861 = vmatpush.bf16.msra.mxu0 0
  %862 = vmatpush.bf16.msra.mxu0 0
  %863 = vmatpush.bf16.msra.mxu0 0
  %864 = vmatpush.bf16.msra.mxu0 0
  %865 = vmatpush.bf16.msra.mxu0 0
  %866 = vmatpush.bf16.msra.mxu0 %v845
  %867 = vmatpush.bf16.msra.mxu0 %v844
  %868 = vmatmul.bf16.gmra.mxu0 %v849
  %v869 = vpop.f32.mrf.mxu0
  %v870 = vadd.f32 0.0, %v869
  %v871 = vpop.f32.mrf.mxu0
  %v872 = vadd.f32 0.0, %v871
  %873 = vmatmul.bf16.gmra.mxu0 %v852
  %v874 = vpop.f32.mrf.mxu0
  %v875 = vadd.f32 0.0, %v874
  %v876 = vpop.f32.mrf.mxu0
  %v877 = vadd.f32 0.0, %v876
  %878 = vmatmul.bf16.gmra.mxu0 %v855
  %v879 = vpop.f32.mrf.mxu0
  %v880 = vadd.f32 0.0, %v879
  %v881 = vpop.f32.mrf.mxu0
  %v882 = vadd.f32 0.0, %v881
  %883 = vmatmul.bf16.gmra.mxu0 %v858
  %v884 = vpop.f32.mrf.mxu0
  %v885 = vadd.f32 0.0, %v884
  %v886 = vpop.f32.mrf.mxu0
  %v887 = vadd.f32 0.0, %v886
  %888 = vdwg.mxu0
  %v889 = vadd.f32 %v794, %v870
  %v890 = vadd.f32 %v795, %v872
  %v891 = vadd.f32 %v796, %v875
  %v892 = vadd.f32 %v797, %v877
  %v893 = vadd.f32 %v798, %v880
  %v894 = vadd.f32 %v799, %v882
  %v895 = vadd.f32 %v800, %v885
  %v896 = vadd.f32 %v801, %v887
  %s897 = scalar_lea.vmem %s0, 48
  %v898 = vld [vmem:[%s897] sm:$0xf]
  %v899 = vld [vmem:[%s897 + $0x8] sm:$0xf]
  %v900 = vld [vmem:[%s897 + $0x10] sm:$0xf]
  %v901 = vld [vmem:[%s897 + $0x18] sm:$0xf]
  %v902 = vld [vmem:[%s897 + $0xa0] sm:$0xf]
  %v903 = vld [vmem:[%s897 + $0xa8] sm:$0xf]
  %v904 = vld [vmem:[%s897 + $0xb0] sm:$0xf]
  %v905 = vld [vmem:[%s897 + $0xb8] sm:$0xf]
  %s906 = scalar_lea.vmem %s1, 112
  %v907 = vld [vmem:[%s906] sm:$0xf]
  %v908 = vld [vmem:[%s906 + $0x4] sm:$0xf]
  %v909 = vld [vmem:[%s906 + $0x8] sm:$0xf]
  %v910 = vld [vmem:[%s906 + $0xc] sm:$0xf]
  %v919 = vunpack.c.l.b16 %v898
  %v920 = vunpack.c.l.b16 %v899
  %v921 = vunpack.c.l.b16 %v900
  %v922 = vunpack.c.l.b16 %v901
  %v923 = vunpack.c.l.b16 %v902
  %v924 = vunpack.c.l.b16 %v903
  %v925 = vunpack.c.l.b16 %v904
  %v926 = vunpack.c.l.b16 %v905
  %v927 = vpack.c.b16 %v920, %v919
  %v928 = vpack.c.b16 %v922, %v921
  %v929 = vpack.c.b16 %v924, %v923
  %v930 = vpack.c.b16 %v926, %v925
  %v935 = vunpack.c.l.b16 %v907
  %v936 = vunpack.c.l.b16 %v908
  %v937 = vunpack.c.l.b16 %v909
  %v938 = vunpack.c.l.b16 %v910
  %v939 = vpack.c.b16 %v936, %v935
  %v940 = vpack.c.b16 %v938, %v937
  %v944 = vsel %vm82, %v927, 0
  %v947 = vsel %vm82, %v928, 0
  %v950 = vsel %vm82, %v929, 0
  %v953 = vsel %vm82, %v930, 0
  %955 = vmatpush.bf16.msra.mxu0 0
  %956 = vmatpush.bf16.msra.mxu0 0
  %957 = vmatpush.bf16.msra.mxu0 0
  %958 = vmatpush.bf16.msra.mxu0 0
  %959 = vmatpush.bf16.msra.mxu0 0
  %960 = vmatpush.bf16.msra.mxu0 0
  %961 = vmatpush.bf16.msra.mxu0 %v940
  %962 = vmatpush.bf16.msra.mxu0 %v939
  %963 = vmatmul.bf16.gmra.mxu0 %v944
  %v964 = vpop.f32.mrf.mxu0
  %v965 = vadd.f32 0.0, %v964
  %v966 = vpop.f32.mrf.mxu0
  %v967 = vadd.f32 0.0, %v966
  %968 = vmatmul.bf16.gmra.mxu0 %v947
  %v969 = vpop.f32.mrf.mxu0
  %v970 = vadd.f32 0.0, %v969
  %v971 = vpop.f32.mrf.mxu0
  %v972 = vadd.f32 0.0, %v971
  %973 = vmatmul.bf16.gmra.mxu0 %v950
  %v974 = vpop.f32.mrf.mxu0
  %v975 = vadd.f32 0.0, %v974
  %v976 = vpop.f32.mrf.mxu0
  %v977 = vadd.f32 0.0, %v976
  %978 = vmatmul.bf16.gmra.mxu0 %v953
  %v979 = vpop.f32.mrf.mxu0
  %v980 = vadd.f32 0.0, %v979
  %v981 = vpop.f32.mrf.mxu0
  %v982 = vadd.f32 0.0, %v981
  %983 = vdwg.mxu0
  %v984 = vadd.f32 %v889, %v965
  %v985 = vadd.f32 %v890, %v967
  %v986 = vadd.f32 %v891, %v970
  %v987 = vadd.f32 %v892, %v972
  %v988 = vadd.f32 %v893, %v975
  %v989 = vadd.f32 %v894, %v977
  %v990 = vadd.f32 %v895, %v980
  %v991 = vadd.f32 %v896, %v982
  %v992 = vld [vmem:[%s802] sm:$0xf]
  %v993 = vld [vmem:[%s802 + $0x4] sm:$0x1]
  %v994 = vld [vmem:[%s802 + $0x8] sm:$0xf]
  %v995 = vld [vmem:[%s802 + $0xc] sm:$0x1]
  %v996 = vld [vmem:[%s802 + $0x10] sm:$0xf]
  %v997 = vld [vmem:[%s802 + $0x14] sm:$0x1]
  %v998 = vld [vmem:[%s802 + $0x18] sm:$0xf]
  %v999 = vld [vmem:[%s802 + $0x1c] sm:$0x1]
  %v1000 = vld [vmem:[%s802 + $0xa0] sm:$0xf]
  %v1001 = vld [vmem:[%s802 + $0xa4] sm:$0x1]
  %v1002 = vld [vmem:[%s802 + $0xa8] sm:$0xf]
  %v1003 = vld [vmem:[%s802 + $0xac] sm:$0x1]
  %v1004 = vld [vmem:[%s802 + $0xb0] sm:$0xf]
  %v1005 = vld [vmem:[%s802 + $0xb4] sm:$0x1]
  %v1006 = vld [vmem:[%s802 + $0xb8] sm:$0xf]
  %v1007 = vld [vmem:[%s802 + $0xbc] sm:$0x1]
  %v1009 = vshrl.u32 %v992, 16
  %v1011 = vrot.slane %v1009, 4
  %v1012 = vshll.u32 %v992, 16
  %v1014 = vrot.slane %v1012, 5
  %v1015 = vor.u32 %v1011, %v1014
  %v1016 = vrot.slane %v1015, 4
  %v1018 = vshll.u32 %v993, 16
  %v1020 = vrot.slane %v1018, 5
  %v1021 = vsel %vm215, %v1016, %v1020
  %v1023 = vshrl.u32 %v994, 16
  %v1025 = vrot.slane %v1023, 4
  %v1026 = vshll.u32 %v994, 16
  %v1028 = vrot.slane %v1026, 5
  %v1029 = vor.u32 %v1025, %v1028
  %v1030 = vrot.slane %v1029, 4
  %v1032 = vshll.u32 %v995, 16
  %v1034 = vrot.slane %v1032, 5
  %v1035 = vsel %vm215, %v1030, %v1034
  %v1037 = vshrl.u32 %v996, 16
  %v1039 = vrot.slane %v1037, 4
  %v1040 = vshll.u32 %v996, 16
  %v1042 = vrot.slane %v1040, 5
  %v1043 = vor.u32 %v1039, %v1042
  %v1044 = vrot.slane %v1043, 4
  %v1046 = vshll.u32 %v997, 16
  %v1048 = vrot.slane %v1046, 5
  %v1049 = vsel %vm215, %v1044, %v1048
  %v1051 = vshrl.u32 %v998, 16
  %v1053 = vrot.slane %v1051, 4
  %v1054 = vshll.u32 %v998, 16
  %v1056 = vrot.slane %v1054, 5
  %v1057 = vor.u32 %v1053, %v1056
  %v1058 = vrot.slane %v1057, 4
  %v1060 = vshll.u32 %v999, 16
  %v1062 = vrot.slane %v1060, 5
  %v1063 = vsel %vm215, %v1058, %v1062
  %v1065 = vshrl.u32 %v1000, 16
  %v1067 = vrot.slane %v1065, 4
  %v1068 = vshll.u32 %v1000, 16
  %v1070 = vrot.slane %v1068, 5
  %v1071 = vor.u32 %v1067, %v1070
  %v1072 = vrot.slane %v1071, 4
  %v1074 = vshll.u32 %v1001, 16
  %v1076 = vrot.slane %v1074, 5
  %v1077 = vsel %vm215, %v1072, %v1076
  %v1079 = vshrl.u32 %v1002, 16
  %v1081 = vrot.slane %v1079, 4
  %v1082 = vshll.u32 %v1002, 16
  %v1084 = vrot.slane %v1082, 5
  %v1085 = vor.u32 %v1081, %v1084
  %v1086 = vrot.slane %v1085, 4
  %v1088 = vshll.u32 %v1003, 16
  %v1090 = vrot.slane %v1088, 5
  %v1091 = vsel %vm215, %v1086, %v1090
  %v1093 = vshrl.u32 %v1004, 16
  %v1095 = vrot.slane %v1093, 4
  %v1096 = vshll.u32 %v1004, 16
  %v1098 = vrot.slane %v1096, 5
  %v1099 = vor.u32 %v1095, %v1098
  %v1100 = vrot.slane %v1099, 4
  %v1102 = vshll.u32 %v1005, 16
  %v1104 = vrot.slane %v1102, 5
  %v1105 = vsel %vm215, %v1100, %v1104
  %v1107 = vshrl.u32 %v1006, 16
  %v1109 = vrot.slane %v1107, 4
  %v1110 = vshll.u32 %v1006, 16
  %v1112 = vrot.slane %v1110, 5
  %v1113 = vor.u32 %v1109, %v1112
  %v1114 = vrot.slane %v1113, 4
  %v1116 = vshll.u32 %v1007, 16
  %v1118 = vrot.slane %v1116, 5
  %v1119 = vsel %vm215, %v1114, %v1118
  %s1120 = scalar_lea.vmem %s1, 128
  %v1121 = vld [vmem:[%s1120] sm:$0xf]
  %v1122 = vld [vmem:[%s1120 + $0x4] sm:$0xf]
  %v1123 = vld [vmem:[%s1120 + $0x8] sm:$0xf]
  %v1124 = vld [vmem:[%s1120 + $0xc] sm:$0xf]
  %v1125 = vunpack.c.l.b16 %v1021
  %v1126 = vunpack.c.l.b16 %v1035
  %v1127 = vunpack.c.l.b16 %v1049
  %v1128 = vunpack.c.l.b16 %v1063
  %v1129 = vunpack.c.l.b16 %v1077
  %v1130 = vunpack.c.l.b16 %v1091
  %v1131 = vunpack.c.l.b16 %v1105
  %v1132 = vunpack.c.l.b16 %v1119
  %v1133 = vpack.c.b16 %v1126, %v1125
  %v1134 = vpack.c.b16 %v1128, %v1127
  %v1135 = vpack.c.b16 %v1130, %v1129
  %v1136 = vpack.c.b16 %v1132, %v1131
  %v1141 = vunpack.c.l.b16 %v1121
  %v1142 = vunpack.c.l.b16 %v1122
  %v1143 = vunpack.c.l.b16 %v1123
  %v1144 = vunpack.c.l.b16 %v1124
  %v1145 = vpack.c.b16 %v1142, %v1141
  %v1146 = vpack.c.b16 %v1144, %v1143
  %v1150 = vsel %vm82, %v1133, 0
  %v1153 = vsel %vm82, %v1134, 0
  %v1156 = vsel %vm82, %v1135, 0
  %v1159 = vsel %vm82, %v1136, 0
  %1161 = vmatpush.bf16.msra.mxu0 0
  %1162 = vmatpush.bf16.msra.mxu0 0
  %1163 = vmatpush.bf16.msra.mxu0 0
  %1164 = vmatpush.bf16.msra.mxu0 0
  %1165 = vmatpush.bf16.msra.mxu0 0
  %1166 = vmatpush.bf16.msra.mxu0 0
  %1167 = vmatpush.bf16.msra.mxu0 %v1146
  %1168 = vmatpush.bf16.msra.mxu0 %v1145
  %1169 = vmatmul.bf16.gmra.mxu0 %v1150
  %v1170 = vpop.f32.mrf.mxu0
  %v1171 = vadd.f32 0.0, %v1170
  %v1172 = vpop.f32.mrf.mxu0
  %v1173 = vadd.f32 0.0, %v1172
  %1174 = vmatmul.bf16.gmra.mxu0 %v1153
  %v1175 = vpop.f32.mrf.mxu0
  %v1176 = vadd.f32 0.0, %v1175
  %v1177 = vpop.f32.mrf.mxu0
  %v1178 = vadd.f32 0.0, %v1177
  %1179 = vmatmul.bf16.gmra.mxu0 %v1156
  %v1180 = vpop.f32.mrf.mxu0
  %v1181 = vadd.f32 0.0, %v1180
  %v1182 = vpop.f32.mrf.mxu0
  %v1183 = vadd.f32 0.0, %v1182
  %1184 = vmatmul.bf16.gmra.mxu0 %v1159
  %v1185 = vpop.f32.mrf.mxu0
  %v1186 = vadd.f32 0.0, %v1185
  %v1187 = vpop.f32.mrf.mxu0
  %v1188 = vadd.f32 0.0, %v1187
  %1189 = vdwg.mxu0
  %v1190 = vadd.f32 %v984, %v1171
  %v1191 = vadd.f32 %v985, %v1173
  %v1192 = vadd.f32 %v986, %v1176
  %v1193 = vadd.f32 %v987, %v1178
  %v1194 = vadd.f32 %v988, %v1181
  %v1195 = vadd.f32 %v989, %v1183
  %v1196 = vadd.f32 %v990, %v1186
  %v1197 = vadd.f32 %v991, %v1188
  %v1198 = vlaneseq
  %v1199 = vshrl.u32 %v1198, 7
  %vm1200 = vcmp.lt.s32.totalorder %v1199, 4
  %v1201 = vsel %vm1200, 1, 0
  %vm1202 = vcmp.eq.s32.totalorder %v1201, 1
  %v1203 = vsel %vm1202, %v1190, 0.0
  %v1204 = vsel %vm1202, %v1191, 0.0
  %v1205 = vsel %vm1202, %v1192, 0.0
  %v1206 = vsel %vm1202, %v1193, 0.0
  %v1207 = vsel %vm1202, %v1194, 0.0
  %v1208 = vsel %vm1202, %v1195, 0.0
  %v1209 = vsel %vm1202, %v1196, 0.0
  %v1210 = vsel %vm1202, %v1197, 0.0
  %s1211 = smul.u32 0, 64
  %s1212 = scalar_lea.vmem [#allocation2], %s1211
  %1213 = vst [vmem:[%s1212] sm:$0xff] %v1203
  %1214 = vst [vmem:[%s1212 + $0x8] sm:$0xff] %v1204
  %1215 = vst [vmem:[%s1212 + $0x10] sm:$0xff] %v1205
  %1216 = vst [vmem:[%s1212 + $0x18] sm:$0xff] %v1206
  %1217 = vst [vmem:[%s1212 + $0x20] sm:$0xff] %v1207
  %1218 = vst [vmem:[%s1212 + $0x28] sm:$0xff] %v1208
  %1219 = vst [vmem:[%s1212 + $0x30] sm:$0xff] %v1209
  %1220 = vst [vmem:[%s1212 + $0x38] sm:$0xff] %v1210
  %v1221 = vld [vmem:[#allocation3] sm:$0xff]
  %v1222 = vadd.f32 %v1203, %v1204
  %v1223 = vadd.f32 %v1222, %v1205
  %v1224 = vadd.f32 %v1223, %v1206
  %v1225 = vadd.f32 %v1224, %v1207
  %v1226 = vadd.f32 %v1225, %v1208
  %v1227 = vadd.f32 %v1226, %v1209
  %v1228 = vadd.f32 %v1227, %v1210
  %v1229 = vadd.f32 %v1221, %v1228
  %1230 = vst [vmem:[#allocation3] sm:$0xff] %v1229
  %v1231 = vld [vmem:[#allocation4] sm:$0xff]
  %v1232 = vmul.f32 %v1203, %v1203
  %v1233 = vmul.f32 %v1204, %v1204
  %v1234 = vmul.f32 %v1205, %v1205
  %v1235 = vmul.f32 %v1206, %v1206
  %v1236 = vmul.f32 %v1207, %v1207
  %v1237 = vmul.f32 %v1208, %v1208
  %v1238 = vmul.f32 %v1209, %v1209
  %v1239 = vmul.f32 %v1210, %v1210
  %v1240 = vadd.f32 %v1232, %v1233
  %v1241 = vadd.f32 %v1240, %v1234
  %v1242 = vadd.f32 %v1241, %v1235
  %v1243 = vadd.f32 %v1242, %v1236
  %v1244 = vadd.f32 %v1243, %v1237
  %v1245 = vadd.f32 %v1244, %v1238
  %v1246 = vadd.f32 %v1245, %v1239
  %v1247 = vadd.f32 %v1231, %v1246
  %1248 = vst [vmem:[#allocation4] sm:$0xff] %v1247
  // Predicated region
  $region22: #{dc_discriminator.6} parent=0 // pred_check
    %p1249 = pneg %p18
  $region23: #{dc_discriminator.6} parent=0 // pred_check_branch
    %1251 = sbr.rel (%p1249) target = $region25
  $region24: #{dc_discriminator.6} parent=0 // pred_region
    %v1252 = vld [vmem:[#allocation3] sm:$0xff]
    %v1253 = vrot.slane %v1252, 4
    %v1254 = vadd.f32 %v1252, %v1253
    %v1255 = vrot.slane %v1254, 2
    %v1256 = vadd.f32 %v1254, %v1255
    %v1257 = vrot.slane %v1256, 1
    %v1258 = vadd.f32 %v1256, %v1257
    %v1259 = vld [vmem:[#allocation4] sm:$0xff]
    %v1260 = vrot.slane %v1259, 4
    %v1261 = vadd.f32 %v1259, %v1260
    %v1262 = vrot.slane %v1261, 2
    %v1263 = vadd.f32 %v1261, %v1262
    %v1264 = vrot.slane %v1263, 1
    %v1265 = vadd.f32 %v1263, %v1264
    %v1266 = vmul.f32 %v1258, 0.03125
    %v1267 = vmul.f32 %v1265, 0.03125
    %v1268 = vmul.f32 %v1266, %v1266
    %v1269 = vsub.f32 %v1267, %v1268
    %v1270 = vmax.f32 %v1269, 0.0
    %v1271 = vadd.f32 %v1270, 1e-05
    %v1272 = vrsqrt.pop %v1271
    %v1273 = vmul.f32 %v1272, %v1271
    %v1274 = vmul.f32 %v1273, %v1272
    %v1275 = vmul.f32 0.5, %v1274
    %v1276 = vsub.f32 1.5, %v1275
    %v1277 = vmul.f32 %v1272, %v1276
    %vm1278 = vweird.f32 %v1271
    %vm1279 = vweird.f32 %v1272
    %vm1280 = vmor %vm1278, %vm1279
    %v1281 = vsel %vm1280, %v1272, %v1277
    %v1282 = vld [vmem:[%s2] sm:$0x1]
    %v1283 = vmul.f32 %v1281, %v1282
    %v1284 = vld [vmem:[%s3] sm:$0x1]
    %v1285 = vmul.f32 %v1266, %v1283
    %v1286 = vsub.f32 %v1284, %v1285
    %v1287 = vld [vmem:[#allocation2] sm:$0xff]
    %v1288 = vld [vmem:[#allocation2 + $0x8] sm:$0xff]
    %v1289 = vld [vmem:[#allocation2 + $0x10] sm:$0xff]
    %v1290 = vld [vmem:[#allocation2 + $0x18] sm:$0xff]
    %v1291 = vld [vmem:[#allocation2 + $0x20] sm:$0xff]
    %v1292 = vld [vmem:[#allocation2 + $0x28] sm:$0xff]
    %v1293 = vld [vmem:[#allocation2 + $0x30] sm:$0xff]
    %v1294 = vld [vmem:[#allocation2 + $0x38] sm:$0xff]
    %v1295 = vperm.slane %v1283, 0
    %v1296 = vmul.f32 %v1287, %v1295
    %v1297 = vmul.f32 %v1288, %v1295
    %v1298 = vmul.f32 %v1289, %v1295
    %v1299 = vmul.f32 %v1290, %v1295
    %v1300 = vmul.f32 %v1291, %v1295
    %v1301 = vmul.f32 %v1292, %v1295
    %v1302 = vmul.f32 %v1293, %v1295
    %v1303 = vmul.f32 %v1294, %v1295
    %v1305 = vperm.slane %v1286, 0
    %v1307 = vadd.f32 %v1296, %v1305
    %v1308 = vadd.f32 %v1297, %v1305
    %v1309 = vadd.f32 %v1298, %v1305
    %v1310 = vadd.f32 %v1299, %v1305
    %v1311 = vadd.f32 %v1300, %v1305
    %v1312 = vadd.f32 %v1301, %v1305
    %v1313 = vadd.f32 %v1302, %v1305
    %v1314 = vadd.f32 %v1303, %v1305
    %vm1315 = vcmp.gt.f32.partialorder %v1307, 0.0
    %vm1316 = vcmp.gt.f32.partialorder %v1308, 0.0
    %vm1317 = vcmp.gt.f32.partialorder %v1309, 0.0
    %vm1318 = vcmp.gt.f32.partialorder %v1310, 0.0
    %vm1319 = vcmp.gt.f32.partialorder %v1311, 0.0
    %vm1320 = vcmp.gt.f32.partialorder %v1312, 0.0
    %vm1321 = vcmp.gt.f32.partialorder %v1313, 0.0
    %vm1322 = vcmp.gt.f32.partialorder %v1314, 0.0
    %v1323 = vmul.f32 %v1307, 0.2
    %v1324 = vmul.f32 %v1308, 0.2
    %v1325 = vmul.f32 %v1309, 0.2
    %v1326 = vmul.f32 %v1310, 0.2
    %v1327 = vmul.f32 %v1311, 0.2
    %v1328 = vmul.f32 %v1312, 0.2
    %v1329 = vmul.f32 %v1313, 0.2
    %v1330 = vmul.f32 %v1314, 0.2
    %v1331 = vsel %vm1315, %v1307, %v1323
    %v1332 = vsel %vm1316, %v1308, %v1324
    %v1333 = vsel %vm1317, %v1309, %v1325
    %v1334 = vsel %vm1318, %v1310, %v1326
    %v1335 = vsel %vm1319, %v1311, %v1327
    %v1336 = vsel %vm1320, %v1312, %v1328
    %v1337 = vsel %vm1321, %v1313, %v1329
    %v1338 = vsel %vm1322, %v1314, %v1330
    %v1339 = vpack.c.bf16 %v1331, %v1331
    %v1340 = vpack.c.bf16 %v1332, %v1332
    %v1341 = vpack.c.bf16 %v1333, %v1333
    %v1342 = vpack.c.bf16 %v1334, %v1334
    %v1343 = vpack.c.bf16 %v1335, %v1335
    %v1344 = vpack.c.bf16 %v1336, %v1336
    %v1345 = vpack.c.bf16 %v1337, %v1337
    %v1346 = vpack.c.bf16 %v1338, %v1338
    %1347 = vst [vmem:[%s4] sm:$0xf] %v1339
    %1348 = vst [vmem:[%s4 + $0x4] sm:$0xf] %v1340
    %1349 = vst [vmem:[%s4 + $0x8] sm:$0xf] %v1341
    %1350 = vst [vmem:[%s4 + $0xc] sm:$0xf] %v1342
    %1351 = vst [vmem:[%s4 + $0x10] sm:$0xf] %v1343
    %1352 = vst [vmem:[%s4 + $0x14] sm:$0xf] %v1344
    %1353 = vst [vmem:[%s4 + $0x18] sm:$0xf] %v1345
    %1354 = vst [vmem:[%s4 + $0x1c] sm:$0xf] %v1346
  $region25: #{dc_discriminator.6} parent=0 // pred_fallthru
    _
  // Predicated region
  $region26: #{dc_discriminator.6} parent=0 // pred_check
    _
  $region27: #{dc_discriminator.6} parent=0 // pred_check_branch
    %1356 = sbr.rel (0) target = $region29
  $region28: #{dc_discriminator.6} parent=0 // pred_region
    _
  $region29: #{dc_discriminator.6} parent=0 // pred_fallthru
    _
  // Predicated region
  $region30: #{dc_discriminator.6} parent=0 // pred_check
    _
  $region31: #{dc_discriminator.6} parent=0 // pred_check_branch
    %1358 = sbr.rel (0) target = $region33
  $region32: #{dc_discriminator.6} parent=0 // pred_region
    _
  $region33: #{dc_discriminator.6} parent=0 // pred_fallthru
    _

// kernel: dc_discriminator.7
$region0: #{dc_discriminator.7}
  #allocation0 [shape = 'u32[]', space=smem, size = 0x4, offset = 0x4, fixed_abs, tag = 'smem constant byte address 0x4 - core index']
  #allocation1 [shape = 'u32[72,128]{1,0:T(1,128)}', space=vmem, size = 0x9000, scoped, tag = 'internal scratch']
  %s0 = inlined_call_operand.vmem [shape: bf16[128,1024], index: 0, kind: input, shape index: {}]
  %s1 = inlined_call_operand.vmem [shape: bf16[1024,128], index: 1, kind: input, shape index: {}]
  %s2 = inlined_call_operand.vmem [shape: f32[1,128], index: 2, kind: input, shape index: {}]
  %s3 = inlined_call_operand.vmem [shape: f32[128,128], index: 3, kind: output, shape index: {}]
  %s4 = sld [smem:[#allocation0]]
  $region22: #{dc_discriminator.7} parent=0
    _
  %s6 = ssub.s32 1, %s4
  %s7 = scalar_select 0, %s6, %s4
  // Predicated region
  $region2: #{dc_discriminator.7} parent=0 // pred_check
    _
  $region3: #{dc_discriminator.7} parent=0 // pred_check_branch
    %9 = sbr.rel (0) target = $region5
  $region4: #{dc_discriminator.7} parent=0 // pred_region
    _
  $region5: #{dc_discriminator.7} parent=0 // pred_fallthru
    _
  // Predicated region
  $region6: #{dc_discriminator.7} parent=0 // pred_check
    _
  $region7: #{dc_discriminator.7} parent=0 // pred_check_branch
    %11 = sbr.rel (0) target = $region9
  $region8: #{dc_discriminator.7} parent=0 // pred_region
    _
  $region9: #{dc_discriminator.7} parent=0 // pred_fallthru
    _
  // Predicated region
  $region10: #{dc_discriminator.7} parent=0 // pred_check
    _
  $region11: #{dc_discriminator.7} parent=0 // pred_check_branch
    %13 = sbr.rel (0) target = $region13
  $region12: #{dc_discriminator.7} parent=0 // pred_region
    _
  $region13: #{dc_discriminator.7} parent=0 // pred_fallthru
    _
  %v14 = vld [vmem:[%s0] sm:$0xff]
  %v15 = vld [vmem:[%s0 + $0x8] sm:$0xff]
  %v16 = vld [vmem:[%s0 + $0x10] sm:$0xff]
  %v17 = vld [vmem:[%s0 + $0x18] sm:$0xff]
  %v18 = vld [vmem:[%s0 + $0x20] sm:$0xff]
  %v19 = vld [vmem:[%s0 + $0x28] sm:$0xff]
  %v20 = vld [vmem:[%s0 + $0x30] sm:$0xff]
  %v21 = vld [vmem:[%s0 + $0x38] sm:$0xff]
  %v22 = vld [vmem:[%s0 + $0x40] sm:$0xff]
  %v23 = vld [vmem:[%s0 + $0x48] sm:$0xff]
  %v24 = vld [vmem:[%s0 + $0x50] sm:$0xff]
  %v25 = vld [vmem:[%s0 + $0x58] sm:$0xff]
  %v26 = vld [vmem:[%s0 + $0x60] sm:$0xff]
  %v27 = vld [vmem:[%s0 + $0x68] sm:$0xff]
  %v28 = vld [vmem:[%s0 + $0x70] sm:$0xff]
  %v29 = vld [vmem:[%s0 + $0x78] sm:$0xff]
  %v30 = vld [vmem:[%s0 + $0x80] sm:$0xff]
  %v31 = vld [vmem:[%s0 + $0x88] sm:$0xff]
  %v32 = vld [vmem:[%s0 + $0x90] sm:$0xff]
  %v33 = vld [vmem:[%s0 + $0x98] sm:$0xff]
  %v34 = vld [vmem:[%s0 + $0xa0] sm:$0xff]
  %v35 = vld [vmem:[%s0 + $0xa8] sm:$0xff]
  %v36 = vld [vmem:[%s0 + $0xb0] sm:$0xff]
  %v37 = vld [vmem:[%s0 + $0xb8] sm:$0xff]
  %v38 = vld [vmem:[%s0 + $0xc0] sm:$0xff]
  %v39 = vld [vmem:[%s0 + $0xc8] sm:$0xff]
  %v40 = vld [vmem:[%s0 + $0xd0] sm:$0xff]
  %v41 = vld [vmem:[%s0 + $0xd8] sm:$0xff]
  %v42 = vld [vmem:[%s0 + $0xe0] sm:$0xff]
  %v43 = vld [vmem:[%s0 + $0xe8] sm:$0xff]
  %v44 = vld [vmem:[%s0 + $0xf0] sm:$0xff]
  %v45 = vld [vmem:[%s0 + $0xf8] sm:$0xff]
  %v46 = vld [vmem:[%s0 + $0x100] sm:$0xff]
  %v47 = vld [vmem:[%s0 + $0x108] sm:$0xff]
  %v48 = vld [vmem:[%s0 + $0x110] sm:$0xff]
  %v49 = vld [vmem:[%s0 + $0x118] sm:$0xff]
  %v50 = vld [vmem:[%s0 + $0x120] sm:$0xff]
  %v51 = vld [vmem:[%s0 + $0x128] sm:$0xff]
  %v52 = vld [vmem:[%s0 + $0x130] sm:$0xff]
  %v53 = vld [vmem:[%s0 + $0x138] sm:$0xff]
  %v54 = vld [vmem:[%s0 + $0x140] sm:$0xff]
  %v55 = vld [vmem:[%s0 + $0x148] sm:$0xff]
  %v56 = vld [vmem:[%s0 + $0x150] sm:$0xff]
  %v57 = vld [vmem:[%s0 + $0x158] sm:$0xff]
  %v58 = vld [vmem:[%s0 + $0x160] sm:$0xff]
  %v59 = vld [vmem:[%s0 + $0x168] sm:$0xff]
  %v60 = vld [vmem:[%s0 + $0x170] sm:$0xff]
  %v61 = vld [vmem:[%s0 + $0x178] sm:$0xff]
  %v62 = vld [vmem:[%s0 + $0x180] sm:$0xff]
  %v63 = vld [vmem:[%s0 + $0x188] sm:$0xff]
  %v64 = vld [vmem:[%s0 + $0x190] sm:$0xff]
  %v65 = vld [vmem:[%s0 + $0x198] sm:$0xff]
  %v66 = vld [vmem:[%s0 + $0x1a0] sm:$0xff]
  %v67 = vld [vmem:[%s0 + $0x1a8] sm:$0xff]
  %v68 = vld [vmem:[%s0 + $0x1b0] sm:$0xff]
  %v69 = vld [vmem:[%s0 + $0x1b8] sm:$0xff]
  %v70 = vld [vmem:[%s0 + $0x1c0] sm:$0xff]
  %v71 = vld [vmem:[%s0 + $0x1c8] sm:$0xff]
  %v72 = vld [vmem:[%s0 + $0x1d0] sm:$0xff]
  %v73 = vld [vmem:[%s0 + $0x1d8] sm:$0xff]
  %v74 = vld [vmem:[%s0 + $0x1e0] sm:$0xff]
  %v75 = vld [vmem:[%s0 + $0x1e8] sm:$0xff]
  %v76 = vld [vmem:[%s0 + $0x1f0] sm:$0xff]
  %v77 = vld [vmem:[%s0 + $0x1f8] sm:$0xff]
  %v78 = vld [vmem:[%s1] sm:$0xf]
  %v79 = vld [vmem:[%s1 + $0x4] sm:$0xf]
  %v80 = vld [vmem:[%s1 + $0x8] sm:$0xf]
  %v81 = vld [vmem:[%s1 + $0xc] sm:$0xf]
  %v82 = vld [vmem:[%s1 + $0x10] sm:$0xf]
  %v83 = vld [vmem:[%s1 + $0x14] sm:$0xf]
  %v84 = vld [vmem:[%s1 + $0x18] sm:$0xf]
  %v85 = vld [vmem:[%s1 + $0x1c] sm:$0xf]
  %v86 = vld [vmem:[%s1 + $0x20] sm:$0xf]
  %v87 = vld [vmem:[%s1 + $0x24] sm:$0xf]
  %v88 = vld [vmem:[%s1 + $0x28] sm:$0xf]
  %v89 = vld [vmem:[%s1 + $0x2c] sm:$0xf]
  %v90 = vld [vmem:[%s1 + $0x30] sm:$0xf]
  %v91 = vld [vmem:[%s1 + $0x34] sm:$0xf]
  %v92 = vld [vmem:[%s1 + $0x38] sm:$0xf]
  %v93 = vld [vmem:[%s1 + $0x3c] sm:$0xf]
  %v94 = vld [vmem:[%s1 + $0x40] sm:$0xf]
  %v95 = vld [vmem:[%s1 + $0x44] sm:$0xf]
  %v96 = vld [vmem:[%s1 + $0x48] sm:$0xf]
  %v97 = vld [vmem:[%s1 + $0x4c] sm:$0xf]
  %v98 = vld [vmem:[%s1 + $0x50] sm:$0xf]
  %v99 = vld [vmem:[%s1 + $0x54] sm:$0xf]
  %v100 = vld [vmem:[%s1 + $0x58] sm:$0xf]
  %v101 = vld [vmem:[%s1 + $0x5c] sm:$0xf]
  %v102 = vld [vmem:[%s1 + $0x60] sm:$0xf]
  %v103 = vld [vmem:[%s1 + $0x64] sm:$0xf]
  %v104 = vld [vmem:[%s1 + $0x68] sm:$0xf]
  %v105 = vld [vmem:[%s1 + $0x6c] sm:$0xf]
  %v106 = vld [vmem:[%s1 + $0x70] sm:$0xf]
  %v107 = vld [vmem:[%s1 + $0x74] sm:$0xf]
  %v108 = vld [vmem:[%s1 + $0x78] sm:$0xf]
  %v109 = vld [vmem:[%s1 + $0x7c] sm:$0xf]
  %v110 = vld [vmem:[%s1 + $0x80] sm:$0xf]
  %v111 = vld [vmem:[%s1 + $0x84] sm:$0xf]
  %v112 = vld [vmem:[%s1 + $0x88] sm:$0xf]
  %v113 = vld [vmem:[%s1 + $0x8c] sm:$0xf]
  %v114 = vld [vmem:[%s1 + $0x90] sm:$0xf]
  %v115 = vld [vmem:[%s1 + $0x94] sm:$0xf]
  %v116 = vld [vmem:[%s1 + $0x98] sm:$0xf]
  %v117 = vld [vmem:[%s1 + $0x9c] sm:$0xf]
  %v118 = vld [vmem:[%s1 + $0xa0] sm:$0xf]
  %v119 = vld [vmem:[%s1 + $0xa4] sm:$0xf]
  %v120 = vld [vmem:[%s1 + $0xa8] sm:$0xf]
  %v121 = vld [vmem:[%s1 + $0xac] sm:$0xf]
  %v122 = vld [vmem:[%s1 + $0xb0] sm:$0xf]
  %v123 = vld [vmem:[%s1 + $0xb4] sm:$0xf]
  %v124 = vld [vmem:[%s1 + $0xb8] sm:$0xf]
  %v125 = vld [vmem:[%s1 + $0xbc] sm:$0xf]
  %v126 = vld [vmem:[%s1 + $0xc0] sm:$0xf]
  %v127 = vld [vmem:[%s1 + $0xc4] sm:$0xf]
  %v128 = vld [vmem:[%s1 + $0xc8] sm:$0xf]
  %v129 = vld [vmem:[%s1 + $0xcc] sm:$0xf]
  %v130 = vld [vmem:[%s1 + $0xd0] sm:$0xf]
  %v131 = vld [vmem:[%s1 + $0xd4] sm:$0xf]
  %v132 = vld [vmem:[%s1 + $0xd8] sm:$0xf]
  %v133 = vld [vmem:[%s1 + $0xdc] sm:$0xf]
  %v134 = vld [vmem:[%s1 + $0xe0] sm:$0xf]
  %v135 = vld [vmem:[%s1 + $0xe4] sm:$0xf]
  %v136 = vld [vmem:[%s1 + $0xe8] sm:$0xf]
  %v137 = vld [vmem:[%s1 + $0xec] sm:$0xf]
  %v138 = vld [vmem:[%s1 + $0xf0] sm:$0xf]
  %v139 = vld [vmem:[%s1 + $0xf4] sm:$0xf]
  %v140 = vld [vmem:[%s1 + $0xf8] sm:$0xf]
  %v141 = vld [vmem:[%s1 + $0xfc] sm:$0xf]
  %v142 = vld [vmem:[%s1 + $0x100] sm:$0xf]
  %v143 = vld [vmem:[%s1 + $0x104] sm:$0xf]
  %v144 = vld [vmem:[%s1 + $0x108] sm:$0xf]
  %v145 = vld [vmem:[%s1 + $0x10c] sm:$0xf]
  %v146 = vld [vmem:[%s1 + $0x110] sm:$0xf]
  %v147 = vld [vmem:[%s1 + $0x114] sm:$0xf]
  %v148 = vld [vmem:[%s1 + $0x118] sm:$0xf]
  %v149 = vld [vmem:[%s1 + $0x11c] sm:$0xf]
  %v150 = vld [vmem:[%s1 + $0x120] sm:$0xf]
  %v151 = vld [vmem:[%s1 + $0x124] sm:$0xf]
  %v152 = vld [vmem:[%s1 + $0x128] sm:$0xf]
  %v153 = vld [vmem:[%s1 + $0x12c] sm:$0xf]
  %v154 = vld [vmem:[%s1 + $0x130] sm:$0xf]
  %v155 = vld [vmem:[%s1 + $0x134] sm:$0xf]
  %v156 = vld [vmem:[%s1 + $0x138] sm:$0xf]
  %v157 = vld [vmem:[%s1 + $0x13c] sm:$0xf]
  %v158 = vld [vmem:[%s1 + $0x140] sm:$0xf]
  %v159 = vld [vmem:[%s1 + $0x144] sm:$0xf]
  %v160 = vld [vmem:[%s1 + $0x148] sm:$0xf]
  %v161 = vld [vmem:[%s1 + $0x14c] sm:$0xf]
  %v162 = vld [vmem:[%s1 + $0x150] sm:$0xf]
  %v163 = vld [vmem:[%s1 + $0x154] sm:$0xf]
  %v164 = vld [vmem:[%s1 + $0x158] sm:$0xf]
  %v165 = vld [vmem:[%s1 + $0x15c] sm:$0xf]
  %v166 = vld [vmem:[%s1 + $0x160] sm:$0xf]
  %v167 = vld [vmem:[%s1 + $0x164] sm:$0xf]
  %v168 = vld [vmem:[%s1 + $0x168] sm:$0xf]
  %v169 = vld [vmem:[%s1 + $0x16c] sm:$0xf]
  %v170 = vld [vmem:[%s1 + $0x170] sm:$0xf]
  %v171 = vld [vmem:[%s1 + $0x174] sm:$0xf]
  %v172 = vld [vmem:[%s1 + $0x178] sm:$0xf]
  %v173 = vld [vmem:[%s1 + $0x17c] sm:$0xf]
  %v174 = vld [vmem:[%s1 + $0x180] sm:$0xf]
  %v175 = vld [vmem:[%s1 + $0x184] sm:$0xf]
  %v176 = vld [vmem:[%s1 + $0x188] sm:$0xf]
  %v177 = vld [vmem:[%s1 + $0x18c] sm:$0xf]
  %v178 = vld [vmem:[%s1 + $0x190] sm:$0xf]
  %v179 = vld [vmem:[%s1 + $0x194] sm:$0xf]
  %v180 = vld [vmem:[%s1 + $0x198] sm:$0xf]
  %v181 = vld [vmem:[%s1 + $0x19c] sm:$0xf]
  %v182 = vld [vmem:[%s1 + $0x1a0] sm:$0xf]
  %v183 = vld [vmem:[%s1 + $0x1a4] sm:$0xf]
  %v184 = vld [vmem:[%s1 + $0x1a8] sm:$0xf]
  %v185 = vld [vmem:[%s1 + $0x1ac] sm:$0xf]
  %v186 = vld [vmem:[%s1 + $0x1b0] sm:$0xf]
  %v187 = vld [vmem:[%s1 + $0x1b4] sm:$0xf]
  %v188 = vld [vmem:[%s1 + $0x1b8] sm:$0xf]
  %v189 = vld [vmem:[%s1 + $0x1bc] sm:$0xf]
  %v190 = vld [vmem:[%s1 + $0x1c0] sm:$0xf]
  %v191 = vld [vmem:[%s1 + $0x1c4] sm:$0xf]
  %v192 = vld [vmem:[%s1 + $0x1c8] sm:$0xf]
  %v193 = vld [vmem:[%s1 + $0x1cc] sm:$0xf]
  %v194 = vld [vmem:[%s1 + $0x1d0] sm:$0xf]
  %v195 = vld [vmem:[%s1 + $0x1d4] sm:$0xf]
  %v196 = vld [vmem:[%s1 + $0x1d8] sm:$0xf]
  %v197 = vld [vmem:[%s1 + $0x1dc] sm:$0xf]
  %v198 = vld [vmem:[%s1 + $0x1e0] sm:$0xf]
  %v199 = vld [vmem:[%s1 + $0x1e4] sm:$0xf]
  %v200 = vld [vmem:[%s1 + $0x1e8] sm:$0xf]
  %v201 = vld [vmem:[%s1 + $0x1ec] sm:$0xf]
  %v202 = vld [vmem:[%s1 + $0x1f0] sm:$0xf]
  %v203 = vld [vmem:[%s1 + $0x1f4] sm:$0xf]
  %v204 = vld [vmem:[%s1 + $0x1f8] sm:$0xf]
  %v205 = vld [vmem:[%s1 + $0x1fc] sm:$0xf]
  %v206 = vld [vmem:[%s2] sm:$0x1]
  %v208 = vperm.slane %v206, 0
  %v274 = vunpack.c.l.b16 %v14
  %v275 = vunpack.c.h.b16 %v14
  %v276 = vunpack.c.l.b16 %v15
  %v277 = vunpack.c.h.b16 %v15
  %v278 = vunpack.c.l.b16 %v16
  %v279 = vunpack.c.h.b16 %v16
  %v280 = vunpack.c.l.b16 %v17
  %v281 = vunpack.c.h.b16 %v17
  %v282 = vunpack.c.l.b16 %v18
  %v283 = vunpack.c.h.b16 %v18
  %v284 = vunpack.c.l.b16 %v19
  %v285 = vunpack.c.h.b16 %v19
  %v286 = vunpack.c.l.b16 %v20
  %v287 = vunpack.c.h.b16 %v20
  %v288 = vunpack.c.l.b16 %v21
  %v289 = vunpack.c.h.b16 %v21
  %v290 = vunpack.c.l.b16 %v22
  %v291 = vunpack.c.h.b16 %v22
  %v292 = vunpack.c.l.b16 %v23
  %v293 = vunpack.c.h.b16 %v23
  %v294 = vunpack.c.l.b16 %v24
  %v295 = vunpack.c.h.b16 %v24
  %v296 = vunpack.c.l.b16 %v25
  %v297 = vunpack.c.h.b16 %v25
  %v298 = vunpack.c.l.b16 %v26
  %v299 = vunpack.c.h.b16 %v26
  %v300 = vunpack.c.l.b16 %v27
  %v301 = vunpack.c.h.b16 %v27
  %v302 = vunpack.c.l.b16 %v28
  %v303 = vunpack.c.h.b16 %v28
  %v304 = vunpack.c.l.b16 %v29
  %v305 = vunpack.c.h.b16 %v29
  %v306 = vunpack.c.l.b16 %v30
  %v307 = vunpack.c.h.b16 %v30
  %v308 = vunpack.c.l.b16 %v31
  %v309 = vunpack.c.h.b16 %v31
  %v310 = vunpack.c.l.b16 %v32
  %v311 = vunpack.c.h.b16 %v32
  %v312 = vunpack.c.l.b16 %v33
  %v313 = vunpack.c.h.b16 %v33
  %v314 = vunpack.c.l.b16 %v34
  %v315 = vunpack.c.h.b16 %v34
  %v316 = vunpack.c.l.b16 %v35
  %v317 = vunpack.c.h.b16 %v35
  %v318 = vunpack.c.l.b16 %v36
  %v319 = vunpack.c.h.b16 %v36
  %v320 = vunpack.c.l.b16 %v37
  %v321 = vunpack.c.h.b16 %v37
  %v322 = vunpack.c.l.b16 %v38
  %v323 = vunpack.c.h.b16 %v38
  %v324 = vunpack.c.l.b16 %v39
  %v325 = vunpack.c.h.b16 %v39
  %v326 = vunpack.c.l.b16 %v40
  %v327 = vunpack.c.h.b16 %v40
  %v328 = vunpack.c.l.b16 %v41
  %v329 = vunpack.c.h.b16 %v41
  %v330 = vunpack.c.l.b16 %v42
  %v331 = vunpack.c.h.b16 %v42
  %v332 = vunpack.c.l.b16 %v43
  %v333 = vunpack.c.h.b16 %v43
  %v334 = vunpack.c.l.b16 %v44
  %v335 = vunpack.c.h.b16 %v44
  %v336 = vunpack.c.l.b16 %v45
  %v337 = vunpack.c.h.b16 %v45
  %v338 = vunpack.c.l.b16 %v46
  %v339 = vunpack.c.h.b16 %v46
  %v340 = vunpack.c.l.b16 %v47
  %v341 = vunpack.c.h.b16 %v47
  %v342 = vunpack.c.l.b16 %v48
  %v343 = vunpack.c.h.b16 %v48
  %v344 = vunpack.c.l.b16 %v49
  %v345 = vunpack.c.h.b16 %v49
  %v346 = vunpack.c.l.b16 %v50
  %v347 = vunpack.c.h.b16 %v50
  %v348 = vunpack.c.l.b16 %v51
  %v349 = vunpack.c.h.b16 %v51
  %v350 = vunpack.c.l.b16 %v52
  %v351 = vunpack.c.h.b16 %v52
  %v352 = vunpack.c.l.b16 %v53
  %v353 = vunpack.c.h.b16 %v53
  %v354 = vunpack.c.l.b16 %v54
  %v355 = vunpack.c.h.b16 %v54
  %v356 = vunpack.c.l.b16 %v55
  %v357 = vunpack.c.h.b16 %v55
  %v358 = vunpack.c.l.b16 %v56
  %v359 = vunpack.c.h.b16 %v56
  %v360 = vunpack.c.l.b16 %v57
  %v361 = vunpack.c.h.b16 %v57
  %v362 = vunpack.c.l.b16 %v58
  %v363 = vunpack.c.h.b16 %v58
  %v364 = vunpack.c.l.b16 %v59
  %v365 = vunpack.c.h.b16 %v59
  %v366 = vunpack.c.l.b16 %v60
  %v367 = vunpack.c.h.b16 %v60
  %v368 = vunpack.c.l.b16 %v61
  %v369 = vunpack.c.h.b16 %v61
  %v370 = vunpack.c.l.b16 %v62
  %v371 = vunpack.c.h.b16 %v62
  %v372 = vunpack.c.l.b16 %v63
  %v373 = vunpack.c.h.b16 %v63
  %v374 = vunpack.c.l.b16 %v64
  %v375 = vunpack.c.h.b16 %v64
  %v376 = vunpack.c.l.b16 %v65
  %v377 = vunpack.c.h.b16 %v65
  %v378 = vunpack.c.l.b16 %v66
  %v379 = vunpack.c.h.b16 %v66
  %v380 = vunpack.c.l.b16 %v67
  %v381 = vunpack.c.h.b16 %v67
  %v382 = vunpack.c.l.b16 %v68
  %v383 = vunpack.c.h.b16 %v68
  %v384 = vunpack.c.l.b16 %v69
  %v385 = vunpack.c.h.b16 %v69
  %v386 = vunpack.c.l.b16 %v70
  %v387 = vunpack.c.h.b16 %v70
  %v388 = vunpack.c.l.b16 %v71
  %v389 = vunpack.c.h.b16 %v71
  %v390 = vunpack.c.l.b16 %v72
  %v391 = vunpack.c.h.b16 %v72
  %v392 = vunpack.c.l.b16 %v73
  %v393 = vunpack.c.h.b16 %v73
  %v394 = vunpack.c.l.b16 %v74
  %v395 = vunpack.c.h.b16 %v74
  %v396 = vunpack.c.l.b16 %v75
  %v397 = vunpack.c.h.b16 %v75
  %v398 = vunpack.c.l.b16 %v76
  %v399 = vunpack.c.h.b16 %v76
  %v400 = vunpack.c.l.b16 %v77
  %v401 = vunpack.c.h.b16 %v77
  %v402 = vpack.c.b16 %v282, %v274
  %v403 = vpack.c.b16 %v283, %v275
  %v404 = vpack.c.b16 %v284, %v276
  %v405 = vpack.c.b16 %v285, %v277
  %v406 = vpack.c.b16 %v286, %v278
  %v407 = vpack.c.b16 %v287, %v279
  %v408 = vpack.c.b16 %v288, %v280
  %v409 = vpack.c.b16 %v289, %v281
  %v410 = vpack.c.b16 %v298, %v290
  %v411 = vpack.c.b16 %v299, %v291
  %v412 = vpack.c.b16 %v300, %v292
  %v413 = vpack.c.b16 %v301, %v293
  %v414 = vpack.c.b16 %v302, %v294
  %v415 = vpack.c.b16 %v303, %v295
  %v416 = vpack.c.b16 %v304, %v296
  %v417 = vpack.c.b16 %v305, %v297
  %v418 = vpack.c.b16 %v314, %v306
  %v419 = vpack.c.b16 %v315, %v307
  %v420 = vpack.c.b16 %v316, %v308
  %v421 = vpack.c.b16 %v317, %v309
  %v422 = vpack.c.b16 %v318, %v310
  %v423 = vpack.c.b16 %v319, %v311
  %v424 = vpack.c.b16 %v320, %v312
  %v425 = vpack.c.b16 %v321, %v313
  %v426 = vpack.c.b16 %v330, %v322
  %v427 = vpack.c.b16 %v331, %v323
  %v428 = vpack.c.b16 %v332, %v324
  %v429 = vpack.c.b16 %v333, %v325
  %v430 = vpack.c.b16 %v334, %v326
  %v431 = vpack.c.b16 %v335, %v327
  %v432 = vpack.c.b16 %v336, %v328
  %v433 = vpack.c.b16 %v337, %v329
  %v434 = vpack.c.b16 %v346, %v338
  %v435 = vpack.c.b16 %v347, %v339
  %v436 = vpack.c.b16 %v348, %v340
  %v437 = vpack.c.b16 %v349, %v341
  %v438 = vpack.c.b16 %v350, %v342
  %v439 = vpack.c.b16 %v351, %v343
  %v440 = vpack.c.b16 %v352, %v344
  %v441 = vpack.c.b16 %v353, %v345
  %v442 = vpack.c.b16 %v362, %v354
  %v443 = vpack.c.b16 %v363, %v355
  %v444 = vpack.c.b16 %v364, %v356
  %v445 = vpack.c.b16 %v365, %v357
  %v446 = vpack.c.b16 %v366, %v358
  %v447 = vpack.c.b16 %v367, %v359
  %v448 = vpack.c.b16 %v368, %v360
  %v449 = vpack.c.b16 %v369, %v361
  %v450 = vpack.c.b16 %v378, %v370
  %v451 = vpack.c.b16 %v379, %v371
  %v452 = vpack.c.b16 %v380, %v372
  %v453 = vpack.c.b16 %v381, %v373
  %v454 = vpack.c.b16 %v382, %v374
  %v455 = vpack.c.b16 %v383, %v375
  %v456 = vpack.c.b16 %v384, %v376
  %v457 = vpack.c.b16 %v385, %v377
  %v458 = vpack.c.b16 %v394, %v386
  %v459 = vpack.c.b16 %v395, %v387
  %v460 = vpack.c.b16 %v396, %v388
  %v461 = vpack.c.b16 %v397, %v389
  %v462 = vpack.c.b16 %v398, %v390
  %v463 = vpack.c.b16 %v399, %v391
  %v464 = vpack.c.b16 %v400, %v392
  %v465 = vpack.c.b16 %v401, %v393
  %v658 = vunpack.c.l.b16 %v78
  %v659 = vunpack.c.l.b16 %v79
  %v660 = vunpack.c.l.b16 %v80
  %v661 = vunpack.c.l.b16 %v81
  %v662 = vunpack.c.l.b16 %v82
  %v663 = vunpack.c.l.b16 %v83
  %v664 = vunpack.c.l.b16 %v84
  %v665 = vunpack.c.l.b16 %v85
  %v666 = vunpack.c.l.b16 %v86
  %v667 = vunpack.c.l.b16 %v87
  %v668 = vunpack.c.l.b16 %v88
  %v669 = vunpack.c.l.b16 %v89
  %v670 = vunpack.c.l.b16 %v90
  %v671 = vunpack.c.l.b16 %v91
  %v672 = vunpack.c.l.b16 %v92
  %v673 = vunpack.c.l.b16 %v93
  %v674 = vunpack.c.l.b16 %v94
  %v675 = vunpack.c.l.b16 %v95
  %v676 = vunpack.c.l.b16 %v96
  %v677 = vunpack.c.l.b16 %v97
  %v678 = vunpack.c.l.b16 %v98
  %v679 = vunpack.c.l.b16 %v99
  %v680 = vunpack.c.l.b16 %v100
  %v681 = vunpack.c.l.b16 %v101
  %v682 = vunpack.c.l.b16 %v102
  %v683 = vunpack.c.l.b16 %v103
  %v684 = vunpack.c.l.b16 %v104
  %v685 = vunpack.c.l.b16 %v105
  %v686 = vunpack.c.l.b16 %v106
  %v687 = vunpack.c.l.b16 %v107
  %v688 = vunpack.c.l.b16 %v108
  %v689 = vunpack.c.l.b16 %v109
  %v690 = vunpack.c.l.b16 %v110
  %v691 = vunpack.c.l.b16 %v111
  %v692 = vunpack.c.l.b16 %v112
  %v693 = vunpack.c.l.b16 %v113
  %v694 = vunpack.c.l.b16 %v114
  %v695 = vunpack.c.l.b16 %v115
  %v696 = vunpack.c.l.b16 %v116
  %v697 = vunpack.c.l.b16 %v117
  %v698 = vunpack.c.l.b16 %v118
  %v699 = vunpack.c.l.b16 %v119
  %v700 = vunpack.c.l.b16 %v120
  %v701 = vunpack.c.l.b16 %v121
  %v702 = vunpack.c.l.b16 %v122
  %v703 = vunpack.c.l.b16 %v123
  %v704 = vunpack.c.l.b16 %v124
  %v705 = vunpack.c.l.b16 %v125
  %v706 = vunpack.c.l.b16 %v126
  %v707 = vunpack.c.l.b16 %v127
  %v708 = vunpack.c.l.b16 %v128
  %v709 = vunpack.c.l.b16 %v129
  %v710 = vunpack.c.l.b16 %v130
  %v711 = vunpack.c.l.b16 %v131
  %v712 = vunpack.c.l.b16 %v132
  %v713 = vunpack.c.l.b16 %v133
  %v714 = vunpack.c.l.b16 %v134
  %v715 = vunpack.c.l.b16 %v135
  %v716 = vunpack.c.l.b16 %v136
  %v717 = vunpack.c.l.b16 %v137
  %v718 = vunpack.c.l.b16 %v138
  %v719 = vunpack.c.l.b16 %v139
  %v720 = vunpack.c.l.b16 %v140
  %v721 = vunpack.c.l.b16 %v141
  %v722 = vunpack.c.l.b16 %v142
  %v723 = vunpack.c.l.b16 %v143
  %v724 = vunpack.c.l.b16 %v144
  %v725 = vunpack.c.l.b16 %v145
  %v726 = vunpack.c.l.b16 %v146
  %v727 = vunpack.c.l.b16 %v147
  %v728 = vunpack.c.l.b16 %v148
  %v729 = vunpack.c.l.b16 %v149
  %v730 = vunpack.c.l.b16 %v150
  %v731 = vunpack.c.l.b16 %v151
  %v732 = vunpack.c.l.b16 %v152
  %v733 = vunpack.c.l.b16 %v153
  %v734 = vunpack.c.l.b16 %v154
  %v735 = vunpack.c.l.b16 %v155
  %v736 = vunpack.c.l.b16 %v156
  %v737 = vunpack.c.l.b16 %v157
  %v738 = vunpack.c.l.b16 %v158
  %v739 = vunpack.c.l.b16 %v159
  %v740 = vunpack.c.l.b16 %v160
  %v741 = vunpack.c.l.b16 %v161
  %v742 = vunpack.c.l.b16 %v162
  %v743 = vunpack.c.l.b16 %v163
  %v744 = vunpack.c.l.b16 %v164
  %v745 = vunpack.c.l.b16 %v165
  %v746 = vunpack.c.l.b16 %v166
  %v747 = vunpack.c.l.b16 %v167
  %v748 = vunpack.c.l.b16 %v168
  %v749 = vunpack.c.l.b16 %v169
  %v750 = vunpack.c.l.b16 %v170
  %v751 = vunpack.c.l.b16 %v171
  %v752 = vunpack.c.l.b16 %v172
  %v753 = vunpack.c.l.b16 %v173
  %v754 = vunpack.c.l.b16 %v174
  %v755 = vunpack.c.l.b16 %v175
  %v756 = vunpack.c.l.b16 %v176
  %v757 = vunpack.c.l.b16 %v177
  %v758 = vunpack.c.l.b16 %v178
  %v759 = vunpack.c.l.b16 %v179
  %v760 = vunpack.c.l.b16 %v180
  %v761 = vunpack.c.l.b16 %v181
  %v762 = vunpack.c.l.b16 %v182
  %v763 = vunpack.c.l.b16 %v183
  %v764 = vunpack.c.l.b16 %v184
  %v765 = vunpack.c.l.b16 %v185
  %v766 = vunpack.c.l.b16 %v186
  %v767 = vunpack.c.l.b16 %v187
  %v768 = vunpack.c.l.b16 %v188
  %v769 = vunpack.c.l.b16 %v189
  %v770 = vunpack.c.l.b16 %v190
  %v771 = vunpack.c.l.b16 %v191
  %v772 = vunpack.c.l.b16 %v192
  %v773 = vunpack.c.l.b16 %v193
  %v774 = vunpack.c.l.b16 %v194
  %v775 = vunpack.c.l.b16 %v195
  %v776 = vunpack.c.l.b16 %v196
  %v777 = vunpack.c.l.b16 %v197
  %v778 = vunpack.c.l.b16 %v198
  %v779 = vunpack.c.l.b16 %v199
  %v780 = vunpack.c.l.b16 %v200
  %v781 = vunpack.c.l.b16 %v201
  %v782 = vunpack.c.l.b16 %v202
  %v783 = vunpack.c.l.b16 %v203
  %v784 = vunpack.c.l.b16 %v204
  %v785 = vunpack.c.l.b16 %v205
  %v786 = vpack.c.b16 %v659, %v658
  %v787 = vpack.c.b16 %v661, %v660
  %v788 = vpack.c.b16 %v663, %v662
  %v789 = vpack.c.b16 %v665, %v664
  %v790 = vpack.c.b16 %v667, %v666
  %v791 = vpack.c.b16 %v669, %v668
  %v792 = vpack.c.b16 %v671, %v670
  %v793 = vpack.c.b16 %v673, %v672
  %v794 = vpack.c.b16 %v675, %v674
  %v795 = vpack.c.b16 %v677, %v676
  %v796 = vpack.c.b16 %v679, %v678
  %v797 = vpack.c.b16 %v681, %v680
  %v798 = vpack.c.b16 %v683, %v682
  %v799 = vpack.c.b16 %v685, %v684
  %v800 = vpack.c.b16 %v687, %v686
  %v801 = vpack.c.b16 %v689, %v688
  %v802 = vpack.c.b16 %v691, %v690
  %v803 = vpack.c.b16 %v693, %v692
  %v804 = vpack.c.b16 %v695, %v694
  %v805 = vpack.c.b16 %v697, %v696
  %v806 = vpack.c.b16 %v699, %v698
  %v807 = vpack.c.b16 %v701, %v700
  %v808 = vpack.c.b16 %v703, %v702
  %v809 = vpack.c.b16 %v705, %v704
  %v810 = vpack.c.b16 %v707, %v706
  %v811 = vpack.c.b16 %v709, %v708
  %v812 = vpack.c.b16 %v711, %v710
  %v813 = vpack.c.b16 %v713, %v712
  %v814 = vpack.c.b16 %v715, %v714
  %v815 = vpack.c.b16 %v717, %v716
  %v816 = vpack.c.b16 %v719, %v718
  %v817 = vpack.c.b16 %v721, %v720
  %v818 = vpack.c.b16 %v723, %v722
  %v819 = vpack.c.b16 %v725, %v724
  %v820 = vpack.c.b16 %v727, %v726
  %v821 = vpack.c.b16 %v729, %v728
  %v822 = vpack.c.b16 %v731, %v730
  %v823 = vpack.c.b16 %v733, %v732
  %v824 = vpack.c.b16 %v735, %v734
  %v825 = vpack.c.b16 %v737, %v736
  %v826 = vpack.c.b16 %v739, %v738
  %v827 = vpack.c.b16 %v741, %v740
  %v828 = vpack.c.b16 %v743, %v742
  %v829 = vpack.c.b16 %v745, %v744
  %v830 = vpack.c.b16 %v747, %v746
  %v831 = vpack.c.b16 %v749, %v748
  %v832 = vpack.c.b16 %v751, %v750
  %v833 = vpack.c.b16 %v753, %v752
  %v834 = vpack.c.b16 %v755, %v754
  %v835 = vpack.c.b16 %v757, %v756
  %v836 = vpack.c.b16 %v759, %v758
  %v837 = vpack.c.b16 %v761, %v760
  %v838 = vpack.c.b16 %v763, %v762
  %v839 = vpack.c.b16 %v765, %v764
  %v840 = vpack.c.b16 %v767, %v766
  %v841 = vpack.c.b16 %v769, %v768
  %v842 = vpack.c.b16 %v771, %v770
  %v843 = vpack.c.b16 %v773, %v772
  %v844 = vpack.c.b16 %v775, %v774
  %v845 = vpack.c.b16 %v777, %v776
  %v846 = vpack.c.b16 %v779, %v778
  %v847 = vpack.c.b16 %v781, %v780
  %v848 = vpack.c.b16 %v783, %v782
  %v849 = vpack.c.b16 %v785, %v784
  %914 = vmatpush.bf16.msra.mxu0 %v793
  %915 = vmatpush.bf16.msra.mxu0 %v792
  %916 = vmatpush.bf16.msra.mxu0 %v791
  %917 = vmatpush.bf16.msra.mxu0 %v790
  %918 = vmatpush.bf16.msra.mxu0 %v789
  %919 = vmatpush.bf16.msra.mxu0 %v788
  %920 = vmatpush.bf16.msra.mxu0 %v787
  %921 = vmatpush.bf16.msra.mxu0 %v786
  %922 = vmatmul.bf16.gmra.mxu0 %v402
  %v923 = vpop.f32.mrf.mxu0
  %v924 = vadd.f32 %v208, %v923
  %v925 = vpop.f32.mrf.mxu0
  %v926 = vadd.f32 %v208, %v925
  %927 = vmatmul.bf16.gmra.mxu0 %v410
  %v928 = vpop.f32.mrf.mxu0
  %v929 = vadd.f32 %v208, %v928
  %v930 = vpop.f32.mrf.mxu0
  %v931 = vadd.f32 %v208, %v930
  %932 = vmatmul.bf16.gmra.mxu0 %v418
  %v933 = vpop.f32.mrf.mxu0
  %v934 = vadd.f32 %v208, %v933
  %v935 = vpop.f32.mrf.mxu0
  %v936 = vadd.f32 %v208, %v935
  %937 = vmatmul.bf16.gmra.mxu0 %v426
  %v938 = vpop.f32.mrf.mxu0
  %v939 = vadd.f32 %v208, %v938
  %v940 = vpop.f32.mrf.mxu0
  %v941 = vadd.f32 %v208, %v940
  %942 = vmatmul.bf16.gmra.mxu0 %v434
  %v943 = vpop.f32.mrf.mxu0
  %v944 = vadd.f32 %v208, %v943
  %v945 = vpop.f32.mrf.mxu0
  %v946 = vadd.f32 %v208, %v945
  %947 = vmatmul.bf16.gmra.mxu0 %v442
  %v948 = vpop.f32.mrf.mxu0
  %v949 = vadd.f32 %v208, %v948
  %v950 = vpop.f32.mrf.mxu0
  %v951 = vadd.f32 %v208, %v950
  %952 = vmatmul.bf16.gmra.mxu0 %v450
  %v953 = vpop.f32.mrf.mxu0
  %v954 = vadd.f32 %v208, %v953
  %v955 = vpop.f32.mrf.mxu0
  %v956 = vadd.f32 %v208, %v955
  %957 = vmatmul.bf16.gmra.mxu0 %v458
  %v958 = vpop.f32.mrf.mxu0
  %v959 = vadd.f32 %v208, %v958
  %v960 = vpop.f32.mrf.mxu0
  %v961 = vadd.f32 %v208, %v960
  %962 = vdwg.mxu0
  %963 = vmatpush.bf16.msra.mxu0 %v801
  %964 = vmatpush.bf16.msra.mxu0 %v800
  %965 = vmatpush.bf16.msra.mxu0 %v799
  %966 = vmatpush.bf16.msra.mxu0 %v798
  %967 = vmatpush.bf16.msra.mxu0 %v797
  %968 = vmatpush.bf16.msra.mxu0 %v796
  %969 = vmatpush.bf16.msra.mxu0 %v795
  %970 = vmatpush.bf16.msra.mxu0 %v794
  %971 = vmatmul.bf16.gmra.mxu0 %v403
  %v972 = vpop.f32.mrf.mxu0
  %v973 = vadd.f32 %v924, %v972
  %v974 = vpop.f32.mrf.mxu0
  %v975 = vadd.f32 %v926, %v974
  %976 = vmatmul.bf16.gmra.mxu0 %v411
  %v977 = vpop.f32.mrf.mxu0
  %v978 = vadd.f32 %v929, %v977
  %v979 = vpop.f32.mrf.mxu0
  %v980 = vadd.f32 %v931, %v979
  %981 = vmatmul.bf16.gmra.mxu0 %v419
  %v982 = vpop.f32.mrf.mxu0
  %v983 = vadd.f32 %v934, %v982
  %v984 = vpop.f32.mrf.mxu0
  %v985 = vadd.f32 %v936, %v984
  %986 = vmatmul.bf16.gmra.mxu0 %v427
  %v987 = vpop.f32.mrf.mxu0
  %v988 = vadd.f32 %v939, %v987
  %v989 = vpop.f32.mrf.mxu0
  %v990 = vadd.f32 %v941, %v989
  %991 = vmatmul.bf16.gmra.mxu0 %v435
  %v992 = vpop.f32.mrf.mxu0
  %v993 = vadd.f32 %v944, %v992
  %v994 = vpop.f32.mrf.mxu0
  %v995 = vadd.f32 %v946, %v994
  %996 = vmatmul.bf16.gmra.mxu0 %v443
  %v997 = vpop.f32.mrf.mxu0
  %v998 = vadd.f32 %v949, %v997
  %v999 = vpop.f32.mrf.mxu0
  %v1000 = vadd.f32 %v951, %v999
  %1001 = vmatmul.bf16.gmra.mxu0 %v451
  %v1002 = vpop.f32.mrf.mxu0
  %v1003 = vadd.f32 %v954, %v1002
  %v1004 = vpop.f32.mrf.mxu0
  %v1005 = vadd.f32 %v956, %v1004
  %1006 = vmatmul.bf16.gmra.mxu0 %v459
  %v1007 = vpop.f32.mrf.mxu0
  %v1008 = vadd.f32 %v959, %v1007
  %v1009 = vpop.f32.mrf.mxu0
  %v1010 = vadd.f32 %v961, %v1009
  %1011 = vdwg.mxu0
  %1012 = vmatpush.bf16.msra.mxu0 %v809
  %1013 = vmatpush.bf16.msra.mxu0 %v808
  %1014 = vmatpush.bf16.msra.mxu0 %v807
  %1015 = vmatpush.bf16.msra.mxu0 %v806
  %1016 = vmatpush.bf16.msra.mxu0 %v805
  %1017 = vmatpush.bf16.msra.mxu0 %v804
  %1018 = vmatpush.bf16.msra.mxu0 %v803
  %1019 = vmatpush.bf16.msra.mxu0 %v802
  %1020 = vmatmul.bf16.gmra.mxu0 %v404
  %v1021 = vpop.f32.mrf.mxu0
  %v1022 = vadd.f32 %v973, %v1021
  %v1023 = vpop.f32.mrf.mxu0
  %v1024 = vadd.f32 %v975, %v1023
  %1025 = vmatmul.bf16.gmra.mxu0 %v412
  %v1026 = vpop.f32.mrf.mxu0
  %v1027 = vadd.f32 %v978, %v1026
  %v1028 = vpop.f32.mrf.mxu0
  %v1029 = vadd.f32 %v980, %v1028
  %1030 = vmatmul.bf16.gmra.mxu0 %v420
  %v1031 = vpop.f32.mrf.mxu0
  %v1032 = vadd.f32 %v983, %v1031
  %v1033 = vpop.f32.mrf.mxu0
  %v1034 = vadd.f32 %v985, %v1033
  %1035 = vmatmul.bf16.gmra.mxu0 %v428
  %v1036 = vpop.f32.mrf.mxu0
  %v1037 = vadd.f32 %v988, %v1036
  %v1038 = vpop.f32.mrf.mxu0
  %v1039 = vadd.f32 %v990, %v1038
  %1040 = vmatmul.bf16.gmra.mxu0 %v436
  %v1041 = vpop.f32.mrf.mxu0
  %v1042 = vadd.f32 %v993, %v1041
  %v1043 = vpop.f32.mrf.mxu0
  %v1044 = vadd.f32 %v995, %v1043
  %1045 = vmatmul.bf16.gmra.mxu0 %v444
  %v1046 = vpop.f32.mrf.mxu0
  %v1047 = vadd.f32 %v998, %v1046
  %v1048 = vpop.f32.mrf.mxu0
  %v1049 = vadd.f32 %v1000, %v1048
  %1050 = vmatmul.bf16.gmra.mxu0 %v452
  %v1051 = vpop.f32.mrf.mxu0
  %v1052 = vadd.f32 %v1003, %v1051
  %v1053 = vpop.f32.mrf.mxu0
  %v1054 = vadd.f32 %v1005, %v1053
  %1055 = vmatmul.bf16.gmra.mxu0 %v460
  %v1056 = vpop.f32.mrf.mxu0
  %v1057 = vadd.f32 %v1008, %v1056
  %v1058 = vpop.f32.mrf.mxu0
  %v1059 = vadd.f32 %v1010, %v1058
  %1060 = vdwg.mxu0
  %1061 = vmatpush.bf16.msra.mxu0 %v817
  %1062 = vmatpush.bf16.msra.mxu0 %v816
  %1063 = vmatpush.bf16.msra.mxu0 %v815
  %1064 = vmatpush.bf16.msra.mxu0 %v814
  %1065 = vmatpush.bf16.msra.mxu0 %v813
  %1066 = vmatpush.bf16.msra.mxu0 %v812
  %1067 = vmatpush.bf16.msra.mxu0 %v811
  %1068 = vmatpush.bf16.msra.mxu0 %v810
  %1069 = vmatmul.bf16.gmra.mxu0 %v405
  %v1070 = vpop.f32.mrf.mxu0
  %v1071 = vadd.f32 %v1022, %v1070
  %v1072 = vpop.f32.mrf.mxu0
  %v1073 = vadd.f32 %v1024, %v1072
  %1074 = vmatmul.bf16.gmra.mxu0 %v413
  %v1075 = vpop.f32.mrf.mxu0
  %v1076 = vadd.f32 %v1027, %v1075
  %v1077 = vpop.f32.mrf.mxu0
  %v1078 = vadd.f32 %v1029, %v1077
  %1079 = vmatmul.bf16.gmra.mxu0 %v421
  %v1080 = vpop.f32.mrf.mxu0
  %v1081 = vadd.f32 %v1032, %v1080
  %v1082 = vpop.f32.mrf.mxu0
  %v1083 = vadd.f32 %v1034, %v1082
  %1084 = vmatmul.bf16.gmra.mxu0 %v429
  %v1085 = vpop.f32.mrf.mxu0
  %v1086 = vadd.f32 %v1037, %v1085
  %v1087 = vpop.f32.mrf.mxu0
  %v1088 = vadd.f32 %v1039, %v1087
  %1089 = vmatmul.bf16.gmra.mxu0 %v437
  %v1090 = vpop.f32.mrf.mxu0
  %v1091 = vadd.f32 %v1042, %v1090
  %v1092 = vpop.f32.mrf.mxu0
  %v1093 = vadd.f32 %v1044, %v1092
  %1094 = vmatmul.bf16.gmra.mxu0 %v445
  %v1095 = vpop.f32.mrf.mxu0
  %v1096 = vadd.f32 %v1047, %v1095
  %v1097 = vpop.f32.mrf.mxu0
  %v1098 = vadd.f32 %v1049, %v1097
  %1099 = vmatmul.bf16.gmra.mxu0 %v453
  %v1100 = vpop.f32.mrf.mxu0
  %v1101 = vadd.f32 %v1052, %v1100
  %v1102 = vpop.f32.mrf.mxu0
  %v1103 = vadd.f32 %v1054, %v1102
  %1104 = vmatmul.bf16.gmra.mxu0 %v461
  %v1105 = vpop.f32.mrf.mxu0
  %v1106 = vadd.f32 %v1057, %v1105
  %v1107 = vpop.f32.mrf.mxu0
  %v1108 = vadd.f32 %v1059, %v1107
  %1109 = vdwg.mxu0
  %1110 = vmatpush.bf16.msra.mxu0 %v825
  %1111 = vmatpush.bf16.msra.mxu0 %v824
  %1112 = vmatpush.bf16.msra.mxu0 %v823
  %1113 = vmatpush.bf16.msra.mxu0 %v822
  %1114 = vmatpush.bf16.msra.mxu0 %v821
  %1115 = vmatpush.bf16.msra.mxu0 %v820
  %1116 = vmatpush.bf16.msra.mxu0 %v819
  %1117 = vmatpush.bf16.msra.mxu0 %v818
  %1118 = vmatmul.bf16.gmra.mxu0 %v406
  %v1119 = vpop.f32.mrf.mxu0
  %v1120 = vadd.f32 %v1071, %v1119
  %v1121 = vpop.f32.mrf.mxu0
  %v1122 = vadd.f32 %v1073, %v1121
  %1123 = vmatmul.bf16.gmra.mxu0 %v414
  %v1124 = vpop.f32.mrf.mxu0
  %v1125 = vadd.f32 %v1076, %v1124
  %v1126 = vpop.f32.mrf.mxu0
  %v1127 = vadd.f32 %v1078, %v1126
  %1128 = vmatmul.bf16.gmra.mxu0 %v422
  %v1129 = vpop.f32.mrf.mxu0
  %v1130 = vadd.f32 %v1081, %v1129
  %v1131 = vpop.f32.mrf.mxu0
  %v1132 = vadd.f32 %v1083, %v1131
  %1133 = vmatmul.bf16.gmra.mxu0 %v430
  %v1134 = vpop.f32.mrf.mxu0
  %v1135 = vadd.f32 %v1086, %v1134
  %v1136 = vpop.f32.mrf.mxu0
  %v1137 = vadd.f32 %v1088, %v1136
  %1138 = vmatmul.bf16.gmra.mxu0 %v438
  %v1139 = vpop.f32.mrf.mxu0
  %v1140 = vadd.f32 %v1091, %v1139
  %v1141 = vpop.f32.mrf.mxu0
  %v1142 = vadd.f32 %v1093, %v1141
  %1143 = vmatmul.bf16.gmra.mxu0 %v446
  %v1144 = vpop.f32.mrf.mxu0
  %v1145 = vadd.f32 %v1096, %v1144
  %v1146 = vpop.f32.mrf.mxu0
  %v1147 = vadd.f32 %v1098, %v1146
  %1148 = vmatmul.bf16.gmra.mxu0 %v454
  %v1149 = vpop.f32.mrf.mxu0
  %v1150 = vadd.f32 %v1101, %v1149
  %v1151 = vpop.f32.mrf.mxu0
  %v1152 = vadd.f32 %v1103, %v1151
  %1153 = vmatmul.bf16.gmra.mxu0 %v462
  %v1154 = vpop.f32.mrf.mxu0
  %v1155 = vadd.f32 %v1106, %v1154
  %v1156 = vpop.f32.mrf.mxu0
  %v1157 = vadd.f32 %v1108, %v1156
  %1158 = vdwg.mxu0
  %1159 = vmatpush.bf16.msra.mxu0 %v833
  %1160 = vmatpush.bf16.msra.mxu0 %v832
  %1161 = vmatpush.bf16.msra.mxu0 %v831
  %1162 = vmatpush.bf16.msra.mxu0 %v830
  %1163 = vmatpush.bf16.msra.mxu0 %v829
  %1164 = vmatpush.bf16.msra.mxu0 %v828
  %1165 = vmatpush.bf16.msra.mxu0 %v827
  %1166 = vmatpush.bf16.msra.mxu0 %v826
  %1167 = vmatmul.bf16.gmra.mxu0 %v407
  %v1168 = vpop.f32.mrf.mxu0
  %v1169 = vadd.f32 %v1120, %v1168
  %v1170 = vpop.f32.mrf.mxu0
  %v1171 = vadd.f32 %v1122, %v1170
  %1172 = vmatmul.bf16.gmra.mxu0 %v415
  %v1173 = vpop.f32.mrf.mxu0
  %v1174 = vadd.f32 %v1125, %v1173
  %v1175 = vpop.f32.mrf.mxu0
  %v1176 = vadd.f32 %v1127, %v1175
  %1177 = vmatmul.bf16.gmra.mxu0 %v423
  %v1178 = vpop.f32.mrf.mxu0
  %v1179 = vadd.f32 %v1130, %v1178
  %v1180 = vpop.f32.mrf.mxu0
  %v1181 = vadd.f32 %v1132, %v1180
  %1182 = vmatmul.bf16.gmra.mxu0 %v431
  %v1183 = vpop.f32.mrf.mxu0
  %v1184 = vadd.f32 %v1135, %v1183
  %v1185 = vpop.f32.mrf.mxu0
  %v1186 = vadd.f32 %v1137, %v1185
  %1187 = vmatmul.bf16.gmra.mxu0 %v439
  %v1188 = vpop.f32.mrf.mxu0
  %v1189 = vadd.f32 %v1140, %v1188
  %v1190 = vpop.f32.mrf.mxu0
  %v1191 = vadd.f32 %v1142, %v1190
  %1192 = vmatmul.bf16.gmra.mxu0 %v447
  %v1193 = vpop.f32.mrf.mxu0
  %v1194 = vadd.f32 %v1145, %v1193
  %v1195 = vpop.f32.mrf.mxu0
  %v1196 = vadd.f32 %v1147, %v1195
  %1197 = vmatmul.bf16.gmra.mxu0 %v455
  %v1198 = vpop.f32.mrf.mxu0
  %v1199 = vadd.f32 %v1150, %v1198
  %v1200 = vpop.f32.mrf.mxu0
  %v1201 = vadd.f32 %v1152, %v1200
  %1202 = vmatmul.bf16.gmra.mxu0 %v463
  %v1203 = vpop.f32.mrf.mxu0
  %v1204 = vadd.f32 %v1155, %v1203
  %v1205 = vpop.f32.mrf.mxu0
  %v1206 = vadd.f32 %v1157, %v1205
  %1207 = vdwg.mxu0
  %1208 = vmatpush.bf16.msra.mxu0 %v841
  %1209 = vmatpush.bf16.msra.mxu0 %v840
  %1210 = vmatpush.bf16.msra.mxu0 %v839
  %1211 = vmatpush.bf16.msra.mxu0 %v838
  %1212 = vmatpush.bf16.msra.mxu0 %v837
  %1213 = vmatpush.bf16.msra.mxu0 %v836
  %1214 = vmatpush.bf16.msra.mxu0 %v835
  %1215 = vmatpush.bf16.msra.mxu0 %v834
  %1216 = vmatmul.bf16.gmra.mxu0 %v408
  %v1217 = vpop.f32.mrf.mxu0
  %v1218 = vadd.f32 %v1169, %v1217
  %v1219 = vpop.f32.mrf.mxu0
  %v1220 = vadd.f32 %v1171, %v1219
  %1221 = vmatmul.bf16.gmra.mxu0 %v416
  %v1222 = vpop.f32.mrf.mxu0
  %v1223 = vadd.f32 %v1174, %v1222
  %v1224 = vpop.f32.mrf.mxu0
  %v1225 = vadd.f32 %v1176, %v1224
  %1226 = vmatmul.bf16.gmra.mxu0 %v424
  %v1227 = vpop.f32.mrf.mxu0
  %v1228 = vadd.f32 %v1179, %v1227
  %v1229 = vpop.f32.mrf.mxu0
  %v1230 = vadd.f32 %v1181, %v1229
  %1231 = vmatmul.bf16.gmra.mxu0 %v432
  %v1232 = vpop.f32.mrf.mxu0
  %v1233 = vadd.f32 %v1184, %v1232
  %v1234 = vpop.f32.mrf.mxu0
  %v1235 = vadd.f32 %v1186, %v1234
  %1236 = vmatmul.bf16.gmra.mxu0 %v440
  %v1237 = vpop.f32.mrf.mxu0
  %v1238 = vadd.f32 %v1189, %v1237
  %v1239 = vpop.f32.mrf.mxu0
  %v1240 = vadd.f32 %v1191, %v1239
  %1241 = vmatmul.bf16.gmra.mxu0 %v448
  %v1242 = vpop.f32.mrf.mxu0
  %v1243 = vadd.f32 %v1194, %v1242
  %v1244 = vpop.f32.mrf.mxu0
  %v1245 = vadd.f32 %v1196, %v1244
  %1246 = vmatmul.bf16.gmra.mxu0 %v456
  %v1247 = vpop.f32.mrf.mxu0
  %v1248 = vadd.f32 %v1199, %v1247
  %v1249 = vpop.f32.mrf.mxu0
  %v1250 = vadd.f32 %v1201, %v1249
  %1251 = vmatmul.bf16.gmra.mxu0 %v464
  %v1252 = vpop.f32.mrf.mxu0
  %v1253 = vadd.f32 %v1204, %v1252
  %v1254 = vpop.f32.mrf.mxu0
  %v1255 = vadd.f32 %v1206, %v1254
  %1256 = vdwg.mxu0
  %1257 = vmatpush.bf16.msra.mxu0 %v849
  %1258 = vmatpush.bf16.msra.mxu0 %v848
  %1259 = vmatpush.bf16.msra.mxu0 %v847
  %1260 = vmatpush.bf16.msra.mxu0 %v846
  %1261 = vmatpush.bf16.msra.mxu0 %v845
  %1262 = vmatpush.bf16.msra.mxu0 %v844
  %1263 = vmatpush.bf16.msra.mxu0 %v843
  %1264 = vmatpush.bf16.msra.mxu0 %v842
  %1265 = vmatmul.bf16.gmra.mxu0 %v409
  %v1266 = vpop.f32.mrf.mxu0
  %v1267 = vadd.f32 %v1218, %v1266
  %v1268 = vpop.f32.mrf.mxu0
  %v1269 = vadd.f32 %v1220, %v1268
  %1270 = vmatmul.bf16.gmra.mxu0 %v417
  %v1271 = vpop.f32.mrf.mxu0
  %v1272 = vadd.f32 %v1223, %v1271
  %v1273 = vpop.f32.mrf.mxu0
  %v1274 = vadd.f32 %v1225, %v1273
  %1275 = vmatmul.bf16.gmra.mxu0 %v425
  %v1276 = vpop.f32.mrf.mxu0
  %v1277 = vadd.f32 %v1228, %v1276
  %v1278 = vpop.f32.mrf.mxu0
  %v1279 = vadd.f32 %v1230, %v1278
  %1280 = vmatmul.bf16.gmra.mxu0 %v433
  %v1281 = vpop.f32.mrf.mxu0
  %v1282 = vadd.f32 %v1233, %v1281
  %v1283 = vpop.f32.mrf.mxu0
  %v1284 = vadd.f32 %v1235, %v1283
  %1285 = vmatmul.bf16.gmra.mxu0 %v441
  %v1286 = vpop.f32.mrf.mxu0
  %v1287 = vadd.f32 %v1238, %v1286
  %v1288 = vpop.f32.mrf.mxu0
  %v1289 = vadd.f32 %v1240, %v1288
  %1290 = vmatmul.bf16.gmra.mxu0 %v449
  %v1291 = vpop.f32.mrf.mxu0
  %v1292 = vadd.f32 %v1243, %v1291
  %v1293 = vpop.f32.mrf.mxu0
  %v1294 = vadd.f32 %v1245, %v1293
  %1295 = vmatmul.bf16.gmra.mxu0 %v457
  %v1296 = vpop.f32.mrf.mxu0
  %v1297 = vadd.f32 %v1248, %v1296
  %v1298 = vpop.f32.mrf.mxu0
  %v1299 = vadd.f32 %v1250, %v1298
  %1300 = vmatmul.bf16.gmra.mxu0 %v465
  %v1301 = vpop.f32.mrf.mxu0
  %v1302 = vadd.f32 %v1253, %v1301
  %v1303 = vpop.f32.mrf.mxu0
  %v1304 = vadd.f32 %v1255, %v1303
  %1305 = vdwg.mxu0
  %v1306 = vsub.f32 0.0, %v1267
  %v1307 = vsub.f32 0.0, %v1269
  %v1308 = vsub.f32 0.0, %v1272
  %v1309 = vsub.f32 0.0, %v1274
  %v1310 = vsub.f32 0.0, %v1277
  %v1311 = vsub.f32 0.0, %v1279
  %v1312 = vsub.f32 0.0, %v1282
  %v1313 = vsub.f32 0.0, %v1284
  %v1314 = vsub.f32 0.0, %v1287
  %v1315 = vsub.f32 0.0, %v1289
  %v1316 = vsub.f32 0.0, %v1292
  %v1317 = vsub.f32 0.0, %v1294
  %v1318 = vsub.f32 0.0, %v1297
  %v1319 = vsub.f32 0.0, %v1299
  %v1320 = vsub.f32 0.0, %v1302
  %v1321 = vsub.f32 0.0, %v1304
  %v1322 = vmul.f32 %v1306, 1.442695
  %v1323 = vpow.pop %v1322
  %v1324 = vmul.f32 %v1307, 1.442695
  %v1325 = vpow.pop %v1324
  %v1326 = vmul.f32 %v1308, 1.442695
  %v1327 = vpow.pop %v1326
  %v1328 = vmul.f32 %v1309, 1.442695
  %v1329 = vpow.pop %v1328
  %v1330 = vmul.f32 %v1310, 1.442695
  %v1331 = vpow.pop %v1330
  %v1332 = vmul.f32 %v1311, 1.442695
  %v1333 = vpow.pop %v1332
  %v1334 = vmul.f32 %v1312, 1.442695
  %v1335 = vpow.pop %v1334
  %v1336 = vmul.f32 %v1313, 1.442695
  %v1337 = vpow.pop %v1336
  %v1338 = vmul.f32 %v1314, 1.442695
  %v1339 = vpow.pop %v1338
  %v1340 = vmul.f32 %v1315, 1.442695
  %v1341 = vpow.pop %v1340
  %v1342 = vmul.f32 %v1316, 1.442695
  %v1343 = vpow.pop %v1342
  %v1344 = vmul.f32 %v1317, 1.442695
  %v1345 = vpow.pop %v1344
  %v1346 = vmul.f32 %v1318, 1.442695
  %v1347 = vpow.pop %v1346
  %v1348 = vmul.f32 %v1319, 1.442695
  %v1349 = vpow.pop %v1348
  %v1350 = vmul.f32 %v1320, 1.442695
  %v1351 = vpow.pop %v1350
  %v1352 = vmul.f32 %v1321, 1.442695
  %v1353 = vpow.pop %v1352
  %v1354 = vadd.f32 %v1323, 1.0
  %v1355 = vadd.f32 %v1325, 1.0
  %v1356 = vadd.f32 %v1327, 1.0
  %v1357 = vadd.f32 %v1329, 1.0
  %v1358 = vadd.f32 %v1331, 1.0
  %v1359 = vadd.f32 %v1333, 1.0
  %v1360 = vadd.f32 %v1335, 1.0
  %v1361 = vadd.f32 %v1337, 1.0
  %v1362 = vadd.f32 %v1339, 1.0
  %v1363 = vadd.f32 %v1341, 1.0
  %v1364 = vadd.f32 %v1343, 1.0
  %v1365 = vadd.f32 %v1345, 1.0
  %v1366 = vadd.f32 %v1347, 1.0
  %v1367 = vadd.f32 %v1349, 1.0
  %v1368 = vadd.f32 %v1351, 1.0
  %v1369 = vadd.f32 %v1353, 1.0
  %v1370 = vrcp.pop %v1354
  %v1371 = vrcp.pop %v1355
  %v1372 = vrcp.pop %v1356
  %v1373 = vrcp.pop %v1357
  %v1374 = vrcp.pop %v1358
  %v1375 = vrcp.pop %v1359
  %v1376 = vrcp.pop %v1360
  %v1377 = vrcp.pop %v1361
  %v1378 = vrcp.pop %v1362
  %v1379 = vrcp.pop %v1363
  %v1380 = vrcp.pop %v1364
  %v1381 = vrcp.pop %v1365
  %v1382 = vrcp.pop %v1366
  %v1383 = vrcp.pop %v1367
  %v1384 = vrcp.pop %v1368
  %v1385 = vrcp.pop %v1369
  %v1386 = vmin.f32 %v1370, 1.0
  %v1387 = vmin.f32 %v1371, 1.0
  %v1388 = vmin.f32 %v1372, 1.0
  %v1389 = vmin.f32 %v1373, 1.0
  %v1390 = vmin.f32 %v1374, 1.0
  %v1391 = vmin.f32 %v1375, 1.0
  %v1392 = vmin.f32 %v1376, 1.0
  %v1393 = vmin.f32 %v1377, 1.0
  %v1394 = vmin.f32 %v1378, 1.0
  %v1395 = vmin.f32 %v1379, 1.0
  %v1396 = vmin.f32 %v1380, 1.0
  %v1397 = vmin.f32 %v1381, 1.0
  %v1398 = vmin.f32 %v1382, 1.0
  %v1399 = vmin.f32 %v1383, 1.0
  %v1400 = vmin.f32 %v1384, 1.0
  %v1401 = vmin.f32 %v1385, 1.0
  %1402 = vst [vmem:[%s3] sm:$0xff] %v1386
  %1403 = vst [vmem:[%s3 + $0x8] sm:$0xff] %v1387
  %1404 = vst [vmem:[%s3 + $0x10] sm:$0xff] %v1388
  %1405 = vst [vmem:[%s3 + $0x18] sm:$0xff] %v1389
  %1406 = vst [vmem:[%s3 + $0x20] sm:$0xff] %v1390
  %1407 = vst [vmem:[%s3 + $0x28] sm:$0xff] %v1391
  %1408 = vst [vmem:[%s3 + $0x30] sm:$0xff] %v1392
  %1409 = vst [vmem:[%s3 + $0x38] sm:$0xff] %v1393
  %1410 = vst [vmem:[%s3 + $0x40] sm:$0xff] %v1394
  %1411 = vst [vmem:[%s3 + $0x48] sm:$0xff] %v1395
  %1412 = vst [vmem:[%s3 + $0x50] sm:$0xff] %v1396
  %1413 = vst [vmem:[%s3 + $0x58] sm:$0xff] %v1397
  %1414 = vst [vmem:[%s3 + $0x60] sm:$0xff] %v1398
  %1415 = vst [vmem:[%s3 + $0x68] sm:$0xff] %v1399
  %1416 = vst [vmem:[%s3 + $0x70] sm:$0xff] %v1400
  %1417 = vst [vmem:[%s3 + $0x78] sm:$0xff] %v1401
  // Predicated region
  $region14: #{dc_discriminator.7} parent=0 // pred_check
    _
  $region15: #{dc_discriminator.7} parent=0 // pred_check_branch
    %1419 = sbr.rel (0) target = $region17
  $region16: #{dc_discriminator.7} parent=0 // pred_region
    _
  $region17: #{dc_discriminator.7} parent=0 // pred_fallthru
    _
  // Predicated region
  $region18: #{dc_discriminator.7} parent=0 // pred_check
    _
  $region19: #{dc_discriminator.7} parent=0 // pred_check_branch
    %1421 = sbr.rel (0) target = $region21
  $region20: #{dc_discriminator.7} parent=0 // pred_region
    _
  $region21: #{dc_discriminator.7} parent=0 // pred_fallthru
    _

// kernel: dc_discriminator.5
$region0: #{dc_discriminator.5}
  #allocation0 [shape = 'u32[]', space=smem, size = 0x4, offset = 0x4, fixed_abs, tag = 'smem constant byte address 0x4 - core index']
  #allocation1 [shape = 'u32[72,128]{1,0:T(1,128)}', space=vmem, size = 0x9000, scoped, tag = 'internal scratch']
  #allocation2 [shape = 'f32[128,128]{1,0:T(8,128)}', space=vmem, size = 0x10000, scoped, tag = 'scratch operand']
  #allocation3 [shape = 'f32[8,128]{1,0:T(8,128)}', space=vmem, size = 0x1000, scoped, tag = 'scratch operand']
  #allocation4 [shape = 'f32[8,128]{1,0:T(8,128)}', space=vmem, size = 0x1000, scoped, tag = 'scratch operand']
  %s0 = inlined_call_operand.vmem [shape: bf16[2,36,9,16], index: 0, kind: input, shape index: {}]
  %s1 = inlined_call_operand.vmem [shape: bf16[16,16,128], index: 1, kind: input, shape index: {}]
  %s2 = inlined_call_operand.vmem [shape: f32[1,128], index: 2, kind: input, shape index: {}]
  %s3 = inlined_call_operand.vmem [shape: f32[1,128], index: 3, kind: input, shape index: {}]
  %s4 = inlined_call_operand.vmem [shape: bf16[128,128], index: 4, kind: output, shape index: {}]
  %s5 = sld [smem:[#allocation0]]
  $region34: #{dc_discriminator.5} parent=0
    _
  %s7 = ssub.s32 1, %s5
  %s8 = scalar_select 0, %s7, %s5
  // Predicated region
  $region2: #{dc_discriminator.5} parent=0 // pred_check
    _
  $region3: #{dc_discriminator.5} parent=0 // pred_check_branch
    %10 = sbr.rel (0) target = $region5
  $region4: #{dc_discriminator.5} parent=0 // pred_region
    _
  $region5: #{dc_discriminator.5} parent=0 // pred_fallthru
    _
  // Predicated region
  $region6: #{dc_discriminator.5} parent=0 // pred_check
    _
  $region7: #{dc_discriminator.5} parent=0 // pred_check_branch
    %12 = sbr.rel (0) target = $region9
  $region8: #{dc_discriminator.5} parent=0 // pred_region
    _
  $region9: #{dc_discriminator.5} parent=0 // pred_fallthru
    _
  // Predicated region
  $region10: #{dc_discriminator.5} parent=0 // pred_check
    _
  $region11: #{dc_discriminator.5} parent=0 // pred_check_branch
    %14 = sbr.rel (0) target = $region13
  $region12: #{dc_discriminator.5} parent=0 // pred_region
    _
  $region13: #{dc_discriminator.5} parent=0 // pred_fallthru
    _
  // Predicated region
  $region14: #{dc_discriminator.5} parent=0 // pred_check
    _
  $region15: #{dc_discriminator.5} parent=0 // pred_check_branch
    %16 = sbr.rel (0) target = $region17
  $region16: #{dc_discriminator.5} parent=0 // pred_region
    _
  $region17: #{dc_discriminator.5} parent=0 // pred_fallthru
    _
  %p18 = scmp.eq.s32.totalorder 0, 0
  // Predicated region
  $region18: #{dc_discriminator.5} parent=0 // pred_check
    %p19 = pneg %p18
  $region19: #{dc_discriminator.5} parent=0 // pred_check_branch
    %21 = sbr.rel (%p19) target = $region21
  $region20: #{dc_discriminator.5} parent=0 // pred_region
    %22 = vst [vmem:[#allocation3] sm:$0xff] 0.0
    %23 = vst [vmem:[#allocation4] sm:$0xff] 0.0
  $region21: #{dc_discriminator.5} parent=0 // pred_fallthru
    _
  %v24 = vld [vmem:[%s0] sm:$0xf]
  %v25 = vld [vmem:[%s0 + $0x8] sm:$0xf]
  %v26 = vld [vmem:[%s0 + $0x10] sm:$0xf]
  %v27 = vld [vmem:[%s0 + $0x18] sm:$0xf]
  %v28 = vld [vmem:[%s0 + $0x20] sm:$0xf]
  %v29 = vld [vmem:[%s0 + $0x28] sm:$0xf]
  %v30 = vld [vmem:[%s0 + $0x30] sm:$0xf]
  %v31 = vld [vmem:[%s0 + $0x38] sm:$0xf]
  %v32 = vld [vmem:[%s0 + $0x120] sm:$0xf]
  %v33 = vld [vmem:[%s0 + $0x128] sm:$0xf]
  %v34 = vld [vmem:[%s0 + $0x130] sm:$0xf]
  %v35 = vld [vmem:[%s0 + $0x138] sm:$0xf]
  %v36 = vld [vmem:[%s0 + $0x140] sm:$0xf]
  %v37 = vld [vmem:[%s0 + $0x148] sm:$0xf]
  %v38 = vld [vmem:[%s0 + $0x150] sm:$0xf]
  %v39 = vld [vmem:[%s0 + $0x158] sm:$0xf]
  %v40 = vld [vmem:[%s1] sm:$0xf]
  %v41 = vld [vmem:[%s1 + $0x4] sm:$0xf]
  %s42 = scalar_lea.vmem %s0, 72
  %v43 = vld [vmem:[%s42] sm:$0xf]
  %v44 = vld [vmem:[%s42 + $0x8] sm:$0xf]
  %v45 = vld [vmem:[%s42 + $0x10] sm:$0xf]
  %v46 = vld [vmem:[%s42 + $0x18] sm:$0xf]
  %v47 = vld [vmem:[%s42 + $0x20] sm:$0xf]
  %v48 = vld [vmem:[%s42 + $0x28] sm:$0xf]
  %v49 = vld [vmem:[%s42 + $0x30] sm:$0xf]
  %v50 = vld [vmem:[%s42 + $0x38] sm:$0xf]
  %v51 = vld [vmem:[%s42 + $0x120] sm:$0xf]
  %v52 = vld [vmem:[%s42 + $0x128] sm:$0xf]
  %v53 = vld [vmem:[%s42 + $0x130] sm:$0xf]
  %v54 = vld [vmem:[%s42 + $0x138] sm:$0xf]
  %v55 = vld [vmem:[%s42 + $0x140] sm:$0xf]
  %v56 = vld [vmem:[%s42 + $0x148] sm:$0xf]
  %v57 = vld [vmem:[%s42 + $0x150] sm:$0xf]
  %v58 = vld [vmem:[%s42 + $0x158] sm:$0xf]
  %s59 = scalar_lea.vmem %s1, 8
  %v60 = vld [vmem:[%s59] sm:$0xf]
  %v61 = vld [vmem:[%s59 + $0x4] sm:$0xf]
  %v78 = vunpack.c.l.b16 %v43
  %v79 = vunpack.c.l.b16 %v44
  %v80 = vunpack.c.l.b16 %v45
  %v81 = vunpack.c.l.b16 %v46
  %v82 = vunpack.c.l.b16 %v47
  %v83 = vunpack.c.l.b16 %v48
  %v84 = vunpack.c.l.b16 %v49
  %v85 = vunpack.c.l.b16 %v50
  %v86 = vunpack.c.l.b16 %v51
  %v87 = vunpack.c.l.b16 %v52
  %v88 = vunpack.c.l.b16 %v53
  %v89 = vunpack.c.l.b16 %v54
  %v90 = vunpack.c.l.b16 %v55
  %v91 = vunpack.c.l.b16 %v56
  %v92 = vunpack.c.l.b16 %v57
  %v93 = vunpack.c.l.b16 %v58
  %v94 = vpack.c.b16 %v79, %v78
  %v95 = vpack.c.b16 %v81, %v80
  %v96 = vpack.c.b16 %v83, %v82
  %v97 = vpack.c.b16 %v85, %v84
  %v98 = vpack.c.b16 %v87, %v86
  %v99 = vpack.c.b16 %v89, %v88
  %v100 = vpack.c.b16 %v91, %v90
  %v101 = vpack.c.b16 %v93, %v92
  %v104 = vunpack.c.l.b16 %v60
  %v105 = vunpack.c.l.b16 %v61
  %v106 = vpack.c.b16 %v105, %v104
  %vm108 = vcmask 130048
  %v110 = vsel %vm108, %v94, 0
  %v113 = vsel %vm108, %v95, 0
  %v116 = vsel %vm108, %v96, 0
  %v119 = vsel %vm108, %v97, 0
  %v122 = vsel %vm108, %v98, 0
  %v125 = vsel %vm108, %v99, 0
  %v128 = vsel %vm108, %v100, 0
  %v131 = vsel %vm108, %v101, 0
  %133 = vmatpush.bf16.msra.mxu0 0
  %134 = vmatpush.bf16.msra.mxu0 0
  %135 = vmatpush.bf16.msra.mxu0 0
  %136 = vmatpush.bf16.msra.mxu0 0
  %137 = vmatpush.bf16.msra.mxu0 0
  %138 = vmatpush.bf16.msra.mxu0 0
  %139 = vmatpush.bf16.msra.mxu0 0
  %140 = vmatpush.bf16.msra.mxu0 %v106
  %141 = vmatmul.bf16.gmra.mxu0 %v110
  %v142 = vpop.f32.mrf.mxu0
  %v143 = vadd.f32 0.0, %v142
  %v144 = vpop.f32.mrf.mxu0
  %v145 = vadd.f32 0.0, %v144
  %146 = vmatmul.bf16.gmra.mxu0 %v113
  %v147 = vpop.f32.mrf.mxu0
  %v148 = vadd.f32 0.0, %v147
  %v149 = vpop.f32.mrf.mxu0
  %v150 = vadd.f32 0.0, %v149
  %151 = vmatmul.bf16.gmra.mxu0 %v116
  %v152 = vpop.f32.mrf.mxu0
  %v153 = vadd.f32 0.0, %v152
  %v154 = vpop.f32.mrf.mxu0
  %v155 = vadd.f32 0.0, %v154
  %156 = vmatmul.bf16.gmra.mxu0 %v119
  %v157 = vpop.f32.mrf.mxu0
  %v158 = vadd.f32 0.0, %v157
  %v159 = vpop.f32.mrf.mxu0
  %v160 = vadd.f32 0.0, %v159
  %161 = vmatmul.bf16.gmra.mxu0 %v122
  %v162 = vpop.f32.mrf.mxu0
  %v163 = vadd.f32 0.0, %v162
  %v164 = vpop.f32.mrf.mxu0
  %v165 = vadd.f32 0.0, %v164
  %166 = vmatmul.bf16.gmra.mxu0 %v125
  %v167 = vpop.f32.mrf.mxu0
  %v168 = vadd.f32 0.0, %v167
  %v169 = vpop.f32.mrf.mxu0
  %v170 = vadd.f32 0.0, %v169
  %171 = vmatmul.bf16.gmra.mxu0 %v128
  %v172 = vpop.f32.mrf.mxu0
  %v173 = vadd.f32 0.0, %v172
  %v174 = vpop.f32.mrf.mxu0
  %v175 = vadd.f32 0.0, %v174
  %176 = vmatmul.bf16.gmra.mxu0 %v131
  %v177 = vpop.f32.mrf.mxu0
  %v178 = vadd.f32 0.0, %v177
  %v179 = vpop.f32.mrf.mxu0
  %v180 = vadd.f32 0.0, %v179
  %181 = vdwg.mxu0
  %v198 = vunpack.c.l.b16 %v24
  %v199 = vunpack.c.l.b16 %v25
  %v200 = vunpack.c.l.b16 %v26
  %v201 = vunpack.c.l.b16 %v27
  %v202 = vunpack.c.l.b16 %v28
  %v203 = vunpack.c.l.b16 %v29
  %v204 = vunpack.c.l.b16 %v30
  %v205 = vunpack.c.l.b16 %v31
  %v206 = vunpack.c.l.b16 %v32
  %v207 = vunpack.c.l.b16 %v33
  %v208 = vunpack.c.l.b16 %v34
  %v209 = vunpack.c.l.b16 %v35
  %v210 = vunpack.c.l.b16 %v36
  %v211 = vunpack.c.l.b16 %v37
  %v212 = vunpack.c.l.b16 %v38
  %v213 = vunpack.c.l.b16 %v39
  %v214 = vpack.c.b16 %v199, %v198
  %v215 = vpack.c.b16 %v201, %v200
  %v216 = vpack.c.b16 %v203, %v202
  %v217 = vpack.c.b16 %v205, %v204
  %v218 = vpack.c.b16 %v207, %v206
  %v219 = vpack.c.b16 %v209, %v208
  %v220 = vpack.c.b16 %v211, %v210
  %v221 = vpack.c.b16 %v213, %v212
  %v224 = vunpack.c.l.b16 %v40
  %v225 = vunpack.c.l.b16 %v41
  %v226 = vpack.c.b16 %v225, %v224
  %v229 = vsel %vm108, %v214, 0
  %v232 = vsel %vm108, %v215, 0
  %v235 = vsel %vm108, %v216, 0
  %v238 = vsel %vm108, %v217, 0
  %v241 = vsel %vm108, %v218, 0
  %v244 = vsel %vm108, %v219, 0
  %v247 = vsel %vm108, %v220, 0
  %v250 = vsel %vm108, %v221, 0
  %252 = vmatpush.bf16.msra.mxu0 0
  %253 = vmatpush.bf16.msra.mxu0 0
  %254 = vmatpush.bf16.msra.mxu0 0
  %255 = vmatpush.bf16.msra.mxu0 0
  %256 = vmatpush.bf16.msra.mxu0 0
  %257 = vmatpush.bf16.msra.mxu0 0
  %258 = vmatpush.bf16.msra.mxu0 0
  %259 = vmatpush.bf16.msra.mxu0 %v226
  %260 = vmatmul.bf16.gmra.mxu0 %v229
  %v261 = vpop.f32.mrf.mxu0
  %v262 = vadd.f32 %v143, %v261
  %v263 = vpop.f32.mrf.mxu0
  %v264 = vadd.f32 %v145, %v263
  %265 = vmatmul.bf16.gmra.mxu0 %v232
  %v266 = vpop.f32.mrf.mxu0
  %v267 = vadd.f32 %v148, %v266
  %v268 = vpop.f32.mrf.mxu0
  %v269 = vadd.f32 %v150, %v268
  %270 = vmatmul.bf16.gmra.mxu0 %v235
  %v271 = vpop.f32.mrf.mxu0
  %v272 = vadd.f32 %v153, %v271
  %v273 = vpop.f32.mrf.mxu0
  %v274 = vadd.f32 %v155, %v273
  %275 = vmatmul.bf16.gmra.mxu0 %v238
  %v276 = vpop.f32.mrf.mxu0
  %v277 = vadd.f32 %v158, %v276
  %v278 = vpop.f32.mrf.mxu0
  %v279 = vadd.f32 %v160, %v278
  %280 = vmatmul.bf16.gmra.mxu0 %v241
  %v281 = vpop.f32.mrf.mxu0
  %v282 = vadd.f32 %v163, %v281
  %v283 = vpop.f32.mrf.mxu0
  %v284 = vadd.f32 %v165, %v283
  %285 = vmatmul.bf16.gmra.mxu0 %v244
  %v286 = vpop.f32.mrf.mxu0
  %v287 = vadd.f32 %v168, %v286
  %v288 = vpop.f32.mrf.mxu0
  %v289 = vadd.f32 %v170, %v288
  %290 = vmatmul.bf16.gmra.mxu0 %v247
  %v291 = vpop.f32.mrf.mxu0
  %v292 = vadd.f32 %v173, %v291
  %v293 = vpop.f32.mrf.mxu0
  %v294 = vadd.f32 %v175, %v293
  %295 = vmatmul.bf16.gmra.mxu0 %v250
  %v296 = vpop.f32.mrf.mxu0
  %v297 = vadd.f32 %v178, %v296
  %v298 = vpop.f32.mrf.mxu0
  %v299 = vadd.f32 %v180, %v298
  %300 = vdwg.mxu0
  %v301 = vld [vmem:[%s0] sm:$0xf]
  %v302 = vld [vmem:[%s0 + $0x4] sm:$0x1]
  %v303 = vld [vmem:[%s0 + $0x8] sm:$0xf]
  %v304 = vld [vmem:[%s0 + $0xc] sm:$0x1]
  %v305 = vld [vmem:[%s0 + $0x10] sm:$0xf]
  %v306 = vld [vmem:[%s0 + $0x14] sm:$0x1]
  %v307 = vld [vmem:[%s0 + $0x18] sm:$0xf]
  %v308 = vld [vmem:[%s0 + $0x1c] sm:$0x1]
  %v309 = vld [vmem:[%s0 + $0x20] sm:$0xf]
  %v310 = vld [vmem:[%s0 + $0x24] sm:$0x1]
  %v311 = vld [vmem:[%s0 + $0x28] sm:$0xf]
  %v312 = vld [vmem:[%s0 + $0x2c] sm:$0x1]
  %v313 = vld [vmem:[%s0 + $0x30] sm:$0xf]
  %v314 = vld [vmem:[%s0 + $0x34] sm:$0x1]
  %v315 = vld [vmem:[%s0 + $0x38] sm:$0xf]
  %v316 = vld [vmem:[%s0 + $0x3c] sm:$0x1]
  %v317 = vld [vmem:[%s0 + $0x120] sm:$0xf]
  %v318 = vld [vmem:[%s0 + $0x124] sm:$0x1]
  %v319 = vld [vmem:[%s0 + $0x128] sm:$0xf]
  %v320 = vld [vmem:[%s0 + $0x12c] sm:$0x1]
  %v321 = vld [vmem:[%s0 + $0x130] sm:$0xf]
  %v322 = vld [vmem:[%s0 + $0x134] sm:$0x1]
  %v323 = vld [vmem:[%s0 + $0x138] sm:$0xf]
  %v324 = vld [vmem:[%s0 + $0x13c] sm:$0x1]
  %v325 = vld [vmem:[%s0 + $0x140] sm:$0xf]
  %v326 = vld [vmem:[%s0 + $0x144] sm:$0x1]
  %v327 = vld [vmem:[%s0 + $0x148] sm:$0xf]
  %v328 = vld [vmem:[%s0 + $0x14c] sm:$0x1]
  %v329 = vld [vmem:[%s0 + $0x150] sm:$0xf]
  %v330 = vld [vmem:[%s0 + $0x154] sm:$0x1]
  %v331 = vld [vmem:[%s0 + $0x158] sm:$0xf]
  %v332 = vld [vmem:[%s0 + $0x15c] sm:$0x1]
  %vm333 = vsmask.f32 3328
  %vm334 = vsmask.f32 7440
  %vm335 = vmor %vm333, %vm334
  %v337 = vshrl.u32 %v301, 16
  %v339 = vrot.slane %v337, 4
  %v340 = vshll.u32 %v301, 16
  %v342 = vrot.slane %v340, 5
  %v343 = vor.u32 %v339, %v342
  %v344 = vrot.slane %v343, 4
  %v346 = vshll.u32 %v302, 16
  %v348 = vrot.slane %v346, 5
  %v349 = vsel %vm335, %v344, %v348
  %v351 = vshrl.u32 %v303, 16
  %v353 = vrot.slane %v351, 4
  %v354 = vshll.u32 %v303, 16
  %v356 = vrot.slane %v354, 5
  %v357 = vor.u32 %v353, %v356
  %v358 = vrot.slane %v357, 4
  %v360 = vshll.u32 %v304, 16
  %v362 = vrot.slane %v360, 5
  %v363 = vsel %vm335, %v358, %v362
  %v365 = vshrl.u32 %v305, 16
  %v367 = vrot.slane %v365, 4
  %v368 = vshll.u32 %v305, 16
  %v370 = vrot.slane %v368, 5
  %v371 = vor.u32 %v367, %v370
  %v372 = vrot.slane %v371, 4
  %v374 = vshll.u32 %v306, 16
  %v376 = vrot.slane %v374, 5
  %v377 = vsel %vm335, %v372, %v376
  %v379 = vshrl.u32 %v307, 16
  %v381 = vrot.slane %v379, 4
  %v382 = vshll.u32 %v307, 16
  %v384 = vrot.slane %v382, 5
  %v385 = vor.u32 %v381, %v384
  %v386 = vrot.slane %v385, 4
  %v388 = vshll.u32 %v308, 16
  %v390 = vrot.slane %v388, 5
  %v391 = vsel %vm335, %v386, %v390
  %v393 = vshrl.u32 %v309, 16
  %v395 = vrot.slane %v393, 4
  %v396 = vshll.u32 %v309, 16
  %v398 = vrot.slane %v396, 5
  %v399 = vor.u32 %v395, %v398
  %v400 = vrot.slane %v399, 4
  %v402 = vshll.u32 %v310, 16
  %v404 = vrot.slane %v402, 5
  %v405 = vsel %vm335, %v400, %v404
  %v407 = vshrl.u32 %v311, 16
  %v409 = vrot.slane %v407, 4
  %v410 = vshll.u32 %v311, 16
  %v412 = vrot.slane %v410, 5
  %v413 = vor.u32 %v409, %v412
  %v414 = vrot.slane %v413, 4
  %v416 = vshll.u32 %v312, 16
  %v418 = vrot.slane %v416, 5
  %v419 = vsel %vm335, %v414, %v418
  %v421 = vshrl.u32 %v313, 16
  %v423 = vrot.slane %v421, 4
  %v424 = vshll.u32 %v313, 16
  %v426 = vrot.slane %v424, 5
  %v427 = vor.u32 %v423, %v426
  %v428 = vrot.slane %v427, 4
  %v430 = vshll.u32 %v314, 16
  %v432 = vrot.slane %v430, 5
  %v433 = vsel %vm335, %v428, %v432
  %v435 = vshrl.u32 %v315, 16
  %v437 = vrot.slane %v435, 4
  %v438 = vshll.u32 %v315, 16
  %v440 = vrot.slane %v438, 5
  %v441 = vor.u32 %v437, %v440
  %v442 = vrot.slane %v441, 4
  %v444 = vshll.u32 %v316, 16
  %v446 = vrot.slane %v444, 5
  %v447 = vsel %vm335, %v442, %v446
  %v449 = vshrl.u32 %v317, 16
  %v451 = vrot.slane %v449, 4
  %v452 = vshll.u32 %v317, 16
  %v454 = vrot.slane %v452, 5
  %v455 = vor.u32 %v451, %v454
  %v456 = vrot.slane %v455, 4
  %v458 = vshll.u32 %v318, 16
  %v460 = vrot.slane %v458, 5
  %v461 = vsel %vm335, %v456, %v460
  %v463 = vshrl.u32 %v319, 16
  %v465 = vrot.slane %v463, 4
  %v466 = vshll.u32 %v319, 16
  %v468 = vrot.slane %v466, 5
  %v469 = vor.u32 %v465, %v468
  %v470 = vrot.slane %v469, 4
  %v472 = vshll.u32 %v320, 16
  %v474 = vrot.slane %v472, 5
  %v475 = vsel %vm335, %v470, %v474
  %v477 = vshrl.u32 %v321, 16
  %v479 = vrot.slane %v477, 4
  %v480 = vshll.u32 %v321, 16
  %v482 = vrot.slane %v480, 5
  %v483 = vor.u32 %v479, %v482
  %v484 = vrot.slane %v483, 4
  %v486 = vshll.u32 %v322, 16
  %v488 = vrot.slane %v486, 5
  %v489 = vsel %vm335, %v484, %v488
  %v491 = vshrl.u32 %v323, 16
  %v493 = vrot.slane %v491, 4
  %v494 = vshll.u32 %v323, 16
  %v496 = vrot.slane %v494, 5
  %v497 = vor.u32 %v493, %v496
  %v498 = vrot.slane %v497, 4
  %v500 = vshll.u32 %v324, 16
  %v502 = vrot.slane %v500, 5
  %v503 = vsel %vm335, %v498, %v502
  %v505 = vshrl.u32 %v325, 16
  %v507 = vrot.slane %v505, 4
  %v508 = vshll.u32 %v325, 16
  %v510 = vrot.slane %v508, 5
  %v511 = vor.u32 %v507, %v510
  %v512 = vrot.slane %v511, 4
  %v514 = vshll.u32 %v326, 16
  %v516 = vrot.slane %v514, 5
  %v517 = vsel %vm335, %v512, %v516
  %v519 = vshrl.u32 %v327, 16
  %v521 = vrot.slane %v519, 4
  %v522 = vshll.u32 %v327, 16
  %v524 = vrot.slane %v522, 5
  %v525 = vor.u32 %v521, %v524
  %v526 = vrot.slane %v525, 4
  %v528 = vshll.u32 %v328, 16
  %v530 = vrot.slane %v528, 5
  %v531 = vsel %vm335, %v526, %v530
  %v533 = vshrl.u32 %v329, 16
  %v535 = vrot.slane %v533, 4
  %v536 = vshll.u32 %v329, 16
  %v538 = vrot.slane %v536, 5
  %v539 = vor.u32 %v535, %v538
  %v540 = vrot.slane %v539, 4
  %v542 = vshll.u32 %v330, 16
  %v544 = vrot.slane %v542, 5
  %v545 = vsel %vm335, %v540, %v544
  %v547 = vshrl.u32 %v331, 16
  %v549 = vrot.slane %v547, 4
  %v550 = vshll.u32 %v331, 16
  %v552 = vrot.slane %v550, 5
  %v553 = vor.u32 %v549, %v552
  %v554 = vrot.slane %v553, 4
  %v556 = vshll.u32 %v332, 16
  %v558 = vrot.slane %v556, 5
  %v559 = vsel %vm335, %v554, %v558
  %s560 = scalar_lea.vmem %s1, 16
  %v561 = vld [vmem:[%s560] sm:$0xf]
  %v562 = vld [vmem:[%s560 + $0x4] sm:$0xf]
  %v563 = vunpack.c.l.b16 %v349
  %v564 = vunpack.c.l.b16 %v363
  %v565 = vunpack.c.l.b16 %v377
  %v566 = vunpack.c.l.b16 %v391
  %v567 = vunpack.c.l.b16 %v405
  %v568 = vunpack.c.l.b16 %v419
  %v569 = vunpack.c.l.b16 %v433
  %v570 = vunpack.c.l.b16 %v447
  %v571 = vunpack.c.l.b16 %v461
  %v572 = vunpack.c.l.b16 %v475
  %v573 = vunpack.c.l.b16 %v489
  %v574 = vunpack.c.l.b16 %v503
  %v575 = vunpack.c.l.b16 %v517
  %v576 = vunpack.c.l.b16 %v531
  %v577 = vunpack.c.l.b16 %v545
  %v578 = vunpack.c.l.b16 %v559
  %v579 = vpack.c.b16 %v564, %v563
  %v580 = vpack.c.b16 %v566, %v565
  %v581 = vpack.c.b16 %v568, %v567
  %v582 = vpack.c.b16 %v570, %v569
  %v583 = vpack.c.b16 %v572, %v571
  %v584 = vpack.c.b16 %v574, %v573
  %v585 = vpack.c.b16 %v576, %v575
  %v586 = vpack.c.b16 %v578, %v577
  %v589 = vunpack.c.l.b16 %v561
  %v590 = vunpack.c.l.b16 %v562
  %v591 = vpack.c.b16 %v590, %v589
  %v594 = vsel %vm108, %v579, 0
  %v597 = vsel %vm108, %v580, 0
  %v600 = vsel %vm108, %v581, 0
  %v603 = vsel %vm108, %v582, 0
  %v606 = vsel %vm108, %v583, 0
  %v609 = vsel %vm108, %v584, 0
  %v612 = vsel %vm108, %v585, 0
  %v615 = vsel %vm108, %v586, 0
  %617 = vmatpush.bf16.msra.mxu0 0
  %618 = vmatpush.bf16.msra.mxu0 0
  %619 = vmatpush.bf16.msra.mxu0 0
  %620 = vmatpush.bf16.msra.mxu0 0
  %621 = vmatpush.bf16.msra.mxu0 0
  %622 = vmatpush.bf16.msra.mxu0 0
  %623 = vmatpush.bf16.msra.mxu0 0
  %624 = vmatpush.bf16.msra.mxu0 %v591
  %625 = vmatmul.bf16.gmra.mxu0 %v594
  %v626 = vpop.f32.mrf.mxu0
  %v627 = vadd.f32 0.0, %v626
  %v628 = vpop.f32.mrf.mxu0
  %v629 = vadd.f32 0.0, %v628
  %630 = vmatmul.bf16.gmra.mxu0 %v597
  %v631 = vpop.f32.mrf.mxu0
  %v632 = vadd.f32 0.0, %v631
  %v633 = vpop.f32.mrf.mxu0
  %v634 = vadd.f32 0.0, %v633
  %635 = vmatmul.bf16.gmra.mxu0 %v600
  %v636 = vpop.f32.mrf.mxu0
  %v637 = vadd.f32 0.0, %v636
  %v638 = vpop.f32.mrf.mxu0
  %v639 = vadd.f32 0.0, %v638
  %640 = vmatmul.bf16.gmra.mxu0 %v603
  %v641 = vpop.f32.mrf.mxu0
  %v642 = vadd.f32 0.0, %v641
  %v643 = vpop.f32.mrf.mxu0
  %v644 = vadd.f32 0.0, %v643
  %645 = vmatmul.bf16.gmra.mxu0 %v606
  %v646 = vpop.f32.mrf.mxu0
  %v647 = vadd.f32 0.0, %v646
  %v648 = vpop.f32.mrf.mxu0
  %v649 = vadd.f32 0.0, %v648
  %650 = vmatmul.bf16.gmra.mxu0 %v609
  %v651 = vpop.f32.mrf.mxu0
  %v652 = vadd.f32 0.0, %v651
  %v653 = vpop.f32.mrf.mxu0
  %v654 = vadd.f32 0.0, %v653
  %655 = vmatmul.bf16.gmra.mxu0 %v612
  %v656 = vpop.f32.mrf.mxu0
  %v657 = vadd.f32 0.0, %v656
  %v658 = vpop.f32.mrf.mxu0
  %v659 = vadd.f32 0.0, %v658
  %660 = vmatmul.bf16.gmra.mxu0 %v615
  %v661 = vpop.f32.mrf.mxu0
  %v662 = vadd.f32 0.0, %v661
  %v663 = vpop.f32.mrf.mxu0
  %v664 = vadd.f32 0.0, %v663
  %665 = vdwg.mxu0
  %v666 = vadd.f32 %v262, %v627
  %v667 = vadd.f32 %v264, %v629
  %v668 = vadd.f32 %v267, %v632
  %v669 = vadd.f32 %v269, %v634
  %v670 = vadd.f32 %v272, %v637
  %v671 = vadd.f32 %v274, %v639
  %v672 = vadd.f32 %v277, %v642
  %v673 = vadd.f32 %v279, %v644
  %v674 = vadd.f32 %v282, %v647
  %v675 = vadd.f32 %v284, %v649
  %v676 = vadd.f32 %v287, %v652
  %v677 = vadd.f32 %v289, %v654
  %v678 = vadd.f32 %v292, %v657
  %v679 = vadd.f32 %v294, %v659
  %v680 = vadd.f32 %v297, %v662
  %v681 = vadd.f32 %v299, %v664
  %v682 = vld [vmem:[%s42] sm:$0xf]
  %v683 = vld [vmem:[%s42 + $0x4] sm:$0x1]
  %v684 = vld [vmem:[%s42 + $0x8] sm:$0xf]
  %v685 = vld [vmem:[%s42 + $0xc] sm:$0x1]
  %v686 = vld [vmem:[%s42 + $0x10] sm:$0xf]
  %v687 = vld [vmem:[%s42 + $0x14] sm:$0x1]
  %v688 = vld [vmem:[%s42 + $0x18] sm:$0xf]
  %v689 = vld [vmem:[%s42 + $0x1c] sm:$0x1]
  %v690 = vld [vmem:[%s42 + $0x20] sm:$0xf]
  %v691 = vld [vmem:[%s42 + $0x24] sm:$0x1]
  %v692 = vld [vmem:[%s42 + $0x28] sm:$0xf]
  %v693 = vld [vmem:[%s42 + $0x2c] sm:$0x1]
  %v694 = vld [vmem:[%s42 + $0x30] sm:$0xf]
  %v695 = vld [vmem:[%s42 + $0x34] sm:$0x1]
  %v696 = vld [vmem:[%s42 + $0x38] sm:$0xf]
  %v697 = vld [vmem:[%s42 + $0x3c] sm:$0x1]
  %v698 = vld [vmem:[%s42 + $0x120] sm:$0xf]
  %v699 = vld [vmem:[%s42 + $0x124] sm:$0x1]
  %v700 = vld [vmem:[%s42 + $0x128] sm:$0xf]
  %v701 = vld [vmem:[%s42 + $0x12c] sm:$0x1]
  %v702 = vld [vmem:[%s42 + $0x130] sm:$0xf]
  %v703 = vld [vmem:[%s42 + $0x134] sm:$0x1]
  %v704 = vld [vmem:[%s42 + $0x138] sm:$0xf]
  %v705 = vld [vmem:[%s42 + $0x13c] sm:$0x1]
  %v706 = vld [vmem:[%s42 + $0x140] sm:$0xf]
  %v707 = vld [vmem:[%s42 + $0x144] sm:$0x1]
  %v708 = vld [vmem:[%s42 + $0x148] sm:$0xf]
  %v709 = vld [vmem:[%s42 + $0x14c] sm:$0x1]
  %v710 = vld [vmem:[%s42 + $0x150] sm:$0xf]
  %v711 = vld [vmem:[%s42 + $0x154] sm:$0x1]
  %v712 = vld [vmem:[%s42 + $0x158] sm:$0xf]
  %v713 = vld [vmem:[%s42 + $0x15c] sm:$0x1]
  %v715 = vshrl.u32 %v682, 16
  %v717 = vrot.slane %v715, 4
  %v718 = vshll.u32 %v682, 16
  %v720 = vrot.slane %v718, 5
  %v721 = vor.u32 %v717, %v720
  %v722 = vrot.slane %v721, 4
  %v724 = vshll.u32 %v683, 16
  %v726 = vrot.slane %v724, 5
  %v727 = vsel %vm335, %v722, %v726
  %v729 = vshrl.u32 %v684, 16
  %v731 = vrot.slane %v729, 4
  %v732 = vshll.u32 %v684, 16
  %v734 = vrot.slane %v732, 5
  %v735 = vor.u32 %v731, %v734
  %v736 = vrot.slane %v735, 4
  %v738 = vshll.u32 %v685, 16
  %v740 = vrot.slane %v738, 5
  %v741 = vsel %vm335, %v736, %v740
  %v743 = vshrl.u32 %v686, 16
  %v745 = vrot.slane %v743, 4
  %v746 = vshll.u32 %v686, 16
  %v748 = vrot.slane %v746, 5
  %v749 = vor.u32 %v745, %v748
  %v750 = vrot.slane %v749, 4
  %v752 = vshll.u32 %v687, 16
  %v754 = vrot.slane %v752, 5
  %v755 = vsel %vm335, %v750, %v754
  %v757 = vshrl.u32 %v688, 16
  %v759 = vrot.slane %v757, 4
  %v760 = vshll.u32 %v688, 16
  %v762 = vrot.slane %v760, 5
  %v763 = vor.u32 %v759, %v762
  %v764 = vrot.slane %v763, 4
  %v766 = vshll.u32 %v689, 16
  %v768 = vrot.slane %v766, 5
  %v769 = vsel %vm335, %v764, %v768
  %v771 = vshrl.u32 %v690, 16
  %v773 = vrot.slane %v771, 4
  %v774 = vshll.u32 %v690, 16
  %v776 = vrot.slane %v774, 5
  %v777 = vor.u32 %v773, %v776
  %v778 = vrot.slane %v777, 4
  %v780 = vshll.u32 %v691, 16
  %v782 = vrot.slane %v780, 5
  %v783 = vsel %vm335, %v778, %v782
  %v785 = vshrl.u32 %v692, 16
  %v787 = vrot.slane %v785, 4
  %v788 = vshll.u32 %v692, 16
  %v790 = vrot.slane %v788, 5
  %v791 = vor.u32 %v787, %v790
  %v792 = vrot.slane %v791, 4
  %v794 = vshll.u32 %v693, 16
  %v796 = vrot.slane %v794, 5
  %v797 = vsel %vm335, %v792, %v796
  %v799 = vshrl.u32 %v694, 16
  %v801 = vrot.slane %v799, 4
  %v802 = vshll.u32 %v694, 16
  %v804 = vrot.slane %v802, 5
  %v805 = vor.u32 %v801, %v804
  %v806 = vrot.slane %v805, 4
  %v808 = vshll.u32 %v695, 16
  %v810 = vrot.slane %v808, 5
  %v811 = vsel %vm335, %v806, %v810
  %v813 = vshrl.u32 %v696, 16
  %v815 = vrot.slane %v813, 4
  %v816 = vshll.u32 %v696, 16
  %v818 = vrot.slane %v816, 5
  %v819 = vor.u32 %v815, %v818
  %v820 = vrot.slane %v819, 4
  %v822 = vshll.u32 %v697, 16
  %v824 = vrot.slane %v822, 5
  %v825 = vsel %vm335, %v820, %v824
  %v827 = vshrl.u32 %v698, 16
  %v829 = vrot.slane %v827, 4
  %v830 = vshll.u32 %v698, 16
  %v832 = vrot.slane %v830, 5
  %v833 = vor.u32 %v829, %v832
  %v834 = vrot.slane %v833, 4
  %v836 = vshll.u32 %v699, 16
  %v838 = vrot.slane %v836, 5
  %v839 = vsel %vm335, %v834, %v838
  %v841 = vshrl.u32 %v700, 16
  %v843 = vrot.slane %v841, 4
  %v844 = vshll.u32 %v700, 16
  %v846 = vrot.slane %v844, 5
  %v847 = vor.u32 %v843, %v846
  %v848 = vrot.slane %v847, 4
  %v850 = vshll.u32 %v701, 16
  %v852 = vrot.slane %v850, 5
  %v853 = vsel %vm335, %v848, %v852
  %v855 = vshrl.u32 %v702, 16
  %v857 = vrot.slane %v855, 4
  %v858 = vshll.u32 %v702, 16
  %v860 = vrot.slane %v858, 5
  %v861 = vor.u32 %v857, %v860
  %v862 = vrot.slane %v861, 4
  %v864 = vshll.u32 %v703, 16
  %v866 = vrot.slane %v864, 5
  %v867 = vsel %vm335, %v862, %v866
  %v869 = vshrl.u32 %v704, 16
  %v871 = vrot.slane %v869, 4
  %v872 = vshll.u32 %v704, 16
  %v874 = vrot.slane %v872, 5
  %v875 = vor.u32 %v871, %v874
  %v876 = vrot.slane %v875, 4
  %v878 = vshll.u32 %v705, 16
  %v880 = vrot.slane %v878, 5
  %v881 = vsel %vm335, %v876, %v880
  %v883 = vshrl.u32 %v706, 16
  %v885 = vrot.slane %v883, 4
  %v886 = vshll.u32 %v706, 16
  %v888 = vrot.slane %v886, 5
  %v889 = vor.u32 %v885, %v888
  %v890 = vrot.slane %v889, 4
  %v892 = vshll.u32 %v707, 16
  %v894 = vrot.slane %v892, 5
  %v895 = vsel %vm335, %v890, %v894
  %v897 = vshrl.u32 %v708, 16
  %v899 = vrot.slane %v897, 4
  %v900 = vshll.u32 %v708, 16
  %v902 = vrot.slane %v900, 5
  %v903 = vor.u32 %v899, %v902
  %v904 = vrot.slane %v903, 4
  %v906 = vshll.u32 %v709, 16
  %v908 = vrot.slane %v906, 5
  %v909 = vsel %vm335, %v904, %v908
  %v911 = vshrl.u32 %v710, 16
  %v913 = vrot.slane %v911, 4
  %v914 = vshll.u32 %v710, 16
  %v916 = vrot.slane %v914, 5
  %v917 = vor.u32 %v913, %v916
  %v918 = vrot.slane %v917, 4
  %v920 = vshll.u32 %v711, 16
  %v922 = vrot.slane %v920, 5
  %v923 = vsel %vm335, %v918, %v922
  %v925 = vshrl.u32 %v712, 16
  %v927 = vrot.slane %v925, 4
  %v928 = vshll.u32 %v712, 16
  %v930 = vrot.slane %v928, 5
  %v931 = vor.u32 %v927, %v930
  %v932 = vrot.slane %v931, 4
  %v934 = vshll.u32 %v713, 16
  %v936 = vrot.slane %v934, 5
  %v937 = vsel %vm335, %v932, %v936
  %s938 = scalar_lea.vmem %s1, 24
  %v939 = vld [vmem:[%s938] sm:$0xf]
  %v940 = vld [vmem:[%s938 + $0x4] sm:$0xf]
  %v941 = vunpack.c.l.b16 %v727
  %v942 = vunpack.c.l.b16 %v741
  %v943 = vunpack.c.l.b16 %v755
  %v944 = vunpack.c.l.b16 %v769
  %v945 = vunpack.c.l.b16 %v783
  %v946 = vunpack.c.l.b16 %v797
  %v947 = vunpack.c.l.b16 %v811
  %v948 = vunpack.c.l.b16 %v825
  %v949 = vunpack.c.l.b16 %v839
  %v950 = vunpack.c.l.b16 %v853
  %v951 = vunpack.c.l.b16 %v867
  %v952 = vunpack.c.l.b16 %v881
  %v953 = vunpack.c.l.b16 %v895
  %v954 = vunpack.c.l.b16 %v909
  %v955 = vunpack.c.l.b16 %v923
  %v956 = vunpack.c.l.b16 %v937
  %v957 = vpack.c.b16 %v942, %v941
  %v958 = vpack.c.b16 %v944, %v943
  %v959 = vpack.c.b16 %v946, %v945
  %v960 = vpack.c.b16 %v948, %v947
  %v961 = vpack.c.b16 %v950, %v949
  %v962 = vpack.c.b16 %v952, %v951
  %v963 = vpack.c.b16 %v954, %v953
  %v964 = vpack.c.b16 %v956, %v955
  %v967 = vunpack.c.l.b16 %v939
  %v968 = vunpack.c.l.b16 %v940
  %v969 = vpack.c.b16 %v968, %v967
  %v972 = vsel %vm108, %v957, 0
  %v975 = vsel %vm108, %v958, 0
  %v978 = vsel %vm108, %v959, 0
  %v981 = vsel %vm108, %v960, 0
  %v984 = vsel %vm108, %v961, 0
  %v987 = vsel %vm108, %v962, 0
  %v990 = vsel %vm108, %v963, 0
  %v993 = vsel %vm108, %v964, 0
  %995 = vmatpush.bf16.msra.mxu0 0
  %996 = vmatpush.bf16.msra.mxu0 0
  %997 = vmatpush.bf16.msra.mxu0 0
  %998 = vmatpush.bf16.msra.mxu0 0
  %999 = vmatpush.bf16.msra.mxu0 0
  %1000 = vmatpush.bf16.msra.mxu0 0
  %1001 = vmatpush.bf16.msra.mxu0 0
  %1002 = vmatpush.bf16.msra.mxu0 %v969
  %1003 = vmatmul.bf16.gmra.mxu0 %v972
  %v1004 = vpop.f32.mrf.mxu0
  %v1005 = vadd.f32 0.0, %v1004
  %v1006 = vpop.f32.mrf.mxu0
  %v1007 = vadd.f32 0.0, %v1006
  %1008 = vmatmul.bf16.gmra.mxu0 %v975
  %v1009 = vpop.f32.mrf.mxu0
  %v1010 = vadd.f32 0.0, %v1009
  %v1011 = vpop.f32.mrf.mxu0
  %v1012 = vadd.f32 0.0, %v1011
  %1013 = vmatmul.bf16.gmra.mxu0 %v978
  %v1014 = vpop.f32.mrf.mxu0
  %v1015 = vadd.f32 0.0, %v1014
  %v1016 = vpop.f32.mrf.mxu0
  %v1017 = vadd.f32 0.0, %v1016
  %1018 = vmatmul.bf16.gmra.mxu0 %v981
  %v1019 = vpop.f32.mrf.mxu0
  %v1020 = vadd.f32 0.0, %v1019
  %v1021 = vpop.f32.mrf.mxu0
  %v1022 = vadd.f32 0.0, %v1021
  %1023 = vmatmul.bf16.gmra.mxu0 %v984
  %v1024 = vpop.f32.mrf.mxu0
  %v1025 = vadd.f32 0.0, %v1024
  %v1026 = vpop.f32.mrf.mxu0
  %v1027 = vadd.f32 0.0, %v1026
  %1028 = vmatmul.bf16.gmra.mxu0 %v987
  %v1029 = vpop.f32.mrf.mxu0
  %v1030 = vadd.f32 0.0, %v1029
  %v1031 = vpop.f32.mrf.mxu0
  %v1032 = vadd.f32 0.0, %v1031
  %1033 = vmatmul.bf16.gmra.mxu0 %v990
  %v1034 = vpop.f32.mrf.mxu0
  %v1035 = vadd.f32 0.0, %v1034
  %v1036 = vpop.f32.mrf.mxu0
  %v1037 = vadd.f32 0.0, %v1036
  %1038 = vmatmul.bf16.gmra.mxu0 %v993
  %v1039 = vpop.f32.mrf.mxu0
  %v1040 = vadd.f32 0.0, %v1039
  %v1041 = vpop.f32.mrf.mxu0
  %v1042 = vadd.f32 0.0, %v1041
  %1043 = vdwg.mxu0
  %v1044 = vadd.f32 %v666, %v1005
  %v1045 = vadd.f32 %v667, %v1007
  %v1046 = vadd.f32 %v668, %v1010
  %v1047 = vadd.f32 %v669, %v1012
  %v1048 = vadd.f32 %v670, %v1015
  %v1049 = vadd.f32 %v671, %v1017
  %v1050 = vadd.f32 %v672, %v1020
  %v1051 = vadd.f32 %v673, %v1022
  %v1052 = vadd.f32 %v674, %v1025
  %v1053 = vadd.f32 %v675, %v1027
  %v1054 = vadd.f32 %v676, %v1030
  %v1055 = vadd.f32 %v677, %v1032
  %v1056 = vadd.f32 %v678, %v1035
  %v1057 = vadd.f32 %v679, %v1037
  %v1058 = vadd.f32 %v680, %v1040
  %v1059 = vadd.f32 %v681, %v1042
  %s1060 = scalar_lea.vmem %s0, 144
  %v1061 = vld [vmem:[%s1060] sm:$0xf]
  %v1062 = vld [vmem:[%s1060 + $0x8] sm:$0xf]
  %v1063 = vld [vmem:[%s1060 + $0x10] sm:$0xf]
  %v1064 = vld [vmem:[%s1060 + $0x18] sm:$0xf]
  %v1065 = vld [vmem:[%s1060 + $0x20] sm:$0xf]
  %v1066 = vld [vmem:[%s1060 + $0x28] sm:$0xf]
  %v1067 = vld [vmem:[%s1060 + $0x30] sm:$0xf]
  %v1068 = vld [vmem:[%s1060 + $0x38] sm:$0xf]
  %v1069 = vld [vmem:[%s1060 + $0x120] sm:$0xf]
  %v1070 = vld [vmem:[%s1060 + $0x128] sm:$0xf]
  %v1071 = vld [vmem:[%s1060 + $0x130] sm:$0xf]
  %v1072 = vld [vmem:[%s1060 + $0x138] sm:$0xf]
  %v1073 = vld [vmem:[%s1060 + $0x140] sm:$0xf]
  %v1074 = vld [vmem:[%s1060 + $0x148] sm:$0xf]
  %v1075 = vld [vmem:[%s1060 + $0x150] sm:$0xf]
  %v1076 = vld [vmem:[%s1060 + $0x158] sm:$0xf]
  %s1077 = scalar_lea.vmem %s1, 32
  %v1078 = vld [vmem:[%s1077] sm:$0xf]
  %v1079 = vld [vmem:[%s1077 + $0x4] sm:$0xf]
  %v1096 = vunpack.c.l.b16 %v1061
  %v1097 = vunpack.c.l.b16 %v1062
  %v1098 = vunpack.c.l.b16 %v1063
  %v1099 = vunpack.c.l.b16 %v1064
  %v1100 = vunpack.c.l.b16 %v1065
  %v1101 = vunpack.c.l.b16 %v1066
  %v1102 = vunpack.c.l.b16 %v1067
  %v1103 = vunpack.c.l.b16 %v1068
  %v1104 = vunpack.c.l.b16 %v1069
  %v1105 = vunpack.c.l.b16 %v1070
  %v1106 = vunpack.c.l.b16 %v1071
  %v1107 = vunpack.c.l.b16 %v1072
  %v1108 = vunpack.c.l.b16 %v1073
  %v1109 = vunpack.c.l.b16 %v1074
  %v1110 = vunpack.c.l.b16 %v1075
  %v1111 = vunpack.c.l.b16 %v1076
  %v1112 = vpack.c.b16 %v1097, %v1096
  %v1113 = vpack.c.b16 %v1099, %v1098
  %v1114 = vpack.c.b16 %v1101, %v1100
  %v1115 = vpack.c.b16 %v1103, %v1102
  %v1116 = vpack.c.b16 %v1105, %v1104
  %v1117 = vpack.c.b16 %v1107, %v1106
  %v1118 = vpack.c.b16 %v1109, %v1108
  %v1119 = vpack.c.b16 %v1111, %v1110
  %v1122 = vunpack.c.l.b16 %v1078
  %v1123 = vunpack.c.l.b16 %v1079
  %v1124 = vpack.c.b16 %v1123, %v1122
  %v1127 = vsel %vm108, %v1112, 0
  %v1130 = vsel %vm108, %v1113, 0
  %v1133 = vsel %vm108, %v1114, 0
  %v1136 = vsel %vm108, %v1115, 0
  %v1139 = vsel %vm108, %v1116, 0
  %v1142 = vsel %vm108, %v1117, 0
  %v1145 = vsel %vm108, %v1118, 0
  %v1148 = vsel %vm108, %v1119, 0
  %1150 = vmatpush.bf16.msra.mxu0 0
  %1151 = vmatpush.bf16.msra.mxu0 0
  %1152 = vmatpush.bf16.msra.mxu0 0
  %1153 = vmatpush.bf16.msra.mxu0 0
  %1154 = vmatpush.bf16.msra.mxu0 0
  %1155 = vmatpush.bf16.msra.mxu0 0
  %1156 = vmatpush.bf16.msra.mxu0 0
  %1157 = vmatpush.bf16.msra.mxu0 %v1124
  %1158 = vmatmul.bf16.gmra.mxu0 %v1127
  %v1159 = vpop.f32.mrf.mxu0
  %v1160 = vadd.f32 0.0, %v1159
  %v1161 = vpop.f32.mrf.mxu0
  %v1162 = vadd.f32 0.0, %v1161
  %1163 = vmatmul.bf16.gmra.mxu0 %v1130
  %v1164 = vpop.f32.mrf.mxu0
  %v1165 = vadd.f32 0.0, %v1164
  %v1166 = vpop.f32.mrf.mxu0
  %v1167 = vadd.f32 0.0, %v1166
  %1168 = vmatmul.bf16.gmra.mxu0 %v1133
  %v1169 = vpop.f32.mrf.mxu0
  %v1170 = vadd.f32 0.0, %v1169
  %v1171 = vpop.f32.mrf.mxu0
  %v1172 = vadd.f32 0.0, %v1171
  %1173 = vmatmul.bf16.gmra.mxu0 %v1136
  %v1174 = vpop.f32.mrf.mxu0
  %v1175 = vadd.f32 0.0, %v1174
  %v1176 = vpop.f32.mrf.mxu0
  %v1177 = vadd.f32 0.0, %v1176
  %1178 = vmatmul.bf16.gmra.mxu0 %v1139
  %v1179 = vpop.f32.mrf.mxu0
  %v1180 = vadd.f32 0.0, %v1179
  %v1181 = vpop.f32.mrf.mxu0
  %v1182 = vadd.f32 0.0, %v1181
  %1183 = vmatmul.bf16.gmra.mxu0 %v1142
  %v1184 = vpop.f32.mrf.mxu0
  %v1185 = vadd.f32 0.0, %v1184
  %v1186 = vpop.f32.mrf.mxu0
  %v1187 = vadd.f32 0.0, %v1186
  %1188 = vmatmul.bf16.gmra.mxu0 %v1145
  %v1189 = vpop.f32.mrf.mxu0
  %v1190 = vadd.f32 0.0, %v1189
  %v1191 = vpop.f32.mrf.mxu0
  %v1192 = vadd.f32 0.0, %v1191
  %1193 = vmatmul.bf16.gmra.mxu0 %v1148
  %v1194 = vpop.f32.mrf.mxu0
  %v1195 = vadd.f32 0.0, %v1194
  %v1196 = vpop.f32.mrf.mxu0
  %v1197 = vadd.f32 0.0, %v1196
  %1198 = vdwg.mxu0
  %v1199 = vadd.f32 %v1044, %v1160
  %v1200 = vadd.f32 %v1045, %v1162
  %v1201 = vadd.f32 %v1046, %v1165
  %v1202 = vadd.f32 %v1047, %v1167
  %v1203 = vadd.f32 %v1048, %v1170
  %v1204 = vadd.f32 %v1049, %v1172
  %v1205 = vadd.f32 %v1050, %v1175
  %v1206 = vadd.f32 %v1051, %v1177
  %v1207 = vadd.f32 %v1052, %v1180
  %v1208 = vadd.f32 %v1053, %v1182
  %v1209 = vadd.f32 %v1054, %v1185
  %v1210 = vadd.f32 %v1055, %v1187
  %v1211 = vadd.f32 %v1056, %v1190
  %v1212 = vadd.f32 %v1057, %v1192
  %v1213 = vadd.f32 %v1058, %v1195
  %v1214 = vadd.f32 %v1059, %v1197
  %s1215 = scalar_lea.vmem %s0, 216
  %v1216 = vld [vmem:[%s1215] sm:$0xf]
  %v1217 = vld [vmem:[%s1215 + $0x8] sm:$0xf]
  %v1218 = vld [vmem:[%s1215 + $0x10] sm:$0xf]
  %v1219 = vld [vmem:[%s1215 + $0x18] sm:$0xf]
  %v1220 = vld [vmem:[%s1215 + $0x20] sm:$0xf]
  %v1221 = vld [vmem:[%s1215 + $0x28] sm:$0xf]
  %v1222 = vld [vmem:[%s1215 + $0x30] sm:$0xf]
  %v1223 = vld [vmem:[%s1215 + $0x38] sm:$0xf]
  %v1224 = vld [vmem:[%s1215 + $0x120] sm:$0xf]
  %v1225 = vld [vmem:[%s1215 + $0x128] sm:$0xf]
  %v1226 = vld [vmem:[%s1215 + $0x130] sm:$0xf]
  %v1227 = vld [vmem:[%s1215 + $0x138] sm:$0xf]
  %v1228 = vld [vmem:[%s1215 + $0x140] sm:$0xf]
  %v1229 = vld [vmem:[%s1215 + $0x148] sm:$0xf]
  %v1230 = vld [vmem:[%s1215 + $0x150] sm:$0xf]
  %v1231 = vld [vmem:[%s1215 + $0x158] sm:$0xf]
  %s1232 = scalar_lea.vmem %s1, 40
  %v1233 = vld [vmem:[%s1232] sm:$0xf]
  %v1234 = vld [vmem:[%s1232 + $0x4] sm:$0xf]
  %v1251 = vunpack.c.l.b16 %v1216
  %v1252 = vunpack.c.l.b16 %v1217
  %v1253 = vunpack.c.l.b16 %v1218
  %v1254 = vunpack.c.l.b16 %v1219
  %v1255 = vunpack.c.l.b16 %v1220
  %v1256 = vunpack.c.l.b16 %v1221
  %v1257 = vunpack.c.l.b16 %v1222
  %v1258 = vunpack.c.l.b16 %v1223
  %v1259 = vunpack.c.l.b16 %v1224
  %v1260 = vunpack.c.l.b16 %v1225
  %v1261 = vunpack.c.l.b16 %v1226
  %v1262 = vunpack.c.l.b16 %v1227
  %v1263 = vunpack.c.l.b16 %v1228
  %v1264 = vunpack.c.l.b16 %v1229
  %v1265 = vunpack.c.l.b16 %v1230
  %v1266 = vunpack.c.l.b16 %v1231
  %v1267 = vpack.c.b16 %v1252, %v1251
  %v1268 = vpack.c.b16 %v1254, %v1253
  %v1269 = vpack.c.b16 %v1256, %v1255
  %v1270 = vpack.c.b16 %v1258, %v1257
  %v1271 = vpack.c.b16 %v1260, %v1259
  %v1272 = vpack.c.b16 %v1262, %v1261
  %v1273 = vpack.c.b16 %v1264, %v1263
  %v1274 = vpack.c.b16 %v1266, %v1265
  %v1277 = vunpack.c.l.b16 %v1233
  %v1278 = vunpack.c.l.b16 %v1234
  %v1279 = vpack.c.b16 %v1278, %v1277
  %v1282 = vsel %vm108, %v1267, 0
  %v1285 = vsel %vm108, %v1268, 0
  %v1288 = vsel %vm108, %v1269, 0
  %v1291 = vsel %vm108, %v1270, 0
  %v1294 = vsel %vm108, %v1271, 0
  %v1297 = vsel %vm108, %v1272, 0
  %v1300 = vsel %vm108, %v1273, 0
  %v1303 = vsel %vm108, %v1274, 0
  %1305 = vmatpush.bf16.msra.mxu0 0
  %1306 = vmatpush.bf16.msra.mxu0 0
  %1307 = vmatpush.bf16.msra.mxu0 0
  %1308 = vmatpush.bf16.msra.mxu0 0
  %1309 = vmatpush.bf16.msra.mxu0 0
  %1310 = vmatpush.bf16.msra.mxu0 0
  %1311 = vmatpush.bf16.msra.mxu0 0
  %1312 = vmatpush.bf16.msra.mxu0 %v1279
  %1313 = vmatmul.bf16.gmra.mxu0 %v1282
  %v1314 = vpop.f32.mrf.mxu0
  %v1315 = vadd.f32 0.0, %v1314
  %v1316 = vpop.f32.mrf.mxu0
  %v1317 = vadd.f32 0.0, %v1316
  %1318 = vmatmul.bf16.gmra.mxu0 %v1285
  %v1319 = vpop.f32.mrf.mxu0
  %v1320 = vadd.f32 0.0, %v1319
  %v1321 = vpop.f32.mrf.mxu0
  %v1322 = vadd.f32 0.0, %v1321
  %1323 = vmatmul.bf16.gmra.mxu0 %v1288
  %v1324 = vpop.f32.mrf.mxu0
  %v1325 = vadd.f32 0.0, %v1324
  %v1326 = vpop.f32.mrf.mxu0
  %v1327 = vadd.f32 0.0, %v1326
  %1328 = vmatmul.bf16.gmra.mxu0 %v1291
  %v1329 = vpop.f32.mrf.mxu0
  %v1330 = vadd.f32 0.0, %v1329
  %v1331 = vpop.f32.mrf.mxu0
  %v1332 = vadd.f32 0.0, %v1331
  %1333 = vmatmul.bf16.gmra.mxu0 %v1294
  %v1334 = vpop.f32.mrf.mxu0
  %v1335 = vadd.f32 0.0, %v1334
  %v1336 = vpop.f32.mrf.mxu0
  %v1337 = vadd.f32 0.0, %v1336
  %1338 = vmatmul.bf16.gmra.mxu0 %v1297
  %v1339 = vpop.f32.mrf.mxu0
  %v1340 = vadd.f32 0.0, %v1339
  %v1341 = vpop.f32.mrf.mxu0
  %v1342 = vadd.f32 0.0, %v1341
  %1343 = vmatmul.bf16.gmra.mxu0 %v1300
  %v1344 = vpop.f32.mrf.mxu0
  %v1345 = vadd.f32 0.0, %v1344
  %v1346 = vpop.f32.mrf.mxu0
  %v1347 = vadd.f32 0.0, %v1346
  %1348 = vmatmul.bf16.gmra.mxu0 %v1303
  %v1349 = vpop.f32.mrf.mxu0
  %v1350 = vadd.f32 0.0, %v1349
  %v1351 = vpop.f32.mrf.mxu0
  %v1352 = vadd.f32 0.0, %v1351
  %1353 = vdwg.mxu0
  %v1354 = vadd.f32 %v1199, %v1315
  %v1355 = vadd.f32 %v1200, %v1317
  %v1356 = vadd.f32 %v1201, %v1320
  %v1357 = vadd.f32 %v1202, %v1322
  %v1358 = vadd.f32 %v1203, %v1325
  %v1359 = vadd.f32 %v1204, %v1327
  %v1360 = vadd.f32 %v1205, %v1330
  %v1361 = vadd.f32 %v1206, %v1332
  %v1362 = vadd.f32 %v1207, %v1335
  %v1363 = vadd.f32 %v1208, %v1337
  %v1364 = vadd.f32 %v1209, %v1340
  %v1365 = vadd.f32 %v1210, %v1342
  %v1366 = vadd.f32 %v1211, %v1345
  %v1367 = vadd.f32 %v1212, %v1347
  %v1368 = vadd.f32 %v1213, %v1350
  %v1369 = vadd.f32 %v1214, %v1352
  %v1370 = vld [vmem:[%s1060] sm:$0xf]
  %v1371 = vld [vmem:[%s1060 + $0x4] sm:$0x1]
  %v1372 = vld [vmem:[%s1060 + $0x8] sm:$0xf]
  %v1373 = vld [vmem:[%s1060 + $0xc] sm:$0x1]
  %v1374 = vld [vmem:[%s1060 + $0x10] sm:$0xf]
  %v1375 = vld [vmem:[%s1060 + $0x14] sm:$0x1]
  %v1376 = vld [vmem:[%s1060 + $0x18] sm:$0xf]
  %v1377 = vld [vmem:[%s1060 + $0x1c] sm:$0x1]
  %v1378 = vld [vmem:[%s1060 + $0x20] sm:$0xf]
  %v1379 = vld [vmem:[%s1060 + $0x24] sm:$0x1]
  %v1380 = vld [vmem:[%s1060 + $0x28] sm:$0xf]
  %v1381 = vld [vmem:[%s1060 + $0x2c] sm:$0x1]
  %v1382 = vld [vmem:[%s1060 + $0x30] sm:$0xf]
  %v1383 = vld [vmem:[%s1060 + $0x34] sm:$0x1]
  %v1384 = vld [vmem:[%s1060 + $0x38] sm:$0xf]
  %v1385 = vld [vmem:[%s1060 + $0x3c] sm:$0x1]
  %v1386 = vld [vmem:[%s1060 + $0x120] sm:$0xf]
  %v1387 = vld [vmem:[%s1060 + $0x124] sm:$0x1]
  %v1388 = vld [vmem:[%s1060 + $0x128] sm:$0xf]
  %v1389 = vld [vmem:[%s1060 + $0x12c] sm:$0x1]
  %v1390 = vld [vmem:[%s1060 + $0x130] sm:$0xf]
  %v1391 = vld [vmem:[%s1060 + $0x134] sm:$0x1]
  %v1392 = vld [vmem:[%s1060 + $0x138] sm:$0xf]
  %v1393 = vld [vmem:[%s1060 + $0x13c] sm:$0x1]
  %v1394 = vld [vmem:[%s1060 + $0x140] sm:$0xf]
  %v1395 = vld [vmem:[%s1060 + $0x144] sm:$0x1]
  %v1396 = vld [vmem:[%s1060 + $0x148] sm:$0xf]
  %v1397 = vld [vmem:[%s1060 + $0x14c] sm:$0x1]
  %v1398 = vld [vmem:[%s1060 + $0x150] sm:$0xf]
  %v1399 = vld [vmem:[%s1060 + $0x154] sm:$0x1]
  %v1400 = vld [vmem:[%s1060 + $0x158] sm:$0xf]
  %v1401 = vld [vmem:[%s1060 + $0x15c] sm:$0x1]
  %v1403 = vshrl.u32 %v1370, 16
  %v1405 = vrot.slane %v1403, 4
  %v1406 = vshll.u32 %v1370, 16
  %v1408 = vrot.slane %v1406, 5
  %v1409 = vor.u32 %v1405, %v1408
  %v1410 = vrot.slane %v1409, 4
  %v1412 = vshll.u32 %v1371, 16
  %v1414 = vrot.slane %v1412, 5
  %v1415 = vsel %vm335, %v1410, %v1414
  %v1417 = vshrl.u32 %v1372, 16
  %v1419 = vrot.slane %v1417, 4
  %v1420 = vshll.u32 %v1372, 16
  %v1422 = vrot.slane %v1420, 5
  %v1423 = vor.u32 %v1419, %v1422
  %v1424 = vrot.slane %v1423, 4
  %v1426 = vshll.u32 %v1373, 16
  %v1428 = vrot.slane %v1426, 5
  %v1429 = vsel %vm335, %v1424, %v1428
  %v1431 = vshrl.u32 %v1374, 16
  %v1433 = vrot.slane %v1431, 4
  %v1434 = vshll.u32 %v1374, 16
  %v1436 = vrot.slane %v1434, 5
  %v1437 = vor.u32 %v1433, %v1436
  %v1438 = vrot.slane %v1437, 4
  %v1440 = vshll.u32 %v1375, 16
  %v1442 = vrot.slane %v1440, 5
  %v1443 = vsel %vm335, %v1438, %v1442
  %v1445 = vshrl.u32 %v1376, 16
  %v1447 = vrot.slane %v1445, 4
  %v1448 = vshll.u32 %v1376, 16
  %v1450 = vrot.slane %v1448, 5
  %v1451 = vor.u32 %v1447, %v1450
  %v1452 = vrot.slane %v1451, 4
  %v1454 = vshll.u32 %v1377, 16
  %v1456 = vrot.slane %v1454, 5
  %v1457 = vsel %vm335, %v1452, %v1456
  %v1459 = vshrl.u32 %v1378, 16
  %v1461 = vrot.slane %v1459, 4
  %v1462 = vshll.u32 %v1378, 16
  %v1464 = vrot.slane %v1462, 5
  %v1465 = vor.u32 %v1461, %v1464
  %v1466 = vrot.slane %v1465, 4
  %v1468 = vshll.u32 %v1379, 16
  %v1470 = vrot.slane %v1468, 5
  %v1471 = vsel %vm335, %v1466, %v1470
  %v1473 = vshrl.u32 %v1380, 16
  %v1475 = vrot.slane %v1473, 4
  %v1476 = vshll.u32 %v1380, 16
  %v1478 = vrot.slane %v1476, 5
  %v1479 = vor.u32 %v1475, %v1478
  %v1480 = vrot.slane %v1479, 4
  %v1482 = vshll.u32 %v1381, 16
  %v1484 = vrot.slane %v1482, 5
  %v1485 = vsel %vm335, %v1480, %v1484
  %v1487 = vshrl.u32 %v1382, 16
  %v1489 = vrot.slane %v1487, 4
  %v1490 = vshll.u32 %v1382, 16
  %v1492 = vrot.slane %v1490, 5
  %v1493 = vor.u32 %v1489, %v1492
  %v1494 = vrot.slane %v1493, 4
  %v1496 = vshll.u32 %v1383, 16
  %v1498 = vrot.slane %v1496, 5
  %v1499 = vsel %vm335, %v1494, %v1498
  %v1501 = vshrl.u32 %v1384, 16
  %v1503 = vrot.slane %v1501, 4
  %v1504 = vshll.u32 %v1384, 16
  %v1506 = vrot.slane %v1504, 5
  %v1507 = vor.u32 %v1503, %v1506
  %v1508 = vrot.slane %v1507, 4
  %v1510 = vshll.u32 %v1385, 16
  %v1512 = vrot.slane %v1510, 5
  %v1513 = vsel %vm335, %v1508, %v1512
  %v1515 = vshrl.u32 %v1386, 16
  %v1517 = vrot.slane %v1515, 4
  %v1518 = vshll.u32 %v1386, 16
  %v1520 = vrot.slane %v1518, 5
  %v1521 = vor.u32 %v1517, %v1520
  %v1522 = vrot.slane %v1521, 4
  %v1524 = vshll.u32 %v1387, 16
  %v1526 = vrot.slane %v1524, 5
  %v1527 = vsel %vm335, %v1522, %v1526
  %v1529 = vshrl.u32 %v1388, 16
  %v1531 = vrot.slane %v1529, 4
  %v1532 = vshll.u32 %v1388, 16
  %v1534 = vrot.slane %v1532, 5
  %v1535 = vor.u32 %v1531, %v1534
  %v1536 = vrot.slane %v1535, 4
  %v1538 = vshll.u32 %v1389, 16
  %v1540 = vrot.slane %v1538, 5
  %v1541 = vsel %vm335, %v1536, %v1540
  %v1543 = vshrl.u32 %v1390, 16
  %v1545 = vrot.slane %v1543, 4
  %v1546 = vshll.u32 %v1390, 16
  %v1548 = vrot.slane %v1546, 5
  %v1549 = vor.u32 %v1545, %v1548
  %v1550 = vrot.slane %v1549, 4
  %v1552 = vshll.u32 %v1391, 16
  %v1554 = vrot.slane %v1552, 5
  %v1555 = vsel %vm335, %v1550, %v1554
  %v1557 = vshrl.u32 %v1392, 16
  %v1559 = vrot.slane %v1557, 4
  %v1560 = vshll.u32 %v1392, 16
  %v1562 = vrot.slane %v1560, 5
  %v1563 = vor.u32 %v1559, %v1562
  %v1564 = vrot.slane %v1563, 4
  %v1566 = vshll.u32 %v1393, 16
  %v1568 = vrot.slane %v1566, 5
  %v1569 = vsel %vm335, %v1564, %v1568
  %v1571 = vshrl.u32 %v1394, 16
  %v1573 = vrot.slane %v1571, 4
  %v1574 = vshll.u32 %v1394, 16
  %v1576 = vrot.slane %v1574, 5
  %v1577 = vor.u32 %v1573, %v1576
  %v1578 = vrot.slane %v1577, 4
  %v1580 = vshll.u32 %v1395, 16
  %v1582 = vrot.slane %v1580, 5
  %v1583 = vsel %vm335, %v1578, %v1582
  %v1585 = vshrl.u32 %v1396, 16
  %v1587 = vrot.slane %v1585, 4
  %v1588 = vshll.u32 %v1396, 16
  %v1590 = vrot.slane %v1588, 5
  %v1591 = vor.u32 %v1587, %v1590
  %v1592 = vrot.slane %v1591, 4
  %v1594 = vshll.u32 %v1397, 16
  %v1596 = vrot.slane %v1594, 5
  %v1597 = vsel %vm335, %v1592, %v1596
  %v1599 = vshrl.u32 %v1398, 16
  %v1601 = vrot.slane %v1599, 4
  %v1602 = vshll.u32 %v1398, 16
  %v1604 = vrot.slane %v1602, 5
  %v1605 = vor.u32 %v1601, %v1604
  %v1606 = vrot.slane %v1605, 4
  %v1608 = vshll.u32 %v1399, 16
  %v1610 = vrot.slane %v1608, 5
  %v1611 = vsel %vm335, %v1606, %v1610
  %v1613 = vshrl.u32 %v1400, 16
  %v1615 = vrot.slane %v1613, 4
  %v1616 = vshll.u32 %v1400, 16
  %v1618 = vrot.slane %v1616, 5
  %v1619 = vor.u32 %v1615, %v1618
  %v1620 = vrot.slane %v1619, 4
  %v1622 = vshll.u32 %v1401, 16
  %v1624 = vrot.slane %v1622, 5
  %v1625 = vsel %vm335, %v1620, %v1624
  %s1626 = scalar_lea.vmem %s1, 48
  %v1627 = vld [vmem:[%s1626] sm:$0xf]
  %v1628 = vld [vmem:[%s1626 + $0x4] sm:$0xf]
  %v1629 = vunpack.c.l.b16 %v1415
  %v1630 = vunpack.c.l.b16 %v1429
  %v1631 = vunpack.c.l.b16 %v1443
  %v1632 = vunpack.c.l.b16 %v1457
  %v1633 = vunpack.c.l.b16 %v1471
  %v1634 = vunpack.c.l.b16 %v1485
  %v1635 = vunpack.c.l.b16 %v1499
  %v1636 = vunpack.c.l.b16 %v1513
  %v1637 = vunpack.c.l.b16 %v1527
  %v1638 = vunpack.c.l.b16 %v1541
  %v1639 = vunpack.c.l.b16 %v1555
  %v1640 = vunpack.c.l.b16 %v1569
  %v1641 = vunpack.c.l.b16 %v1583
  %v1642 = vunpack.c.l.b16 %v1597
  %v1643 = vunpack.c.l.b16 %v1611
  %v1644 = vunpack.c.l.b16 %v1625
  %v1645 = vpack.c.b16 %v1630, %v1629
  %v1646 = vpack.c.b16 %v1632, %v1631
  %v1647 = vpack.c.b16 %v1634, %v1633
  %v1648 = vpack.c.b16 %v1636, %v1635
  %v1649 = vpack.c.b16 %v1638, %v1637
  %v1650 = vpack.c.b16 %v1640, %v1639
  %v1651 = vpack.c.b16 %v1642, %v1641
  %v1652 = vpack.c.b16 %v1644, %v1643
  %v1655 = vunpack.c.l.b16 %v1627
  %v1656 = vunpack.c.l.b16 %v1628
  %v1657 = vpack.c.b16 %v1656, %v1655
  %v1660 = vsel %vm108, %v1645, 0
  %v1663 = vsel %vm108, %v1646, 0
  %v1666 = vsel %vm108, %v1647, 0
  %v1669 = vsel %vm108, %v1648, 0
  %v1672 = vsel %vm108, %v1649, 0
  %v1675 = vsel %vm108, %v1650, 0
  %v1678 = vsel %vm108, %v1651, 0
  %v1681 = vsel %vm108, %v1652, 0
  %1683 = vmatpush.bf16.msra.mxu0 0
  %1684 = vmatpush.bf16.msra.mxu0 0
  %1685 = vmatpush.bf16.msra.mxu0 0
  %1686 = vmatpush.bf16.msra.mxu0 0
  %1687 = vmatpush.bf16.msra.mxu0 0
  %1688 = vmatpush.bf16.msra.mxu0 0
  %1689 = vmatpush.bf16.msra.mxu0 0
  %1690 = vmatpush.bf16.msra.mxu0 %v1657
  %1691 = vmatmul.bf16.gmra.mxu0 %v1660
  %v1692 = vpop.f32.mrf.mxu0
  %v1693 = vadd.f32 0.0, %v1692
  %v1694 = vpop.f32.mrf.mxu0
  %v1695 = vadd.f32 0.0, %v1694
  %1696 = vmatmul.bf16.gmra.mxu0 %v1663
  %v1697 = vpop.f32.mrf.mxu0
  %v1698 = vadd.f32 0.0, %v1697
  %v1699 = vpop.f32.mrf.mxu0
  %v1700 = vadd.f32 0.0, %v1699
  %1701 = vmatmul.bf16.gmra.mxu0 %v1666
  %v1702 = vpop.f32.mrf.mxu0
  %v1703 = vadd.f32 0.0, %v1702
  %v1704 = vpop.f32.mrf.mxu0
  %v1705 = vadd.f32 0.0, %v1704
  %1706 = vmatmul.bf16.gmra.mxu0 %v1669
  %v1707 = vpop.f32.mrf.mxu0
  %v1708 = vadd.f32 0.0, %v1707
  %v1709 = vpop.f32.mrf.mxu0
  %v1710 = vadd.f32 0.0, %v1709
  %1711 = vmatmul.bf16.gmra.mxu0 %v1672
  %v1712 = vpop.f32.mrf.mxu0
  %v1713 = vadd.f32 0.0, %v1712
  %v1714 = vpop.f32.mrf.mxu0
  %v1715 = vadd.f32 0.0, %v1714
  %1716 = vmatmul.bf16.gmra.mxu0 %v1675
  %v1717 = vpop.f32.mrf.mxu0
  %v1718 = vadd.f32 0.0, %v1717
  %v1719 = vpop.f32.mrf.mxu0
  %v1720 = vadd.f32 0.0, %v1719
  %1721 = vmatmul.bf16.gmra.mxu0 %v1678
  %v1722 = vpop.f32.mrf.mxu0
  %v1723 = vadd.f32 0.0, %v1722
  %v1724 = vpop.f32.mrf.mxu0
  %v1725 = vadd.f32 0.0, %v1724
  %1726 = vmatmul.bf16.gmra.mxu0 %v1681
  %v1727 = vpop.f32.mrf.mxu0
  %v1728 = vadd.f32 0.0, %v1727
  %v1729 = vpop.f32.mrf.mxu0
  %v1730 = vadd.f32 0.0, %v1729
  %1731 = vdwg.mxu0
  %v1732 = vadd.f32 %v1354, %v1693
  %v1733 = vadd.f32 %v1355, %v1695
  %v1734 = vadd.f32 %v1356, %v1698
  %v1735 = vadd.f32 %v1357, %v1700
  %v1736 = vadd.f32 %v1358, %v1703
  %v1737 = vadd.f32 %v1359, %v1705
  %v1738 = vadd.f32 %v1360, %v1708
  %v1739 = vadd.f32 %v1361, %v1710
  %v1740 = vadd.f32 %v1362, %v1713
  %v1741 = vadd.f32 %v1363, %v1715
  %v1742 = vadd.f32 %v1364, %v1718
  %v1743 = vadd.f32 %v1365, %v1720
  %v1744 = vadd.f32 %v1366, %v1723
  %v1745 = vadd.f32 %v1367, %v1725
  %v1746 = vadd.f32 %v1368, %v1728
  %v1747 = vadd.f32 %v1369, %v1730
  %v1748 = vld [vmem:[%s1215] sm:$0xf]
  %v1749 = vld [vmem:[%s1215 + $0x4] sm:$0x1]
  %v1750 = vld [vmem:[%s1215 + $0x8] sm:$0xf]
  %v1751 = vld [vmem:[%s1215 + $0xc] sm:$0x1]
  %v1752 = vld [vmem:[%s1215 + $0x10] sm:$0xf]
  %v1753 = vld [vmem:[%s1215 + $0x14] sm:$0x1]
  %v1754 = vld [vmem:[%s1215 + $0x18] sm:$0xf]
  %v1755 = vld [vmem:[%s1215 + $0x1c] sm:$0x1]
  %v1756 = vld [vmem:[%s1215 + $0x20] sm:$0xf]
  %v1757 = vld [vmem:[%s1215 + $0x24] sm:$0x1]
  %v1758 = vld [vmem:[%s1215 + $0x28] sm:$0xf]
  %v1759 = vld [vmem:[%s1215 + $0x2c] sm:$0x1]
  %v1760 = vld [vmem:[%s1215 + $0x30] sm:$0xf]
  %v1761 = vld [vmem:[%s1215 + $0x34] sm:$0x1]
  %v1762 = vld [vmem:[%s1215 + $0x38] sm:$0xf]
  %v1763 = vld [vmem:[%s1215 + $0x3c] sm:$0x1]
  %v1764 = vld [vmem:[%s1215 + $0x120] sm:$0xf]
  %v1765 = vld [vmem:[%s1215 + $0x124] sm:$0x1]
  %v1766 = vld [vmem:[%s1215 + $0x128] sm:$0xf]
  %v1767 = vld [vmem:[%s1215 + $0x12c] sm:$0x1]
  %v1768 = vld [vmem:[%s1215 + $0x130] sm:$0xf]
  %v1769 = vld [vmem:[%s1215 + $0x134] sm:$0x1]
  %v1770 = vld [vmem:[%s1215 + $0x138] sm:$0xf]
  %v1771 = vld [vmem:[%s1215 + $0x13c] sm:$0x1]
  %v1772 = vld [vmem:[%s1215 + $0x140] sm:$0xf]
  %v1773 = vld [vmem:[%s1215 + $0x144] sm:$0x1]
  %v1774 = vld [vmem:[%s1215 + $0x148] sm:$0xf]
  %v1775 = vld [vmem:[%s1215 + $0x14c] sm:$0x1]
  %v1776 = vld [vmem:[%s1215 + $0x150] sm:$0xf]
  %v1777 = vld [vmem:[%s1215 + $0x154] sm:$0x1]
  %v1778 = vld [vmem:[%s1215 + $0x158] sm:$0xf]
  %v1779 = vld [vmem:[%s1215 + $0x15c] sm:$0x1]
  %v1781 = vshrl.u32 %v1748, 16
  %v1783 = vrot.slane %v1781, 4
  %v1784 = vshll.u32 %v1748, 16
  %v1786 = vrot.slane %v1784, 5
  %v1787 = vor.u32 %v1783, %v1786
  %v1788 = vrot.slane %v1787, 4
  %v1790 = vshll.u32 %v1749, 16
  %v1792 = vrot.slane %v1790, 5
  %v1793 = vsel %vm335, %v1788, %v1792
  %v1795 = vshrl.u32 %v1750, 16
  %v1797 = vrot.slane %v1795, 4
  %v1798 = vshll.u32 %v1750, 16
  %v1800 = vrot.slane %v1798, 5
  %v1801 = vor.u32 %v1797, %v1800
  %v1802 = vrot.slane %v1801, 4
  %v1804 = vshll.u32 %v1751, 16
  %v1806 = vrot.slane %v1804, 5
  %v1807 = vsel %vm335, %v1802, %v1806
  %v1809 = vshrl.u32 %v1752, 16
  %v1811 = vrot.slane %v1809, 4
  %v1812 = vshll.u32 %v1752, 16
  %v1814 = vrot.slane %v1812, 5
  %v1815 = vor.u32 %v1811, %v1814
  %v1816 = vrot.slane %v1815, 4
  %v1818 = vshll.u32 %v1753, 16
  %v1820 = vrot.slane %v1818, 5
  %v1821 = vsel %vm335, %v1816, %v1820
  %v1823 = vshrl.u32 %v1754, 16
  %v1825 = vrot.slane %v1823, 4
  %v1826 = vshll.u32 %v1754, 16
  %v1828 = vrot.slane %v1826, 5
  %v1829 = vor.u32 %v1825, %v1828
  %v1830 = vrot.slane %v1829, 4
  %v1832 = vshll.u32 %v1755, 16
  %v1834 = vrot.slane %v1832, 5
  %v1835 = vsel %vm335, %v1830, %v1834
  %v1837 = vshrl.u32 %v1756, 16
  %v1839 = vrot.slane %v1837, 4
  %v1840 = vshll.u32 %v1756, 16
  %v1842 = vrot.slane %v1840, 5
  %v1843 = vor.u32 %v1839, %v1842
  %v1844 = vrot.slane %v1843, 4
  %v1846 = vshll.u32 %v1757, 16
  %v1848 = vrot.slane %v1846, 5
  %v1849 = vsel %vm335, %v1844, %v1848
  %v1851 = vshrl.u32 %v1758, 16
  %v1853 = vrot.slane %v1851, 4
  %v1854 = vshll.u32 %v1758, 16
  %v1856 = vrot.slane %v1854, 5
  %v1857 = vor.u32 %v1853, %v1856
  %v1858 = vrot.slane %v1857, 4
  %v1860 = vshll.u32 %v1759, 16
  %v1862 = vrot.slane %v1860, 5
  %v1863 = vsel %vm335, %v1858, %v1862
  %v1865 = vshrl.u32 %v1760, 16
  %v1867 = vrot.slane %v1865, 4
  %v1868 = vshll.u32 %v1760, 16
  %v1870 = vrot.slane %v1868, 5
  %v1871 = vor.u32 %v1867, %v1870
  %v1872 = vrot.slane %v1871, 4
  %v1874 = vshll.u32 %v1761, 16
  %v1876 = vrot.slane %v1874, 5
  %v1877 = vsel %vm335, %v1872, %v1876
  %v1879 = vshrl.u32 %v1762, 16
  %v1881 = vrot.slane %v1879, 4
  %v1882 = vshll.u32 %v1762, 16
  %v1884 = vrot.slane %v1882, 5
  %v1885 = vor.u32 %v1881, %v1884
  %v1886 = vrot.slane %v1885, 4
  %v1888 = vshll.u32 %v1763, 16
  %v1890 = vrot.slane %v1888, 5
  %v1891 = vsel %vm335, %v1886, %v1890
  %v1893 = vshrl.u32 %v1764, 16
  %v1895 = vrot.slane %v1893, 4
  %v1896 = vshll.u32 %v1764, 16
  %v1898 = vrot.slane %v1896, 5
  %v1899 = vor.u32 %v1895, %v1898
  %v1900 = vrot.slane %v1899, 4
  %v1902 = vshll.u32 %v1765, 16
  %v1904 = vrot.slane %v1902, 5
  %v1905 = vsel %vm335, %v1900, %v1904
  %v1907 = vshrl.u32 %v1766, 16
  %v1909 = vrot.slane %v1907, 4
  %v1910 = vshll.u32 %v1766, 16
  %v1912 = vrot.slane %v1910, 5
  %v1913 = vor.u32 %v1909, %v1912
  %v1914 = vrot.slane %v1913, 4
  %v1916 = vshll.u32 %v1767, 16
  %v1918 = vrot.slane %v1916, 5
  %v1919 = vsel %vm335, %v1914, %v1918
  %v1921 = vshrl.u32 %v1768, 16
  %v1923 = vrot.slane %v1921, 4
  %v1924 = vshll.u32 %v1768, 16
  %v1926 = vrot.slane %v1924, 5
  %v1927 = vor.u32 %v1923, %v1926
  %v1928 = vrot.slane %v1927, 4
  %v1930 = vshll.u32 %v1769, 16
  %v1932 = vrot.slane %v1930, 5
  %v1933 = vsel %vm335, %v1928, %v1932
  %v1935 = vshrl.u32 %v1770, 16
  %v1937 = vrot.slane %v1935, 4
  %v1938 = vshll.u32 %v1770, 16
  %v1940 = vrot.slane %v1938, 5
  %v1941 = vor.u32 %v1937, %v1940
  %v1942 = vrot.slane %v1941, 4
  %v1944 = vshll.u32 %v1771, 16
  %v1946 = vrot.slane %v1944, 5
  %v1947 = vsel %vm335, %v1942, %v1946
  %v1949 = vshrl.u32 %v1772, 16
  %v1951 = vrot.slane %v1949, 4
  %v1952 = vshll.u32 %v1772, 16
  %v1954 = vrot.slane %v1952, 5
  %v1955 = vor.u32 %v1951, %v1954
  %v1956 = vrot.slane %v1955, 4
  %v1958 = vshll.u32 %v1773, 16
  %v1960 = vrot.slane %v1958, 5
  %v1961 = vsel %vm335, %v1956, %v1960
  %v1963 = vshrl.u32 %v1774, 16
  %v1965 = vrot.slane %v1963, 4
  %v1966 = vshll.u32 %v1774, 16
  %v1968 = vrot.slane %v1966, 5
  %v1969 = vor.u32 %v1965, %v1968
  %v1970 = vrot.slane %v1969, 4
  %v1972 = vshll.u32 %v1775, 16
  %v1974 = vrot.slane %v1972, 5
  %v1975 = vsel %vm335, %v1970, %v1974
  %v1977 = vshrl.u32 %v1776, 16
  %v1979 = vrot.slane %v1977, 4
  %v1980 = vshll.u32 %v1776, 16
  %v1982 = vrot.slane %v1980, 5
  %v1983 = vor.u32 %v1979, %v1982
  %v1984 = vrot.slane %v1983, 4
  %v1986 = vshll.u32 %v1777, 16
  %v1988 = vrot.slane %v1986, 5
  %v1989 = vsel %vm335, %v1984, %v1988
  %v1991 = vshrl.u32 %v1778, 16
  %v1993 = vrot.slane %v1991, 4
  %v1994 = vshll.u32 %v1778, 16
  %v1996 = vrot.slane %v1994, 5
  %v1997 = vor.u32 %v1993, %v1996
  %v1998 = vrot.slane %v1997, 4
  %v2000 = vshll.u32 %v1779, 16
  %v2002 = vrot.slane %v2000, 5
  %v2003 = vsel %vm335, %v1998, %v2002
  %s2004 = scalar_lea.vmem %s1, 56
  %v2005 = vld [vmem:[%s2004] sm:$0xf]
  %v2006 = vld [vmem:[%s2004 + $0x4] sm:$0xf]
  %v2007 = vunpack.c.l.b16 %v1793
  %v2008 = vunpack.c.l.b16 %v1807
  %v2009 = vunpack.c.l.b16 %v1821
  %v2010 = vunpack.c.l.b16 %v1835
  %v2011 = vunpack.c.l.b16 %v1849
  %v2012 = vunpack.c.l.b16 %v1863
  %v2013 = vunpack.c.l.b16 %v1877
  %v2014 = vunpack.c.l.b16 %v1891
  %v2015 = vunpack.c.l.b16 %v1905
  %v2016 = vunpack.c.l.b16 %v1919
  %v2017 = vunpack.c.l.b16 %v1933
  %v2018 = vunpack.c.l.b16 %v1947
  %v2019 = vunpack.c.l.b16 %v1961
  %v2020 = vunpack.c.l.b16 %v1975
  %v2021 = vunpack.c.l.b16 %v1989
  %v2022 = vunpack.c.l.b16 %v2003
  %v2023 = vpack.c.b16 %v2008, %v2007
  %v2024 = vpack.c.b16 %v2010, %v2009
  %v2025 = vpack.c.b16 %v2012, %v2011
  %v2026 = vpack.c.b16 %v2014, %v2013
  %v2027 = vpack.c.b16 %v2016, %v2015
  %v2028 = vpack.c.b16 %v2018, %v2017
  %v2029 = vpack.c.b16 %v2020, %v2019
  %v2030 = vpack.c.b16 %v2022, %v2021
  %v2033 = vunpack.c.l.b16 %v2005
  %v2034 = vunpack.c.l.b16 %v2006
  %v2035 = vpack.c.b16 %v2034, %v2033
  %v2038 = vsel %vm108, %v2023, 0
  %v2041 = vsel %vm108, %v2024, 0
  %v2044 = vsel %vm108, %v2025, 0
  %v2047 = vsel %vm108, %v2026, 0
  %v2050 = vsel %vm108, %v2027, 0
  %v2053 = vsel %vm108, %v2028, 0
  %v2056 = vsel %vm108, %v2029, 0
  %v2059 = vsel %vm108, %v2030, 0
  %2061 = vmatpush.bf16.msra.mxu0 0
  %2062 = vmatpush.bf16.msra.mxu0 0
  %2063 = vmatpush.bf16.msra.mxu0 0
  %2064 = vmatpush.bf16.msra.mxu0 0
  %2065 = vmatpush.bf16.msra.mxu0 0
  %2066 = vmatpush.bf16.msra.mxu0 0
  %2067 = vmatpush.bf16.msra.mxu0 0
  %2068 = vmatpush.bf16.msra.mxu0 %v2035
  %2069 = vmatmul.bf16.gmra.mxu0 %v2038
  %v2070 = vpop.f32.mrf.mxu0
  %v2071 = vadd.f32 0.0, %v2070
  %v2072 = vpop.f32.mrf.mxu0
  %v2073 = vadd.f32 0.0, %v2072
  %2074 = vmatmul.bf16.gmra.mxu0 %v2041
  %v2075 = vpop.f32.mrf.mxu0
  %v2076 = vadd.f32 0.0, %v2075
  %v2077 = vpop.f32.mrf.mxu0
  %v2078 = vadd.f32 0.0, %v2077
  %2079 = vmatmul.bf16.gmra.mxu0 %v2044
  %v2080 = vpop.f32.mrf.mxu0
  %v2081 = vadd.f32 0.0, %v2080
  %v2082 = vpop.f32.mrf.mxu0
  %v2083 = vadd.f32 0.0, %v2082
  %2084 = vmatmul.bf16.gmra.mxu0 %v2047
  %v2085 = vpop.f32.mrf.mxu0
  %v2086 = vadd.f32 0.0, %v2085
  %v2087 = vpop.f32.mrf.mxu0
  %v2088 = vadd.f32 0.0, %v2087
  %2089 = vmatmul.bf16.gmra.mxu0 %v2050
  %v2090 = vpop.f32.mrf.mxu0
  %v2091 = vadd.f32 0.0, %v2090
  %v2092 = vpop.f32.mrf.mxu0
  %v2093 = vadd.f32 0.0, %v2092
  %2094 = vmatmul.bf16.gmra.mxu0 %v2053
  %v2095 = vpop.f32.mrf.mxu0
  %v2096 = vadd.f32 0.0, %v2095
  %v2097 = vpop.f32.mrf.mxu0
  %v2098 = vadd.f32 0.0, %v2097
  %2099 = vmatmul.bf16.gmra.mxu0 %v2056
  %v2100 = vpop.f32.mrf.mxu0
  %v2101 = vadd.f32 0.0, %v2100
  %v2102 = vpop.f32.mrf.mxu0
  %v2103 = vadd.f32 0.0, %v2102
  %2104 = vmatmul.bf16.gmra.mxu0 %v2059
  %v2105 = vpop.f32.mrf.mxu0
  %v2106 = vadd.f32 0.0, %v2105
  %v2107 = vpop.f32.mrf.mxu0
  %v2108 = vadd.f32 0.0, %v2107
  %2109 = vdwg.mxu0
  %v2110 = vadd.f32 %v1732, %v2071
  %v2111 = vadd.f32 %v1733, %v2073
  %v2112 = vadd.f32 %v1734, %v2076
  %v2113 = vadd.f32 %v1735, %v2078
  %v2114 = vadd.f32 %v1736, %v2081
  %v2115 = vadd.f32 %v1737, %v2083
  %v2116 = vadd.f32 %v1738, %v2086
  %v2117 = vadd.f32 %v1739, %v2088
  %v2118 = vadd.f32 %v1740, %v2091
  %v2119 = vadd.f32 %v1741, %v2093
  %v2120 = vadd.f32 %v1742, %v2096
  %v2121 = vadd.f32 %v1743, %v2098
  %v2122 = vadd.f32 %v1744, %v2101
  %v2123 = vadd.f32 %v1745, %v2103
  %v2124 = vadd.f32 %v1746, %v2106
  %v2125 = vadd.f32 %v1747, %v2108
  %s2126 = scalar_lea.vmem %s0, 8
  %v2127 = vld [vmem:[%s2126] sm:$0xf]
  %v2128 = vld [vmem:[%s2126 + $0x8] sm:$0xf]
  %v2129 = vld [vmem:[%s2126 + $0x10] sm:$0xf]
  %v2130 = vld [vmem:[%s2126 + $0x18] sm:$0xf]
  %v2131 = vld [vmem:[%s2126 + $0x20] sm:$0xf]
  %v2132 = vld [vmem:[%s2126 + $0x28] sm:$0xf]
  %v2133 = vld [vmem:[%s2126 + $0x30] sm:$0xf]
  %v2134 = vld [vmem:[%s2126 + $0x38] sm:$0xf]
  %v2135 = vld [vmem:[%s2126 + $0x120] sm:$0xf]
  %v2136 = vld [vmem:[%s2126 + $0x128] sm:$0xf]
  %v2137 = vld [vmem:[%s2126 + $0x130] sm:$0xf]
  %v2138 = vld [vmem:[%s2126 + $0x138] sm:$0xf]
  %v2139 = vld [vmem:[%s2126 + $0x140] sm:$0xf]
  %v2140 = vld [vmem:[%s2126 + $0x148] sm:$0xf]
  %v2141 = vld [vmem:[%s2126 + $0x150] sm:$0xf]
  %v2142 = vld [vmem:[%s2126 + $0x158] sm:$0xf]
  %s2143 = scalar_lea.vmem %s1, 64
  %v2144 = vld [vmem:[%s2143] sm:$0xf]
  %v2145 = vld [vmem:[%s2143 + $0x4] sm:$0xf]
  %v2162 = vunpack.c.l.b16 %v2127
  %v2163 = vunpack.c.l.b16 %v2128
  %v2164 = vunpack.c.l.b16 %v2129
  %v2165 = vunpack.c.l.b16 %v2130
  %v2166 = vunpack.c.l.b16 %v2131
  %v2167 = vunpack.c.l.b16 %v2132
  %v2168 = vunpack.c.l.b16 %v2133
  %v2169 = vunpack.c.l.b16 %v2134
  %v2170 = vunpack.c.l.b16 %v2135
  %v2171 = vunpack.c.l.b16 %v2136
  %v2172 = vunpack.c.l.b16 %v2137
  %v2173 = vunpack.c.l.b16 %v2138
  %v2174 = vunpack.c.l.b16 %v2139
  %v2175 = vunpack.c.l.b16 %v2140
  %v2176 = vunpack.c.l.b16 %v2141
  %v2177 = vunpack.c.l.b16 %v2142
  %v2178 = vpack.c.b16 %v2163, %v2162
  %v2179 = vpack.c.b16 %v2165, %v2164
  %v2180 = vpack.c.b16 %v2167, %v2166
  %v2181 = vpack.c.b16 %v2169, %v2168
  %v2182 = vpack.c.b16 %v2171, %v2170
  %v2183 = vpack.c.b16 %v2173, %v2172
  %v2184 = vpack.c.b16 %v2175, %v2174
  %v2185 = vpack.c.b16 %v2177, %v2176
  %v2188 = vunpack.c.l.b16 %v2144
  %v2189 = vunpack.c.l.b16 %v2145
  %v2190 = vpack.c.b16 %v2189, %v2188
  %v2193 = vsel %vm108, %v2178, 0
  %v2196 = vsel %vm108, %v2179, 0
  %v2199 = vsel %vm108, %v2180, 0
  %v2202 = vsel %vm108, %v2181, 0
  %v2205 = vsel %vm108, %v2182, 0
  %v2208 = vsel %vm108, %v2183, 0
  %v2211 = vsel %vm108, %v2184, 0
  %v2214 = vsel %vm108, %v2185, 0
  %2216 = vmatpush.bf16.msra.mxu0 0
  %2217 = vmatpush.bf16.msra.mxu0 0
  %2218 = vmatpush.bf16.msra.mxu0 0
  %2219 = vmatpush.bf16.msra.mxu0 0
  %2220 = vmatpush.bf16.msra.mxu0 0
  %2221 = vmatpush.bf16.msra.mxu0 0
  %2222 = vmatpush.bf16.msra.mxu0 0
  %2223 = vmatpush.bf16.msra.mxu0 %v2190
  %2224 = vmatmul.bf16.gmra.mxu0 %v2193
  %v2225 = vpop.f32.mrf.mxu0
  %v2226 = vadd.f32 0.0, %v2225
  %v2227 = vpop.f32.mrf.mxu0
  %v2228 = vadd.f32 0.0, %v2227
  %2229 = vmatmul.bf16.gmra.mxu0 %v2196
  %v2230 = vpop.f32.mrf.mxu0
  %v2231 = vadd.f32 0.0, %v2230
  %v2232 = vpop.f32.mrf.mxu0
  %v2233 = vadd.f32 0.0, %v2232
  %2234 = vmatmul.bf16.gmra.mxu0 %v2199
  %v2235 = vpop.f32.mrf.mxu0
  %v2236 = vadd.f32 0.0, %v2235
  %v2237 = vpop.f32.mrf.mxu0
  %v2238 = vadd.f32 0.0, %v2237
  %2239 = vmatmul.bf16.gmra.mxu0 %v2202
  %v2240 = vpop.f32.mrf.mxu0
  %v2241 = vadd.f32 0.0, %v2240
  %v2242 = vpop.f32.mrf.mxu0
  %v2243 = vadd.f32 0.0, %v2242
  %2244 = vmatmul.bf16.gmra.mxu0 %v2205
  %v2245 = vpop.f32.mrf.mxu0
  %v2246 = vadd.f32 0.0, %v2245
  %v2247 = vpop.f32.mrf.mxu0
  %v2248 = vadd.f32 0.0, %v2247
  %2249 = vmatmul.bf16.gmra.mxu0 %v2208
  %v2250 = vpop.f32.mrf.mxu0
  %v2251 = vadd.f32 0.0, %v2250
  %v2252 = vpop.f32.mrf.mxu0
  %v2253 = vadd.f32 0.0, %v2252
  %2254 = vmatmul.bf16.gmra.mxu0 %v2211
  %v2255 = vpop.f32.mrf.mxu0
  %v2256 = vadd.f32 0.0, %v2255
  %v2257 = vpop.f32.mrf.mxu0
  %v2258 = vadd.f32 0.0, %v2257
  %2259 = vmatmul.bf16.gmra.mxu0 %v2214
  %v2260 = vpop.f32.mrf.mxu0
  %v2261 = vadd.f32 0.0, %v2260
  %v2262 = vpop.f32.mrf.mxu0
  %v2263 = vadd.f32 0.0, %v2262
  %2264 = vdwg.mxu0
  %v2265 = vadd.f32 %v2110, %v2226
  %v2266 = vadd.f32 %v2111, %v2228
  %v2267 = vadd.f32 %v2112, %v2231
  %v2268 = vadd.f32 %v2113, %v2233
  %v2269 = vadd.f32 %v2114, %v2236
  %v2270 = vadd.f32 %v2115, %v2238
  %v2271 = vadd.f32 %v2116, %v2241
  %v2272 = vadd.f32 %v2117, %v2243
  %v2273 = vadd.f32 %v2118, %v2246
  %v2274 = vadd.f32 %v2119, %v2248
  %v2275 = vadd.f32 %v2120, %v2251
  %v2276 = vadd.f32 %v2121, %v2253
  %v2277 = vadd.f32 %v2122, %v2256
  %v2278 = vadd.f32 %v2123, %v2258
  %v2279 = vadd.f32 %v2124, %v2261
  %v2280 = vadd.f32 %v2125, %v2263
  %s2281 = scalar_lea.vmem %s0, 80
  %v2282 = vld [vmem:[%s2281] sm:$0xf]
  %v2283 = vld [vmem:[%s2281 + $0x8] sm:$0xf]
  %v2284 = vld [vmem:[%s2281 + $0x10] sm:$0xf]
  %v2285 = vld [vmem:[%s2281 + $0x18] sm:$0xf]
  %v2286 = vld [vmem:[%s2281 + $0x20] sm:$0xf]
  %v2287 = vld [vmem:[%s2281 + $0x28] sm:$0xf]
  %v2288 = vld [vmem:[%s2281 + $0x30] sm:$0xf]
  %v2289 = vld [vmem:[%s2281 + $0x38] sm:$0xf]
  %v2290 = vld [vmem:[%s2281 + $0x120] sm:$0xf]
  %v2291 = vld [vmem:[%s2281 + $0x128] sm:$0xf]
  %v2292 = vld [vmem:[%s2281 + $0x130] sm:$0xf]
  %v2293 = vld [vmem:[%s2281 + $0x138] sm:$0xf]
  %v2294 = vld [vmem:[%s2281 + $0x140] sm:$0xf]
  %v2295 = vld [vmem:[%s2281 + $0x148] sm:$0xf]
  %v2296 = vld [vmem:[%s2281 + $0x150] sm:$0xf]
  %v2297 = vld [vmem:[%s2281 + $0x158] sm:$0xf]
  %s2298 = scalar_lea.vmem %s1, 72
  %v2299 = vld [vmem:[%s2298] sm:$0xf]
  %v2300 = vld [vmem:[%s2298 + $0x4] sm:$0xf]
  %v2317 = vunpack.c.l.b16 %v2282
  %v2318 = vunpack.c.l.b16 %v2283
  %v2319 = vunpack.c.l.b16 %v2284
  %v2320 = vunpack.c.l.b16 %v2285
  %v2321 = vunpack.c.l.b16 %v2286
  %v2322 = vunpack.c.l.b16 %v2287
  %v2323 = vunpack.c.l.b16 %v2288
  %v2324 = vunpack.c.l.b16 %v2289
  %v2325 = vunpack.c.l.b16 %v2290
  %v2326 = vunpack.c.l.b16 %v2291
  %v2327 = vunpack.c.l.b16 %v2292
  %v2328 = vunpack.c.l.b16 %v2293
  %v2329 = vunpack.c.l.b16 %v2294
  %v2330 = vunpack.c.l.b16 %v2295
  %v2331 = vunpack.c.l.b16 %v2296
  %v2332 = vunpack.c.l.b16 %v2297
  %v2333 = vpack.c.b16 %v2318, %v2317
  %v2334 = vpack.c.b16 %v2320, %v2319
  %v2335 = vpack.c.b16 %v2322, %v2321
  %v2336 = vpack.c.b16 %v2324, %v2323
  %v2337 = vpack.c.b16 %v2326, %v2325
  %v2338 = vpack.c.b16 %v2328, %v2327
  %v2339 = vpack.c.b16 %v2330, %v2329
  %v2340 = vpack.c.b16 %v2332, %v2331
  %v2343 = vunpack.c.l.b16 %v2299
  %v2344 = vunpack.c.l.b16 %v2300
  %v2345 = vpack.c.b16 %v2344, %v2343
  %v2348 = vsel %vm108, %v2333, 0
  %v2351 = vsel %vm108, %v2334, 0
  %v2354 = vsel %vm108, %v2335, 0
  %v2357 = vsel %vm108, %v2336, 0
  %v2360 = vsel %vm108, %v2337, 0
  %v2363 = vsel %vm108, %v2338, 0
  %v2366 = vsel %vm108, %v2339, 0
  %v2369 = vsel %vm108, %v2340, 0
  %2371 = vmatpush.bf16.msra.mxu0 0
  %2372 = vmatpush.bf16.msra.mxu0 0
  %2373 = vmatpush.bf16.msra.mxu0 0
  %2374 = vmatpush.bf16.msra.mxu0 0
  %2375 = vmatpush.bf16.msra.mxu0 0
  %2376 = vmatpush.bf16.msra.mxu0 0
  %2377 = vmatpush.bf16.msra.mxu0 0
  %2378 = vmatpush.bf16.msra.mxu0 %v2345
  %2379 = vmatmul.bf16.gmra.mxu0 %v2348
  %v2380 = vpop.f32.mrf.mxu0
  %v2381 = vadd.f32 0.0, %v2380
  %v2382 = vpop.f32.mrf.mxu0
  %v2383 = vadd.f32 0.0, %v2382
  %2384 = vmatmul.bf16.gmra.mxu0 %v2351
  %v2385 = vpop.f32.mrf.mxu0
  %v2386 = vadd.f32 0.0, %v2385
  %v2387 = vpop.f32.mrf.mxu0
  %v2388 = vadd.f32 0.0, %v2387
  %2389 = vmatmul.bf16.gmra.mxu0 %v2354
  %v2390 = vpop.f32.mrf.mxu0
  %v2391 = vadd.f32 0.0, %v2390
  %v2392 = vpop.f32.mrf.mxu0
  %v2393 = vadd.f32 0.0, %v2392
  %2394 = vmatmul.bf16.gmra.mxu0 %v2357
  %v2395 = vpop.f32.mrf.mxu0
  %v2396 = vadd.f32 0.0, %v2395
  %v2397 = vpop.f32.mrf.mxu0
  %v2398 = vadd.f32 0.0, %v2397
  %2399 = vmatmul.bf16.gmra.mxu0 %v2360
  %v2400 = vpop.f32.mrf.mxu0
  %v2401 = vadd.f32 0.0, %v2400
  %v2402 = vpop.f32.mrf.mxu0
  %v2403 = vadd.f32 0.0, %v2402
  %2404 = vmatmul.bf16.gmra.mxu0 %v2363
  %v2405 = vpop.f32.mrf.mxu0
  %v2406 = vadd.f32 0.0, %v2405
  %v2407 = vpop.f32.mrf.mxu0
  %v2408 = vadd.f32 0.0, %v2407
  %2409 = vmatmul.bf16.gmra.mxu0 %v2366
  %v2410 = vpop.f32.mrf.mxu0
  %v2411 = vadd.f32 0.0, %v2410
  %v2412 = vpop.f32.mrf.mxu0
  %v2413 = vadd.f32 0.0, %v2412
  %2414 = vmatmul.bf16.gmra.mxu0 %v2369
  %v2415 = vpop.f32.mrf.mxu0
  %v2416 = vadd.f32 0.0, %v2415
  %v2417 = vpop.f32.mrf.mxu0
  %v2418 = vadd.f32 0.0, %v2417
  %2419 = vdwg.mxu0
  %v2420 = vadd.f32 %v2265, %v2381
  %v2421 = vadd.f32 %v2266, %v2383
  %v2422 = vadd.f32 %v2267, %v2386
  %v2423 = vadd.f32 %v2268, %v2388
  %v2424 = vadd.f32 %v2269, %v2391
  %v2425 = vadd.f32 %v2270, %v2393
  %v2426 = vadd.f32 %v2271, %v2396
  %v2427 = vadd.f32 %v2272, %v2398
  %v2428 = vadd.f32 %v2273, %v2401
  %v2429 = vadd.f32 %v2274, %v2403
  %v2430 = vadd.f32 %v2275, %v2406
  %v2431 = vadd.f32 %v2276, %v2408
  %v2432 = vadd.f32 %v2277, %v2411
  %v2433 = vadd.f32 %v2278, %v2413
  %v2434 = vadd.f32 %v2279, %v2416
  %v2435 = vadd.f32 %v2280, %v2418
  %v2436 = vld [vmem:[%s2126] sm:$0xf]
  %v2437 = vld [vmem:[%s2126 + $0x4] sm:$0x1]
  %v2438 = vld [vmem:[%s2126 + $0x8] sm:$0xf]
  %v2439 = vld [vmem:[%s2126 + $0xc] sm:$0x1]
  %v2440 = vld [vmem:[%s2126 + $0x10] sm:$0xf]
  %v2441 = vld [vmem:[%s2126 + $0x14] sm:$0x1]
  %v2442 = vld [vmem:[%s2126 + $0x18] sm:$0xf]
  %v2443 = vld [vmem:[%s2126 + $0x1c] sm:$0x1]
  %v2444 = vld [vmem:[%s2126 + $0x20] sm:$0xf]
  %v2445 = vld [vmem:[%s2126 + $0x24] sm:$0x1]
  %v2446 = vld [vmem:[%s2126 + $0x28] sm:$0xf]
  %v2447 = vld [vmem:[%s2126 + $0x2c] sm:$0x1]
  %v2448 = vld [vmem:[%s2126 + $0x30] sm:$0xf]
  %v2449 = vld [vmem:[%s2126 + $0x34] sm:$0x1]
  %v2450 = vld [vmem:[%s2126 + $0x38] sm:$0xf]
  %v2451 = vld [vmem:[%s2126 + $0x3c] sm:$0x1]
  %v2452 = vld [vmem:[%s2126 + $0x120] sm:$0xf]
  %v2453 = vld [vmem:[%s2126 + $0x124] sm:$0x1]
  %v2454 = vld [vmem:[%s2126 + $0x128] sm:$0xf]
  %v2455 = vld [vmem:[%s2126 + $0x12c] sm:$0x1]
  %v2456 = vld [vmem:[%s2126 + $0x130] sm:$0xf]
  %v2457 = vld [vmem:[%s2126 + $0x134] sm:$0x1]
  %v2458 = vld [vmem:[%s2126 + $0x138] sm:$0xf]
  %v2459 = vld [vmem:[%s2126 + $0x13c] sm:$0x1]
  %v2460 = vld [vmem:[%s2126 + $0x140] sm:$0xf]
  %v2461 = vld [vmem:[%s2126 + $0x144] sm:$0x1]
  %v2462 = vld [vmem:[%s2126 + $0x148] sm:$0xf]
  %v2463 = vld [vmem:[%s2126 + $0x14c] sm:$0x1]
  %v2464 = vld [vmem:[%s2126 + $0x150] sm:$0xf]
  %v2465 = vld [vmem:[%s2126 + $0x154] sm:$0x1]
  %v2466 = vld [vmem:[%s2126 + $0x158] sm:$0xf]
  %v2467 = vld [vmem:[%s2126 + $0x15c] sm:$0x1]
  %v2469 = vshrl.u32 %v2436, 16
  %v2471 = vrot.slane %v2469, 4
  %v2472 = vshll.u32 %v2436, 16
  %v2474 = vrot.slane %v2472, 5
  %v2475 = vor.u32 %v2471, %v2474
  %v2476 = vrot.slane %v2475, 4
  %v2478 = vshll.u32 %v2437, 16
  %v2480 = vrot.slane %v2478, 5
  %v2481 = vsel %vm335, %v2476, %v2480
  %v2483 = vshrl.u32 %v2438, 16
  %v2485 = vrot.slane %v2483, 4
  %v2486 = vshll.u32 %v2438, 16
  %v2488 = vrot.slane %v2486, 5
  %v2489 = vor.u32 %v2485, %v2488
  %v2490 = vrot.slane %v2489, 4
  %v2492 = vshll.u32 %v2439, 16
  %v2494 = vrot.slane %v2492, 5
  %v2495 = vsel %vm335, %v2490, %v2494
  %v2497 = vshrl.u32 %v2440, 16
  %v2499 = vrot.slane %v2497, 4
  %v2500 = vshll.u32 %v2440, 16
  %v2502 = vrot.slane %v2500, 5
  %v2503 = vor.u32 %v2499, %v2502
  %v2504 = vrot.slane %v2503, 4
  %v2506 = vshll.u32 %v2441, 16
  %v2508 = vrot.slane %v2506, 5
  %v2509 = vsel %vm335, %v2504, %v2508
  %v2511 = vshrl.u32 %v2442, 16
  %v2513 = vrot.slane %v2511, 4
  %v2514 = vshll.u32 %v2442, 16
  %v2516 = vrot.slane %v2514, 5
  %v2517 = vor.u32 %v2513, %v2516
  %v2518 = vrot.slane %v2517, 4
  %v2520 = vshll.u32 %v2443, 16
  %v2522 = vrot.slane %v2520, 5
  %v2523 = vsel %vm335, %v2518, %v2522
  %v2525 = vshrl.u32 %v2444, 16
  %v2527 = vrot.slane %v2525, 4
  %v2528 = vshll.u32 %v2444, 16
  %v2530 = vrot.slane %v2528, 5
  %v2531 = vor.u32 %v2527, %v2530
  %v2532 = vrot.slane %v2531, 4
  %v2534 = vshll.u32 %v2445, 16
  %v2536 = vrot.slane %v2534, 5
  %v2537 = vsel %vm335, %v2532, %v2536
  %v2539 = vshrl.u32 %v2446, 16
  %v2541 = vrot.slane %v2539, 4
  %v2542 = vshll.u32 %v2446, 16
  %v2544 = vrot.slane %v2542, 5
  %v2545 = vor.u32 %v2541, %v2544
  %v2546 = vrot.slane %v2545, 4
  %v2548 = vshll.u32 %v2447, 16
  %v2550 = vrot.slane %v2548, 5
  %v2551 = vsel %vm335, %v2546, %v2550
  %v2553 = vshrl.u32 %v2448, 16
  %v2555 = vrot.slane %v2553, 4
  %v2556 = vshll.u32 %v2448, 16
  %v2558 = vrot.slane %v2556, 5
  %v2559 = vor.u32 %v2555, %v2558
  %v2560 = vrot.slane %v2559, 4
  %v2562 = vshll.u32 %v2449, 16
  %v2564 = vrot.slane %v2562, 5
  %v2565 = vsel %vm335, %v2560, %v2564
  %v2567 = vshrl.u32 %v2450, 16
  %v2569 = vrot.slane %v2567, 4
  %v2570 = vshll.u32 %v2450, 16
  %v2572 = vrot.slane %v2570, 5
  %v2573 = vor.u32 %v2569, %v2572
  %v2574 = vrot.slane %v2573, 4
  %v2576 = vshll.u32 %v2451, 16
  %v2578 = vrot.slane %v2576, 5
  %v2579 = vsel %vm335, %v2574, %v2578
  %v2581 = vshrl.u32 %v2452, 16
  %v2583 = vrot.slane %v2581, 4
  %v2584 = vshll.u32 %v2452, 16
  %v2586 = vrot.slane %v2584, 5
  %v2587 = vor.u32 %v2583, %v2586
  %v2588 = vrot.slane %v2587, 4
  %v2590 = vshll.u32 %v2453, 16
  %v2592 = vrot.slane %v2590, 5
  %v2593 = vsel %vm335, %v2588, %v2592
  %v2595 = vshrl.u32 %v2454, 16
  %v2597 = vrot.slane %v2595, 4
  %v2598 = vshll.u32 %v2454, 16
  %v2600 = vrot.slane %v2598, 5
  %v2601 = vor.u32 %v2597, %v2600
  %v2602 = vrot.slane %v2601, 4
  %v2604 = vshll.u32 %v2455, 16
  %v2606 = vrot.slane %v2604, 5
  %v2607 = vsel %vm335, %v2602, %v2606
  %v2609 = vshrl.u32 %v2456, 16
  %v2611 = vrot.slane %v2609, 4
  %v2612 = vshll.u32 %v2456, 16
  %v2614 = vrot.slane %v2612, 5
  %v2615 = vor.u32 %v2611, %v2614
  %v2616 = vrot.slane %v2615, 4
  %v2618 = vshll.u32 %v2457, 16
  %v2620 = vrot.slane %v2618, 5
  %v2621 = vsel %vm335, %v2616, %v2620
  %v2623 = vshrl.u32 %v2458, 16
  %v2625 = vrot.slane %v2623, 4
  %v2626 = vshll.u32 %v2458, 16
  %v2628 = vrot.slane %v2626, 5
  %v2629 = vor.u32 %v2625, %v2628
  %v2630 = vrot.slane %v2629, 4
  %v2632 = vshll.u32 %v2459, 16
  %v2634 = vrot.slane %v2632, 5
  %v2635 = vsel %vm335, %v2630, %v2634
  %v2637 = vshrl.u32 %v2460, 16
  %v2639 = vrot.slane %v2637, 4
  %v2640 = vshll.u32 %v2460, 16
  %v2642 = vrot.slane %v2640, 5
  %v2643 = vor.u32 %v2639, %v2642
  %v2644 = vrot.slane %v2643, 4
  %v2646 = vshll.u32 %v2461, 16
  %v2648 = vrot.slane %v2646, 5
  %v2649 = vsel %vm335, %v2644, %v2648
  %v2651 = vshrl.u32 %v2462, 16
  %v2653 = vrot.slane %v2651, 4
  %v2654 = vshll.u32 %v2462, 16
  %v2656 = vrot.slane %v2654, 5
  %v2657 = vor.u32 %v2653, %v2656
  %v2658 = vrot.slane %v2657, 4
  %v2660 = vshll.u32 %v2463, 16
  %v2662 = vrot.slane %v2660, 5
  %v2663 = vsel %vm335, %v2658, %v2662
  %v2665 = vshrl.u32 %v2464, 16
  %v2667 = vrot.slane %v2665, 4
  %v2668 = vshll.u32 %v2464, 16
  %v2670 = vrot.slane %v2668, 5
  %v2671 = vor.u32 %v2667, %v2670
  %v2672 = vrot.slane %v2671, 4
  %v2674 = vshll.u32 %v2465, 16
  %v2676 = vrot.slane %v2674, 5
  %v2677 = vsel %vm335, %v2672, %v2676
  %v2679 = vshrl.u32 %v2466, 16
  %v2681 = vrot.slane %v2679, 4
  %v2682 = vshll.u32 %v2466, 16
  %v2684 = vrot.slane %v2682, 5
  %v2685 = vor.u32 %v2681, %v2684
  %v2686 = vrot.slane %v2685, 4
  %v2688 = vshll.u32 %v2467, 16
  %v2690 = vrot.slane %v2688, 5
  %v2691 = vsel %vm335, %v2686, %v2690
  %s2692 = scalar_lea.vmem %s1, 80
  %v2693 = vld [vmem:[%s2692] sm:$0xf]
  %v2694 = vld [vmem:[%s2692 + $0x4] sm:$0xf]
  %v2695 = vunpack.c.l.b16 %v2481
  %v2696 = vunpack.c.l.b16 %v2495
  %v2697 = vunpack.c.l.b16 %v2509
  %v2698 = vunpack.c.l.b16 %v2523
  %v2699 = vunpack.c.l.b16 %v2537
  %v2700 = vunpack.c.l.b16 %v2551
  %v2701 = vunpack.c.l.b16 %v2565
  %v2702 = vunpack.c.l.b16 %v2579
  %v2703 = vunpack.c.l.b16 %v2593
  %v2704 = vunpack.c.l.b16 %v2607
  %v2705 = vunpack.c.l.b16 %v2621
  %v2706 = vunpack.c.l.b16 %v2635
  %v2707 = vunpack.c.l.b16 %v2649
  %v2708 = vunpack.c.l.b16 %v2663
  %v2709 = vunpack.c.l.b16 %v2677
  %v2710 = vunpack.c.l.b16 %v2691
  %v2711 = vpack.c.b16 %v2696, %v2695
  %v2712 = vpack.c.b16 %v2698, %v2697
  %v2713 = vpack.c.b16 %v2700, %v2699
  %v2714 = vpack.c.b16 %v2702, %v2701
  %v2715 = vpack.c.b16 %v2704, %v2703
  %v2716 = vpack.c.b16 %v2706, %v2705
  %v2717 = vpack.c.b16 %v2708, %v2707
  %v2718 = vpack.c.b16 %v2710, %v2709
  %v2721 = vunpack.c.l.b16 %v2693
  %v2722 = vunpack.c.l.b16 %v2694
  %v2723 = vpack.c.b16 %v2722, %v2721
  %v2726 = vsel %vm108, %v2711, 0
  %v2729 = vsel %vm108, %v2712, 0
  %v2732 = vsel %vm108, %v2713, 0
  %v2735 = vsel %vm108, %v2714, 0
  %v2738 = vsel %vm108, %v2715, 0
  %v2741 = vsel %vm108, %v2716, 0
  %v2744 = vsel %vm108, %v2717, 0
  %v2747 = vsel %vm108, %v2718, 0
  %2749 = vmatpush.bf16.msra.mxu0 0
  %2750 = vmatpush.bf16.msra.mxu0 0
  %2751 = vmatpush.bf16.msra.mxu0 0
  %2752 = vmatpush.bf16.msra.mxu0 0
  %2753 = vmatpush.bf16.msra.mxu0 0
  %2754 = vmatpush.bf16.msra.mxu0 0
  %2755 = vmatpush.bf16.msra.mxu0 0
  %2756 = vmatpush.bf16.msra.mxu0 %v2723
  %2757 = vmatmul.bf16.gmra.mxu0 %v2726
  %v2758 = vpop.f32.mrf.mxu0
  %v2759 = vadd.f32 0.0, %v2758
  %v2760 = vpop.f32.mrf.mxu0
  %v2761 = vadd.f32 0.0, %v2760
  %2762 = vmatmul.bf16.gmra.mxu0 %v2729
  %v2763 = vpop.f32.mrf.mxu0
  %v2764 = vadd.f32 0.0, %v2763
  %v2765 = vpop.f32.mrf.mxu0
  %v2766 = vadd.f32 0.0, %v2765
  %2767 = vmatmul.bf16.gmra.mxu0 %v2732
  %v2768 = vpop.f32.mrf.mxu0
  %v2769 = vadd.f32 0.0, %v2768
  %v2770 = vpop.f32.mrf.mxu0
  %v2771 = vadd.f32 0.0, %v2770
  %2772 = vmatmul.bf16.gmra.mxu0 %v2735
  %v2773 = vpop.f32.mrf.mxu0
  %v2774 = vadd.f32 0.0, %v2773
  %v2775 = vpop.f32.mrf.mxu0
  %v2776 = vadd.f32 0.0, %v2775
  %2777 = vmatmul.bf16.gmra.mxu0 %v2738
  %v2778 = vpop.f32.mrf.mxu0
  %v2779 = vadd.f32 0.0, %v2778
  %v2780 = vpop.f32.mrf.mxu0
  %v2781 = vadd.f32 0.0, %v2780
  %2782 = vmatmul.bf16.gmra.mxu0 %v2741
  %v2783 = vpop.f32.mrf.mxu0
  %v2784 = vadd.f32 0.0, %v2783
  %v2785 = vpop.f32.mrf.mxu0
  %v2786 = vadd.f32 0.0, %v2785
  %2787 = vmatmul.bf16.gmra.mxu0 %v2744
  %v2788 = vpop.f32.mrf.mxu0
  %v2789 = vadd.f32 0.0, %v2788
  %v2790 = vpop.f32.mrf.mxu0
  %v2791 = vadd.f32 0.0, %v2790
  %2792 = vmatmul.bf16.gmra.mxu0 %v2747
  %v2793 = vpop.f32.mrf.mxu0
  %v2794 = vadd.f32 0.0, %v2793
  %v2795 = vpop.f32.mrf.mxu0
  %v2796 = vadd.f32 0.0, %v2795
  %2797 = vdwg.mxu0
  %v2798 = vadd.f32 %v2420, %v2759
  %v2799 = vadd.f32 %v2421, %v2761
  %v2800 = vadd.f32 %v2422, %v2764
  %v2801 = vadd.f32 %v2423, %v2766
  %v2802 = vadd.f32 %v2424, %v2769
  %v2803 = vadd.f32 %v2425, %v2771
  %v2804 = vadd.f32 %v2426, %v2774
  %v2805 = vadd.f32 %v2427, %v2776
  %v2806 = vadd.f32 %v2428, %v2779
  %v2807 = vadd.f32 %v2429, %v2781
  %v2808 = vadd.f32 %v2430, %v2784
  %v2809 = vadd.f32 %v2431, %v2786
  %v2810 = vadd.f32 %v2432, %v2789
  %v2811 = vadd.f32 %v2433, %v2791
  %v2812 = vadd.f32 %v2434, %v2794
  %v2813 = vadd.f32 %v2435, %v2796
  %v2814 = vld [vmem:[%s2281] sm:$0xf]
  %v2815 = vld [vmem:[%s2281 + $0x4] sm:$0x1]
  %v2816 = vld [vmem:[%s2281 + $0x8] sm:$0xf]
  %v2817 = vld [vmem:[%s2281 + $0xc] sm:$0x1]
  %v2818 = vld [vmem:[%s2281 + $0x10] sm:$0xf]
  %v2819 = vld [vmem:[%s2281 + $0x14] sm:$0x1]
  %v2820 = vld [vmem:[%s2281 + $0x18] sm:$0xf]
  %v2821 = vld [vmem:[%s2281 + $0x1c] sm:$0x1]
  %v2822 = vld [vmem:[%s2281 + $0x20] sm:$0xf]
  %v2823 = vld [vmem:[%s2281 + $0x24] sm:$0x1]
  %v2824 = vld [vmem:[%s2281 + $0x28] sm:$0xf]
  %v2825 = vld [vmem:[%s2281 + $0x2c] sm:$0x1]
  %v2826 = vld [vmem:[%s2281 + $0x30] sm:$0xf]
  %v2827 = vld [vmem:[%s2281 + $0x34] sm:$0x1]
  %v2828 = vld [vmem:[%s2281 + $0x38] sm:$0xf]
  %v2829 = vld [vmem:[%s2281 + $0x3c] sm:$0x1]
  %v2830 = vld [vmem:[%s2281 + $0x120] sm:$0xf]
  %v2831 = vld [vmem:[%s2281 + $0x124] sm:$0x1]
  %v2832 = vld [vmem:[%s2281 + $0x128] sm:$0xf]
  %v2833 = vld [vmem:[%s2281 + $0x12c] sm:$0x1]
  %v2834 = vld [vmem:[%s2281 + $0x130] sm:$0xf]
  %v2835 = vld [vmem:[%s2281 + $0x134] sm:$0x1]
  %v2836 = vld [vmem:[%s2281 + $0x138] sm:$0xf]
  %v2837 = vld [vmem:[%s2281 + $0x13c] sm:$0x1]
  %v2838 = vld [vmem:[%s2281 + $0x140] sm:$0xf]
  %v2839 = vld [vmem:[%s2281 + $0x144] sm:$0x1]
  %v2840 = vld [vmem:[%s2281 + $0x148] sm:$0xf]
  %v2841 = vld [vmem:[%s2281 + $0x14c] sm:$0x1]
  %v2842 = vld [vmem:[%s2281 + $0x150] sm:$0xf]
  %v2843 = vld [vmem:[%s2281 + $0x154] sm:$0x1]
  %v2844 = vld [vmem:[%s2281 + $0x158] sm:$0xf]
  %v2845 = vld [vmem:[%s2281 + $0x15c] sm:$0x1]
  %v2847 = vshrl.u32 %v2814, 16
  %v2849 = vrot.slane %v2847, 4
  %v2850 = vshll.u32 %v2814, 16
  %v2852 = vrot.slane %v2850, 5
  %v2853 = vor.u32 %v2849, %v2852
  %v2854 = vrot.slane %v2853, 4
  %v2856 = vshll.u32 %v2815, 16
  %v2858 = vrot.slane %v2856, 5
  %v2859 = vsel %vm335, %v2854, %v2858
  %v2861 = vshrl.u32 %v2816, 16
  %v2863 = vrot.slane %v2861, 4
  %v2864 = vshll.u32 %v2816, 16
  %v2866 = vrot.slane %v2864, 5
  %v2867 = vor.u32 %v2863, %v2866
  %v2868 = vrot.slane %v2867, 4
  %v2870 = vshll.u32 %v2817, 16
  %v2872 = vrot.slane %v2870, 5
  %v2873 = vsel %vm335, %v2868, %v2872
  %v2875 = vshrl.u32 %v2818, 16
  %v2877 = vrot.slane %v2875, 4
  %v2878 = vshll.u32 %v2818, 16
  %v2880 = vrot.slane %v2878, 5
  %v2881 = vor.u32 %v2877, %v2880
  %v2882 = vrot.slane %v2881, 4
  %v2884 = vshll.u32 %v2819, 16
  %v2886 = vrot.slane %v2884, 5
  %v2887 = vsel %vm335, %v2882, %v2886
  %v2889 = vshrl.u32 %v2820, 16
  %v2891 = vrot.slane %v2889, 4
  %v2892 = vshll.u32 %v2820, 16
  %v2894 = vrot.slane %v2892, 5
  %v2895 = vor.u32 %v2891, %v2894
  %v2896 = vrot.slane %v2895, 4
  %v2898 = vshll.u32 %v2821, 16
  %v2900 = vrot.slane %v2898, 5
  %v2901 = vsel %vm335, %v2896, %v2900
  %v2903 = vshrl.u32 %v2822, 16
  %v2905 = vrot.slane %v2903, 4
  %v2906 = vshll.u32 %v2822, 16
  %v2908 = vrot.slane %v2906, 5
  %v2909 = vor.u32 %v2905, %v2908
  %v2910 = vrot.slane %v2909, 4
  %v2912 = vshll.u32 %v2823, 16
  %v2914 = vrot.slane %v2912, 5
  %v2915 = vsel %vm335, %v2910, %v2914
  %v2917 = vshrl.u32 %v2824, 16
  %v2919 = vrot.slane %v2917, 4
  %v2920 = vshll.u32 %v2824, 16
  %v2922 = vrot.slane %v2920, 5
  %v2923 = vor.u32 %v2919, %v2922
  %v2924 = vrot.slane %v2923, 4
  %v2926 = vshll.u32 %v2825, 16
  %v2928 = vrot.slane %v2926, 5
  %v2929 = vsel %vm335, %v2924, %v2928
  %v2931 = vshrl.u32 %v2826, 16
  %v2933 = vrot.slane %v2931, 4
  %v2934 = vshll.u32 %v2826, 16
  %v2936 = vrot.slane %v2934, 5
  %v2937 = vor.u32 %v2933, %v2936
  %v2938 = vrot.slane %v2937, 4
  %v2940 = vshll.u32 %v2827, 16
  %v2942 = vrot.slane %v2940, 5
  %v2943 = vsel %vm335, %v2938, %v2942
  %v2945 = vshrl.u32 %v2828, 16
  %v2947 = vrot.slane %v2945, 4
  %v2948 = vshll.u32 %v2828, 16
  %v2950 = vrot.slane %v2948, 5
  %v2951 = vor.u32 %v2947, %v2950
  %v2952 = vrot.slane %v2951, 4
  %v2954 = vshll.u32 %v2829, 16
  %v2956 = vrot.slane %v2954, 5
  %v2957 = vsel %vm335, %v2952, %v2956
  %v2959 = vshrl.u32 %v2830, 16
  %v2961 = vrot.slane %v2959, 4
  %v2962 = vshll.u32 %v2830, 16
  %v2964 = vrot.slane %v2962, 5
  %v2965 = vor.u32 %v2961, %v2964
  %v2966 = vrot.slane %v2965, 4
  %v2968 = vshll.u32 %v2831, 16
  %v2970 = vrot.slane %v2968, 5
  %v2971 = vsel %vm335, %v2966, %v2970
  %v2973 = vshrl.u32 %v2832, 16
  %v2975 = vrot.slane %v2973, 4
  %v2976 = vshll.u32 %v2832, 16
  %v2978 = vrot.slane %v2976, 5
  %v2979 = vor.u32 %v2975, %v2978
  %v2980 = vrot.slane %v2979, 4
  %v2982 = vshll.u32 %v2833, 16
  %v2984 = vrot.slane %v2982, 5
  %v2985 = vsel %vm335, %v2980, %v2984
  %v2987 = vshrl.u32 %v2834, 16
  %v2989 = vrot.slane %v2987, 4
  %v2990 = vshll.u32 %v2834, 16
  %v2992 = vrot.slane %v2990, 5
  %v2993 = vor.u32 %v2989, %v2992
  %v2994 = vrot.slane %v2993, 4
  %v2996 = vshll.u32 %v2835, 16
  %v2998 = vrot.slane %v2996, 5
  %v2999 = vsel %vm335, %v2994, %v2998
  %v3001 = vshrl.u32 %v2836, 16
  %v3003 = vrot.slane %v3001, 4
  %v3004 = vshll.u32 %v2836, 16
  %v3006 = vrot.slane %v3004, 5
  %v3007 = vor.u32 %v3003, %v3006
  %v3008 = vrot.slane %v3007, 4
  %v3010 = vshll.u32 %v2837, 16
  %v3012 = vrot.slane %v3010, 5
  %v3013 = vsel %vm335, %v3008, %v3012
  %v3015 = vshrl.u32 %v2838, 16
  %v3017 = vrot.slane %v3015, 4
  %v3018 = vshll.u32 %v2838, 16
  %v3020 = vrot.slane %v3018, 5
  %v3021 = vor.u32 %v3017, %v3020
  %v3022 = vrot.slane %v3021, 4
  %v3024 = vshll.u32 %v2839, 16
  %v3026 = vrot.slane %v3024, 5
  %v3027 = vsel %vm335, %v3022, %v3026
  %v3029 = vshrl.u32 %v2840, 16
  %v3031 = vrot.slane %v3029, 4
  %v3032 = vshll.u32 %v2840, 16
  %v3034 = vrot.slane %v3032, 5
  %v3035 = vor.u32 %v3031, %v3034
  %v3036 = vrot.slane %v3035, 4
  %v3038 = vshll.u32 %v2841, 16
  %v3040 = vrot.slane %v3038, 5
  %v3041 = vsel %vm335, %v3036, %v3040
  %v3043 = vshrl.u32 %v2842, 16
  %v3045 = vrot.slane %v3043, 4
  %v3046 = vshll.u32 %v2842, 16
  %v3048 = vrot.slane %v3046, 5
  %v3049 = vor.u32 %v3045, %v3048
  %v3050 = vrot.slane %v3049, 4
  %v3052 = vshll.u32 %v2843, 16
  %v3054 = vrot.slane %v3052, 5
  %v3055 = vsel %vm335, %v3050, %v3054
  %v3057 = vshrl.u32 %v2844, 16
  %v3059 = vrot.slane %v3057, 4
  %v3060 = vshll.u32 %v2844, 16
  %v3062 = vrot.slane %v3060, 5
  %v3063 = vor.u32 %v3059, %v3062
  %v3064 = vrot.slane %v3063, 4
  %v3066 = vshll.u32 %v2845, 16
  %v3068 = vrot.slane %v3066, 5
  %v3069 = vsel %vm335, %v3064, %v3068
  %s3070 = scalar_lea.vmem %s1, 88
  %v3071 = vld [vmem:[%s3070] sm:$0xf]
  %v3072 = vld [vmem:[%s3070 + $0x4] sm:$0xf]
  %v3073 = vunpack.c.l.b16 %v2859
  %v3074 = vunpack.c.l.b16 %v2873
  %v3075 = vunpack.c.l.b16 %v2887
  %v3076 = vunpack.c.l.b16 %v2901
  %v3077 = vunpack.c.l.b16 %v2915
  %v3078 = vunpack.c.l.b16 %v2929
  %v3079 = vunpack.c.l.b16 %v2943
  %v3080 = vunpack.c.l.b16 %v2957
  %v3081 = vunpack.c.l.b16 %v2971
  %v3082 = vunpack.c.l.b16 %v2985
  %v3083 = vunpack.c.l.b16 %v2999
  %v3084 = vunpack.c.l.b16 %v3013
  %v3085 = vunpack.c.l.b16 %v3027
  %v3086 = vunpack.c.l.b16 %v3041
  %v3087 = vunpack.c.l.b16 %v3055
  %v3088 = vunpack.c.l.b16 %v3069
  %v3089 = vpack.c.b16 %v3074, %v3073
  %v3090 = vpack.c.b16 %v3076, %v3075
  %v3091 = vpack.c.b16 %v3078, %v3077
  %v3092 = vpack.c.b16 %v3080, %v3079
  %v3093 = vpack.c.b16 %v3082, %v3081
  %v3094 = vpack.c.b16 %v3084, %v3083
  %v3095 = vpack.c.b16 %v3086, %v3085
  %v3096 = vpack.c.b16 %v3088, %v3087
  %v3099 = vunpack.c.l.b16 %v3071
  %v3100 = vunpack.c.l.b16 %v3072
  %v3101 = vpack.c.b16 %v3100, %v3099
  %v3104 = vsel %vm108, %v3089, 0
  %v3107 = vsel %vm108, %v3090, 0
  %v3110 = vsel %vm108, %v3091, 0
  %v3113 = vsel %vm108, %v3092, 0
  %v3116 = vsel %vm108, %v3093, 0
  %v3119 = vsel %vm108, %v3094, 0
  %v3122 = vsel %vm108, %v3095, 0
  %v3125 = vsel %vm108, %v3096, 0
  %3127 = vmatpush.bf16.msra.mxu0 0
  %3128 = vmatpush.bf16.msra.mxu0 0
  %3129 = vmatpush.bf16.msra.mxu0 0
  %3130 = vmatpush.bf16.msra.mxu0 0
  %3131 = vmatpush.bf16.msra.mxu0 0
  %3132 = vmatpush.bf16.msra.mxu0 0
  %3133 = vmatpush.bf16.msra.mxu0 0
  %3134 = vmatpush.bf16.msra.mxu0 %v3101
  %3135 = vmatmul.bf16.gmra.mxu0 %v3104
  %v3136 = vpop.f32.mrf.mxu0
  %v3137 = vadd.f32 0.0, %v3136
  %v3138 = vpop.f32.mrf.mxu0
  %v3139 = vadd.f32 0.0, %v3138
  %3140 = vmatmul.bf16.gmra.mxu0 %v3107
  %v3141 = vpop.f32.mrf.mxu0
  %v3142 = vadd.f32 0.0, %v3141
  %v3143 = vpop.f32.mrf.mxu0
  %v3144 = vadd.f32 0.0, %v3143
  %3145 = vmatmul.bf16.gmra.mxu0 %v3110
  %v3146 = vpop.f32.mrf.mxu0
  %v3147 = vadd.f32 0.0, %v3146
  %v3148 = vpop.f32.mrf.mxu0
  %v3149 = vadd.f32 0.0, %v3148
  %3150 = vmatmul.bf16.gmra.mxu0 %v3113
  %v3151 = vpop.f32.mrf.mxu0
  %v3152 = vadd.f32 0.0, %v3151
  %v3153 = vpop.f32.mrf.mxu0
  %v3154 = vadd.f32 0.0, %v3153
  %3155 = vmatmul.bf16.gmra.mxu0 %v3116
  %v3156 = vpop.f32.mrf.mxu0
  %v3157 = vadd.f32 0.0, %v3156
  %v3158 = vpop.f32.mrf.mxu0
  %v3159 = vadd.f32 0.0, %v3158
  %3160 = vmatmul.bf16.gmra.mxu0 %v3119
  %v3161 = vpop.f32.mrf.mxu0
  %v3162 = vadd.f32 0.0, %v3161
  %v3163 = vpop.f32.mrf.mxu0
  %v3164 = vadd.f32 0.0, %v3163
  %3165 = vmatmul.bf16.gmra.mxu0 %v3122
  %v3166 = vpop.f32.mrf.mxu0
  %v3167 = vadd.f32 0.0, %v3166
  %v3168 = vpop.f32.mrf.mxu0
  %v3169 = vadd.f32 0.0, %v3168
  %3170 = vmatmul.bf16.gmra.mxu0 %v3125
  %v3171 = vpop.f32.mrf.mxu0
  %v3172 = vadd.f32 0.0, %v3171
  %v3173 = vpop.f32.mrf.mxu0
  %v3174 = vadd.f32 0.0, %v3173
  %3175 = vdwg.mxu0
  %v3176 = vadd.f32 %v2798, %v3137
  %v3177 = vadd.f32 %v2799, %v3139
  %v3178 = vadd.f32 %v2800, %v3142
  %v3179 = vadd.f32 %v2801, %v3144
  %v3180 = vadd.f32 %v2802, %v3147
  %v3181 = vadd.f32 %v2803, %v3149
  %v3182 = vadd.f32 %v2804, %v3152
  %v3183 = vadd.f32 %v2805, %v3154
  %v3184 = vadd.f32 %v2806, %v3157
  %v3185 = vadd.f32 %v2807, %v3159
  %v3186 = vadd.f32 %v2808, %v3162
  %v3187 = vadd.f32 %v2809, %v3164
  %v3188 = vadd.f32 %v2810, %v3167
  %v3189 = vadd.f32 %v2811, %v3169
  %v3190 = vadd.f32 %v2812, %v3172
  %v3191 = vadd.f32 %v2813, %v3174
  %s3192 = scalar_lea.vmem %s0, 152
  %v3193 = vld [vmem:[%s3192] sm:$0xf]
  %v3194 = vld [vmem:[%s3192 + $0x8] sm:$0xf]
  %v3195 = vld [vmem:[%s3192 + $0x10] sm:$0xf]
  %v3196 = vld [vmem:[%s3192 + $0x18] sm:$0xf]
  %v3197 = vld [vmem:[%s3192 + $0x20] sm:$0xf]
  %v3198 = vld [vmem:[%s3192 + $0x28] sm:$0xf]
  %v3199 = vld [vmem:[%s3192 + $0x30] sm:$0xf]
  %v3200 = vld [vmem:[%s3192 + $0x38] sm:$0xf]
  %v3201 = vld [vmem:[%s3192 + $0x120] sm:$0xf]
  %v3202 = vld [vmem:[%s3192 + $0x128] sm:$0xf]
  %v3203 = vld [vmem:[%s3192 + $0x130] sm:$0xf]
  %v3204 = vld [vmem:[%s3192 + $0x138] sm:$0xf]
  %v3205 = vld [vmem:[%s3192 + $0x140] sm:$0xf]
  %v3206 = vld [vmem:[%s3192 + $0x148] sm:$0xf]
  %v3207 = vld [vmem:[%s3192 + $0x150] sm:$0xf]
  %v3208 = vld [vmem:[%s3192 + $0x158] sm:$0xf]
  %s3209 = scalar_lea.vmem %s1, 96
  %v3210 = vld [vmem:[%s3209] sm:$0xf]
  %v3211 = vld [vmem:[%s3209 + $0x4] sm:$0xf]
  %v3228 = vunpack.c.l.b16 %v3193
  %v3229 = vunpack.c.l.b16 %v3194
  %v3230 = vunpack.c.l.b16 %v3195
  %v3231 = vunpack.c.l.b16 %v3196
  %v3232 = vunpack.c.l.b16 %v3197
  %v3233 = vunpack.c.l.b16 %v3198
  %v3234 = vunpack.c.l.b16 %v3199
  %v3235 = vunpack.c.l.b16 %v3200
  %v3236 = vunpack.c.l.b16 %v3201
  %v3237 = vunpack.c.l.b16 %v3202
  %v3238 = vunpack.c.l.b16 %v3203
  %v3239 = vunpack.c.l.b16 %v3204
  %v3240 = vunpack.c.l.b16 %v3205
  %v3241 = vunpack.c.l.b16 %v3206
  %v3242 = vunpack.c.l.b16 %v3207
  %v3243 = vunpack.c.l.b16 %v3208
  %v3244 = vpack.c.b16 %v3229, %v3228
  %v3245 = vpack.c.b16 %v3231, %v3230
  %v3246 = vpack.c.b16 %v3233, %v3232
  %v3247 = vpack.c.b16 %v3235, %v3234
  %v3248 = vpack.c.b16 %v3237, %v3236
  %v3249 = vpack.c.b16 %v3239, %v3238
  %v3250 = vpack.c.b16 %v3241, %v3240
  %v3251 = vpack.c.b16 %v3243, %v3242
  %v3254 = vunpack.c.l.b16 %v3210
  %v3255 = vunpack.c.l.b16 %v3211
  %v3256 = vpack.c.b16 %v3255, %v3254
  %v3259 = vsel %vm108, %v3244, 0
  %v3262 = vsel %vm108, %v3245, 0
  %v3265 = vsel %vm108, %v3246, 0
  %v3268 = vsel %vm108, %v3247, 0
  %v3271 = vsel %vm108, %v3248, 0
  %v3274 = vsel %vm108, %v3249, 0
  %v3277 = vsel %vm108, %v3250, 0
  %v3280 = vsel %vm108, %v3251, 0
  %3282 = vmatpush.bf16.msra.mxu0 0
  %3283 = vmatpush.bf16.msra.mxu0 0
  %3284 = vmatpush.bf16.msra.mxu0 0
  %3285 = vmatpush.bf16.msra.mxu0 0
  %3286 = vmatpush.bf16.msra.mxu0 0
  %3287 = vmatpush.bf16.msra.mxu0 0
  %3288 = vmatpush.bf16.msra.mxu0 0
  %3289 = vmatpush.bf16.msra.mxu0 %v3256
  %3290 = vmatmul.bf16.gmra.mxu0 %v3259
  %v3291 = vpop.f32.mrf.mxu0
  %v3292 = vadd.f32 0.0, %v3291
  %v3293 = vpop.f32.mrf.mxu0
  %v3294 = vadd.f32 0.0, %v3293
  %3295 = vmatmul.bf16.gmra.mxu0 %v3262
  %v3296 = vpop.f32.mrf.mxu0
  %v3297 = vadd.f32 0.0, %v3296
  %v3298 = vpop.f32.mrf.mxu0
  %v3299 = vadd.f32 0.0, %v3298
  %3300 = vmatmul.bf16.gmra.mxu0 %v3265
  %v3301 = vpop.f32.mrf.mxu0
  %v3302 = vadd.f32 0.0, %v3301
  %v3303 = vpop.f32.mrf.mxu0
  %v3304 = vadd.f32 0.0, %v3303
  %3305 = vmatmul.bf16.gmra.mxu0 %v3268
  %v3306 = vpop.f32.mrf.mxu0
  %v3307 = vadd.f32 0.0, %v3306
  %v3308 = vpop.f32.mrf.mxu0
  %v3309 = vadd.f32 0.0, %v3308
  %3310 = vmatmul.bf16.gmra.mxu0 %v3271
  %v3311 = vpop.f32.mrf.mxu0
  %v3312 = vadd.f32 0.0, %v3311
  %v3313 = vpop.f32.mrf.mxu0
  %v3314 = vadd.f32 0.0, %v3313
  %3315 = vmatmul.bf16.gmra.mxu0 %v3274
  %v3316 = vpop.f32.mrf.mxu0
  %v3317 = vadd.f32 0.0, %v3316
  %v3318 = vpop.f32.mrf.mxu0
  %v3319 = vadd.f32 0.0, %v3318
  %3320 = vmatmul.bf16.gmra.mxu0 %v3277
  %v3321 = vpop.f32.mrf.mxu0
  %v3322 = vadd.f32 0.0, %v3321
  %v3323 = vpop.f32.mrf.mxu0
  %v3324 = vadd.f32 0.0, %v3323
  %3325 = vmatmul.bf16.gmra.mxu0 %v3280
  %v3326 = vpop.f32.mrf.mxu0
  %v3327 = vadd.f32 0.0, %v3326
  %v3328 = vpop.f32.mrf.mxu0
  %v3329 = vadd.f32 0.0, %v3328
  %3330 = vdwg.mxu0
  %v3331 = vadd.f32 %v3176, %v3292
  %v3332 = vadd.f32 %v3177, %v3294
  %v3333 = vadd.f32 %v3178, %v3297
  %v3334 = vadd.f32 %v3179, %v3299
  %v3335 = vadd.f32 %v3180, %v3302
  %v3336 = vadd.f32 %v3181, %v3304
  %v3337 = vadd.f32 %v3182, %v3307
  %v3338 = vadd.f32 %v3183, %v3309
  %v3339 = vadd.f32 %v3184, %v3312
  %v3340 = vadd.f32 %v3185, %v3314
  %v3341 = vadd.f32 %v3186, %v3317
  %v3342 = vadd.f32 %v3187, %v3319
  %v3343 = vadd.f32 %v3188, %v3322
  %v3344 = vadd.f32 %v3189, %v3324
  %v3345 = vadd.f32 %v3190, %v3327
  %v3346 = vadd.f32 %v3191, %v3329
  %s3347 = scalar_lea.vmem %s0, 224
  %v3348 = vld [vmem:[%s3347] sm:$0xf]
  %v3349 = vld [vmem:[%s3347 + $0x8] sm:$0xf]
  %v3350 = vld [vmem:[%s3347 + $0x10] sm:$0xf]
  %v3351 = vld [vmem:[%s3347 + $0x18] sm:$0xf]
  %v3352 = vld [vmem:[%s3347 + $0x20] sm:$0xf]
  %v3353 = vld [vmem:[%s3347 + $0x28] sm:$0xf]
  %v3354 = vld [vmem:[%s3347 + $0x30] sm:$0xf]
  %v3355 = vld [vmem:[%s3347 + $0x38] sm:$0xf]
  %v3356 = vld [vmem:[%s3347 + $0x120] sm:$0xf]
  %v3357 = vld [vmem:[%s3347 + $0x128] sm:$0xf]
  %v3358 = vld [vmem:[%s3347 + $0x130] sm:$0xf]
  %v3359 = vld [vmem:[%s3347 + $0x138] sm:$0xf]
  %v3360 = vld [vmem:[%s3347 + $0x140] sm:$0xf]
  %v3361 = vld [vmem:[%s3347 + $0x148] sm:$0xf]
  %v3362 = vld [vmem:[%s3347 + $0x150] sm:$0xf]
  %v3363 = vld [vmem:[%s3347 + $0x158] sm:$0xf]
  %s3364 = scalar_lea.vmem %s1, 104
  %v3365 = vld [vmem:[%s3364] sm:$0xf]
  %v3366 = vld [vmem:[%s3364 + $0x4] sm:$0xf]
  %v3383 = vunpack.c.l.b16 %v3348
  %v3384 = vunpack.c.l.b16 %v3349
  %v3385 = vunpack.c.l.b16 %v3350
  %v3386 = vunpack.c.l.b16 %v3351
  %v3387 = vunpack.c.l.b16 %v3352
  %v3388 = vunpack.c.l.b16 %v3353
  %v3389 = vunpack.c.l.b16 %v3354
  %v3390 = vunpack.c.l.b16 %v3355
  %v3391 = vunpack.c.l.b16 %v3356
  %v3392 = vunpack.c.l.b16 %v3357
  %v3393 = vunpack.c.l.b16 %v3358
  %v3394 = vunpack.c.l.b16 %v3359
  %v3395 = vunpack.c.l.b16 %v3360
  %v3396 = vunpack.c.l.b16 %v3361
  %v3397 = vunpack.c.l.b16 %v3362
  %v3398 = vunpack.c.l.b16 %v3363
  %v3399 = vpack.c.b16 %v3384, %v3383
  %v3400 = vpack.c.b16 %v3386, %v3385
  %v3401 = vpack.c.b16 %v3388, %v3387
  %v3402 = vpack.c.b16 %v3390, %v3389
  %v3403 = vpack.c.b16 %v3392, %v3391
  %v3404 = vpack.c.b16 %v3394, %v3393
  %v3405 = vpack.c.b16 %v3396, %v3395
  %v3406 = vpack.c.b16 %v3398, %v3397
  %v3409 = vunpack.c.l.b16 %v3365
  %v3410 = vunpack.c.l.b16 %v3366
  %v3411 = vpack.c.b16 %v3410, %v3409
  %v3414 = vsel %vm108, %v3399, 0
  %v3417 = vsel %vm108, %v3400, 0
  %v3420 = vsel %vm108, %v3401, 0
  %v3423 = vsel %vm108, %v3402, 0
  %v3426 = vsel %vm108, %v3403, 0
  %v3429 = vsel %vm108, %v3404, 0
  %v3432 = vsel %vm108, %v3405, 0
  %v3435 = vsel %vm108, %v3406, 0
  %3437 = vmatpush.bf16.msra.mxu0 0
  %3438 = vmatpush.bf16.msra.mxu0 0
  %3439 = vmatpush.bf16.msra.mxu0 0
  %3440 = vmatpush.bf16.msra.mxu0 0
  %3441 = vmatpush.bf16.msra.mxu0 0
  %3442 = vmatpush.bf16.msra.mxu0 0
  %3443 = vmatpush.bf16.msra.mxu0 0
  %3444 = vmatpush.bf16.msra.mxu0 %v3411
  %3445 = vmatmul.bf16.gmra.mxu0 %v3414
  %v3446 = vpop.f32.mrf.mxu0
  %v3447 = vadd.f32 0.0, %v3446
  %v3448 = vpop.f32.mrf.mxu0
  %v3449 = vadd.f32 0.0, %v3448
  %3450 = vmatmul.bf16.gmra.mxu0 %v3417
  %v3451 = vpop.f32.mrf.mxu0
  %v3452 = vadd.f32 0.0, %v3451
  %v3453 = vpop.f32.mrf.mxu0
  %v3454 = vadd.f32 0.0, %v3453
  %3455 = vmatmul.bf16.gmra.mxu0 %v3420
  %v3456 = vpop.f32.mrf.mxu0
  %v3457 = vadd.f32 0.0, %v3456
  %v3458 = vpop.f32.mrf.mxu0
  %v3459 = vadd.f32 0.0, %v3458
  %3460 = vmatmul.bf16.gmra.mxu0 %v3423
  %v3461 = vpop.f32.mrf.mxu0
  %v3462 = vadd.f32 0.0, %v3461
  %v3463 = vpop.f32.mrf.mxu0
  %v3464 = vadd.f32 0.0, %v3463
  %3465 = vmatmul.bf16.gmra.mxu0 %v3426
  %v3466 = vpop.f32.mrf.mxu0
  %v3467 = vadd.f32 0.0, %v3466
  %v3468 = vpop.f32.mrf.mxu0
  %v3469 = vadd.f32 0.0, %v3468
  %3470 = vmatmul.bf16.gmra.mxu0 %v3429
  %v3471 = vpop.f32.mrf.mxu0
  %v3472 = vadd.f32 0.0, %v3471
  %v3473 = vpop.f32.mrf.mxu0
  %v3474 = vadd.f32 0.0, %v3473
  %3475 = vmatmul.bf16.gmra.mxu0 %v3432
  %v3476 = vpop.f32.mrf.mxu0
  %v3477 = vadd.f32 0.0, %v3476
  %v3478 = vpop.f32.mrf.mxu0
  %v3479 = vadd.f32 0.0, %v3478
  %3480 = vmatmul.bf16.gmra.mxu0 %v3435
  %v3481 = vpop.f32.mrf.mxu0
  %v3482 = vadd.f32 0.0, %v3481
  %v3483 = vpop.f32.mrf.mxu0
  %v3484 = vadd.f32 0.0, %v3483
  %3485 = vdwg.mxu0
  %v3486 = vadd.f32 %v3331, %v3447
  %v3487 = vadd.f32 %v3332, %v3449
  %v3488 = vadd.f32 %v3333, %v3452
  %v3489 = vadd.f32 %v3334, %v3454
  %v3490 = vadd.f32 %v3335, %v3457
  %v3491 = vadd.f32 %v3336, %v3459
  %v3492 = vadd.f32 %v3337, %v3462
  %v3493 = vadd.f32 %v3338, %v3464
  %v3494 = vadd.f32 %v3339, %v3467
  %v3495 = vadd.f32 %v3340, %v3469
  %v3496 = vadd.f32 %v3341, %v3472
  %v3497 = vadd.f32 %v3342, %v3474
  %v3498 = vadd.f32 %v3343, %v3477
  %v3499 = vadd.f32 %v3344, %v3479
  %v3500 = vadd.f32 %v3345, %v3482
  %v3501 = vadd.f32 %v3346, %v3484
  %v3502 = vld [vmem:[%s3192] sm:$0xf]
  %v3503 = vld [vmem:[%s3192 + $0x4] sm:$0x1]
  %v3504 = vld [vmem:[%s3192 + $0x8] sm:$0xf]
  %v3505 = vld [vmem:[%s3192 + $0xc] sm:$0x1]
  %v3506 = vld [vmem:[%s3192 + $0x10] sm:$0xf]
  %v3507 = vld [vmem:[%s3192 + $0x14] sm:$0x1]
  %v3508 = vld [vmem:[%s3192 + $0x18] sm:$0xf]
  %v3509 = vld [vmem:[%s3192 + $0x1c] sm:$0x1]
  %v3510 = vld [vmem:[%s3192 + $0x20] sm:$0xf]
  %v3511 = vld [vmem:[%s3192 + $0x24] sm:$0x1]
  %v3512 = vld [vmem:[%s3192 + $0x28] sm:$0xf]
  %v3513 = vld [vmem:[%s3192 + $0x2c] sm:$0x1]
  %v3514 = vld [vmem:[%s3192 + $0x30] sm:$0xf]
  %v3515 = vld [vmem:[%s3192 + $0x34] sm:$0x1]
  %v3516 = vld [vmem:[%s3192 + $0x38] sm:$0xf]
  %v3517 = vld [vmem:[%s3192 + $0x3c] sm:$0x1]
  %v3518 = vld [vmem:[%s3192 + $0x120] sm:$0xf]
  %v3519 = vld [vmem:[%s3192 + $0x124] sm:$0x1]
  %v3520 = vld [vmem:[%s3192 + $0x128] sm:$0xf]
  %v3521 = vld [vmem:[%s3192 + $0x12c] sm:$0x1]
  %v3522 = vld [vmem:[%s3192 + $0x130] sm:$0xf]
  %v3523 = vld [vmem:[%s3192 + $0x134] sm:$0x1]
  %v3524 = vld [vmem:[%s3192 + $0x138] sm:$0xf]
  %v3525 = vld [vmem:[%s3192 + $0x13c] sm:$0x1]
  %v3526 = vld [vmem:[%s3192 + $0x140] sm:$0xf]
  %v3527 = vld [vmem:[%s3192 + $0x144] sm:$0x1]
  %v3528 = vld [vmem:[%s3192 + $0x148] sm:$0xf]
  %v3529 = vld [vmem:[%s3192 + $0x14c] sm:$0x1]
  %v3530 = vld [vmem:[%s3192 + $0x150] sm:$0xf]
  %v3531 = vld [vmem:[%s3192 + $0x154] sm:$0x1]
  %v3532 = vld [vmem:[%s3192 + $0x158] sm:$0xf]
  %v3533 = vld [vmem:[%s3192 + $0x15c] sm:$0x1]
  %v3535 = vshrl.u32 %v3502, 16
  %v3537 = vrot.slane %v3535, 4
  %v3538 = vshll.u32 %v3502, 16
  %v3540 = vrot.slane %v3538, 5
  %v3541 = vor.u32 %v3537, %v3540
  %v3542 = vrot.slane %v3541, 4
  %v3544 = vshll.u32 %v3503, 16
  %v3546 = vrot.slane %v3544, 5
  %v3547 = vsel %vm335, %v3542, %v3546
  %v3549 = vshrl.u32 %v3504, 16
  %v3551 = vrot.slane %v3549, 4
  %v3552 = vshll.u32 %v3504, 16
  %v3554 = vrot.slane %v3552, 5
  %v3555 = vor.u32 %v3551, %v3554
  %v3556 = vrot.slane %v3555, 4
  %v3558 = vshll.u32 %v3505, 16
  %v3560 = vrot.slane %v3558, 5
  %v3561 = vsel %vm335, %v3556, %v3560
  %v3563 = vshrl.u32 %v3506, 16
  %v3565 = vrot.slane %v3563, 4
  %v3566 = vshll.u32 %v3506, 16
  %v3568 = vrot.slane %v3566, 5
  %v3569 = vor.u32 %v3565, %v3568
  %v3570 = vrot.slane %v3569, 4
  %v3572 = vshll.u32 %v3507, 16
  %v3574 = vrot.slane %v3572, 5
  %v3575 = vsel %vm335, %v3570, %v3574
  %v3577 = vshrl.u32 %v3508, 16
  %v3579 = vrot.slane %v3577, 4
  %v3580 = vshll.u32 %v3508, 16
  %v3582 = vrot.slane %v3580, 5
  %v3583 = vor.u32 %v3579, %v3582
  %v3584 = vrot.slane %v3583, 4
  %v3586 = vshll.u32 %v3509, 16
  %v3588 = vrot.slane %v3586, 5
  %v3589 = vsel %vm335, %v3584, %v3588
  %v3591 = vshrl.u32 %v3510, 16
  %v3593 = vrot.slane %v3591, 4
  %v3594 = vshll.u32 %v3510, 16
  %v3596 = vrot.slane %v3594, 5
  %v3597 = vor.u32 %v3593, %v3596
  %v3598 = vrot.slane %v3597, 4
  %v3600 = vshll.u32 %v3511, 16
  %v3602 = vrot.slane %v3600, 5
  %v3603 = vsel %vm335, %v3598, %v3602
  %v3605 = vshrl.u32 %v3512, 16
  %v3607 = vrot.slane %v3605, 4
  %v3608 = vshll.u32 %v3512, 16
  %v3610 = vrot.slane %v3608, 5
  %v3611 = vor.u32 %v3607, %v3610
  %v3612 = vrot.slane %v3611, 4
  %v3614 = vshll.u32 %v3513, 16
  %v3616 = vrot.slane %v3614, 5
  %v3617 = vsel %vm335, %v3612, %v3616
  %v3619 = vshrl.u32 %v3514, 16
  %v3621 = vrot.slane %v3619, 4
  %v3622 = vshll.u32 %v3514, 16
  %v3624 = vrot.slane %v3622, 5
  %v3625 = vor.u32 %v3621, %v3624
  %v3626 = vrot.slane %v3625, 4
  %v3628 = vshll.u32 %v3515, 16
  %v3630 = vrot.slane %v3628, 5
  %v3631 = vsel %vm335, %v3626, %v3630
  %v3633 = vshrl.u32 %v3516, 16
  %v3635 = vrot.slane %v3633, 4
  %v3636 = vshll.u32 %v3516, 16
  %v3638 = vrot.slane %v3636, 5
  %v3639 = vor.u32 %v3635, %v3638
  %v3640 = vrot.slane %v3639, 4
  %v3642 = vshll.u32 %v3517, 16
  %v3644 = vrot.slane %v3642, 5
  %v3645 = vsel %vm335, %v3640, %v3644
  %v3647 = vshrl.u32 %v3518, 16
  %v3649 = vrot.slane %v3647, 4
  %v3650 = vshll.u32 %v3518, 16
  %v3652 = vrot.slane %v3650, 5
  %v3653 = vor.u32 %v3649, %v3652
  %v3654 = vrot.slane %v3653, 4
  %v3656 = vshll.u32 %v3519, 16
  %v3658 = vrot.slane %v3656, 5
  %v3659 = vsel %vm335, %v3654, %v3658
  %v3661 = vshrl.u32 %v3520, 16
  %v3663 = vrot.slane %v3661, 4
  %v3664 = vshll.u32 %v3520, 16
  %v3666 = vrot.slane %v3664, 5
  %v3667 = vor.u32 %v3663, %v3666
  %v3668 = vrot.slane %v3667, 4
  %v3670 = vshll.u32 %v3521, 16
  %v3672 = vrot.slane %v3670, 5
  %v3673 = vsel %vm335, %v3668, %v3672
  %v3675 = vshrl.u32 %v3522, 16
  %v3677 = vrot.slane %v3675, 4
  %v3678 = vshll.u32 %v3522, 16
  %v3680 = vrot.slane %v3678, 5
  %v3681 = vor.u32 %v3677, %v3680
  %v3682 = vrot.slane %v3681, 4
  %v3684 = vshll.u32 %v3523, 16
  %v3686 = vrot.slane %v3684, 5
  %v3687 = vsel %vm335, %v3682, %v3686
  %v3689 = vshrl.u32 %v3524, 16
  %v3691 = vrot.slane %v3689, 4
  %v3692 = vshll.u32 %v3524, 16
  %v3694 = vrot.slane %v3692, 5
  %v3695 = vor.u32 %v3691, %v3694
  %v3696 = vrot.slane %v3695, 4
  %v3698 = vshll.u32 %v3525, 16
  %v3700 = vrot.slane %v3698, 5
  %v3701 = vsel %vm335, %v3696, %v3700
  %v3703 = vshrl.u32 %v3526, 16
  %v3705 = vrot.slane %v3703, 4
  %v3706 = vshll.u32 %v3526, 16
  %v3708 = vrot.slane %v3706, 5
  %v3709 = vor.u32 %v3705, %v3708
  %v3710 = vrot.slane %v3709, 4
  %v3712 = vshll.u32 %v3527, 16
  %v3714 = vrot.slane %v3712, 5
  %v3715 = vsel %vm335, %v3710, %v3714
  %v3717 = vshrl.u32 %v3528, 16
  %v3719 = vrot.slane %v3717, 4
  %v3720 = vshll.u32 %v3528, 16
  %v3722 = vrot.slane %v3720, 5
  %v3723 = vor.u32 %v3719, %v3722
  %v3724 = vrot.slane %v3723, 4
  %v3726 = vshll.u32 %v3529, 16
  %v3728 = vrot.slane %v3726, 5
  %v3729 = vsel %vm335, %v3724, %v3728
  %v3731 = vshrl.u32 %v3530, 16
  %v3733 = vrot.slane %v3731, 4
  %v3734 = vshll.u32 %v3530, 16
  %v3736 = vrot.slane %v3734, 5
  %v3737 = vor.u32 %v3733, %v3736
  %v3738 = vrot.slane %v3737, 4
  %v3740 = vshll.u32 %v3531, 16
  %v3742 = vrot.slane %v3740, 5
  %v3743 = vsel %vm335, %v3738, %v3742
  %v3745 = vshrl.u32 %v3532, 16
  %v3747 = vrot.slane %v3745, 4
  %v3748 = vshll.u32 %v3532, 16
  %v3750 = vrot.slane %v3748, 5
  %v3751 = vor.u32 %v3747, %v3750
  %v3752 = vrot.slane %v3751, 4
  %v3754 = vshll.u32 %v3533, 16
  %v3756 = vrot.slane %v3754, 5
  %v3757 = vsel %vm335, %v3752, %v3756
  %s3758 = scalar_lea.vmem %s1, 112
  %v3759 = vld [vmem:[%s3758] sm:$0xf]
  %v3760 = vld [vmem:[%s3758 + $0x4] sm:$0xf]
  %v3761 = vunpack.c.l.b16 %v3547
  %v3762 = vunpack.c.l.b16 %v3561
  %v3763 = vunpack.c.l.b16 %v3575
  %v3764 = vunpack.c.l.b16 %v3589
  %v3765 = vunpack.c.l.b16 %v3603
  %v3766 = vunpack.c.l.b16 %v3617
  %v3767 = vunpack.c.l.b16 %v3631
  %v3768 = vunpack.c.l.b16 %v3645
  %v3769 = vunpack.c.l.b16 %v3659
  %v3770 = vunpack.c.l.b16 %v3673
  %v3771 = vunpack.c.l.b16 %v3687
  %v3772 = vunpack.c.l.b16 %v3701
  %v3773 = vunpack.c.l.b16 %v3715
  %v3774 = vunpack.c.l.b16 %v3729
  %v3775 = vunpack.c.l.b16 %v3743
  %v3776 = vunpack.c.l.b16 %v3757
  %v3777 = vpack.c.b16 %v3762, %v3761
  %v3778 = vpack.c.b16 %v3764, %v3763
  %v3779 = vpack.c.b16 %v3766, %v3765
  %v3780 = vpack.c.b16 %v3768, %v3767
  %v3781 = vpack.c.b16 %v3770, %v3769
  %v3782 = vpack.c.b16 %v3772, %v3771
  %v3783 = vpack.c.b16 %v3774, %v3773
  %v3784 = vpack.c.b16 %v3776, %v3775
  %v3787 = vunpack.c.l.b16 %v3759
  %v3788 = vunpack.c.l.b16 %v3760
  %v3789 = vpack.c.b16 %v3788, %v3787
  %v3792 = vsel %vm108, %v3777, 0
  %v3795 = vsel %vm108, %v3778, 0
  %v3798 = vsel %vm108, %v3779, 0
  %v3801 = vsel %vm108, %v3780, 0
  %v3804 = vsel %vm108, %v3781, 0
  %v3807 = vsel %vm108, %v3782, 0
  %v3810 = vsel %vm108, %v3783, 0
  %v3813 = vsel %vm108, %v3784, 0
  %3815 = vmatpush.bf16.msra.mxu0 0
  %3816 = vmatpush.bf16.msra.mxu0 0
  %3817 = vmatpush.bf16.msra.mxu0 0
  %3818 = vmatpush.bf16.msra.mxu0 0
  %3819 = vmatpush.bf16.msra.mxu0 0
  %3820 = vmatpush.bf16.msra.mxu0 0
  %3821 = vmatpush.bf16.msra.mxu0 0
  %3822 = vmatpush.bf16.msra.mxu0 %v3789
  %3823 = vmatmul.bf16.gmra.mxu0 %v3792
  %v3824 = vpop.f32.mrf.mxu0
  %v3825 = vadd.f32 0.0, %v3824
  %v3826 = vpop.f32.mrf.mxu0
  %v3827 = vadd.f32 0.0, %v3826
  %3828 = vmatmul.bf16.gmra.mxu0 %v3795
  %v3829 = vpop.f32.mrf.mxu0
  %v3830 = vadd.f32 0.0, %v3829
  %v3831 = vpop.f32.mrf.mxu0
  %v3832 = vadd.f32 0.0, %v3831
  %3833 = vmatmul.bf16.gmra.mxu0 %v3798
  %v3834 = vpop.f32.mrf.mxu0
  %v3835 = vadd.f32 0.0, %v3834
  %v3836 = vpop.f32.mrf.mxu0
  %v3837 = vadd.f32 0.0, %v3836
  %3838 = vmatmul.bf16.gmra.mxu0 %v3801
  %v3839 = vpop.f32.mrf.mxu0
  %v3840 = vadd.f32 0.0, %v3839
  %v3841 = vpop.f32.mrf.mxu0
  %v3842 = vadd.f32 0.0, %v3841
  %3843 = vmatmul.bf16.gmra.mxu0 %v3804
  %v3844 = vpop.f32.mrf.mxu0
  %v3845 = vadd.f32 0.0, %v3844
  %v3846 = vpop.f32.mrf.mxu0
  %v3847 = vadd.f32 0.0, %v3846
  %3848 = vmatmul.bf16.gmra.mxu0 %v3807
  %v3849 = vpop.f32.mrf.mxu0
  %v3850 = vadd.f32 0.0, %v3849
  %v3851 = vpop.f32.mrf.mxu0
  %v3852 = vadd.f32 0.0, %v3851
  %3853 = vmatmul.bf16.gmra.mxu0 %v3810
  %v3854 = vpop.f32.mrf.mxu0
  %v3855 = vadd.f32 0.0, %v3854
  %v3856 = vpop.f32.mrf.mxu0
  %v3857 = vadd.f32 0.0, %v3856
  %3858 = vmatmul.bf16.gmra.mxu0 %v3813
  %v3859 = vpop.f32.mrf.mxu0
  %v3860 = vadd.f32 0.0, %v3859
  %v3861 = vpop.f32.mrf.mxu0
  %v3862 = vadd.f32 0.0, %v3861
  %3863 = vdwg.mxu0
  %v3864 = vadd.f32 %v3486, %v3825
  %v3865 = vadd.f32 %v3487, %v3827
  %v3866 = vadd.f32 %v3488, %v3830
  %v3867 = vadd.f32 %v3489, %v3832
  %v3868 = vadd.f32 %v3490, %v3835
  %v3869 = vadd.f32 %v3491, %v3837
  %v3870 = vadd.f32 %v3492, %v3840
  %v3871 = vadd.f32 %v3493, %v3842
  %v3872 = vadd.f32 %v3494, %v3845
  %v3873 = vadd.f32 %v3495, %v3847
  %v3874 = vadd.f32 %v3496, %v3850
  %v3875 = vadd.f32 %v3497, %v3852
  %v3876 = vadd.f32 %v3498, %v3855
  %v3877 = vadd.f32 %v3499, %v3857
  %v3878 = vadd.f32 %v3500, %v3860
  %v3879 = vadd.f32 %v3501, %v3862
  %v3880 = vld [vmem:[%s3347] sm:$0xf]
  %v3881 = vld [vmem:[%s3347 + $0x4] sm:$0x1]
  %v3882 = vld [vmem:[%s3347 + $0x8] sm:$0xf]
  %v3883 = vld [vmem:[%s3347 + $0xc] sm:$0x1]
  %v3884 = vld [vmem:[%s3347 + $0x10] sm:$0xf]
  %v3885 = vld [vmem:[%s3347 + $0x14] sm:$0x1]
  %v3886 = vld [vmem:[%s3347 + $0x18] sm:$0xf]
  %v3887 = vld [vmem:[%s3347 + $0x1c] sm:$0x1]
  %v3888 = vld [vmem:[%s3347 + $0x20] sm:$0xf]
  %v3889 = vld [vmem:[%s3347 + $0x24] sm:$0x1]
  %v3890 = vld [vmem:[%s3347 + $0x28] sm:$0xf]
  %v3891 = vld [vmem:[%s3347 + $0x2c] sm:$0x1]
  %v3892 = vld [vmem:[%s3347 + $0x30] sm:$0xf]
  %v3893 = vld [vmem:[%s3347 + $0x34] sm:$0x1]
  %v3894 = vld [vmem:[%s3347 + $0x38] sm:$0xf]
  %v3895 = vld [vmem:[%s3347 + $0x3c] sm:$0x1]
  %v3896 = vld [vmem:[%s3347 + $0x120] sm:$0xf]
  %v3897 = vld [vmem:[%s3347 + $0x124] sm:$0x1]
  %v3898 = vld [vmem:[%s3347 + $0x128] sm:$0xf]
  %v3899 = vld [vmem:[%s3347 + $0x12c] sm:$0x1]
  %v3900 = vld [vmem:[%s3347 + $0x130] sm:$0xf]
  %v3901 = vld [vmem:[%s3347 + $0x134] sm:$0x1]
  %v3902 = vld [vmem:[%s3347 + $0x138] sm:$0xf]
  %v3903 = vld [vmem:[%s3347 + $0x13c] sm:$0x1]
  %v3904 = vld [vmem:[%s3347 + $0x140] sm:$0xf]
  %v3905 = vld [vmem:[%s3347 + $0x144] sm:$0x1]
  %v3906 = vld [vmem:[%s3347 + $0x148] sm:$0xf]
  %v3907 = vld [vmem:[%s3347 + $0x14c] sm:$0x1]
  %v3908 = vld [vmem:[%s3347 + $0x150] sm:$0xf]
  %v3909 = vld [vmem:[%s3347 + $0x154] sm:$0x1]
  %v3910 = vld [vmem:[%s3347 + $0x158] sm:$0xf]
  %v3911 = vld [vmem:[%s3347 + $0x15c] sm:$0x1]
  %v3913 = vshrl.u32 %v3880, 16
  %v3915 = vrot.slane %v3913, 4
  %v3916 = vshll.u32 %v3880, 16
  %v3918 = vrot.slane %v3916, 5
  %v3919 = vor.u32 %v3915, %v3918
  %v3920 = vrot.slane %v3919, 4
  %v3922 = vshll.u32 %v3881, 16
  %v3924 = vrot.slane %v3922, 5
  %v3925 = vsel %vm335, %v3920, %v3924
  %v3927 = vshrl.u32 %v3882, 16
  %v3929 = vrot.slane %v3927, 4
  %v3930 = vshll.u32 %v3882, 16
  %v3932 = vrot.slane %v3930, 5
  %v3933 = vor.u32 %v3929, %v3932
  %v3934 = vrot.slane %v3933, 4
  %v3936 = vshll.u32 %v3883, 16
  %v3938 = vrot.slane %v3936, 5
  %v3939 = vsel %vm335, %v3934, %v3938
  %v3941 = vshrl.u32 %v3884, 16
  %v3943 = vrot.slane %v3941, 4
  %v3944 = vshll.u32 %v3884, 16
  %v3946 = vrot.slane %v3944, 5
  %v3947 = vor.u32 %v3943, %v3946
  %v3948 = vrot.slane %v3947, 4
  %v3950 = vshll.u32 %v3885, 16
  %v3952 = vrot.slane %v3950, 5
  %v3953 = vsel %vm335, %v3948, %v3952
  %v3955 = vshrl.u32 %v3886, 16
  %v3957 = vrot.slane %v3955, 4
  %v3958 = vshll.u32 %v3886, 16
  %v3960 = vrot.slane %v3958, 5
  %v3961 = vor.u32 %v3957, %v3960
  %v3962 = vrot.slane %v3961, 4
  %v3964 = vshll.u32 %v3887, 16
  %v3966 = vrot.slane %v3964, 5
  %v3967 = vsel %vm335, %v3962, %v3966
  %v3969 = vshrl.u32 %v3888, 16
  %v3971 = vrot.slane %v3969, 4
  %v3972 = vshll.u32 %v3888, 16
  %v3974 = vrot.slane %v3972, 5
  %v3975 = vor.u32 %v3971, %v3974
  %v3976 = vrot.slane %v3975, 4
  %v3978 = vshll.u32 %v3889, 16
  %v3980 = vrot.slane %v3978, 5
  %v3981 = vsel %vm335, %v3976, %v3980
  %v3983 = vshrl.u32 %v3890, 16
  %v3985 = vrot.slane %v3983, 4
  %v3986 = vshll.u32 %v3890, 16
  %v3988 = vrot.slane %v3986, 5
  %v3989 = vor.u32 %v3985, %v3988
  %v3990 = vrot.slane %v3989, 4
  %v3992 = vshll.u32 %v3891, 16
  %v3994 = vrot.slane %v3992, 5
  %v3995 = vsel %vm335, %v3990, %v3994
  %v3997 = vshrl.u32 %v3892, 16
  %v3999 = vrot.slane %v3997, 4
  %v4000 = vshll.u32 %v3892, 16
  %v4002 = vrot.slane %v4000, 5
  %v4003 = vor.u32 %v3999, %v4002
  %v4004 = vrot.slane %v4003, 4
  %v4006 = vshll.u32 %v3893, 16
  %v4008 = vrot.slane %v4006, 5
  %v4009 = vsel %vm335, %v4004, %v4008
  %v4011 = vshrl.u32 %v3894, 16
  %v4013 = vrot.slane %v4011, 4
  %v4014 = vshll.u32 %v3894, 16
  %v4016 = vrot.slane %v4014, 5
  %v4017 = vor.u32 %v4013, %v4016
  %v4018 = vrot.slane %v4017, 4
  %v4020 = vshll.u32 %v3895, 16
  %v4022 = vrot.slane %v4020, 5
  %v4023 = vsel %vm335, %v4018, %v4022
  %v4025 = vshrl.u32 %v3896, 16
  %v4027 = vrot.slane %v4025, 4
  %v4028 = vshll.u32 %v3896, 16
  %v4030 = vrot.slane %v4028, 5
  %v4031 = vor.u32 %v4027, %v4030
  %v4032 = vrot.slane %v4031, 4
  %v4034 = vshll.u32 %v3897, 16
  %v4036 = vrot.slane %v4034, 5
  %v4037 = vsel %vm335, %v4032, %v4036
  %v4039 = vshrl.u32 %v3898, 16
  %v4041 = vrot.slane %v4039, 4
  %v4042 = vshll.u32 %v3898, 16
  %v4044 = vrot.slane %v4042, 5
  %v4045 = vor.u32 %v4041, %v4044
  %v4046 = vrot.slane %v4045, 4
  %v4048 = vshll.u32 %v3899, 16
  %v4050 = vrot.slane %v4048, 5
  %v4051 = vsel %vm335, %v4046, %v4050
  %v4053 = vshrl.u32 %v3900, 16
  %v4055 = vrot.slane %v4053, 4
  %v4056 = vshll.u32 %v3900, 16
  %v4058 = vrot.slane %v4056, 5
  %v4059 = vor.u32 %v4055, %v4058
  %v4060 = vrot.slane %v4059, 4
  %v4062 = vshll.u32 %v3901, 16
  %v4064 = vrot.slane %v4062, 5
  %v4065 = vsel %vm335, %v4060, %v4064
  %v4067 = vshrl.u32 %v3902, 16
  %v4069 = vrot.slane %v4067, 4
  %v4070 = vshll.u32 %v3902, 16
  %v4072 = vrot.slane %v4070, 5
  %v4073 = vor.u32 %v4069, %v4072
  %v4074 = vrot.slane %v4073, 4
  %v4076 = vshll.u32 %v3903, 16
  %v4078 = vrot.slane %v4076, 5
  %v4079 = vsel %vm335, %v4074, %v4078
  %v4081 = vshrl.u32 %v3904, 16
  %v4083 = vrot.slane %v4081, 4
  %v4084 = vshll.u32 %v3904, 16
  %v4086 = vrot.slane %v4084, 5
  %v4087 = vor.u32 %v4083, %v4086
  %v4088 = vrot.slane %v4087, 4
  %v4090 = vshll.u32 %v3905, 16
  %v4092 = vrot.slane %v4090, 5
  %v4093 = vsel %vm335, %v4088, %v4092
  %v4095 = vshrl.u32 %v3906, 16
  %v4097 = vrot.slane %v4095, 4
  %v4098 = vshll.u32 %v3906, 16
  %v4100 = vrot.slane %v4098, 5
  %v4101 = vor.u32 %v4097, %v4100
  %v4102 = vrot.slane %v4101, 4
  %v4104 = vshll.u32 %v3907, 16
  %v4106 = vrot.slane %v4104, 5
  %v4107 = vsel %vm335, %v4102, %v4106
  %v4109 = vshrl.u32 %v3908, 16
  %v4111 = vrot.slane %v4109, 4
  %v4112 = vshll.u32 %v3908, 16
  %v4114 = vrot.slane %v4112, 5
  %v4115 = vor.u32 %v4111, %v4114
  %v4116 = vrot.slane %v4115, 4
  %v4118 = vshll.u32 %v3909, 16
  %v4120 = vrot.slane %v4118, 5
  %v4121 = vsel %vm335, %v4116, %v4120
  %v4123 = vshrl.u32 %v3910, 16
  %v4125 = vrot.slane %v4123, 4
  %v4126 = vshll.u32 %v3910, 16
  %v4128 = vrot.slane %v4126, 5
  %v4129 = vor.u32 %v4125, %v4128
  %v4130 = vrot.slane %v4129, 4
  %v4132 = vshll.u32 %v3911, 16
  %v4134 = vrot.slane %v4132, 5
  %v4135 = vsel %vm335, %v4130, %v4134
  %s4136 = scalar_lea.vmem %s1, 120
  %v4137 = vld [vmem:[%s4136] sm:$0xf]
  %v4138 = vld [vmem:[%s4136 + $0x4] sm:$0xf]
  %v4139 = vunpack.c.l.b16 %v3925
  %v4140 = vunpack.c.l.b16 %v3939
  %v4141 = vunpack.c.l.b16 %v3953
  %v4142 = vunpack.c.l.b16 %v3967
  %v4143 = vunpack.c.l.b16 %v3981
  %v4144 = vunpack.c.l.b16 %v3995
  %v4145 = vunpack.c.l.b16 %v4009
  %v4146 = vunpack.c.l.b16 %v4023
  %v4147 = vunpack.c.l.b16 %v4037
  %v4148 = vunpack.c.l.b16 %v4051
  %v4149 = vunpack.c.l.b16 %v4065
  %v4150 = vunpack.c.l.b16 %v4079
  %v4151 = vunpack.c.l.b16 %v4093
  %v4152 = vunpack.c.l.b16 %v4107
  %v4153 = vunpack.c.l.b16 %v4121
  %v4154 = vunpack.c.l.b16 %v4135
  %v4155 = vpack.c.b16 %v4140, %v4139
  %v4156 = vpack.c.b16 %v4142, %v4141
  %v4157 = vpack.c.b16 %v4144, %v4143
  %v4158 = vpack.c.b16 %v4146, %v4145
  %v4159 = vpack.c.b16 %v4148, %v4147
  %v4160 = vpack.c.b16 %v4150, %v4149
  %v4161 = vpack.c.b16 %v4152, %v4151
  %v4162 = vpack.c.b16 %v4154, %v4153
  %v4165 = vunpack.c.l.b16 %v4137
  %v4166 = vunpack.c.l.b16 %v4138
  %v4167 = vpack.c.b16 %v4166, %v4165
  %v4170 = vsel %vm108, %v4155, 0
  %v4173 = vsel %vm108, %v4156, 0
  %v4176 = vsel %vm108, %v4157, 0
  %v4179 = vsel %vm108, %v4158, 0
  %v4182 = vsel %vm108, %v4159, 0
  %v4185 = vsel %vm108, %v4160, 0
  %v4188 = vsel %vm108, %v4161, 0
  %v4191 = vsel %vm108, %v4162, 0
  %4193 = vmatpush.bf16.msra.mxu0 0
  %4194 = vmatpush.bf16.msra.mxu0 0
  %4195 = vmatpush.bf16.msra.mxu0 0
  %4196 = vmatpush.bf16.msra.mxu0 0
  %4197 = vmatpush.bf16.msra.mxu0 0
  %4198 = vmatpush.bf16.msra.mxu0 0
  %4199 = vmatpush.bf16.msra.mxu0 0
  %4200 = vmatpush.bf16.msra.mxu0 %v4167
  %4201 = vmatmul.bf16.gmra.mxu0 %v4170
  %v4202 = vpop.f32.mrf.mxu0
  %v4203 = vadd.f32 0.0, %v4202
  %v4204 = vpop.f32.mrf.mxu0
  %v4205 = vadd.f32 0.0, %v4204
  %4206 = vmatmul.bf16.gmra.mxu0 %v4173
  %v4207 = vpop.f32.mrf.mxu0
  %v4208 = vadd.f32 0.0, %v4207
  %v4209 = vpop.f32.mrf.mxu0
  %v4210 = vadd.f32 0.0, %v4209
  %4211 = vmatmul.bf16.gmra.mxu0 %v4176
  %v4212 = vpop.f32.mrf.mxu0
  %v4213 = vadd.f32 0.0, %v4212
  %v4214 = vpop.f32.mrf.mxu0
  %v4215 = vadd.f32 0.0, %v4214
  %4216 = vmatmul.bf16.gmra.mxu0 %v4179
  %v4217 = vpop.f32.mrf.mxu0
  %v4218 = vadd.f32 0.0, %v4217
  %v4219 = vpop.f32.mrf.mxu0
  %v4220 = vadd.f32 0.0, %v4219
  %4221 = vmatmul.bf16.gmra.mxu0 %v4182
  %v4222 = vpop.f32.mrf.mxu0
  %v4223 = vadd.f32 0.0, %v4222
  %v4224 = vpop.f32.mrf.mxu0
  %v4225 = vadd.f32 0.0, %v4224
  %4226 = vmatmul.bf16.gmra.mxu0 %v4185
  %v4227 = vpop.f32.mrf.mxu0
  %v4228 = vadd.f32 0.0, %v4227
  %v4229 = vpop.f32.mrf.mxu0
  %v4230 = vadd.f32 0.0, %v4229
  %4231 = vmatmul.bf16.gmra.mxu0 %v4188
  %v4232 = vpop.f32.mrf.mxu0
  %v4233 = vadd.f32 0.0, %v4232
  %v4234 = vpop.f32.mrf.mxu0
  %v4235 = vadd.f32 0.0, %v4234
  %4236 = vmatmul.bf16.gmra.mxu0 %v4191
  %v4237 = vpop.f32.mrf.mxu0
  %v4238 = vadd.f32 0.0, %v4237
  %v4239 = vpop.f32.mrf.mxu0
  %v4240 = vadd.f32 0.0, %v4239
  %4241 = vdwg.mxu0
  %v4242 = vadd.f32 %v3864, %v4203
  %v4243 = vadd.f32 %v3865, %v4205
  %v4244 = vadd.f32 %v3866, %v4208
  %v4245 = vadd.f32 %v3867, %v4210
  %v4246 = vadd.f32 %v3868, %v4213
  %v4247 = vadd.f32 %v3869, %v4215
  %v4248 = vadd.f32 %v3870, %v4218
  %v4249 = vadd.f32 %v3871, %v4220
  %v4250 = vadd.f32 %v3872, %v4223
  %v4251 = vadd.f32 %v3873, %v4225
  %v4252 = vadd.f32 %v3874, %v4228
  %v4253 = vadd.f32 %v3875, %v4230
  %v4254 = vadd.f32 %v3876, %v4233
  %v4255 = vadd.f32 %v3877, %v4235
  %v4256 = vadd.f32 %v3878, %v4238
  %v4257 = vadd.f32 %v3879, %v4240
  %s4258 = smul.u32 0, 128
  %s4259 = scalar_lea.vmem [#allocation2], %s4258
  %4260 = vst [vmem:[%s4259] sm:$0xff] %v4242
  %4261 = vst [vmem:[%s4259 + $0x8] sm:$0xff] %v4243
  %4262 = vst [vmem:[%s4259 + $0x10] sm:$0xff] %v4244
  %4263 = vst [vmem:[%s4259 + $0x18] sm:$0xff] %v4245
  %4264 = vst [vmem:[%s4259 + $0x20] sm:$0xff] %v4246
  %4265 = vst [vmem:[%s4259 + $0x28] sm:$0xff] %v4247
  %4266 = vst [vmem:[%s4259 + $0x30] sm:$0xff] %v4248
  %4267 = vst [vmem:[%s4259 + $0x38] sm:$0xff] %v4249
  %4268 = vst [vmem:[%s4259 + $0x40] sm:$0xff] %v4250
  %4269 = vst [vmem:[%s4259 + $0x48] sm:$0xff] %v4251
  %4270 = vst [vmem:[%s4259 + $0x50] sm:$0xff] %v4252
  %4271 = vst [vmem:[%s4259 + $0x58] sm:$0xff] %v4253
  %4272 = vst [vmem:[%s4259 + $0x60] sm:$0xff] %v4254
  %4273 = vst [vmem:[%s4259 + $0x68] sm:$0xff] %v4255
  %4274 = vst [vmem:[%s4259 + $0x70] sm:$0xff] %v4256
  %4275 = vst [vmem:[%s4259 + $0x78] sm:$0xff] %v4257
  %v4276 = vld [vmem:[#allocation3] sm:$0xff]
  %v4277 = vadd.f32 %v4242, %v4243
  %v4278 = vadd.f32 %v4277, %v4244
  %v4279 = vadd.f32 %v4278, %v4245
  %v4280 = vadd.f32 %v4279, %v4246
  %v4281 = vadd.f32 %v4280, %v4247
  %v4282 = vadd.f32 %v4281, %v4248
  %v4283 = vadd.f32 %v4282, %v4249
  %v4284 = vadd.f32 %v4283, %v4250
  %v4285 = vadd.f32 %v4284, %v4251
  %v4286 = vadd.f32 %v4285, %v4252
  %v4287 = vadd.f32 %v4286, %v4253
  %v4288 = vadd.f32 %v4287, %v4254
  %v4289 = vadd.f32 %v4288, %v4255
  %v4290 = vadd.f32 %v4289, %v4256
  %v4291 = vadd.f32 %v4290, %v4257
  %v4292 = vadd.f32 %v4276, %v4291
  %4293 = vst [vmem:[#allocation3] sm:$0xff] %v4292
  %v4294 = vld [vmem:[#allocation4] sm:$0xff]
  %v4295 = vmul.f32 %v4242, %v4242
  %v4296 = vmul.f32 %v4243, %v4243
  %v4297 = vmul.f32 %v4244, %v4244
  %v4298 = vmul.f32 %v4245, %v4245
  %v4299 = vmul.f32 %v4246, %v4246
  %v4300 = vmul.f32 %v4247, %v4247
  %v4301 = vmul.f32 %v4248, %v4248
  %v4302 = vmul.f32 %v4249, %v4249
  %v4303 = vmul.f32 %v4250, %v4250
  %v4304 = vmul.f32 %v4251, %v4251
  %v4305 = vmul.f32 %v4252, %v4252
  %v4306 = vmul.f32 %v4253, %v4253
  %v4307 = vmul.f32 %v4254, %v4254
  %v4308 = vmul.f32 %v4255, %v4255
  %v4309 = vmul.f32 %v4256, %v4256
  %v4310 = vmul.f32 %v4257, %v4257
  %v4311 = vadd.f32 %v4295, %v4296
  %v4312 = vadd.f32 %v4311, %v4297
  %v4313 = vadd.f32 %v4312, %v4298
  %v4314 = vadd.f32 %v4313, %v4299
  %v4315 = vadd.f32 %v4314, %v4300
  %v4316 = vadd.f32 %v4315, %v4301
  %v4317 = vadd.f32 %v4316, %v4302
  %v4318 = vadd.f32 %v4317, %v4303
  %v4319 = vadd.f32 %v4318, %v4304
  %v4320 = vadd.f32 %v4319, %v4305
  %v4321 = vadd.f32 %v4320, %v4306
  %v4322 = vadd.f32 %v4321, %v4307
  %v4323 = vadd.f32 %v4322, %v4308
  %v4324 = vadd.f32 %v4323, %v4309
  %v4325 = vadd.f32 %v4324, %v4310
  %v4326 = vadd.f32 %v4294, %v4325
  %4327 = vst [vmem:[#allocation4] sm:$0xff] %v4326
  // Predicated region
  $region22: #{dc_discriminator.5} parent=0 // pred_check
    %p4328 = pneg %p18
  $region23: #{dc_discriminator.5} parent=0 // pred_check_branch
    %4330 = sbr.rel (%p4328) target = $region25
  $region24: #{dc_discriminator.5} parent=0 // pred_region
    %v4331 = vld [vmem:[#allocation3] sm:$0xff]
    %v4332 = vrot.slane %v4331, 4
    %v4333 = vadd.f32 %v4331, %v4332
    %v4334 = vrot.slane %v4333, 2
    %v4335 = vadd.f32 %v4333, %v4334
    %v4336 = vrot.slane %v4335, 1
    %v4337 = vadd.f32 %v4335, %v4336
    %v4338 = vld [vmem:[#allocation4] sm:$0xff]
    %v4339 = vrot.slane %v4338, 4
    %v4340 = vadd.f32 %v4338, %v4339
    %v4341 = vrot.slane %v4340, 2
    %v4342 = vadd.f32 %v4340, %v4341
    %v4343 = vrot.slane %v4342, 1
    %v4344 = vadd.f32 %v4342, %v4343
    %v4345 = vmul.f32 %v4337, 0.0078125
    %v4346 = vmul.f32 %v4344, 0.0078125
    %v4347 = vmul.f32 %v4345, %v4345
    %v4348 = vsub.f32 %v4346, %v4347
    %v4349 = vmax.f32 %v4348, 0.0
    %v4350 = vadd.f32 %v4349, 1e-05
    %v4351 = vrsqrt.pop %v4350
    %v4352 = vmul.f32 %v4351, %v4350
    %v4353 = vmul.f32 %v4352, %v4351
    %v4354 = vmul.f32 0.5, %v4353
    %v4355 = vsub.f32 1.5, %v4354
    %v4356 = vmul.f32 %v4351, %v4355
    %vm4357 = vweird.f32 %v4350
    %vm4358 = vweird.f32 %v4351
    %vm4359 = vmor %vm4357, %vm4358
    %v4360 = vsel %vm4359, %v4351, %v4356
    %v4361 = vld [vmem:[%s2] sm:$0x1]
    %v4362 = vmul.f32 %v4360, %v4361
    %v4363 = vld [vmem:[%s3] sm:$0x1]
    %v4364 = vmul.f32 %v4345, %v4362
    %v4365 = vsub.f32 %v4363, %v4364
    %v4366 = vld [vmem:[#allocation2] sm:$0xff]
    %v4367 = vld [vmem:[#allocation2 + $0x8] sm:$0xff]
    %v4368 = vld [vmem:[#allocation2 + $0x10] sm:$0xff]
    %v4369 = vld [vmem:[#allocation2 + $0x18] sm:$0xff]
    %v4370 = vld [vmem:[#allocation2 + $0x20] sm:$0xff]
    %v4371 = vld [vmem:[#allocation2 + $0x28] sm:$0xff]
    %v4372 = vld [vmem:[#allocation2 + $0x30] sm:$0xff]
    %v4373 = vld [vmem:[#allocation2 + $0x38] sm:$0xff]
    %v4374 = vld [vmem:[#allocation2 + $0x40] sm:$0xff]
    %v4375 = vld [vmem:[#allocation2 + $0x48] sm:$0xff]
    %v4376 = vld [vmem:[#allocation2 + $0x50] sm:$0xff]
    %v4377 = vld [vmem:[#allocation2 + $0x58] sm:$0xff]
    %v4378 = vld [vmem:[#allocation2 + $0x60] sm:$0xff]
    %v4379 = vld [vmem:[#allocation2 + $0x68] sm:$0xff]
    %v4380 = vld [vmem:[#allocation2 + $0x70] sm:$0xff]
    %v4381 = vld [vmem:[#allocation2 + $0x78] sm:$0xff]
    %v4382 = vperm.slane %v4362, 0
    %v4383 = vmul.f32 %v4366, %v4382
    %v4384 = vmul.f32 %v4367, %v4382
    %v4385 = vmul.f32 %v4368, %v4382
    %v4386 = vmul.f32 %v4369, %v4382
    %v4387 = vmul.f32 %v4370, %v4382
    %v4388 = vmul.f32 %v4371, %v4382
    %v4389 = vmul.f32 %v4372, %v4382
    %v4390 = vmul.f32 %v4373, %v4382
    %v4391 = vmul.f32 %v4374, %v4382
    %v4392 = vmul.f32 %v4375, %v4382
    %v4393 = vmul.f32 %v4376, %v4382
    %v4394 = vmul.f32 %v4377, %v4382
    %v4395 = vmul.f32 %v4378, %v4382
    %v4396 = vmul.f32 %v4379, %v4382
    %v4397 = vmul.f32 %v4380, %v4382
    %v4398 = vmul.f32 %v4381, %v4382
    %v4400 = vperm.slane %v4365, 0
    %v4402 = vadd.f32 %v4383, %v4400
    %v4403 = vadd.f32 %v4384, %v4400
    %v4404 = vadd.f32 %v4385, %v4400
    %v4405 = vadd.f32 %v4386, %v4400
    %v4406 = vadd.f32 %v4387, %v4400
    %v4407 = vadd.f32 %v4388, %v4400
    %v4408 = vadd.f32 %v4389, %v4400
    %v4409 = vadd.f32 %v4390, %v4400
    %v4410 = vadd.f32 %v4391, %v4400
    %v4411 = vadd.f32 %v4392, %v4400
    %v4412 = vadd.f32 %v4393, %v4400
    %v4413 = vadd.f32 %v4394, %v4400
    %v4414 = vadd.f32 %v4395, %v4400
    %v4415 = vadd.f32 %v4396, %v4400
    %v4416 = vadd.f32 %v4397, %v4400
    %v4417 = vadd.f32 %v4398, %v4400
    %vm4418 = vcmp.gt.f32.partialorder %v4402, 0.0
    %vm4419 = vcmp.gt.f32.partialorder %v4403, 0.0
    %vm4420 = vcmp.gt.f32.partialorder %v4404, 0.0
    %vm4421 = vcmp.gt.f32.partialorder %v4405, 0.0
    %vm4422 = vcmp.gt.f32.partialorder %v4406, 0.0
    %vm4423 = vcmp.gt.f32.partialorder %v4407, 0.0
    %vm4424 = vcmp.gt.f32.partialorder %v4408, 0.0
    %vm4425 = vcmp.gt.f32.partialorder %v4409, 0.0
    %vm4426 = vcmp.gt.f32.partialorder %v4410, 0.0
    %vm4427 = vcmp.gt.f32.partialorder %v4411, 0.0
    %vm4428 = vcmp.gt.f32.partialorder %v4412, 0.0
    %vm4429 = vcmp.gt.f32.partialorder %v4413, 0.0
    %vm4430 = vcmp.gt.f32.partialorder %v4414, 0.0
    %vm4431 = vcmp.gt.f32.partialorder %v4415, 0.0
    %vm4432 = vcmp.gt.f32.partialorder %v4416, 0.0
    %vm4433 = vcmp.gt.f32.partialorder %v4417, 0.0
    %v4434 = vmul.f32 %v4402, 0.2
    %v4435 = vmul.f32 %v4403, 0.2
    %v4436 = vmul.f32 %v4404, 0.2
    %v4437 = vmul.f32 %v4405, 0.2
    %v4438 = vmul.f32 %v4406, 0.2
    %v4439 = vmul.f32 %v4407, 0.2
    %v4440 = vmul.f32 %v4408, 0.2
    %v4441 = vmul.f32 %v4409, 0.2
    %v4442 = vmul.f32 %v4410, 0.2
    %v4443 = vmul.f32 %v4411, 0.2
    %v4444 = vmul.f32 %v4412, 0.2
    %v4445 = vmul.f32 %v4413, 0.2
    %v4446 = vmul.f32 %v4414, 0.2
    %v4447 = vmul.f32 %v4415, 0.2
    %v4448 = vmul.f32 %v4416, 0.2
    %v4449 = vmul.f32 %v4417, 0.2
    %v4450 = vsel %vm4418, %v4402, %v4434
    %v4451 = vsel %vm4419, %v4403, %v4435
    %v4452 = vsel %vm4420, %v4404, %v4436
    %v4453 = vsel %vm4421, %v4405, %v4437
    %v4454 = vsel %vm4422, %v4406, %v4438
    %v4455 = vsel %vm4423, %v4407, %v4439
    %v4456 = vsel %vm4424, %v4408, %v4440
    %v4457 = vsel %vm4425, %v4409, %v4441
    %v4458 = vsel %vm4426, %v4410, %v4442
    %v4459 = vsel %vm4427, %v4411, %v4443
    %v4460 = vsel %vm4428, %v4412, %v4444
    %v4461 = vsel %vm4429, %v4413, %v4445
    %v4462 = vsel %vm4430, %v4414, %v4446
    %v4463 = vsel %vm4431, %v4415, %v4447
    %v4464 = vsel %vm4432, %v4416, %v4448
    %v4465 = vsel %vm4433, %v4417, %v4449
    %v4466 = vpack.c.bf16 %v4450, %v4450
    %v4467 = vpack.c.bf16 %v4451, %v4451
    %v4468 = vpack.c.bf16 %v4452, %v4452
    %v4469 = vpack.c.bf16 %v4453, %v4453
    %v4470 = vpack.c.bf16 %v4454, %v4454
    %v4471 = vpack.c.bf16 %v4455, %v4455
    %v4472 = vpack.c.bf16 %v4456, %v4456
    %v4473 = vpack.c.bf16 %v4457, %v4457
    %v4474 = vpack.c.bf16 %v4458, %v4458
    %v4475 = vpack.c.bf16 %v4459, %v4459
    %v4476 = vpack.c.bf16 %v4460, %v4460
    %v4477 = vpack.c.bf16 %v4461, %v4461
    %v4478 = vpack.c.bf16 %v4462, %v4462
    %v4479 = vpack.c.bf16 %v4463, %v4463
    %v4480 = vpack.c.bf16 %v4464, %v4464
    %v4481 = vpack.c.bf16 %v4465, %v4465
    %4482 = vst [vmem:[%s4] sm:$0xf] %v4466
    %4483 = vst [vmem:[%s4 + $0x4] sm:$0xf] %v4467
    %4484 = vst [vmem:[%s4 + $0x8] sm:$0xf] %v4468
    %4485 = vst [vmem:[%s4 + $0xc] sm:$0xf] %v4469
    %4486 = vst [vmem:[%s4 + $0x10] sm:$0xf] %v4470
    %4487 = vst [vmem:[%s4 + $0x14] sm:$0xf] %v4471
    %4488 = vst [vmem:[%s4 + $0x18] sm:$0xf] %v4472
    %4489 = vst [vmem:[%s4 + $0x1c] sm:$0xf] %v4473
    %4490 = vst [vmem:[%s4 + $0x20] sm:$0xf] %v4474
    %4491 = vst [vmem:[%s4 + $0x24] sm:$0xf] %v4475
    %4492 = vst [vmem:[%s4 + $0x28] sm:$0xf] %v4476
    %4493 = vst [vmem:[%s4 + $0x2c] sm:$0xf] %v4477
    %4494 = vst [vmem:[%s4 + $0x30] sm:$0xf] %v4478
    %4495 = vst [vmem:[%s4 + $0x34] sm:$0xf] %v4479
    %4496 = vst [vmem:[%s4 + $0x38] sm:$0xf] %v4480
    %4497 = vst [vmem:[%s4 + $0x3c] sm:$0xf] %v4481
  $region25: #{dc_discriminator.5} parent=0 // pred_fallthru
    _
  // Predicated region
  $region26: #{dc_discriminator.5} parent=0 // pred_check
    _
  $region27: #{dc_discriminator.5} parent=0 // pred_check_branch
    %4499 = sbr.rel (0) target = $region29
  $region28: #{dc_discriminator.5} parent=0 // pred_region
    _
  $region29: #{dc_discriminator.5} parent=0 // pred_fallthru
    _
  // Predicated region
  $region30: #{dc_discriminator.5} parent=0 // pred_check
    _
  $region31: #{dc_discriminator.5} parent=0 // pred_check_branch
    %4501 = sbr.rel (0) target = $region33
  $region32: #{dc_discriminator.5} parent=0 // pred_region
    _
  $region33: #{dc_discriminator.5} parent=0 // pred_fallthru
    _

</llo_original>
